<compile_context>
chip_gen: v7x
topology: tpu7x:2x2x1
jax: 0.10.0
libtpu: 0.0.40
codegen_flags: <defaults>
</compile_context>

<pallas_src>
import functools
import math

import jax
import jax.numpy as jnp
from jax.experimental import pallas as pl
from jax.experimental.pallas import tpu as pltpu

_VMEM_LIMIT = 32 * 1024 * 1024   # explicit & safe on v5e/v6e/v7x; raise for big-model tiles.
_MASK_VAL = -1e30                # hard mask sentinel (f32 score path only)
_BIAS_VAL = -1e9                 # additive key-pad bias


def _round_up(x, m):
    return (x + m - 1) // m * m


def _pick_tile(dim, cap, quantum):
    """Largest tile <= cap dividing dim (dims are pre-padded to multiples of `quantum`)."""
    if dim <= cap:
        return dim
    t = (cap // quantum) * quantum
    while dim % t:
        t -= quantum
    return t


# ----------------------------- in-kernel math helpers --------------------------------

_SQRT_HALF = 0.7071067811865476


def _erf_f32(x):
    # Abramowitz & Stegun 7.1.26 rational approximation, |err| < 1.5e-7.
    a1, a2, a3, a4, a5 = 0.254829592, -0.284496736, 1.421413741, -1.453152027, 1.061405429
    p = 0.3275911
    sgn = jnp.where(x < 0.0, -1.0, 1.0)
    ax = jnp.abs(x)
    t = pl.reciprocal(1.0 + p * ax, approx=True)          # EUP slot, off the VALU path
    poly = ((((a5 * t + a4) * t + a3) * t + a2) * t + a1) * t
    return sgn * (1.0 - poly * jnp.exp(-ax * ax))


def _gelu_exact(x):
    # erf-based GELU, matching PyTorch F.gelu default (to ~1e-7 abs).
    return 0.5 * x * (1.0 + _erf_f32(x * _SQRT_HALF))


# ----------------------------- tiled linear (+ fused bias / GELU) --------------------


def _linear_kernel(x_ref, w_ref, b_ref, o_ref, acc_ref, *, activation):
    @pl.when(pl.program_id(2) == 0)
    def _():
        acc_ref[...] = jnp.zeros_like(acc_ref)

    acc_ref[...] += jnp.dot(x_ref[...].astype(jnp.bfloat16), w_ref[...],
                            preferred_element_type=jnp.float32)

    @pl.when(pl.program_id(2) == pl.num_programs(2) - 1)
    def _():
        y = acc_ref[...] + b_ref[...]
        if activation == "gelu":
            y = _gelu_exact(y)
        o_ref[...] = y.astype(o_ref.dtype)


def linear(x, w, b, *, activation=None, out_dtype=jnp.float32):
    """y = act(x @ w + b).  x/w/b already padded (rows mult-8, features mult-128),
    w pre-cast bf16; x is cast to bf16 in-kernel (no XLA cast pass)."""
    m, k = x.shape
    _, n = w.shape
    tm = _pick_tile(m, 512, 8)
    tn = _pick_tile(n, 512, 128)
    tk = _pick_tile(k, 1024, 128)
    return pl.pallas_call(
        functools.partial(_linear_kernel, activation=activation),
        out_shape=jax.ShapeDtypeStruct((m, n), out_dtype),
        grid=(m // tm, n // tn, k // tk),
        in_specs=[
            pl.BlockSpec((tm, tk), lambda i, j, kk: (i, kk)),
            pl.BlockSpec((tk, tn), lambda i, j, kk: (kk, j)),
            pl.BlockSpec((1, tn), lambda i, j, kk: (0, j)),
        ],
        out_specs=pl.BlockSpec((tm, tn), lambda i, j, kk: (i, j)),
        scratch_shapes=[pltpu.VMEM((tm, tn), jnp.float32)],
        compiler_params=pltpu.CompilerParams(
            dimension_semantics=("parallel", "parallel", "arbitrary"),
            vmem_limit_bytes=_VMEM_LIMIT),
    )(x, w, b)


# ----------------------------- linear + fused residual-add + LayerNorm ---------------


def _linear_ln_kernel(x_ref, w_ref, b_ref, r_ref, g_ref, be_ref, o_ref, acc_ref,
                      *, n_real, eps):
    @pl.when(pl.program_id(1) == 0)
    def _():
        acc_ref[...] = jnp.zeros_like(acc_ref)

    acc_ref[...] += jnp.dot(x_ref[...].astype(jnp.bfloat16), w_ref[...],
                            preferred_element_type=jnp.float32)

    @pl.when(pl.program_id(1) == pl.num_programs(1) - 1)
    def _():
        # Padded feature columns of acc/bias/residual are all exactly zero, so the
        # masked-sum stats below are exact for the n_real real features.
        y = acc_ref[...] + b_ref[...] + r_ref[...].astype(jnp.float32)
        inv_n = 1.0 / n_real
        mean = jnp.sum(y, axis=-1, keepdims=True) * inv_n
        msq = jnp.sum(y * y, axis=-1, keepdims=True) * inv_n
        var = msq - mean * mean
        o_ref[...] = ((y - mean) * jax.lax.rsqrt(var + eps) * g_ref[...]
                      + be_ref[...]).astype(o_ref.dtype)


def linear_add_layernorm(x, w, b, res, gamma, beta, *, n_real, eps=1e-5):
    """LayerNorm(x @ w + b + res) fused into the matmul epilogue.
    Requires the padded output width to fit a single N tile (true for hidden_dim here)."""
    m, k = x.shape
    _, n = w.shape
    tm = _pick_tile(m, 512, 8)
    tk = _pick_tile(k, 1024, 128)
    return pl.pallas_call(
        functools.partial(_linear_ln_kernel, n_real=n_real, eps=eps),
        out_shape=jax.ShapeDtypeStruct((m, n), jnp.float32),
        grid=(m // tm, k // tk),
        in_specs=[
            pl.BlockSpec((tm, tk), lambda i, kk: (i, kk)),
            pl.BlockSpec((tk, n), lambda i, kk: (kk, 0)),
            pl.BlockSpec((1, n), lambda i, kk: (0, 0)),
            pl.BlockSpec((tm, n), lambda i, kk: (i, 0)),
            pl.BlockSpec((1, n), lambda i, kk: (0, 0)),
            pl.BlockSpec((1, n), lambda i, kk: (0, 0)),
        ],
        out_specs=pl.BlockSpec((tm, n), lambda i, kk: (i, 0)),
        scratch_shapes=[pltpu.VMEM((tm, n), jnp.float32)],
        compiler_params=pltpu.CompilerParams(
            dimension_semantics=("parallel", "arbitrary"),
            vmem_limit_bytes=_VMEM_LIMIT),
    )(x, w, b, res, gamma, beta)


# ----------------------------- flash-style attention ---------------------------------


def _flash_attn_kernel(*refs, scale, causal, k_real, mask_pad, has_bias):
    if has_bias:
        q_ref, k_ref, v_ref, kb_ref, o_ref, m_ref, l_ref, acc_ref = refs
    else:
        q_ref, k_ref, v_ref, o_ref, m_ref, l_ref, acc_ref = refs
        kb_ref = None
    qi = pl.program_id(2)
    ki = pl.program_id(3)
    blk_q = q_ref.shape[1]
    blk_k = k_ref.shape[1]

    @pl.when(ki == 0)
    def _():
        m_ref[...] = jnp.full_like(m_ref, _MASK_VAL)
        l_ref[...] = jnp.zeros_like(l_ref)
        acc_ref[...] = jnp.zeros_like(acc_ref)

    def body():
        q = q_ref[0]          # (blk_q, dh_pad) bf16 ; padded head lanes are zero
        k = k_ref[0]          # (blk_k, dh_pad) bf16
        v = v_ref[0]          # (blk_k, dh_pad) bf16
        s = jax.lax.dot_general(q, k, (((1,), (1,)), ((), ())),
                                preferred_element_type=jnp.float32) * scale
        if kb_ref is not None:
            s = s + kb_ref[0]                                      # (1, blk_k) key-pad bias
        if mask_pad or causal:
            k_pos = ki * blk_k + jax.lax.broadcasted_iota(jnp.int32, (blk_q, blk_k), 1)
            mask = None
            if mask_pad:
                mask = k_pos < k_real
            if causal:
                q_pos = qi * blk_q + jax.lax.broadcasted_iota(jnp.int32, (blk_q, blk_k), 0)
                cm = k_pos <= q_pos
                mask = cm if mask is None else jnp.logical_and(mask, cm)
            s = jnp.where(mask, s, _MASK_VAL)

        m_prev = m_ref[...]
        m_new = jnp.maximum(m_prev, jnp.max(s, axis=-1, keepdims=True))
        alpha = jnp.exp(m_prev - m_new)
        p = jnp.exp(s - m_new)
        l_ref[...] = alpha * l_ref[...] + jnp.sum(p, axis=-1, keepdims=True)
        acc_ref[...] = alpha * acc_ref[...] + jax.lax.dot_general(
            p.astype(v.dtype), v, (((1,), (0,)), ((), ())),
            preferred_element_type=jnp.float32)
        m_ref[...] = m_new

    if causal:
        # Skip kv tiles that lie entirely above the diagonal.
        @pl.when(ki * blk_k <= (qi + 1) * blk_q - 1)
        def _():
            body()
    else:
        body()

    @pl.when(ki == pl.num_programs(3) - 1)
    def _():
        o_ref[0] = (acc_ref[...] * pl.reciprocal(l_ref[...], approx=True)).astype(o_ref.dtype)


def attention(q_src, kv_src, *, num_heads, dh_pad, q_base, k_base, v_base,
              k_real, causal, scale, kbias=None):
    """q_src: (B, Tq, *) and kv_src: (B, Tk, *) in head-padded feature layout; the
    *_base arguments give each stream's starting head-block (units of dh_pad) so the
    BlockSpec index_maps read Q/K/V straight from the projection outputs (no transposes).
    Output: (B, Tq, H*dh_pad) bf16, lane-dense 128-wide blocks."""
    B, Tq, _ = q_src.shape
    Tk = kv_src.shape[1]
    blk_q = min(128, Tq)
    blk_k = min(128, Tk)
    grid = (B, num_heads, Tq // blk_q, Tk // blk_k)

    q_map = lambda b, h, qi, ki, base=q_base: (b, qi, base + h)
    k_map = lambda b, h, qi, ki, base=k_base: (b, ki, base + h)
    v_map = lambda b, h, qi, ki, base=v_base: (b, ki, base + h)

    in_specs = [
        pl.BlockSpec((1, blk_q, dh_pad), q_map),
        pl.BlockSpec((1, blk_k, dh_pad), k_map),
        pl.BlockSpec((1, blk_k, dh_pad), v_map),
    ]
    args = [q_src, kv_src, kv_src]
    if kbias is not None:
        in_specs.append(pl.BlockSpec((1, 1, blk_k), lambda b, h, qi, ki: (b, 0, ki)))
        args.append(kbias)

    return pl.pallas_call(
        functools.partial(_flash_attn_kernel, scale=scale, causal=causal, k_real=k_real,
                          mask_pad=(k_real < Tk), has_bias=kbias is not None),
        out_shape=jax.ShapeDtypeStruct((B, Tq, num_heads * dh_pad), jnp.bfloat16),
        grid=grid,
        in_specs=in_specs,
        out_specs=pl.BlockSpec((1, blk_q, dh_pad), lambda b, h, qi, ki: (b, qi, h)),
        scratch_shapes=[
            pltpu.VMEM((blk_q, 1), jnp.float32),
            pltpu.VMEM((blk_q, 1), jnp.float32),
            pltpu.VMEM((blk_q, dh_pad), jnp.float32),
        ],
        compiler_params=pltpu.CompilerParams(
            dimension_semantics=("parallel", "parallel", "parallel", "arbitrary"),
            vmem_limit_bytes=_VMEM_LIMIT),
    )(*args)


# ----------------------------- model layers -------------------------------------------


def encoder_layer(x, p, *, H, dh_pad, d, k_real, scale):
    B, Tp, Dp = x.shape
    rows = B * Tp
    x2 = x.reshape(rows, Dp)

    a = p["attn"]
    qkv = linear(x2, a["wqkv"], a["bqkv"],
                 out_dtype=jnp.bfloat16).reshape(B, Tp, 3 * H * dh_pad)
    o = attention(qkv, qkv, num_heads=H, dh_pad=dh_pad, q_base=0, k_base=H, v_base=2 * H,
                  k_real=k_real, causal=False, scale=scale)
    x2 = linear_add_layernorm(o.reshape(rows, H * dh_pad), a["wo"], a["bo"], x2,
                              p["ln1_g"], p["ln1_b"], n_real=d)

    f = p["ff"]
    hdn = linear(x2, f["w1"], f["b1"], activation="gelu", out_dtype=jnp.bfloat16)
    x2 = linear_add_layernorm(hdn, f["w2"], f["b2"], x2, p["ln2_g"], p["ln2_b"], n_real=d)
    return x2.reshape(B, Tp, Dp)


def decoder_layer(y, mem, p, *, H, dh_pad, d, t_real, s_real, kb_self, scale):
    B, Tq, Dp = y.shape
    Ts = mem.shape[1]
    rows = B * Tq
    y2 = y.reshape(rows, Dp)

    sa = p["self_attn"]
    qkv = linear(y2, sa["wqkv"], sa["bqkv"],
                 out_dtype=jnp.bfloat16).reshape(B, Tq, 3 * H * dh_pad)
    o = attention(qkv, qkv, num_heads=H, dh_pad=dh_pad, q_base=0, k_base=H, v_base=2 * H,
                  k_real=t_real, causal=True, scale=scale, kbias=kb_self)
    y2 = linear_add_layernorm(o.reshape(rows, H * dh_pad), sa["wo"], sa["bo"], y2,
                              p["ln1_g"], p["ln1_b"], n_real=d)

    ca = p["cross_attn"]
    q = linear(y2, ca["wq"], ca["bq"], out_dtype=jnp.bfloat16).reshape(B, Tq, H * dh_pad)
    kv = linear(mem.reshape(B * Ts, Dp), ca["wkv"], ca["bkv"],
                out_dtype=jnp.bfloat16).reshape(B, Ts, 2 * H * dh_pad)
    o = attention(q, kv, num_heads=H, dh_pad=dh_pad, q_base=0, k_base=0, v_base=H,
                  k_real=s_real, causal=False, scale=scale)
    y2 = linear_add_layernorm(o.reshape(rows, H * dh_pad), ca["wo"], ca["bo"], y2,
                              p["ln2_g"], p["ln2_b"], n_real=d)

    f = p["ff"]
    hdn = linear(y2, f["w1"], f["b1"], activation="gelu", out_dtype=jnp.bfloat16)
    y2 = linear_add_layernorm(hdn, f["w2"], f["b2"], y2, p["ln3_g"], p["ln3_b"], n_real=d)
    return y2.reshape(B, Tq, Dp)


def vit_forward(params, x, trg, cfg):
    p1, p2 = cfg["patch_dim"]
    d = cfg["hidden_dim"]
    H = cfg["num_heads"]
    dh = d // H
    d_pad = _round_up(d, 128)
    dh_pad = _round_up(dh, 128)
    scale = 1.0 / math.sqrt(dh)

    b, c, hh, ww = x.shape
    h_, w_ = hh // p1, ww // p2
    n = h_ * w_
    in_dim = p1 * p2 * c
    in_pad = _round_up(in_dim, 128)

    # ---- one-time XLA glue: patch rearrange, embeddings, pos add, sequence padding ----
    # einops: 'b c (h p1) (w p2) -> b (h w) (p1 p2 c)'
    patches = (x.reshape(b, c, h_, p1, w_, p2)
                 .transpose(0, 2, 4, 3, 5, 1)
                 .reshape(b, n, in_dim))
    patches = jnp.pad(patches, ((0, 0), (0, 0), (0, in_pad - in_dim)))

    emb = linear(patches.reshape(b * n, in_pad), params["patch_w"],
                 params["patch_b"]).reshape(b, n, d_pad)
    cls = jnp.broadcast_to(params["cls_token"], (b, 1, d_pad))
    src = jnp.concatenate([cls, emb], axis=1) + params["pos_embedding"][:, : n + 1]
    s_real = n + 1
    s_pad = _round_up(s_real, 16)
    src = jnp.pad(src, ((0, 0), (0, s_pad - s_real), (0, 0)))

    t = trg.shape[1]
    temb = params["char_embedding"][trg] + params["pos_embedding"][:, :t]
    t_pad = _round_up(t, 16)
    temb = jnp.pad(temb, ((0, 0), (0, t_pad - t), (0, 0)))

    # Key-only additive bias for decoder self-attention (pad tokens); causal + key-validity
    # masks are built in-kernel from iota, so encoder/cross attention DMA no bias at all.
    kb_self = jnp.where(trg != cfg["trg_pad_index"], 0.0, _BIAS_VAL).astype(jnp.float32)
    kb_self = jnp.pad(kb_self, ((0, 0), (0, t_pad - t)),
                      constant_values=_BIAS_VAL).reshape(b, 1, t_pad)

    # dropout(rate=0.0) -> identity
    mem = src
    for lp in params["encoder_layers"]:
        mem = encoder_layer(mem, lp, H=H, dh_pad=dh_pad, d=d, k_real=s_real, scale=scale)
    out = temb
    for lp in params["decoder_layers"]:
        out = decoder_layer(out, mem, lp, H=H, dh_pad=dh_pad, d=d,
                            t_real=t, s_real=s_real, kb_self=kb_self, scale=scale)

    logits = linear(out.reshape(b * t_pad, d_pad), params["head_w"], params["head_b"])
    logits = logits.reshape(b, t_pad, -1)[:, :t, : cfg["vocab_size"]]
    return logits


# ----------------------------- parameter init (PyTorch layout) ------------------------


def _nrm(key, shape, std=0.02):
    return std * jax.random.normal(key, shape, jnp.float32)


def init_attn_params(key, d):
    k1, k2 = jax.random.split(key)
    return {
        "w_qkv": _nrm(k1, (d, 3 * d)), "b_qkv": jnp.zeros(3 * d, jnp.float32),
        "wo": _nrm(k2, (d, d)), "bo": jnp.zeros(d, jnp.float32),
    }


def init_ln(d):
    return {"g": jnp.ones(d, jnp.float32), "b": jnp.zeros(d, jnp.float32)}


def init_ffn(key, d, e):
    k1, k2 = jax.random.split(key)
    return {
        "w1": _nrm(k1, (d, e)), "b1": jnp.zeros(e, jnp.float32),
        "w2": _nrm(k2, (e, d)), "b2": jnp.zeros(d, jnp.float32),
    }


def init_params(key, cfg, in_channels=1):
    d = cfg["hidden_dim"]
    e = cfg["expansion_dim"]
    v = cfg["vocab_size"]
    p1, p2 = cfg["patch_dim"]
    in_dim = p1 * p2 * in_channels  # matches nn.Linear(p1 * p2, hidden_dim) for C=1

    n_keys = 5 + 2 * cfg["num_encoder_layers"] + 3 * cfg["num_decoder_layers"]
    ks = iter(jax.random.split(key, n_keys))
    nxt = lambda: next(ks)

    params = {
        "patch_w": _nrm(nxt(), (in_dim, d)),
        "patch_b": jnp.zeros(d, jnp.float32),
        "cls_token": jax.random.normal(nxt(), (1, 1, d), jnp.float32),
        "pos_embedding": jax.random.normal(nxt(), (1, cfg["max_len"], d), jnp.float32),
        "char_embedding": _nrm(nxt(), (v, d)),  # normal_(std=0.02) as in _init()
        "head_w": _nrm(nxt(), (d, v)),
        "head_b": jnp.zeros(v, jnp.float32),
        "encoder_layers": [],
        "decoder_layers": [],
    }
    for _ in range(cfg["num_encoder_layers"]):
        params["encoder_layers"].append({
            "attn": init_attn_params(nxt(), d),
            "ff": init_ffn(nxt(), d, e),
            "ln1": init_ln(d),
            "ln2": init_ln(d),
        })
    for _ in range(cfg["num_decoder_layers"]):
        params["decoder_layers"].append({
            "self_attn": init_attn_params(nxt(), d),
            "cross_attn": init_attn_params(nxt(), d),
            "ff": init_ffn(nxt(), d, e),
            "ln1": init_ln(d),
            "ln2": init_ln(d),
            "ln3": init_ln(d),
        })
    return params


# --------------------- one-time padding / bf16 cast / head-padded layout --------------


def prepare_params(raw, cfg, in_channels=1):
    """Done ONCE outside the jitted forward: pad all weights to lane/sublane-friendly
    shapes, cast them to bf16, and lay the QKV / out-projection weights out in a
    head-padded layout (one aligned 128-lane block per head)."""
    d = cfg["hidden_dim"]
    e = cfg["expansion_dim"]
    v = cfg["vocab_size"]
    H = cfg["num_heads"]
    dh = d // H
    p1, p2 = cfg["patch_dim"]
    in_dim = p1 * p2 * in_channels
    d_pad, e_pad = _round_up(d, 128), _round_up(e, 128)
    v_pad, in_pad = _round_up(v, 128), _round_up(in_dim, 128)
    dh_pad = _round_up(dh, 128)

    def dense(w, b, kp, np_):
        wp = jnp.zeros((kp, np_), jnp.float32).at[: w.shape[0], : w.shape[1]].set(w)
        bp = jnp.zeros((1, np_), jnp.float32).at[0, : b.shape[0]].set(b)
        return wp.astype(jnp.bfloat16), bp

    def headed(w, b):              # (d, H*dh) -> (d_pad, H*dh_pad), head-padded columns
        wp = jnp.zeros((d_pad, H * dh_pad), jnp.float32)
        bp = jnp.zeros((H * dh_pad,), jnp.float32)
        for h in range(H):
            wp = wp.at[:d, h * dh_pad: h * dh_pad + dh].set(w[:, h * dh:(h + 1) * dh])
            bp = bp.at[h * dh_pad: h * dh_pad + dh].set(b[h * dh:(h + 1) * dh])
        return wp.astype(jnp.bfloat16), bp.reshape(1, -1)

    def out_proj(w, b):            # (H*dh, d) -> (H*dh_pad, d_pad), head-padded rows
        wp = jnp.zeros((H * dh_pad, d_pad), jnp.float32)
        for h in range(H):
            wp = wp.at[h * dh_pad: h * dh_pad + dh, :d].set(w[h * dh:(h + 1) * dh, :])
        bp = jnp.zeros((1, d_pad), jnp.float32).at[0, :d].set(b)
        return wp.astype(jnp.bfloat16), bp

    def ln(p):
        g = jnp.zeros((1, d_pad), jnp.float32).at[0, :d].set(p["g"])
        b = jnp.zeros((1, d_pad), jnp.float32).at[0, :d].set(p["b"])
        return g, b

    def split_qkv(p):
        wq, wk, wv = p["w_qkv"][:, :d], p["w_qkv"][:, d:2 * d], p["w_qkv"][:, 2 * d:]
        bq, bk, bv = p["b_qkv"][:d], p["b_qkv"][d:2 * d], p["b_qkv"][2 * d:]
        return (headed(wq, bq), headed(wk, bk), headed(wv, bv))

    def attn_self(p):
        (wq, bq), (wk, bk), (wv, bv) = split_qkv(p)
        wo, bo = out_proj(p["wo"], p["bo"])
        return {"wqkv": jnp.concatenate([wq, wk, wv], axis=1),
                "bqkv": jnp.concatenate([bq, bk, bv], axis=1),
                "wo": wo, "bo": bo}

    def attn_cross(p):             # separate Wq and fused Wkv: no runtime slicing
        (wq, bq), (wk, bk), (wv, bv) = split_qkv(p)
        wo, bo = out_proj(p["wo"], p["bo"])
        return {"wq": wq, "bq": bq,
                "wkv": jnp.concatenate([wk, wv], axis=1),
                "bkv": jnp.concatenate([bk, bv], axis=1),
                "wo": wo, "bo": bo}

    def ffnp(p):
        w1, b1 = dense(p["w1"], p["b1"], d_pad, e_pad)
        w2, b2 = dense(p["w2"], p["b2"], e_pad, d_pad)
        return {"w1": w1, "b1": b1, "w2": w2, "b2": b2}

    patch_w, patch_b = dense(raw["patch_w"], raw["patch_b"], in_pad, d_pad)
    head_w, head_b = dense(raw["head_w"], raw["head_b"], d_pad, v_pad)

    pp = {
        "patch_w": patch_w, "patch_b": patch_b,
        "head_w": head_w, "head_b": head_b,
        "cls_token": jnp.pad(raw["cls_token"], ((0, 0), (0, 0), (0, d_pad - d))),
        "pos_embedding": jnp.pad(raw["pos_embedding"], ((0, 0), (0, 0), (0, d_pad - d))),
        "char_embedding": jnp.pad(raw["char_embedding"], ((0, 0), (0, d_pad - d))),
        "encoder_layers": [],
        "decoder_layers": [],
    }
    for lp in raw["encoder_layers"]:
        g1, b1 = ln(lp["ln1"])
        g2, b2 = ln(lp["ln2"])
        pp["encoder_layers"].append({
            "attn": attn_self(lp["attn"]), "ff": ffnp(lp["ff"]),
            "ln1_g": g1, "ln1_b": b1, "ln2_g": g2, "ln2_b": b2})
    for lp in raw["decoder_layers"]:
        g1, b1 = ln(lp["ln1"])
        g2, b2 = ln(lp["ln2"])
        g3, b3 = ln(lp["ln3"])
        pp["decoder_layers"].append({
            "self_attn": attn_self(lp["self_attn"]),
            "cross_attn": attn_cross(lp["cross_attn"]),
            "ff": ffnp(lp["ff"]),
            "ln1_g": g1, "ln1_b": b1, "ln2_g": g2, "ln2_b": b2, "ln3_g": g3, "ln3_b": b3})
    return pp


# ----------------------------- main ---------------------------------------------------


if __name__ == "__main__":
    cfg = dict(
        num_encoder_layers=2,
        num_decoder_layers=2,
        hidden_dim=32,
        vocab_size=20,
        num_heads=4,
        expansion_dim=64,
        patch_dim=(8, 8),
        image_size=(8, 32),
        dropout_rate=0.0,
        trg_pad_index=0,
        max_len=16,
    )
    key = jax.random.PRNGKey(0)
    pkey, xkey = jax.random.split(key)

    raw_params = init_params(pkey, cfg, in_channels=1)
    params = prepare_params(raw_params, cfg, in_channels=1)  # one-time pad/cast, outside jit

    # NCHW grayscale image (C=1 so patch features = p1*p2, matching patch_to_embedding)
    x = jax.random.normal(xkey, (2, 1, 8, 32), jnp.float32)
    trg = jnp.array([[3, 5, 7, 2, 0, 0], [4, 6, 1, 9, 8, 0]], jnp.int32)

    fwd = jax.jit(functools.partial(vit_forward, cfg=cfg))
    logits = jax.block_until_ready(fwd(params, x, trg))

    assert logits.shape == (2, 6, cfg["vocab_size"])
    assert bool(jnp.all(jnp.isfinite(logits)))
    print("KERNEL_OK")
</pallas_src>

<mosaic_0001>
module attributes {stable_mosaic.version = 11 : i64} {
  func.func @_linear_kernel(%arg0: i32, %arg1: i32, %arg2: i32, %arg3: memref<32x128xf32, #tpu.memory_space<vmem>>, %arg4: memref<128x512xbf16, #tpu.memory_space<vmem>>, %arg5: memref<1x512xf32, #tpu.memory_space<vmem>>, %arg6: memref<32x512xbf16, #tpu.memory_space<vmem>>, %arg7: memref<32x512xf32, #tpu.memory_space<vmem>>) attributes {dimension_semantics = [#tpu.dimension_semantics<parallel>, #tpu.dimension_semantics<parallel>, #tpu.dimension_semantics<arbitrary>], iteration_bounds = array<i64: 1, 3, 1>, scalar_prefetch = 0 : i64, scratch_operands = 1 : i64, tpu.core_type = #tpu.core_type<tc>, window_params = [{transform_indices = @transform_0, window_bounds = array<i64: 32, 128>}, {transform_indices = @transform_1, window_bounds = array<i64: 128, 512>}, {transform_indices = @transform_2, window_bounds = array<i64: 1, 512>}, {transform_indices = @transform_3, window_bounds = array<i64: 32, 512>}]} {
    %c0_i32 = arith.constant 0 : i32
    %0 = arith.cmpi eq, %arg2, %c0_i32 : i32
    %1 = arith.extui %0 : i1 to i32
    %c0_i32_0 = arith.constant 0 : i32
    %2 = arith.cmpi ne, %1, %c0_i32_0 : i32
    scf.if %2 {
      %cst_10 = arith.constant 0.000000e+00 : f32
      %13 = vector.broadcast %cst_10 : f32 to vector<32x512xf32>
      %c0_11 = arith.constant 0 : index
      %c0_12 = arith.constant 0 : index
      %14 = vector.load %arg7[%c0_11, %c0_12] : memref<32x512xf32, #tpu.memory_space<vmem>>, vector<32x512xf32>
      tpu.vector_store %arg7[%c0_11, %c0_12], %13 {strides = array<i32>} : memref<32x512xf32, #tpu.memory_space<vmem>>, vector<32x512xf32>,
    } else {
    }
    %c0 = arith.constant 0 : index
    %c0_1 = arith.constant 0 : index
    %3 = vector.load %arg7[%c0, %c0_1] : memref<32x512xf32, #tpu.memory_space<vmem>>, vector<32x512xf32>
    %c0_2 = arith.constant 0 : index
    %c0_3 = arith.constant 0 : index
    %4 = vector.load %arg3[%c0_2, %c0_3] : memref<32x128xf32, #tpu.memory_space<vmem>>, vector<32x128xf32>
    %5 = arith.truncf %4 : vector<32x128xf32> to vector<32x128xbf16>
    %c0_4 = arith.constant 0 : index
    %c0_5 = arith.constant 0 : index
    %6 = vector.load %arg4[%c0_4, %c0_5] : memref<128x512xbf16, #tpu.memory_space<vmem>>, vector<128x512xbf16>
    %cst = arith.constant dense<0.000000e+00> : vector<32x512xf32>
    %7 = tpu.matmul %5, %6, %cst {dimension_numbers = #tpu.dot_dimension_numbers<[1], [0], [0], [1], [0, 0, 1, 1], [], []>} : vector<32x128xbf16>, vector<128x512xbf16>, vector<32x512xf32> -> vector<32x512xf32>
    %8 = arith.addf %3, %7 : vector<32x512xf32>
    %c0_6 = arith.constant 0 : index
    %c0_7 = arith.constant 0 : index
    %9 = vector.load %arg7[%c0_6, %c0_7] : memref<32x512xf32, #tpu.memory_space<vmem>>, vector<32x512xf32>
    tpu.vector_store %arg7[%c0_6, %c0_7], %8 {strides = array<i32>} : memref<32x512xf32, #tpu.memory_space<vmem>>, vector<32x512xf32>,
    %c0_i32_8 = arith.constant 0 : i32
    %10 = arith.cmpi eq, %arg2, %c0_i32_8 : i32
    %11 = arith.extui %10 : i1 to i32
    %c0_i32_9 = arith.constant 0 : i32
    %12 = arith.cmpi ne, %11, %c0_i32_9 : i32
    scf.if %12 {
      %c0_10 = arith.constant 0 : index
      %c0_11 = arith.constant 0 : index
      %13 = vector.load %arg7[%c0_10, %c0_11] : memref<32x512xf32, #tpu.memory_space<vmem>>, vector<32x512xf32>
      %c0_12 = arith.constant 0 : index
      %c0_13 = arith.constant 0 : index
      %14 = vector.load %arg5[%c0_12, %c0_13] : memref<1x512xf32, #tpu.memory_space<vmem>>, vector<1x512xf32>
      %15 = vector.broadcast %14 : vector<1x512xf32> to vector<32x512xf32>
      %16 = arith.addf %13, %15 : vector<32x512xf32>
      %17 = arith.truncf %16 : vector<32x512xf32> to vector<32x512xbf16>
      %c0_14 = arith.constant 0 : index
      %c0_15 = arith.constant 0 : index
      %18 = vector.load %arg6[%c0_14, %c0_15] : memref<32x512xbf16, #tpu.memory_space<vmem>>, vector<32x512xbf16>
      tpu.vector_store %arg6[%c0_14, %c0_15], %17 {strides = array<i32>} : memref<32x512xbf16, #tpu.memory_space<vmem>>, vector<32x512xbf16>,
    } else {
    }
    return
  }
  func.func @transform_0(%arg0: i32, %arg1: i32, %arg2: i32) -> (i32, i32) {
    %c0_i32 = arith.constant 0 : i32
    return %arg0, %arg2 : i32, i32
  }
  func.func @transform_1(%arg0: i32, %arg1: i32, %arg2: i32) -> (i32, i32) {
    %c0_i32 = arith.constant 0 : i32
    return %arg2, %arg1 : i32, i32
  }
  func.func @transform_2(%arg0: i32, %arg1: i32, %arg2: i32) -> (i32, i32) {
    %c0_i32 = arith.constant 0 : i32
    %c0_i32_0 = arith.constant 0 : i32
    return %c0_i32, %arg1 : i32, i32
  }
  func.func @transform_3(%arg0: i32, %arg1: i32, %arg2: i32) -> (i32, i32) {
    %c0_i32 = arith.constant 0 : i32
    return %arg0, %arg1 : i32, i32
  }
}

module attributes {stable_mosaic.version = 11 : i64} {
  func.func @_flash_attn_kernel(%arg0: i32, %arg1: i32, %arg2: i32, %arg3: i32, %arg4: memref<1x16x128xbf16, #tpu.memory_space<vmem>>, %arg5: memref<1x16x128xbf16, #tpu.memory_space<vmem>>, %arg6: memref<1x16x128xbf16, #tpu.memory_space<vmem>>, %arg7: memref<1x1x16xf32, #tpu.memory_space<vmem>>, %arg8: memref<1x16x128xbf16, #tpu.memory_space<vmem>>, %arg9: memref<16x1xf32, #tpu.memory_space<vmem>>, %arg10: memref<16x1xf32, #tpu.memory_space<vmem>>, %arg11: memref<16x128xf32, #tpu.memory_space<vmem>>) attributes {dimension_semantics = [#tpu.dimension_semantics<parallel>, #tpu.dimension_semantics<parallel>, #tpu.dimension_semantics<parallel>, #tpu.dimension_semantics<arbitrary>], iteration_bounds = array<i64: 2, 4, 1, 1>, scalar_prefetch = 0 : i64, scratch_operands = 3 : i64, tpu.core_type = #tpu.core_type<tc>, window_params = [{transform_indices = @transform_0, window_bounds = array<i64: 1, 16, 128>}, {transform_indices = @transform_1, window_bounds = array<i64: 1, 16, 128>}, {transform_indices = @transform_2, window_bounds = array<i64: 1, 16, 128>}, {transform_indices = @transform_3, window_bounds = array<i64: 1, 1, 16>}, {transform_indices = @transform_4, window_bounds = array<i64: 1, 16, 128>}]} {
    %c0_i32 = arith.constant 0 : i32
    %0 = arith.cmpi eq, %arg3, %c0_i32 : i32
    %1 = arith.extui %0 : i1 to i32
    %c0_i32_0 = arith.constant 0 : i32
    %2 = arith.cmpi ne, %1, %c0_i32_0 : i32
    scf.if %2 {
      %cst = arith.constant -1.000000e+30 : f32
      %13 = vector.broadcast %cst : f32 to vector<16x1xf32>
      %c0 = arith.constant 0 : index
      %c0_6 = arith.constant 0 : index
      %14 = vector.load %arg9[%c0, %c0_6] : memref<16x1xf32, #tpu.memory_space<vmem>>, vector<16x1xf32>
      tpu.vector_store %arg9[%c0, %c0_6], %13 {strides = array<i32>} : memref<16x1xf32, #tpu.memory_space<vmem>>, vector<16x1xf32>,
      %cst_7 = arith.constant 0.000000e+00 : f32
      %15 = vector.broadcast %cst_7 : f32 to vector<16x1xf32>
      %c0_8 = arith.constant 0 : index
      %c0_9 = arith.constant 0 : index
      %16 = vector.load %arg10[%c0_8, %c0_9] : memref<16x1xf32, #tpu.memory_space<vmem>>, vector<16x1xf32>
      tpu.vector_store %arg10[%c0_8, %c0_9], %15 {strides = array<i32>} : memref<16x1xf32, #tpu.memory_space<vmem>>, vector<16x1xf32>,
      %cst_10 = arith.constant 0.000000e+00 : f32
      %17 = vector.broadcast %cst_10 : f32 to vector<16x128xf32>
      %c0_11 = arith.constant 0 : index
      %c0_12 = arith.constant 0 : index
      %18 = vector.load %arg11[%c0_11, %c0_12] : memref<16x128xf32, #tpu.memory_space<vmem>>, vector<16x128xf32>
      tpu.vector_store %arg11[%c0_11, %c0_12], %17 {strides = array<i32>} : memref<16x128xf32, #tpu.memory_space<vmem>>, vector<16x128xf32>,
    } else {
    }
    %c16_i32 = arith.constant 16 : i32
    %3 = arith.muli %arg3, %c16_i32 : i32
    %c1_i32 = arith.constant 1 : i32
    %4 = arith.addi %arg2, %c1_i32 : i32
    %c16_i32_1 = arith.constant 16 : i32
    %5 = arith.muli %4, %c16_i32_1 : i32
    %c1_i32_2 = arith.constant 1 : i32
    %6 = arith.subi %5, %c1_i32_2 : i32
    %7 = arith.cmpi sle, %3, %6 : i32
    %8 = arith.extui %7 : i1 to i32
    %c0_i32_3 = arith.constant 0 : i32
    %9 = arith.cmpi ne, %8, %c0_i32_3 : i32
    scf.if %9 {
      %c0 = arith.constant 0 : index
      %c0_6 = arith.constant 0 : index
      %c0_7 = arith.constant 0 : index
      %13 = vector.load %arg4[%c0, %c0_6, %c0_7] : memref<1x16x128xbf16, #tpu.memory_space<vmem>>, vector<1x16x128xbf16>
      %14 = vector.shape_cast %13 : vector<1x16x128xbf16> to vector<16x128xbf16>
      %c0_8 = arith.constant 0 : index
      %c0_9 = arith.constant 0 : index
      %c0_10 = arith.constant 0 : index
      %15 = vector.load %arg5[%c0_8, %c0_9, %c0_10] : memref<1x16x128xbf16, #tpu.memory_space<vmem>>, vector<1x16x128xbf16>
      %16 = vector.shape_cast %15 : vector<1x16x128xbf16> to vector<16x128xbf16>
      %c0_11 = arith.constant 0 : index
      %c0_12 = arith.constant 0 : index
      %c0_13 = arith.constant 0 : index
      %17 = vector.load %arg6[%c0_11, %c0_12, %c0_13] : memref<1x16x128xbf16, #tpu.memory_space<vmem>>, vector<1x16x128xbf16>
      %18 = vector.shape_cast %17 : vector<1x16x128xbf16> to vector<16x128xbf16>
      %cst = arith.constant dense<0.000000e+00> : vector<16x16xf32>
      %19 = tpu.matmul %14, %16, %cst {dimension_numbers = #tpu.dot_dimension_numbers<[1], [1], [0], [0], [0, 0, 1, 0], [], []>} : vector<16x128xbf16>, vector<16x128xbf16>, vector<16x16xf32> -> vector<16x16xf32>
      %cst_14 = arith.constant 0.353553385 : f32
      %20 = vector.broadcast %cst_14 : f32 to vector<16x16xf32>
      %21 = arith.mulf %19, %20 : vector<16x16xf32>
      %c0_15 = arith.constant 0 : index
      %c0_16 = arith.constant 0 : index
      %c0_17 = arith.constant 0 : index
      %22 = vector.load %arg7[%c0_15, %c0_16, %c0_17] : memref<1x1x16xf32, #tpu.memory_space<vmem>>, vector<1x1x16xf32>
      %23 = vector.shape_cast %22 : vector<1x1x16xf32> to vector<1x16xf32>
      %24 = vector.broadcast %23 : vector<1x16xf32> to vector<16x16xf32>
      %25 = arith.addf %21, %24 : vector<16x16xf32>
      %c16_i32_18 = arith.constant 16 : i32
      %26 = arith.muli %arg3, %c16_i32_18 : i32
      %27 = tpu.iota {dimensions = array<i32: 1>} : vector<16x16xi32>
      %28 = vector.broadcast %26 : i32 to vector<16x16xi32>
      %29 = arith.addi %28, %27 : vector<16x16xi32>
      %c6_i32 = arith.constant 6 : i32
      %30 = vector.broadcast %c6_i32 : i32 to vector<16x16xi32>
      %31 = arith.cmpi slt, %29, %30 : vector<16x16xi32>
      %c16_i32_19 = arith.constant 16 : i32
      %32 = arith.muli %arg2, %c16_i32_19 : i32
      %33 = tpu.iota {dimensions = array<i32: 0>} : vector<16x16xi32>
      %34 = vector.broadcast %32 : i32 to vector<16x16xi32>
      %35 = arith.addi %34, %33 : vector<16x16xi32>
      %36 = arith.cmpi sle, %29, %35 : vector<16x16xi32>
      %37 = arith.andi %31, %36 : vector<16x16xi1>
      %cst_20 = arith.constant -1.000000e+30 : f32
      %38 = vector.broadcast %cst_20 : f32 to vector<16x16xf32>
      %39 = arith.select %37, %25, %38 : vector<16x16xi1>, vector<16x16xf32>
      %c0_21 = arith.constant 0 : index
      %c0_22 = arith.constant 0 : index
      %40 = vector.load %arg9[%c0_21, %c0_22] : memref<16x1xf32, #tpu.memory_space<vmem>>, vector<16x1xf32>
      %cst_23 = arith.constant dense<0xFF800000> : vector<16xf32>
      %41 = vector.multi_reduction <maximumf>, %39, %cst_23 [1] : vector<16x16xf32> to vector<16xf32>
      %42 = vector.shape_cast %41 : vector<16xf32> to vector<16x1xf32>
      %43 = arith.maximumf %40, %42 : vector<16x1xf32>
      %44 = arith.subf %40, %43 : vector<16x1xf32>
      %45 = math.exp %44 : vector<16x1xf32>
      %46 = vector.broadcast %43 : vector<16x1xf32> to vector<16x16xf32>
      %47 = arith.subf %39, %46 : vector<16x16xf32>
      %48 = math.exp %47 : vector<16x16xf32>
      %c0_24 = arith.constant 0 : index
      %c0_25 = arith.constant 0 : index
      %49 = vector.load %arg10[%c0_24, %c0_25] : memref<16x1xf32, #tpu.memory_space<vmem>>, vector<16x1xf32>
      %50 = arith.mulf %45, %49 : vector<16x1xf32>
      %cst_26 = arith.constant dense<0.000000e+00> : vector<16xf32>
      %51 = vector.multi_reduction <add>, %48, %cst_26 [1] : vector<16x16xf32> to vector<16xf32>
      %52 = vector.shape_cast %51 : vector<16xf32> to vector<16x1xf32>
      %53 = arith.addf %50, %52 : vector<16x1xf32>
      %c0_27 = arith.constant 0 : index
      %c0_28 = arith.constant 0 : index
      %54 = vector.load %arg10[%c0_27, %c0_28] : memref<16x1xf32, #tpu.memory_space<vmem>>, vector<16x1xf32>
      tpu.vector_store %arg10[%c0_27, %c0_28], %53 {strides = array<i32>} : memref<16x1xf32, #tpu.memory_space<vmem>>, vector<16x1xf32>,
      %c0_29 = arith.constant 0 : index
      %c0_30 = arith.constant 0 : index
      %55 = vector.load %arg11[%c0_29, %c0_30] : memref<16x128xf32, #tpu.memory_space<vmem>>, vector<16x128xf32>
      %56 = vector.broadcast %45 : vector<16x1xf32> to vector<16x128xf32>
      %57 = arith.mulf %56, %55 : vector<16x128xf32>
      %58 = arith.truncf %48 : vector<16x16xf32> to vector<16x16xbf16>
      %cst_31 = arith.constant dense<0.000000e+00> : vector<16x128xf32>
      %59 = tpu.matmul %58, %18, %cst_31 {dimension_numbers = #tpu.dot_dimension_numbers<[1], [0], [0], [1], [0, 0, 1, 1], [], []>} : vector<16x16xbf16>, vector<16x128xbf16>, vector<16x128xf32> -> vector<16x128xf32>
      %60 = arith.addf %57, %59 : vector<16x128xf32>
      %c0_32 = arith.constant 0 : index
      %c0_33 = arith.constant 0 : index
      %61 = vector.load %arg11[%c0_32, %c0_33] : memref<16x128xf32, #tpu.memory_space<vmem>>, vector<16x128xf32>
      tpu.vector_store %arg11[%c0_32, %c0_33], %60 {strides = array<i32>} : memref<16x128xf32, #tpu.memory_space<vmem>>, vector<16x128xf32>,
      %c0_34 = arith.constant 0 : index
      %c0_35 = arith.constant 0 : index
      %62 = vector.load %arg9[%c0_34, %c0_35] : memref<16x1xf32, #tpu.memory_space<vmem>>, vector<16x1xf32>
      tpu.vector_store %arg9[%c0_34, %c0_35], %43 {strides = array<i32>} : memref<16x1xf32, #tpu.memory_space<vmem>>, vector<16x1xf32>,
    } else {
    }
    %c0_i32_4 = arith.constant 0 : i32
    %10 = arith.cmpi eq, %arg3, %c0_i32_4 : i32
    %11 = arith.extui %10 : i1 to i32
    %c0_i32_5 = arith.constant 0 : i32
    %12 = arith.cmpi ne, %11, %c0_i32_5 : i32
    scf.if %12 {
      %c0 = arith.constant 0 : index
      %c0_6 = arith.constant 0 : index
      %13 = vector.load %arg11[%c0, %c0_6] : memref<16x128xf32, #tpu.memory_space<vmem>>, vector<16x128xf32>
      %c0_7 = arith.constant 0 : index
      %c0_8 = arith.constant 0 : index
      %14 = vector.load %arg10[%c0_7, %c0_8] : memref<16x1xf32, #tpu.memory_space<vmem>>, vector<16x1xf32>
      %15 = tpu.reciprocal %14 {approx = true} : vector<16x1xf32> -> vector<16x1xf32>
      %16 = vector.broadcast %15 : vector<16x1xf32> to vector<16x128xf32>
      %17 = arith.mulf %13, %16 : vector<16x128xf32>
      %18 = arith.truncf %17 : vector<16x128xf32> to vector<16x128xbf16>
      %c0_9 = arith.constant 0 : index
      %c0_10 = arith.constant 0 : index
      %c0_11 = arith.constant 0 : index
      %19 = vector.load %arg8[%c0_9, %c0_10, %c0_11] : memref<1x16x128xbf16, #tpu.memory_space<vmem>>, vector<1x16x128xbf16>
      %20 = vector.shape_cast %19 : vector<1x16x128xbf16> to vector<16x128xbf16>
      %21 = vector.shape_cast %18 : vector<16x128xbf16> to vector<1x16x128xbf16>
      tpu.vector_store %arg8[%c0_9, %c0_10, %c0_11], %21 {strides = array<i32>} : memref<1x16x128xbf16, #tpu.memory_space<vmem>>, vector<1x16x128xbf16>,
    } else {
    }
    return
  }
  func.func @transform_0(%arg0: i32, %arg1: i32, %arg2: i32, %arg3: i32) -> (i32, i32, i32) {
    %c0_i32 = arith.constant 0 : i32
    %0 = arith.addi %c0_i32, %arg1 : i32
    %c0_i32_0 = arith.constant 0 : i32
    return %arg0, %arg2, %0 : i32, i32, i32
  }
  func.func @transform_1(%arg0: i32, %arg1: i32, %arg2: i32, %arg3: i32) -> (i32, i32, i32) {
    %c4_i32 = arith.constant 4 : i32
    %0 = arith.addi %c4_i32, %arg1 : i32
    %c0_i32 = arith.constant 0 : i32
    return %arg0, %arg3, %0 : i32, i32, i32
  }
  func.func @transform_2(%arg0: i32, %arg1: i32, %arg2: i32, %arg3: i32) -> (i32, i32, i32) {
    %c8_i32 = arith.constant 8 : i32
    %0 = arith.addi %c8_i32, %arg1 : i32
    %c0_i32 = arith.constant 0 : i32
    return %arg0, %arg3, %0 : i32, i32, i32
  }
  func.func @transform_3(%arg0: i32, %arg1: i32, %arg2: i32, %arg3: i32) -> (i32, i32, i32) {
    %c0_i32 = arith.constant 0 : i32
    %c0_i32_0 = arith.constant 0 : i32
    return %arg0, %c0_i32, %arg3 : i32, i32, i32
  }
  func.func @transform_4(%arg0: i32, %arg1: i32, %arg2: i32, %arg3: i32) -> (i32, i32, i32) {
    %c0_i32 = arith.constant 0 : i32
    return %arg0, %arg2, %arg1 : i32, i32, i32
  }
}

module attributes {stable_mosaic.version = 11 : i64} {
  func.func @_linear_kernel(%arg0: i32, %arg1: i32, %arg2: i32, %arg3: memref<32x128xf32, #tpu.memory_space<vmem>>, %arg4: memref<128x512xbf16, #tpu.memory_space<vmem>>, %arg5: memref<1x512xf32, #tpu.memory_space<vmem>>, %arg6: memref<32x512xbf16, #tpu.memory_space<vmem>>, %arg7: memref<32x512xf32, #tpu.memory_space<vmem>>) attributes {dimension_semantics = [#tpu.dimension_semantics<parallel>, #tpu.dimension_semantics<parallel>, #tpu.dimension_semantics<arbitrary>], iteration_bounds = array<i64: 1, 1, 1>, scalar_prefetch = 0 : i64, scratch_operands = 1 : i64, tpu.core_type = #tpu.core_type<tc>, window_params = [{transform_indices = @transform_0, window_bounds = array<i64: 32, 128>}, {transform_indices = @transform_1, window_bounds = array<i64: 128, 512>}, {transform_indices = @transform_2, window_bounds = array<i64: 1, 512>}, {transform_indices = @transform_3, window_bounds = array<i64: 32, 512>}]} {
    %c0_i32 = arith.constant 0 : i32
    %0 = arith.cmpi eq, %arg2, %c0_i32 : i32
    %1 = arith.extui %0 : i1 to i32
    %c0_i32_0 = arith.constant 0 : i32
    %2 = arith.cmpi ne, %1, %c0_i32_0 : i32
    scf.if %2 {
      %cst_10 = arith.constant 0.000000e+00 : f32
      %13 = vector.broadcast %cst_10 : f32 to vector<32x512xf32>
      %c0_11 = arith.constant 0 : index
      %c0_12 = arith.constant 0 : index
      %14 = vector.load %arg7[%c0_11, %c0_12] : memref<32x512xf32, #tpu.memory_space<vmem>>, vector<32x512xf32>
      tpu.vector_store %arg7[%c0_11, %c0_12], %13 {strides = array<i32>} : memref<32x512xf32, #tpu.memory_space<vmem>>, vector<32x512xf32>,
    } else {
    }
    %c0 = arith.constant 0 : index
    %c0_1 = arith.constant 0 : index
    %3 = vector.load %arg7[%c0, %c0_1] : memref<32x512xf32, #tpu.memory_space<vmem>>, vector<32x512xf32>
    %c0_2 = arith.constant 0 : index
    %c0_3 = arith.constant 0 : index
    %4 = vector.load %arg3[%c0_2, %c0_3] : memref<32x128xf32, #tpu.memory_space<vmem>>, vector<32x128xf32>
    %5 = arith.truncf %4 : vector<32x128xf32> to vector<32x128xbf16>
    %c0_4 = arith.constant 0 : index
    %c0_5 = arith.constant 0 : index
    %6 = vector.load %arg4[%c0_4, %c0_5] : memref<128x512xbf16, #tpu.memory_space<vmem>>, vector<128x512xbf16>
    %cst = arith.constant dense<0.000000e+00> : vector<32x512xf32>
    %7 = tpu.matmul %5, %6, %cst {dimension_numbers = #tpu.dot_dimension_numbers<[1], [0], [0], [1], [0, 0, 1, 1], [], []>} : vector<32x128xbf16>, vector<128x512xbf16>, vector<32x512xf32> -> vector<32x512xf32>
    %8 = arith.addf %3, %7 : vector<32x512xf32>
    %c0_6 = arith.constant 0 : index
    %c0_7 = arith.constant 0 : index
    %9 = vector.load %arg7[%c0_6, %c0_7] : memref<32x512xf32, #tpu.memory_space<vmem>>, vector<32x512xf32>
    tpu.vector_store %arg7[%c0_6, %c0_7], %8 {strides = array<i32>} : memref<32x512xf32, #tpu.memory_space<vmem>>, vector<32x512xf32>,
    %c0_i32_8 = arith.constant 0 : i32
    %10 = arith.cmpi eq, %arg2, %c0_i32_8 : i32
    %11 = arith.extui %10 : i1 to i32
    %c0_i32_9 = arith.constant 0 : i32
    %12 = arith.cmpi ne, %11, %c0_i32_9 : i32
    scf.if %12 {
      %c0_10 = arith.constant 0 : index
      %c0_11 = arith.constant 0 : index
      %13 = vector.load %arg7[%c0_10, %c0_11] : memref<32x512xf32, #tpu.memory_space<vmem>>, vector<32x512xf32>
      %c0_12 = arith.constant 0 : index
      %c0_13 = arith.constant 0 : index
      %14 = vector.load %arg5[%c0_12, %c0_13] : memref<1x512xf32, #tpu.memory_space<vmem>>, vector<1x512xf32>
      %15 = vector.broadcast %14 : vector<1x512xf32> to vector<32x512xf32>
      %16 = arith.addf %13, %15 : vector<32x512xf32>
      %17 = arith.truncf %16 : vector<32x512xf32> to vector<32x512xbf16>
      %c0_14 = arith.constant 0 : index
      %c0_15 = arith.constant 0 : index
      %18 = vector.load %arg6[%c0_14, %c0_15] : memref<32x512xbf16, #tpu.memory_space<vmem>>, vector<32x512xbf16>
      tpu.vector_store %arg6[%c0_14, %c0_15], %17 {strides = array<i32>} : memref<32x512xbf16, #tpu.memory_space<vmem>>, vector<32x512xbf16>,
    } else {
    }
    return
  }
  func.func @transform_0(%arg0: i32, %arg1: i32, %arg2: i32) -> (i32, i32) {
    %c0_i32 = arith.constant 0 : i32
    return %arg0, %arg2 : i32, i32
  }
  func.func @transform_1(%arg0: i32, %arg1: i32, %arg2: i32) -> (i32, i32) {
    %c0_i32 = arith.constant 0 : i32
    return %arg2, %arg1 : i32, i32
  }
  func.func @transform_2(%arg0: i32, %arg1: i32, %arg2: i32) -> (i32, i32) {
    %c0_i32 = arith.constant 0 : i32
    %c0_i32_0 = arith.constant 0 : i32
    return %c0_i32, %arg1 : i32, i32
  }
  func.func @transform_3(%arg0: i32, %arg1: i32, %arg2: i32) -> (i32, i32) {
    %c0_i32 = arith.constant 0 : i32
    return %arg0, %arg1 : i32, i32
  }
}

module attributes {stable_mosaic.version = 11 : i64} {
  func.func @_linear_ln_kernel(%arg0: i32, %arg1: i32, %arg2: memref<32x512xbf16, #tpu.memory_space<vmem>>, %arg3: memref<512x128xbf16, #tpu.memory_space<vmem>>, %arg4: memref<1x128xf32, #tpu.memory_space<vmem>>, %arg5: memref<32x128xf32, #tpu.memory_space<vmem>>, %arg6: memref<1x128xf32, #tpu.memory_space<vmem>>, %arg7: memref<1x128xf32, #tpu.memory_space<vmem>>, %arg8: memref<32x128xf32, #tpu.memory_space<vmem>>, %arg9: memref<32x128xf32, #tpu.memory_space<vmem>>) attributes {dimension_semantics = [#tpu.dimension_semantics<parallel>, #tpu.dimension_semantics<arbitrary>], iteration_bounds = array<i64: 1, 1>, scalar_prefetch = 0 : i64, scratch_operands = 1 : i64, tpu.core_type = #tpu.core_type<tc>, window_params = [{transform_indices = @transform_0, window_bounds = array<i64: 32, 512>}, {transform_indices = @transform_1, window_bounds = array<i64: 512, 128>}, {pipeline_mode = #tpu.pipeline_mode<synchronous>, transform_indices = @transform_2, window_bounds = array<i64: 1, 128>}, {transform_indices = @transform_3, window_bounds = array<i64: 32, 128>}, {pipeline_mode = #tpu.pipeline_mode<synchronous>, transform_indices = @transform_4, window_bounds = array<i64: 1, 128>}, {pipeline_mode = #tpu.pipeline_mode<synchronous>, transform_indices = @transform_5, window_bounds = array<i64: 1, 128>}, {transform_indices = @transform_6, window_bounds = array<i64: 32, 128>}]} {
    %c0_i32 = arith.constant 0 : i32
    %0 = arith.cmpi eq, %arg1, %c0_i32 : i32
    %1 = arith.extui %0 : i1 to i32
    %c0_i32_0 = arith.constant 0 : i32
    %2 = arith.cmpi ne, %1, %c0_i32_0 : i32
    scf.if %2 {
      %cst_10 = arith.constant 0.000000e+00 : f32
      %12 = vector.broadcast %cst_10 : f32 to vector<32x128xf32>
      %c0_11 = arith.constant 0 : index
      %c0_12 = arith.constant 0 : index
      %13 = vector.load %arg9[%c0_11, %c0_12] : memref<32x128xf32, #tpu.memory_space<vmem>>, vector<32x128xf32>
      tpu.vector_store %arg9[%c0_11, %c0_12], %12 {strides = array<i32>} : memref<32x128xf32, #tpu.memory_space<vmem>>, vector<32x128xf32>,
    } else {
    }
    %c0 = arith.constant 0 : index
    %c0_1 = arith.constant 0 : index
    %3 = vector.load %arg9[%c0, %c0_1] : memref<32x128xf32, #tpu.memory_space<vmem>>, vector<32x128xf32>
    %c0_2 = arith.constant 0 : index
    %c0_3 = arith.constant 0 : index
    %4 = vector.load %arg2[%c0_2, %c0_3] : memref<32x512xbf16, #tpu.memory_space<vmem>>, vector<32x512xbf16>
    %c0_4 = arith.constant 0 : index
    %c0_5 = arith.constant 0 : index
    %5 = vector.load %arg3[%c0_4, %c0_5] : memref<512x128xbf16, #tpu.memory_space<vmem>>, vector<512x128xbf16>
    %cst = arith.constant dense<0.000000e+00> : vector<32x128xf32>
    %6 = tpu.matmul %4, %5, %cst {dimension_numbers = #tpu.dot_dimension_numbers<[1], [0], [0], [1], [0, 0, 1, 1], [], []>} : vector<32x512xbf16>, vector<512x128xbf16>, vector<32x128xf32> -> vector<32x128xf32>
    %7 = arith.addf %3, %6 : vector<32x128xf32>
    %c0_6 = arith.constant 0 : index
    %c0_7 = arith.constant 0 : index
    %8 = vector.load %arg9[%c0_6, %c0_7] : memref<32x128xf32, #tpu.memory_space<vmem>>, vector<32x128xf32>
    tpu.vector_store %arg9[%c0_6, %c0_7], %7 {strides = array<i32>} : memref<32x128xf32, #tpu.memory_space<vmem>>, vector<32x128xf32>,
    %c0_i32_8 = arith.constant 0 : i32
    %9 = arith.cmpi eq, %arg1, %c0_i32_8 : i32
    %10 = arith.extui %9 : i1 to i32
    %c0_i32_9 = arith.constant 0 : i32
    %11 = arith.cmpi ne, %10, %c0_i32_9 : i32
    scf.if %11 {
      %c0_10 = arith.constant 0 : index
      %c0_11 = arith.constant 0 : index
      %12 = vector.load %arg9[%c0_10, %c0_11] : memref<32x128xf32, #tpu.memory_space<vmem>>, vector<32x128xf32>
      %c0_12 = arith.constant 0 : index
      %c0_13 = arith.constant 0 : index
      %13 = vector.load %arg4[%c0_12, %c0_13] : memref<1x128xf32, #tpu.memory_space<vmem>>, vector<1x128xf32>
      %14 = vector.broadcast %13 : vector<1x128xf32> to vector<32x128xf32>
      %15 = arith.addf %12, %14 : vector<32x128xf32>
      %c0_14 = arith.constant 0 : index
      %c0_15 = arith.constant 0 : index
      %16 = vector.load %arg5[%c0_14, %c0_15] : memref<32x128xf32, #tpu.memory_space<vmem>>, vector<32x128xf32>
      %17 = arith.addf %15, %16 : vector<32x128xf32>
      %cst_16 = arith.constant dense<0.000000e+00> : vector<32xf32>
      %18 = vector.multi_reduction <add>, %17, %cst_16 [1] : vector<32x128xf32> to vector<32xf32>
      %19 = vector.shape_cast %18 : vector<32xf32> to vector<32x1xf32>
      %cst_17 = arith.constant 3.125000e-02 : f32
      %20 = vector.broadcast %cst_17 : f32 to vector<32x1xf32>
      %21 = arith.mulf %19, %20 : vector<32x1xf32>
      %22 = arith.mulf %17, %17 : vector<32x128xf32>
      %cst_18 = arith.constant dense<0.000000e+00> : vector<32xf32>
      %23 = vector.multi_reduction <add>, %22, %cst_18 [1] : vector<32x128xf32> to vector<32xf32>
      %24 = vector.shape_cast %23 : vector<32xf32> to vector<32x1xf32>
      %cst_19 = arith.constant 3.125000e-02 : f32
      %25 = vector.broadcast %cst_19 : f32 to vector<32x1xf32>
      %26 = arith.mulf %24, %25 : vector<32x1xf32>
      %27 = arith.mulf %21, %21 : vector<32x1xf32>
      %28 = arith.subf %26, %27 : vector<32x1xf32>
      %29 = vector.broadcast %21 : vector<32x1xf32> to vector<32x128xf32>
      %30 = arith.subf %17, %29 : vector<32x128xf32>
      %cst_20 = arith.constant 9.99999974E-6 : f32
      %31 = vector.broadcast %cst_20 : f32 to vector<32x1xf32>
      %32 = arith.addf %28, %31 : vector<32x1xf32>
      %33 = math.rsqrt %32 : vector<32x1xf32>
      %34 = vector.broadcast %33 : vector<32x1xf32> to vector<32x128xf32>
      %35 = arith.mulf %30, %34 : vector<32x128xf32>
      %c0_21 = arith.constant 0 : index
      %c0_22 = arith.constant 0 : index
      %36 = vector.load %arg6[%c0_21, %c0_22] : memref<1x128xf32, #tpu.memory_space<vmem>>, vector<1x128xf32>
      %37 = vector.broadcast %36 : vector<1x128xf32> to vector<32x128xf32>
      %38 = arith.mulf %35, %37 : vector<32x128xf32>
      %c0_23 = arith.constant 0 : index
      %c0_24 = arith.constant 0 : index
      %39 = vector.load %arg7[%c0_23, %c0_24] : memref<1x128xf32, #tpu.memory_space<vmem>>, vector<1x128xf32>
      %40 = vector.broadcast %39 : vector<1x128xf32> to vector<32x128xf32>
      %41 = arith.addf %38, %40 : vector<32x128xf32>
      %c0_25 = arith.constant 0 : index
      %c0_26 = arith.constant 0 : index
      %42 = vector.load %arg8[%c0_25, %c0_26] : memref<32x128xf32, #tpu.memory_space<vmem>>, vector<32x128xf32>
      tpu.vector_store %arg8[%c0_25, %c0_26], %41 {strides = array<i32>} : memref<32x128xf32, #tpu.memory_space<vmem>>, vector<32x128xf32>,
    } else {
    }
    return
  }
  func.func @transform_0(%arg0: i32, %arg1: i32) -> (i32, i32) {
    %c0_i32 = arith.constant 0 : i32
    return %arg0, %arg1 : i32, i32
  }
  func.func @transform_1(%arg0: i32, %arg1: i32) -> (i32, i32) {
    %c0_i32 = arith.constant 0 : i32
    %c0_i32_0 = arith.constant 0 : i32
    return %arg1, %c0_i32 : i32, i32
  }
  func.func @transform_2(%arg0: i32, %arg1: i32) -> (i32, i32) {
    %c0_i32 = arith.constant 0 : i32
    %c0_i32_0 = arith.constant 0 : i32
    %c0_i32_1 = arith.constant 0 : i32
    return %c0_i32, %c0_i32_0 : i32, i32
  }
  func.func @transform_3(%arg0: i32, %arg1: i32) -> (i32, i32) {
    %c0_i32 = arith.constant 0 : i32
    %c0_i32_0 = arith.constant 0 : i32
    return %arg0, %c0_i32 : i32, i32
  }
  func.func @transform_4(%arg0: i32, %arg1: i32) -> (i32, i32) {
    %c0_i32 = arith.constant 0 : i32
    %c0_i32_0 = arith.constant 0 : i32
    %c0_i32_1 = arith.constant 0 : i32
    return %c0_i32, %c0_i32_0 : i32, i32
  }
  func.func @transform_5(%arg0: i32, %arg1: i32) -> (i32, i32) {
    %c0_i32 = arith.constant 0 : i32
    %c0_i32_0 = arith.constant 0 : i32
    %c0_i32_1 = arith.constant 0 : i32
    return %c0_i32, %c0_i32_0 : i32, i32
  }
  func.func @transform_6(%arg0: i32, %arg1: i32) -> (i32, i32) {
    %c0_i32 = arith.constant 0 : i32
    %c0_i32_0 = arith.constant 0 : i32
    return %arg0, %c0_i32 : i32, i32
  }
}

module attributes {stable_mosaic.version = 11 : i64} {
  func.func @_linear_kernel(%arg0: i32, %arg1: i32, %arg2: i32, %arg3: memref<8x128xf32, #tpu.memory_space<vmem>>, %arg4: memref<128x128xbf16, #tpu.memory_space<vmem>>, %arg5: memref<1x128xf32, #tpu.memory_space<vmem>>, %arg6: memref<8x128xf32, #tpu.memory_space<vmem>>, %arg7: memref<8x128xf32, #tpu.memory_space<vmem>>) attributes {dimension_semantics = [#tpu.dimension_semantics<parallel>, #tpu.dimension_semantics<parallel>, #tpu.dimension_semantics<arbitrary>], iteration_bounds = array<i64: 1, 1, 1>, scalar_prefetch = 0 : i64, scratch_operands = 1 : i64, tpu.core_type = #tpu.core_type<tc>, window_params = [{transform_indices = @transform_0, window_bounds = array<i64: 8, 128>}, {transform_indices = @transform_1, window_bounds = array<i64: 128, 128>}, {transform_indices = @transform_2, window_bounds = array<i64: 1, 128>}, {transform_indices = @transform_3, window_bounds = array<i64: 8, 128>}]} {
    %c0_i32 = arith.constant 0 : i32
    %0 = arith.cmpi eq, %arg2, %c0_i32 : i32
    %1 = arith.extui %0 : i1 to i32
    %c0_i32_0 = arith.constant 0 : i32
    %2 = arith.cmpi ne, %1, %c0_i32_0 : i32
    scf.if %2 {
      %cst_10 = arith.constant 0.000000e+00 : f32
      %13 = vector.broadcast %cst_10 : f32 to vector<8x128xf32>
      %c0_11 = arith.constant 0 : index
      %c0_12 = arith.constant 0 : index
      %14 = vector.load %arg7[%c0_11, %c0_12] : memref<8x128xf32, #tpu.memory_space<vmem>>, vector<8x128xf32>
      tpu.vector_store %arg7[%c0_11, %c0_12], %13 {strides = array<i32>} : memref<8x128xf32, #tpu.memory_space<vmem>>, vector<8x128xf32>,
    } else {
    }
    %c0 = arith.constant 0 : index
    %c0_1 = arith.constant 0 : index
    %3 = vector.load %arg7[%c0, %c0_1] : memref<8x128xf32, #tpu.memory_space<vmem>>, vector<8x128xf32>
    %c0_2 = arith.constant 0 : index
    %c0_3 = arith.constant 0 : index
    %4 = vector.load %arg3[%c0_2, %c0_3] : memref<8x128xf32, #tpu.memory_space<vmem>>, vector<8x128xf32>
    %5 = arith.truncf %4 : vector<8x128xf32> to vector<8x128xbf16>
    %c0_4 = arith.constant 0 : index
    %c0_5 = arith.constant 0 : index
    %6 = vector.load %arg4[%c0_4, %c0_5] : memref<128x128xbf16, #tpu.memory_space<vmem>>, vector<128x128xbf16>
    %cst = arith.constant dense<0.000000e+00> : vector<8x128xf32>
    %7 = tpu.matmul %5, %6, %cst {dimension_numbers = #tpu.dot_dimension_numbers<[1], [0], [0], [1], [0, 0, 1, 1], [], []>} : vector<8x128xbf16>, vector<128x128xbf16>, vector<8x128xf32> -> vector<8x128xf32>
    %8 = arith.addf %3, %7 : vector<8x128xf32>
    %c0_6 = arith.constant 0 : index
    %c0_7 = arith.constant 0 : index
    %9 = vector.load %arg7[%c0_6, %c0_7] : memref<8x128xf32, #tpu.memory_space<vmem>>, vector<8x128xf32>
    tpu.vector_store %arg7[%c0_6, %c0_7], %8 {strides = array<i32>} : memref<8x128xf32, #tpu.memory_space<vmem>>, vector<8x128xf32>,
    %c0_i32_8 = arith.constant 0 : i32
    %10 = arith.cmpi eq, %arg2, %c0_i32_8 : i32
    %11 = arith.extui %10 : i1 to i32
    %c0_i32_9 = arith.constant 0 : i32
    %12 = arith.cmpi ne, %11, %c0_i32_9 : i32
    scf.if %12 {
      %c0_10 = arith.constant 0 : index
      %c0_11 = arith.constant 0 : index
      %13 = vector.load %arg7[%c0_10, %c0_11] : memref<8x128xf32, #tpu.memory_space<vmem>>, vector<8x128xf32>
      %c0_12 = arith.constant 0 : index
      %c0_13 = arith.constant 0 : index
      %14 = vector.load %arg5[%c0_12, %c0_13] : memref<1x128xf32, #tpu.memory_space<vmem>>, vector<1x128xf32>
      %15 = vector.broadcast %14 : vector<1x128xf32> to vector<8x128xf32>
      %16 = arith.addf %13, %15 : vector<8x128xf32>
      %c0_14 = arith.constant 0 : index
      %c0_15 = arith.constant 0 : index
      %17 = vector.load %arg6[%c0_14, %c0_15] : memref<8x128xf32, #tpu.memory_space<vmem>>, vector<8x128xf32>
      tpu.vector_store %arg6[%c0_14, %c0_15], %16 {strides = array<i32>} : memref<8x128xf32, #tpu.memory_space<vmem>>, vector<8x128xf32>,
    } else {
    }
    return
  }
  func.func @transform_0(%arg0: i32, %arg1: i32, %arg2: i32) -> (i32, i32) {
    %c0_i32 = arith.constant 0 : i32
    return %arg0, %arg2 : i32, i32
  }
  func.func @transform_1(%arg0: i32, %arg1: i32, %arg2: i32) -> (i32, i32) {
    %c0_i32 = arith.constant 0 : i32
    return %arg2, %arg1 : i32, i32
  }
  func.func @transform_2(%arg0: i32, %arg1: i32, %arg2: i32) -> (i32, i32) {
    %c0_i32 = arith.constant 0 : i32
    %c0_i32_0 = arith.constant 0 : i32
    return %c0_i32, %arg1 : i32, i32
  }
  func.func @transform_3(%arg0: i32, %arg1: i32, %arg2: i32) -> (i32, i32) {
    %c0_i32 = arith.constant 0 : i32
    return %arg0, %arg1 : i32, i32
  }
}

module attributes {stable_mosaic.version = 11 : i64} {
  func.func @_linear_kernel(%arg0: i32, %arg1: i32, %arg2: i32, %arg3: memref<32x128xf32, #tpu.memory_space<vmem>>, %arg4: memref<128x512xbf16, #tpu.memory_space<vmem>>, %arg5: memref<1x512xf32, #tpu.memory_space<vmem>>, %arg6: memref<32x512xbf16, #tpu.memory_space<vmem>>, %arg7: memref<32x512xf32, #tpu.memory_space<vmem>>) attributes {dimension_semantics = [#tpu.dimension_semantics<parallel>, #tpu.dimension_semantics<parallel>, #tpu.dimension_semantics<arbitrary>], iteration_bounds = array<i64: 1, 3, 1>, scalar_prefetch = 0 : i64, scratch_operands = 1 : i64, tpu.core_type = #tpu.core_type<tc>, window_params = [{transform_indices = @transform_0, window_bounds = array<i64: 32, 128>}, {transform_indices = @transform_1, window_bounds = array<i64: 128, 512>}, {transform_indices = @transform_2, window_bounds = array<i64: 1, 512>}, {transform_indices = @transform_3, window_bounds = array<i64: 32, 512>}]} {
    %c0_i32 = arith.constant 0 : i32
    %0 = arith.cmpi eq, %arg2, %c0_i32 : i32
    %1 = arith.extui %0 : i1 to i32
    %c0_i32_0 = arith.constant 0 : i32
    %2 = arith.cmpi ne, %1, %c0_i32_0 : i32
    scf.if %2 {
      %cst_10 = arith.constant 0.000000e+00 : f32
      %13 = vector.broadcast %cst_10 : f32 to vector<32x512xf32>
      %c0_11 = arith.constant 0 : index
      %c0_12 = arith.constant 0 : index
      %14 = vector.load %arg7[%c0_11, %c0_12] : memref<32x512xf32, #tpu.memory_space<vmem>>, vector<32x512xf32>
      tpu.vector_store %arg7[%c0_11, %c0_12], %13 {strides = array<i32>} : memref<32x512xf32, #tpu.memory_space<vmem>>, vector<32x512xf32>,
    } else {
    }
    %c0 = arith.constant 0 : index
    %c0_1 = arith.constant 0 : index
    %3 = vector.load %arg7[%c0, %c0_1] : memref<32x512xf32, #tpu.memory_space<vmem>>, vector<32x512xf32>
    %c0_2 = arith.constant 0 : index
    %c0_3 = arith.constant 0 : index
    %4 = vector.load %arg3[%c0_2, %c0_3] : memref<32x128xf32, #tpu.memory_space<vmem>>, vector<32x128xf32>
    %5 = arith.truncf %4 : vector<32x128xf32> to vector<32x128xbf16>
    %c0_4 = arith.constant 0 : index
    %c0_5 = arith.constant 0 : index
    %6 = vector.load %arg4[%c0_4, %c0_5] : memref<128x512xbf16, #tpu.memory_space<vmem>>, vector<128x512xbf16>
    %cst = arith.constant dense<0.000000e+00> : vector<32x512xf32>
    %7 = tpu.matmul %5, %6, %cst {dimension_numbers = #tpu.dot_dimension_numbers<[1], [0], [0], [1], [0, 0, 1, 1], [], []>} : vector<32x128xbf16>, vector<128x512xbf16>, vector<32x512xf32> -> vector<32x512xf32>
    %8 = arith.addf %3, %7 : vector<32x512xf32>
    %c0_6 = arith.constant 0 : index
    %c0_7 = arith.constant 0 : index
    %9 = vector.load %arg7[%c0_6, %c0_7] : memref<32x512xf32, #tpu.memory_space<vmem>>, vector<32x512xf32>
    tpu.vector_store %arg7[%c0_6, %c0_7], %8 {strides = array<i32>} : memref<32x512xf32, #tpu.memory_space<vmem>>, vector<32x512xf32>,
    %c0_i32_8 = arith.constant 0 : i32
    %10 = arith.cmpi eq, %arg2, %c0_i32_8 : i32
    %11 = arith.extui %10 : i1 to i32
    %c0_i32_9 = arith.constant 0 : i32
    %12 = arith.cmpi ne, %11, %c0_i32_9 : i32
    scf.if %12 {
      %c0_10 = arith.constant 0 : index
      %c0_11 = arith.constant 0 : index
      %13 = vector.load %arg7[%c0_10, %c0_11] : memref<32x512xf32, #tpu.memory_space<vmem>>, vector<32x512xf32>
      %c0_12 = arith.constant 0 : index
      %c0_13 = arith.constant 0 : index
      %14 = vector.load %arg5[%c0_12, %c0_13] : memref<1x512xf32, #tpu.memory_space<vmem>>, vector<1x512xf32>
      %15 = vector.broadcast %14 : vector<1x512xf32> to vector<32x512xf32>
      %16 = arith.addf %13, %15 : vector<32x512xf32>
      %17 = arith.truncf %16 : vector<32x512xf32> to vector<32x512xbf16>
      %c0_14 = arith.constant 0 : index
      %c0_15 = arith.constant 0 : index
      %18 = vector.load %arg6[%c0_14, %c0_15] : memref<32x512xbf16, #tpu.memory_space<vmem>>, vector<32x512xbf16>
      tpu.vector_store %arg6[%c0_14, %c0_15], %17 {strides = array<i32>} : memref<32x512xbf16, #tpu.memory_space<vmem>>, vector<32x512xbf16>,
    } else {
    }
    return
  }
  func.func @transform_0(%arg0: i32, %arg1: i32, %arg2: i32) -> (i32, i32) {
    %c0_i32 = arith.constant 0 : i32
    return %arg0, %arg2 : i32, i32
  }
  func.func @transform_1(%arg0: i32, %arg1: i32, %arg2: i32) -> (i32, i32) {
    %c0_i32 = arith.constant 0 : i32
    return %arg2, %arg1 : i32, i32
  }
  func.func @transform_2(%arg0: i32, %arg1: i32, %arg2: i32) -> (i32, i32) {
    %c0_i32 = arith.constant 0 : i32
    %c0_i32_0 = arith.constant 0 : i32
    return %c0_i32, %arg1 : i32, i32
  }
  func.func @transform_3(%arg0: i32, %arg1: i32, %arg2: i32) -> (i32, i32) {
    %c0_i32 = arith.constant 0 : i32
    return %arg0, %arg1 : i32, i32
  }
}

module attributes {stable_mosaic.version = 11 : i64} {
  func.func @_linear_kernel(%arg0: i32, %arg1: i32, %arg2: i32, %arg3: memref<32x128xf32, #tpu.memory_space<vmem>>, %arg4: memref<128x128xbf16, #tpu.memory_space<vmem>>, %arg5: memref<1x128xf32, #tpu.memory_space<vmem>>, %arg6: memref<32x128xbf16, #tpu.memory_space<vmem>>, %arg7: memref<32x128xf32, #tpu.memory_space<vmem>>) attributes {dimension_semantics = [#tpu.dimension_semantics<parallel>, #tpu.dimension_semantics<parallel>, #tpu.dimension_semantics<arbitrary>], iteration_bounds = array<i64: 1, 1, 1>, scalar_prefetch = 0 : i64, scratch_operands = 1 : i64, tpu.core_type = #tpu.core_type<tc>, window_params = [{transform_indices = @transform_0, window_bounds = array<i64: 32, 128>}, {transform_indices = @transform_1, window_bounds = array<i64: 128, 128>}, {transform_indices = @transform_2, window_bounds = array<i64: 1, 128>}, {transform_indices = @transform_3, window_bounds = array<i64: 32, 128>}]} {
    %c0_i32 = arith.constant 0 : i32
    %0 = arith.cmpi eq, %arg2, %c0_i32 : i32
    %1 = arith.extui %0 : i1 to i32
    %c0_i32_0 = arith.constant 0 : i32
    %2 = arith.cmpi ne, %1, %c0_i32_0 : i32
    scf.if %2 {
      %cst_10 = arith.constant 0.000000e+00 : f32
      %13 = vector.broadcast %cst_10 : f32 to vector<32x128xf32>
      %c0_11 = arith.constant 0 : index
      %c0_12 = arith.constant 0 : index
      %14 = vector.load %arg7[%c0_11, %c0_12] : memref<32x128xf32, #tpu.memory_space<vmem>>, vector<32x128xf32>
      tpu.vector_store %arg7[%c0_11, %c0_12], %13 {strides = array<i32>} : memref<32x128xf32, #tpu.memory_space<vmem>>, vector<32x128xf32>,
    } else {
    }
    %c0 = arith.constant 0 : index
    %c0_1 = arith.constant 0 : index
    %3 = vector.load %arg7[%c0, %c0_1] : memref<32x128xf32, #tpu.memory_space<vmem>>, vector<32x128xf32>
    %c0_2 = arith.constant 0 : index
    %c0_3 = arith.constant 0 : index
    %4 = vector.load %arg3[%c0_2, %c0_3] : memref<32x128xf32, #tpu.memory_space<vmem>>, vector<32x128xf32>
    %5 = arith.truncf %4 : vector<32x128xf32> to vector<32x128xbf16>
    %c0_4 = arith.constant 0 : index
    %c0_5 = arith.constant 0 : index
    %6 = vector.load %arg4[%c0_4, %c0_5] : memref<128x128xbf16, #tpu.memory_space<vmem>>, vector<128x128xbf16>
    %cst = arith.constant dense<0.000000e+00> : vector<32x128xf32>
    %7 = tpu.matmul %5, %6, %cst {dimension_numbers = #tpu.dot_dimension_numbers<[1], [0], [0], [1], [0, 0, 1, 1], [], []>} : vector<32x128xbf16>, vector<128x128xbf16>, vector<32x128xf32> -> vector<32x128xf32>
    %8 = arith.addf %3, %7 : vector<32x128xf32>
    %c0_6 = arith.constant 0 : index
    %c0_7 = arith.constant 0 : index
    %9 = vector.load %arg7[%c0_6, %c0_7] : memref<32x128xf32, #tpu.memory_space<vmem>>, vector<32x128xf32>
    tpu.vector_store %arg7[%c0_6, %c0_7], %8 {strides = array<i32>} : memref<32x128xf32, #tpu.memory_space<vmem>>, vector<32x128xf32>,
    %c0_i32_8 = arith.constant 0 : i32
    %10 = arith.cmpi eq, %arg2, %c0_i32_8 : i32
    %11 = arith.extui %10 : i1 to i32
    %c0_i32_9 = arith.constant 0 : i32
    %12 = arith.cmpi ne, %11, %c0_i32_9 : i32
    scf.if %12 {
      %c0_10 = arith.constant 0 : index
      %c0_11 = arith.constant 0 : index
      %13 = vector.load %arg7[%c0_10, %c0_11] : memref<32x128xf32, #tpu.memory_space<vmem>>, vector<32x128xf32>
      %c0_12 = arith.constant 0 : index
      %c0_13 = arith.constant 0 : index
      %14 = vector.load %arg5[%c0_12, %c0_13] : memref<1x128xf32, #tpu.memory_space<vmem>>, vector<1x128xf32>
      %15 = vector.broadcast %14 : vector<1x128xf32> to vector<32x128xf32>
      %16 = arith.addf %13, %15 : vector<32x128xf32>
      %cst_14 = arith.constant 5.000000e-01 : f32
      %17 = vector.broadcast %cst_14 : f32 to vector<32x128xf32>
      %18 = arith.mulf %17, %16 : vector<32x128xf32>
      %cst_15 = arith.constant 0.707106769 : f32
      %19 = vector.broadcast %cst_15 : f32 to vector<32x128xf32>
      %20 = arith.mulf %16, %19 : vector<32x128xf32>
      %cst_16 = arith.constant 0.000000e+00 : f32
      %21 = vector.broadcast %cst_16 : f32 to vector<32x128xf32>
      %22 = arith.cmpf olt, %20, %21 : vector<32x128xf32>
      %cst_17 = arith.constant -1.000000e+00 : f32
      %cst_18 = arith.constant 1.000000e+00 : f32
      %23 = vector.broadcast %cst_17 : f32 to vector<32x128xf32>
      %24 = vector.broadcast %cst_18 : f32 to vector<32x128xf32>
      %25 = arith.select %22, %23, %24 : vector<32x128xi1>, vector<32x128xf32>
      %26 = math.absf %20 : vector<32x128xf32>
      %cst_19 = arith.constant 0.327591091 : f32
      %27 = vector.broadcast %cst_19 : f32 to vector<32x128xf32>
      %28 = arith.mulf %27, %26 : vector<32x128xf32>
      %cst_20 = arith.constant 1.000000e+00 : f32
      %29 = vector.broadcast %cst_20 : f32 to vector<32x128xf32>
      %30 = arith.addf %29, %28 : vector<32x128xf32>
      %31 = tpu.reciprocal %30 {approx = true} : vector<32x128xf32> -> vector<32x128xf32>
      %cst_21 = arith.constant 1.06140542 : f32
      %32 = vector.broadcast %cst_21 : f32 to vector<32x128xf32>
      %33 = arith.mulf %32, %31 : vector<32x128xf32>
      %cst_22 = arith.constant -1.45315206 : f32
      %34 = vector.broadcast %cst_22 : f32 to vector<32x128xf32>
      %35 = arith.addf %33, %34 : vector<32x128xf32>
      %36 = arith.mulf %35, %31 : vector<32x128xf32>
      %cst_23 = arith.constant 1.42141378 : f32
      %37 = vector.broadcast %cst_23 : f32 to vector<32x128xf32>
      %38 = arith.addf %36, %37 : vector<32x128xf32>
      %39 = arith.mulf %38, %31 : vector<32x128xf32>
      %cst_24 = arith.constant -0.284496725 : f32
      %40 = vector.broadcast %cst_24 : f32 to vector<32x128xf32>
      %41 = arith.addf %39, %40 : vector<32x128xf32>
      %42 = arith.mulf %41, %31 : vector<32x128xf32>
      %cst_25 = arith.constant 0.254829586 : f32
      %43 = vector.broadcast %cst_25 : f32 to vector<32x128xf32>
      %44 = arith.addf %42, %43 : vector<32x128xf32>
      %45 = arith.mulf %44, %31 : vector<32x128xf32>
      %cst_26 = arith.constant 0.000000e+00 : f32
      %46 = vector.broadcast %cst_26 : f32 to vector<32x128xf32>
      %47 = arith.subf %46, %26 : vector<32x128xf32>
      %48 = arith.mulf %47, %26 : vector<32x128xf32>
      %49 = math.exp %48 : vector<32x128xf32>
      %50 = arith.mulf %45, %49 : vector<32x128xf32>
      %cst_27 = arith.constant 1.000000e+00 : f32
      %51 = vector.broadcast %cst_27 : f32 to vector<32x128xf32>
      %52 = arith.subf %51, %50 : vector<32x128xf32>
      %53 = arith.mulf %25, %52 : vector<32x128xf32>
      %cst_28 = arith.constant 1.000000e+00 : f32
      %54 = vector.broadcast %cst_28 : f32 to vector<32x128xf32>
      %55 = arith.addf %54, %53 : vector<32x128xf32>
      %56 = arith.mulf %18, %55 : vector<32x128xf32>
      %57 = arith.truncf %56 : vector<32x128xf32> to vector<32x128xbf16>
      %c0_29 = arith.constant 0 : index
      %c0_30 = arith.constant 0 : index
      %58 = vector.load %arg6[%c0_29, %c0_30] : memref<32x128xbf16, #tpu.memory_space<vmem>>, vector<32x128xbf16>
      tpu.vector_store %arg6[%c0_29, %c0_30], %57 {strides = array<i32>} : memref<32x128xbf16, #tpu.memory_space<vmem>>, vector<32x128xbf16>,
    } else {
    }
    return
  }
  func.func @transform_0(%arg0: i32, %arg1: i32, %arg2: i32) -> (i32, i32) {
    %c0_i32 = arith.constant 0 : i32
    return %arg0, %arg2 : i32, i32
  }
  func.func @transform_1(%arg0: i32, %arg1: i32, %arg2: i32) -> (i32, i32) {
    %c0_i32 = arith.constant 0 : i32
    return %arg2, %arg1 : i32, i32
  }
  func.func @transform_2(%arg0: i32, %arg1: i32, %arg2: i32) -> (i32, i32) {
    %c0_i32 = arith.constant 0 : i32
    %c0_i32_0 = arith.constant 0 : i32
    return %c0_i32, %arg1 : i32, i32
  }
  func.func @transform_3(%arg0: i32, %arg1: i32, %arg2: i32) -> (i32, i32) {
    %c0_i32 = arith.constant 0 : i32
    return %arg0, %arg1 : i32, i32
  }
}

module attributes {stable_mosaic.version = 11 : i64} {
  func.func @_flash_attn_kernel(%arg0: i32, %arg1: i32, %arg2: i32, %arg3: i32, %arg4: memref<1x16x128xbf16, #tpu.memory_space<vmem>>, %arg5: memref<1x16x128xbf16, #tpu.memory_space<vmem>>, %arg6: memref<1x16x128xbf16, #tpu.memory_space<vmem>>, %arg7: memref<1x16x128xbf16, #tpu.memory_space<vmem>>, %arg8: memref<16x1xf32, #tpu.memory_space<vmem>>, %arg9: memref<16x1xf32, #tpu.memory_space<vmem>>, %arg10: memref<16x128xf32, #tpu.memory_space<vmem>>) attributes {dimension_semantics = [#tpu.dimension_semantics<parallel>, #tpu.dimension_semantics<parallel>, #tpu.dimension_semantics<parallel>, #tpu.dimension_semantics<arbitrary>], iteration_bounds = array<i64: 2, 4, 1, 1>, scalar_prefetch = 0 : i64, scratch_operands = 3 : i64, tpu.core_type = #tpu.core_type<tc>, window_params = [{transform_indices = @transform_0, window_bounds = array<i64: 1, 16, 128>}, {transform_indices = @transform_1, window_bounds = array<i64: 1, 16, 128>}, {transform_indices = @transform_2, window_bounds = array<i64: 1, 16, 128>}, {transform_indices = @transform_3, window_bounds = array<i64: 1, 16, 128>}]} {
    %c0_i32 = arith.constant 0 : i32
    %0 = arith.cmpi eq, %arg3, %c0_i32 : i32
    %1 = arith.extui %0 : i1 to i32
    %c0_i32_0 = arith.constant 0 : i32
    %2 = arith.cmpi ne, %1, %c0_i32_0 : i32
    scf.if %2 {
      %cst_28 = arith.constant -1.000000e+30 : f32
      %46 = vector.broadcast %cst_28 : f32 to vector<16x1xf32>
      %c0_29 = arith.constant 0 : index
      %c0_30 = arith.constant 0 : index
      %47 = vector.load %arg8[%c0_29, %c0_30] : memref<16x1xf32, #tpu.memory_space<vmem>>, vector<16x1xf32>
      tpu.vector_store %arg8[%c0_29, %c0_30], %46 {strides = array<i32>} : memref<16x1xf32, #tpu.memory_space<vmem>>, vector<16x1xf32>,
      %cst_31 = arith.constant 0.000000e+00 : f32
      %48 = vector.broadcast %cst_31 : f32 to vector<16x1xf32>
      %c0_32 = arith.constant 0 : index
      %c0_33 = arith.constant 0 : index
      %49 = vector.load %arg9[%c0_32, %c0_33] : memref<16x1xf32, #tpu.memory_space<vmem>>, vector<16x1xf32>
      tpu.vector_store %arg9[%c0_32, %c0_33], %48 {strides = array<i32>} : memref<16x1xf32, #tpu.memory_space<vmem>>, vector<16x1xf32>,
      %cst_34 = arith.constant 0.000000e+00 : f32
      %50 = vector.broadcast %cst_34 : f32 to vector<16x128xf32>
      %c0_35 = arith.constant 0 : index
      %c0_36 = arith.constant 0 : index
      %51 = vector.load %arg10[%c0_35, %c0_36] : memref<16x128xf32, #tpu.memory_space<vmem>>, vector<16x128xf32>
      tpu.vector_store %arg10[%c0_35, %c0_36], %50 {strides = array<i32>} : memref<16x128xf32, #tpu.memory_space<vmem>>, vector<16x128xf32>,
    } else {
    }
    %c0 = arith.constant 0 : index
    %c0_1 = arith.constant 0 : index
    %c0_2 = arith.constant 0 : index
    %3 = vector.load %arg4[%c0, %c0_1, %c0_2] : memref<1x16x128xbf16, #tpu.memory_space<vmem>>, vector<1x16x128xbf16>
    %4 = vector.shape_cast %3 : vector<1x16x128xbf16> to vector<16x128xbf16>
    %c0_3 = arith.constant 0 : index
    %c0_4 = arith.constant 0 : index
    %c0_5 = arith.constant 0 : index
    %5 = vector.load %arg5[%c0_3, %c0_4, %c0_5] : memref<1x16x128xbf16, #tpu.memory_space<vmem>>, vector<1x16x128xbf16>
    %6 = vector.shape_cast %5 : vector<1x16x128xbf16> to vector<16x128xbf16>
    %c0_6 = arith.constant 0 : index
    %c0_7 = arith.constant 0 : index
    %c0_8 = arith.constant 0 : index
    %7 = vector.load %arg6[%c0_6, %c0_7, %c0_8] : memref<1x16x128xbf16, #tpu.memory_space<vmem>>, vector<1x16x128xbf16>
    %8 = vector.shape_cast %7 : vector<1x16x128xbf16> to vector<16x128xbf16>
    %cst = arith.constant dense<0.000000e+00> : vector<16x16xf32>
    %9 = tpu.matmul %4, %6, %cst {dimension_numbers = #tpu.dot_dimension_numbers<[1], [1], [0], [0], [0, 0, 1, 0], [], []>} : vector<16x128xbf16>, vector<16x128xbf16>, vector<16x16xf32> -> vector<16x16xf32>
    %cst_9 = arith.constant 0.353553385 : f32
    %10 = vector.broadcast %cst_9 : f32 to vector<16x16xf32>
    %11 = arith.mulf %9, %10 : vector<16x16xf32>
    %c16_i32 = arith.constant 16 : i32
    %12 = arith.muli %arg3, %c16_i32 : i32
    %13 = tpu.iota {dimensions = array<i32: 1>} : vector<16x16xi32>
    %14 = vector.broadcast %12 : i32 to vector<16x16xi32>
    %15 = arith.addi %14, %13 : vector<16x16xi32>
    %c5_i32 = arith.constant 5 : i32
    %16 = vector.broadcast %c5_i32 : i32 to vector<16x16xi32>
    %17 = arith.cmpi slt, %15, %16 : vector<16x16xi32>
    %cst_10 = arith.constant -1.000000e+30 : f32
    %18 = vector.broadcast %cst_10 : f32 to vector<16x16xf32>
    %19 = arith.select %17, %11, %18 : vector<16x16xi1>, vector<16x16xf32>
    %c0_11 = arith.constant 0 : index
    %c0_12 = arith.constant 0 : index
    %20 = vector.load %arg8[%c0_11, %c0_12] : memref<16x1xf32, #tpu.memory_space<vmem>>, vector<16x1xf32>
    %cst_13 = arith.constant dense<0xFF800000> : vector<16xf32>
    %21 = vector.multi_reduction <maximumf>, %19, %cst_13 [1] : vector<16x16xf32> to vector<16xf32>
    %22 = vector.shape_cast %21 : vector<16xf32> to vector<16x1xf32>
    %23 = arith.maximumf %20, %22 : vector<16x1xf32>
    %24 = arith.subf %20, %23 : vector<16x1xf32>
    %25 = math.exp %24 : vector<16x1xf32>
    %26 = vector.broadcast %23 : vector<16x1xf32> to vector<16x16xf32>
    %27 = arith.subf %19, %26 : vector<16x16xf32>
    %28 = math.exp %27 : vector<16x16xf32>
    %c0_14 = arith.constant 0 : index
    %c0_15 = arith.constant 0 : index
    %29 = vector.load %arg9[%c0_14, %c0_15] : memref<16x1xf32, #tpu.memory_space<vmem>>, vector<16x1xf32>
    %30 = arith.mulf %25, %29 : vector<16x1xf32>
    %cst_16 = arith.constant dense<0.000000e+00> : vector<16xf32>
    %31 = vector.multi_reduction <add>, %28, %cst_16 [1] : vector<16x16xf32> to vector<16xf32>
    %32 = vector.shape_cast %31 : vector<16xf32> to vector<16x1xf32>
    %33 = arith.addf %30, %32 : vector<16x1xf32>
    %c0_17 = arith.constant 0 : index
    %c0_18 = arith.constant 0 : index
    %34 = vector.load %arg9[%c0_17, %c0_18] : memref<16x1xf32, #tpu.memory_space<vmem>>, vector<16x1xf32>
    tpu.vector_store %arg9[%c0_17, %c0_18], %33 {strides = array<i32>} : memref<16x1xf32, #tpu.memory_space<vmem>>, vector<16x1xf32>,
    %c0_19 = arith.constant 0 : index
    %c0_20 = arith.constant 0 : index
    %35 = vector.load %arg10[%c0_19, %c0_20] : memref<16x128xf32, #tpu.memory_space<vmem>>, vector<16x128xf32>
    %36 = vector.broadcast %25 : vector<16x1xf32> to vector<16x128xf32>
    %37 = arith.mulf %36, %35 : vector<16x128xf32>
    %38 = arith.truncf %28 : vector<16x16xf32> to vector<16x16xbf16>
    %cst_21 = arith.constant dense<0.000000e+00> : vector<16x128xf32>
    %39 = tpu.matmul %38, %8, %cst_21 {dimension_numbers = #tpu.dot_dimension_numbers<[1], [0], [0], [1], [0, 0, 1, 1], [], []>} : vector<16x16xbf16>, vector<16x128xbf16>, vector<16x128xf32> -> vector<16x128xf32>
    %40 = arith.addf %37, %39 : vector<16x128xf32>
    %c0_22 = arith.constant 0 : index
    %c0_23 = arith.constant 0 : index
    %41 = vector.load %arg10[%c0_22, %c0_23] : memref<16x128xf32, #tpu.memory_space<vmem>>, vector<16x128xf32>
    tpu.vector_store %arg10[%c0_22, %c0_23], %40 {strides = array<i32>} : memref<16x128xf32, #tpu.memory_space<vmem>>, vector<16x128xf32>,
    %c0_24 = arith.constant 0 : index
    %c0_25 = arith.constant 0 : index
    %42 = vector.load %arg8[%c0_24, %c0_25] : memref<16x1xf32, #tpu.memory_space<vmem>>, vector<16x1xf32>
    tpu.vector_store %arg8[%c0_24, %c0_25], %23 {strides = array<i32>} : memref<16x1xf32, #tpu.memory_space<vmem>>, vector<16x1xf32>,
    %c0_i32_26 = arith.constant 0 : i32
    %43 = arith.cmpi eq, %arg3, %c0_i32_26 : i32
    %44 = arith.extui %43 : i1 to i32
    %c0_i32_27 = arith.constant 0 : i32
    %45 = arith.cmpi ne, %44, %c0_i32_27 : i32
    scf.if %45 {
      %c0_28 = arith.constant 0 : index
      %c0_29 = arith.constant 0 : index
      %46 = vector.load %arg10[%c0_28, %c0_29] : memref<16x128xf32, #tpu.memory_space<vmem>>, vector<16x128xf32>
      %c0_30 = arith.constant 0 : index
      %c0_31 = arith.constant 0 : index
      %47 = vector.load %arg9[%c0_30, %c0_31] : memref<16x1xf32, #tpu.memory_space<vmem>>, vector<16x1xf32>
      %48 = tpu.reciprocal %47 {approx = true} : vector<16x1xf32> -> vector<16x1xf32>
      %49 = vector.broadcast %48 : vector<16x1xf32> to vector<16x128xf32>
      %50 = arith.mulf %46, %49 : vector<16x128xf32>
      %51 = arith.truncf %50 : vector<16x128xf32> to vector<16x128xbf16>
      %c0_32 = arith.constant 0 : index
      %c0_33 = arith.constant 0 : index
      %c0_34 = arith.constant 0 : index
      %52 = vector.load %arg7[%c0_32, %c0_33, %c0_34] : memref<1x16x128xbf16, #tpu.memory_space<vmem>>, vector<1x16x128xbf16>
      %53 = vector.shape_cast %52 : vector<1x16x128xbf16> to vector<16x128xbf16>
      %54 = vector.shape_cast %51 : vector<16x128xbf16> to vector<1x16x128xbf16>
      tpu.vector_store %arg7[%c0_32, %c0_33, %c0_34], %54 {strides = array<i32>} : memref<1x16x128xbf16, #tpu.memory_space<vmem>>, vector<1x16x128xbf16>,
    } else {
    }
    return
  }
  func.func @transform_0(%arg0: i32, %arg1: i32, %arg2: i32, %arg3: i32) -> (i32, i32, i32) {
    %c0_i32 = arith.constant 0 : i32
    %0 = arith.addi %c0_i32, %arg1 : i32
    %c0_i32_0 = arith.constant 0 : i32
    return %arg0, %arg2, %0 : i32, i32, i32
  }
  func.func @transform_1(%arg0: i32, %arg1: i32, %arg2: i32, %arg3: i32) -> (i32, i32, i32) {
    %c4_i32 = arith.constant 4 : i32
    %0 = arith.addi %c4_i32, %arg1 : i32
    %c0_i32 = arith.constant 0 : i32
    return %arg0, %arg3, %0 : i32, i32, i32
  }
  func.func @transform_2(%arg0: i32, %arg1: i32, %arg2: i32, %arg3: i32) -> (i32, i32, i32) {
    %c8_i32 = arith.constant 8 : i32
    %0 = arith.addi %c8_i32, %arg1 : i32
    %c0_i32 = arith.constant 0 : i32
    return %arg0, %arg3, %0 : i32, i32, i32
  }
  func.func @transform_3(%arg0: i32, %arg1: i32, %arg2: i32, %arg3: i32) -> (i32, i32, i32) {
    %c0_i32 = arith.constant 0 : i32
    return %arg0, %arg2, %arg1 : i32, i32, i32
  }
}

module attributes {stable_mosaic.version = 11 : i64} {
  func.func @_linear_ln_kernel(%arg0: i32, %arg1: i32, %arg2: memref<32x128xbf16, #tpu.memory_space<vmem>>, %arg3: memref<128x128xbf16, #tpu.memory_space<vmem>>, %arg4: memref<1x128xf32, #tpu.memory_space<vmem>>, %arg5: memref<32x128xf32, #tpu.memory_space<vmem>>, %arg6: memref<1x128xf32, #tpu.memory_space<vmem>>, %arg7: memref<1x128xf32, #tpu.memory_space<vmem>>, %arg8: memref<32x128xf32, #tpu.memory_space<vmem>>, %arg9: memref<32x128xf32, #tpu.memory_space<vmem>>) attributes {dimension_semantics = [#tpu.dimension_semantics<parallel>, #tpu.dimension_semantics<arbitrary>], iteration_bounds = array<i64: 1, 1>, scalar_prefetch = 0 : i64, scratch_operands = 1 : i64, tpu.core_type = #tpu.core_type<tc>, window_params = [{transform_indices = @transform_0, window_bounds = array<i64: 32, 128>}, {transform_indices = @transform_1, window_bounds = array<i64: 128, 128>}, {pipeline_mode = #tpu.pipeline_mode<synchronous>, transform_indices = @transform_2, window_bounds = array<i64: 1, 128>}, {transform_indices = @transform_3, window_bounds = array<i64: 32, 128>}, {pipeline_mode = #tpu.pipeline_mode<synchronous>, transform_indices = @transform_4, window_bounds = array<i64: 1, 128>}, {pipeline_mode = #tpu.pipeline_mode<synchronous>, transform_indices = @transform_5, window_bounds = array<i64: 1, 128>}, {transform_indices = @transform_6, window_bounds = array<i64: 32, 128>}]} {
    %c0_i32 = arith.constant 0 : i32
    %0 = arith.cmpi eq, %arg1, %c0_i32 : i32
    %1 = arith.extui %0 : i1 to i32
    %c0_i32_0 = arith.constant 0 : i32
    %2 = arith.cmpi ne, %1, %c0_i32_0 : i32
    scf.if %2 {
      %cst_10 = arith.constant 0.000000e+00 : f32
      %12 = vector.broadcast %cst_10 : f32 to vector<32x128xf32>
      %c0_11 = arith.constant 0 : index
      %c0_12 = arith.constant 0 : index
      %13 = vector.load %arg9[%c0_11, %c0_12] : memref<32x128xf32, #tpu.memory_space<vmem>>, vector<32x128xf32>
      tpu.vector_store %arg9[%c0_11, %c0_12], %12 {strides = array<i32>} : memref<32x128xf32, #tpu.memory_space<vmem>>, vector<32x128xf32>,
    } else {
    }
    %c0 = arith.constant 0 : index
    %c0_1 = arith.constant 0 : index
    %3 = vector.load %arg9[%c0, %c0_1] : memref<32x128xf32, #tpu.memory_space<vmem>>, vector<32x128xf32>
    %c0_2 = arith.constant 0 : index
    %c0_3 = arith.constant 0 : index
    %4 = vector.load %arg2[%c0_2, %c0_3] : memref<32x128xbf16, #tpu.memory_space<vmem>>, vector<32x128xbf16>
    %c0_4 = arith.constant 0 : index
    %c0_5 = arith.constant 0 : index
    %5 = vector.load %arg3[%c0_4, %c0_5] : memref<128x128xbf16, #tpu.memory_space<vmem>>, vector<128x128xbf16>
    %cst = arith.constant dense<0.000000e+00> : vector<32x128xf32>
    %6 = tpu.matmul %4, %5, %cst {dimension_numbers = #tpu.dot_dimension_numbers<[1], [0], [0], [1], [0, 0, 1, 1], [], []>} : vector<32x128xbf16>, vector<128x128xbf16>, vector<32x128xf32> -> vector<32x128xf32>
    %7 = arith.addf %3, %6 : vector<32x128xf32>
    %c0_6 = arith.constant 0 : index
    %c0_7 = arith.constant 0 : index
    %8 = vector.load %arg9[%c0_6, %c0_7] : memref<32x128xf32, #tpu.memory_space<vmem>>, vector<32x128xf32>
    tpu.vector_store %arg9[%c0_6, %c0_7], %7 {strides = array<i32>} : memref<32x128xf32, #tpu.memory_space<vmem>>, vector<32x128xf32>,
    %c0_i32_8 = arith.constant 0 : i32
    %9 = arith.cmpi eq, %arg1, %c0_i32_8 : i32
    %10 = arith.extui %9 : i1 to i32
    %c0_i32_9 = arith.constant 0 : i32
    %11 = arith.cmpi ne, %10, %c0_i32_9 : i32
    scf.if %11 {
      %c0_10 = arith.constant 0 : index
      %c0_11 = arith.constant 0 : index
      %12 = vector.load %arg9[%c0_10, %c0_11] : memref<32x128xf32, #tpu.memory_space<vmem>>, vector<32x128xf32>
      %c0_12 = arith.constant 0 : index
      %c0_13 = arith.constant 0 : index
      %13 = vector.load %arg4[%c0_12, %c0_13] : memref<1x128xf32, #tpu.memory_space<vmem>>, vector<1x128xf32>
      %14 = vector.broadcast %13 : vector<1x128xf32> to vector<32x128xf32>
      %15 = arith.addf %12, %14 : vector<32x128xf32>
      %c0_14 = arith.constant 0 : index
      %c0_15 = arith.constant 0 : index
      %16 = vector.load %arg5[%c0_14, %c0_15] : memref<32x128xf32, #tpu.memory_space<vmem>>, vector<32x128xf32>
      %17 = arith.addf %15, %16 : vector<32x128xf32>
      %cst_16 = arith.constant dense<0.000000e+00> : vector<32xf32>
      %18 = vector.multi_reduction <add>, %17, %cst_16 [1] : vector<32x128xf32> to vector<32xf32>
      %19 = vector.shape_cast %18 : vector<32xf32> to vector<32x1xf32>
      %cst_17 = arith.constant 3.125000e-02 : f32
      %20 = vector.broadcast %cst_17 : f32 to vector<32x1xf32>
      %21 = arith.mulf %19, %20 : vector<32x1xf32>
      %22 = arith.mulf %17, %17 : vector<32x128xf32>
      %cst_18 = arith.constant dense<0.000000e+00> : vector<32xf32>
      %23 = vector.multi_reduction <add>, %22, %cst_18 [1] : vector<32x128xf32> to vector<32xf32>
      %24 = vector.shape_cast %23 : vector<32xf32> to vector<32x1xf32>
      %cst_19 = arith.constant 3.125000e-02 : f32
      %25 = vector.broadcast %cst_19 : f32 to vector<32x1xf32>
      %26 = arith.mulf %24, %25 : vector<32x1xf32>
      %27 = arith.mulf %21, %21 : vector<32x1xf32>
      %28 = arith.subf %26, %27 : vector<32x1xf32>
      %29 = vector.broadcast %21 : vector<32x1xf32> to vector<32x128xf32>
      %30 = arith.subf %17, %29 : vector<32x128xf32>
      %cst_20 = arith.constant 9.99999974E-6 : f32
      %31 = vector.broadcast %cst_20 : f32 to vector<32x1xf32>
      %32 = arith.addf %28, %31 : vector<32x1xf32>
      %33 = math.rsqrt %32 : vector<32x1xf32>
      %34 = vector.broadcast %33 : vector<32x1xf32> to vector<32x128xf32>
      %35 = arith.mulf %30, %34 : vector<32x128xf32>
      %c0_21 = arith.constant 0 : index
      %c0_22 = arith.constant 0 : index
      %36 = vector.load %arg6[%c0_21, %c0_22] : memref<1x128xf32, #tpu.memory_space<vmem>>, vector<1x128xf32>
      %37 = vector.broadcast %36 : vector<1x128xf32> to vector<32x128xf32>
      %38 = arith.mulf %35, %37 : vector<32x128xf32>
      %c0_23 = arith.constant 0 : index
      %c0_24 = arith.constant 0 : index
      %39 = vector.load %arg7[%c0_23, %c0_24] : memref<1x128xf32, #tpu.memory_space<vmem>>, vector<1x128xf32>
      %40 = vector.broadcast %39 : vector<1x128xf32> to vector<32x128xf32>
      %41 = arith.addf %38, %40 : vector<32x128xf32>
      %c0_25 = arith.constant 0 : index
      %c0_26 = arith.constant 0 : index
      %42 = vector.load %arg8[%c0_25, %c0_26] : memref<32x128xf32, #tpu.memory_space<vmem>>, vector<32x128xf32>
      tpu.vector_store %arg8[%c0_25, %c0_26], %41 {strides = array<i32>} : memref<32x128xf32, #tpu.memory_space<vmem>>, vector<32x128xf32>,
    } else {
    }
    return
  }
  func.func @transform_0(%arg0: i32, %arg1: i32) -> (i32, i32) {
    %c0_i32 = arith.constant 0 : i32
    return %arg0, %arg1 : i32, i32
  }
  func.func @transform_1(%arg0: i32, %arg1: i32) -> (i32, i32) {
    %c0_i32 = arith.constant 0 : i32
    %c0_i32_0 = arith.constant 0 : i32
    return %arg1, %c0_i32 : i32, i32
  }
  func.func @transform_2(%arg0: i32, %arg1: i32) -> (i32, i32) {
    %c0_i32 = arith.constant 0 : i32
    %c0_i32_0 = arith.constant 0 : i32
    %c0_i32_1 = arith.constant 0 : i32
    return %c0_i32, %c0_i32_0 : i32, i32
  }
  func.func @transform_3(%arg0: i32, %arg1: i32) -> (i32, i32) {
    %c0_i32 = arith.constant 0 : i32
    %c0_i32_0 = arith.constant 0 : i32
    return %arg0, %c0_i32 : i32, i32
  }
  func.func @transform_4(%arg0: i32, %arg1: i32) -> (i32, i32) {
    %c0_i32 = arith.constant 0 : i32
    %c0_i32_0 = arith.constant 0 : i32
    %c0_i32_1 = arith.constant 0 : i32
    return %c0_i32, %c0_i32_0 : i32, i32
  }
  func.func @transform_5(%arg0: i32, %arg1: i32) -> (i32, i32) {
    %c0_i32 = arith.constant 0 : i32
    %c0_i32_0 = arith.constant 0 : i32
    %c0_i32_1 = arith.constant 0 : i32
    return %c0_i32, %c0_i32_0 : i32, i32
  }
  func.func @transform_6(%arg0: i32, %arg1: i32) -> (i32, i32) {
    %c0_i32 = arith.constant 0 : i32
    %c0_i32_0 = arith.constant 0 : i32
    return %arg0, %c0_i32 : i32, i32
  }
}

module attributes {stable_mosaic.version = 11 : i64} {
  func.func @_linear_kernel(%arg0: i32, %arg1: i32, %arg2: i32, %arg3: memref<32x128xf32, #tpu.memory_space<vmem>>, %arg4: memref<128x512xbf16, #tpu.memory_space<vmem>>, %arg5: memref<1x512xf32, #tpu.memory_space<vmem>>, %arg6: memref<32x512xbf16, #tpu.memory_space<vmem>>, %arg7: memref<32x512xf32, #tpu.memory_space<vmem>>) attributes {dimension_semantics = [#tpu.dimension_semantics<parallel>, #tpu.dimension_semantics<parallel>, #tpu.dimension_semantics<arbitrary>], iteration_bounds = array<i64: 1, 2, 1>, scalar_prefetch = 0 : i64, scratch_operands = 1 : i64, tpu.core_type = #tpu.core_type<tc>, window_params = [{transform_indices = @transform_0, window_bounds = array<i64: 32, 128>}, {transform_indices = @transform_1, window_bounds = array<i64: 128, 512>}, {transform_indices = @transform_2, window_bounds = array<i64: 1, 512>}, {transform_indices = @transform_3, window_bounds = array<i64: 32, 512>}]} {
    %c0_i32 = arith.constant 0 : i32
    %0 = arith.cmpi eq, %arg2, %c0_i32 : i32
    %1 = arith.extui %0 : i1 to i32
    %c0_i32_0 = arith.constant 0 : i32
    %2 = arith.cmpi ne, %1, %c0_i32_0 : i32
    scf.if %2 {
      %cst_10 = arith.constant 0.000000e+00 : f32
      %13 = vector.broadcast %cst_10 : f32 to vector<32x512xf32>
      %c0_11 = arith.constant 0 : index
      %c0_12 = arith.constant 0 : index
      %14 = vector.load %arg7[%c0_11, %c0_12] : memref<32x512xf32, #tpu.memory_space<vmem>>, vector<32x512xf32>
      tpu.vector_store %arg7[%c0_11, %c0_12], %13 {strides = array<i32>} : memref<32x512xf32, #tpu.memory_space<vmem>>, vector<32x512xf32>,
    } else {
    }
    %c0 = arith.constant 0 : index
    %c0_1 = arith.constant 0 : index
    %3 = vector.load %arg7[%c0, %c0_1] : memref<32x512xf32, #tpu.memory_space<vmem>>, vector<32x512xf32>
    %c0_2 = arith.constant 0 : index
    %c0_3 = arith.constant 0 : index
    %4 = vector.load %arg3[%c0_2, %c0_3] : memref<32x128xf32, #tpu.memory_space<vmem>>, vector<32x128xf32>
    %5 = arith.truncf %4 : vector<32x128xf32> to vector<32x128xbf16>
    %c0_4 = arith.constant 0 : index
    %c0_5 = arith.constant 0 : index
    %6 = vector.load %arg4[%c0_4, %c0_5] : memref<128x512xbf16, #tpu.memory_space<vmem>>, vector<128x512xbf16>
    %cst = arith.constant dense<0.000000e+00> : vector<32x512xf32>
    %7 = tpu.matmul %5, %6, %cst {dimension_numbers = #tpu.dot_dimension_numbers<[1], [0], [0], [1], [0, 0, 1, 1], [], []>} : vector<32x128xbf16>, vector<128x512xbf16>, vector<32x512xf32> -> vector<32x512xf32>
    %8 = arith.addf %3, %7 : vector<32x512xf32>
    %c0_6 = arith.constant 0 : index
    %c0_7 = arith.constant 0 : index
    %9 = vector.load %arg7[%c0_6, %c0_7] : memref<32x512xf32, #tpu.memory_space<vmem>>, vector<32x512xf32>
    tpu.vector_store %arg7[%c0_6, %c0_7], %8 {strides = array<i32>} : memref<32x512xf32, #tpu.memory_space<vmem>>, vector<32x512xf32>,
    %c0_i32_8 = arith.constant 0 : i32
    %10 = arith.cmpi eq, %arg2, %c0_i32_8 : i32
    %11 = arith.extui %10 : i1 to i32
    %c0_i32_9 = arith.constant 0 : i32
    %12 = arith.cmpi ne, %11, %c0_i32_9 : i32
    scf.if %12 {
      %c0_10 = arith.constant 0 : index
      %c0_11 = arith.constant 0 : index
      %13 = vector.load %arg7[%c0_10, %c0_11] : memref<32x512xf32, #tpu.memory_space<vmem>>, vector<32x512xf32>
      %c0_12 = arith.constant 0 : index
      %c0_13 = arith.constant 0 : index
      %14 = vector.load %arg5[%c0_12, %c0_13] : memref<1x512xf32, #tpu.memory_space<vmem>>, vector<1x512xf32>
      %15 = vector.broadcast %14 : vector<1x512xf32> to vector<32x512xf32>
      %16 = arith.addf %13, %15 : vector<32x512xf32>
      %17 = arith.truncf %16 : vector<32x512xf32> to vector<32x512xbf16>
      %c0_14 = arith.constant 0 : index
      %c0_15 = arith.constant 0 : index
      %18 = vector.load %arg6[%c0_14, %c0_15] : memref<32x512xbf16, #tpu.memory_space<vmem>>, vector<32x512xbf16>
      tpu.vector_store %arg6[%c0_14, %c0_15], %17 {strides = array<i32>} : memref<32x512xbf16, #tpu.memory_space<vmem>>, vector<32x512xbf16>,
    } else {
    }
    return
  }
  func.func @transform_0(%arg0: i32, %arg1: i32, %arg2: i32) -> (i32, i32) {
    %c0_i32 = arith.constant 0 : i32
    return %arg0, %arg2 : i32, i32
  }
  func.func @transform_1(%arg0: i32, %arg1: i32, %arg2: i32) -> (i32, i32) {
    %c0_i32 = arith.constant 0 : i32
    return %arg2, %arg1 : i32, i32
  }
  func.func @transform_2(%arg0: i32, %arg1: i32, %arg2: i32) -> (i32, i32) {
    %c0_i32 = arith.constant 0 : i32
    %c0_i32_0 = arith.constant 0 : i32
    return %c0_i32, %arg1 : i32, i32
  }
  func.func @transform_3(%arg0: i32, %arg1: i32, %arg2: i32) -> (i32, i32) {
    %c0_i32 = arith.constant 0 : i32
    return %arg0, %arg1 : i32, i32
  }
}

module attributes {stable_mosaic.version = 11 : i64} {
  func.func @_flash_attn_kernel(%arg0: i32, %arg1: i32, %arg2: i32, %arg3: i32, %arg4: memref<1x16x128xbf16, #tpu.memory_space<vmem>>, %arg5: memref<1x16x128xbf16, #tpu.memory_space<vmem>>, %arg6: memref<1x16x128xbf16, #tpu.memory_space<vmem>>, %arg7: memref<1x16x128xbf16, #tpu.memory_space<vmem>>, %arg8: memref<16x1xf32, #tpu.memory_space<vmem>>, %arg9: memref<16x1xf32, #tpu.memory_space<vmem>>, %arg10: memref<16x128xf32, #tpu.memory_space<vmem>>) attributes {dimension_semantics = [#tpu.dimension_semantics<parallel>, #tpu.dimension_semantics<parallel>, #tpu.dimension_semantics<parallel>, #tpu.dimension_semantics<arbitrary>], iteration_bounds = array<i64: 2, 4, 1, 1>, scalar_prefetch = 0 : i64, scratch_operands = 3 : i64, tpu.core_type = #tpu.core_type<tc>, window_params = [{transform_indices = @transform_0, window_bounds = array<i64: 1, 16, 128>}, {transform_indices = @transform_1, window_bounds = array<i64: 1, 16, 128>}, {transform_indices = @transform_2, window_bounds = array<i64: 1, 16, 128>}, {transform_indices = @transform_3, window_bounds = array<i64: 1, 16, 128>}]} {
    %c0_i32 = arith.constant 0 : i32
    %0 = arith.cmpi eq, %arg3, %c0_i32 : i32
    %1 = arith.extui %0 : i1 to i32
    %c0_i32_0 = arith.constant 0 : i32
    %2 = arith.cmpi ne, %1, %c0_i32_0 : i32
    scf.if %2 {
      %cst_28 = arith.constant -1.000000e+30 : f32
      %46 = vector.broadcast %cst_28 : f32 to vector<16x1xf32>
      %c0_29 = arith.constant 0 : index
      %c0_30 = arith.constant 0 : index
      %47 = vector.load %arg8[%c0_29, %c0_30] : memref<16x1xf32, #tpu.memory_space<vmem>>, vector<16x1xf32>
      tpu.vector_store %arg8[%c0_29, %c0_30], %46 {strides = array<i32>} : memref<16x1xf32, #tpu.memory_space<vmem>>, vector<16x1xf32>,
      %cst_31 = arith.constant 0.000000e+00 : f32
      %48 = vector.broadcast %cst_31 : f32 to vector<16x1xf32>
      %c0_32 = arith.constant 0 : index
      %c0_33 = arith.constant 0 : index
      %49 = vector.load %arg9[%c0_32, %c0_33] : memref<16x1xf32, #tpu.memory_space<vmem>>, vector<16x1xf32>
      tpu.vector_store %arg9[%c0_32, %c0_33], %48 {strides = array<i32>} : memref<16x1xf32, #tpu.memory_space<vmem>>, vector<16x1xf32>,
      %cst_34 = arith.constant 0.000000e+00 : f32
      %50 = vector.broadcast %cst_34 : f32 to vector<16x128xf32>
      %c0_35 = arith.constant 0 : index
      %c0_36 = arith.constant 0 : index
      %51 = vector.load %arg10[%c0_35, %c0_36] : memref<16x128xf32, #tpu.memory_space<vmem>>, vector<16x128xf32>
      tpu.vector_store %arg10[%c0_35, %c0_36], %50 {strides = array<i32>} : memref<16x128xf32, #tpu.memory_space<vmem>>, vector<16x128xf32>,
    } else {
    }
    %c0 = arith.constant 0 : index
    %c0_1 = arith.constant 0 : index
    %c0_2 = arith.constant 0 : index
    %3 = vector.load %arg4[%c0, %c0_1, %c0_2] : memref<1x16x128xbf16, #tpu.memory_space<vmem>>, vector<1x16x128xbf16>
    %4 = vector.shape_cast %3 : vector<1x16x128xbf16> to vector<16x128xbf16>
    %c0_3 = arith.constant 0 : index
    %c0_4 = arith.constant 0 : index
    %c0_5 = arith.constant 0 : index
    %5 = vector.load %arg5[%c0_3, %c0_4, %c0_5] : memref<1x16x128xbf16, #tpu.memory_space<vmem>>, vector<1x16x128xbf16>
    %6 = vector.shape_cast %5 : vector<1x16x128xbf16> to vector<16x128xbf16>
    %c0_6 = arith.constant 0 : index
    %c0_7 = arith.constant 0 : index
    %c0_8 = arith.constant 0 : index
    %7 = vector.load %arg6[%c0_6, %c0_7, %c0_8] : memref<1x16x128xbf16, #tpu.memory_space<vmem>>, vector<1x16x128xbf16>
    %8 = vector.shape_cast %7 : vector<1x16x128xbf16> to vector<16x128xbf16>
    %cst = arith.constant dense<0.000000e+00> : vector<16x16xf32>
    %9 = tpu.matmul %4, %6, %cst {dimension_numbers = #tpu.dot_dimension_numbers<[1], [1], [0], [0], [0, 0, 1, 0], [], []>} : vector<16x128xbf16>, vector<16x128xbf16>, vector<16x16xf32> -> vector<16x16xf32>
    %cst_9 = arith.constant 0.353553385 : f32
    %10 = vector.broadcast %cst_9 : f32 to vector<16x16xf32>
    %11 = arith.mulf %9, %10 : vector<16x16xf32>
    %c16_i32 = arith.constant 16 : i32
    %12 = arith.muli %arg3, %c16_i32 : i32
    %13 = tpu.iota {dimensions = array<i32: 1>} : vector<16x16xi32>
    %14 = vector.broadcast %12 : i32 to vector<16x16xi32>
    %15 = arith.addi %14, %13 : vector<16x16xi32>
    %c5_i32 = arith.constant 5 : i32
    %16 = vector.broadcast %c5_i32 : i32 to vector<16x16xi32>
    %17 = arith.cmpi slt, %15, %16 : vector<16x16xi32>
    %cst_10 = arith.constant -1.000000e+30 : f32
    %18 = vector.broadcast %cst_10 : f32 to vector<16x16xf32>
    %19 = arith.select %17, %11, %18 : vector<16x16xi1>, vector<16x16xf32>
    %c0_11 = arith.constant 0 : index
    %c0_12 = arith.constant 0 : index
    %20 = vector.load %arg8[%c0_11, %c0_12] : memref<16x1xf32, #tpu.memory_space<vmem>>, vector<16x1xf32>
    %cst_13 = arith.constant dense<0xFF800000> : vector<16xf32>
    %21 = vector.multi_reduction <maximumf>, %19, %cst_13 [1] : vector<16x16xf32> to vector<16xf32>
    %22 = vector.shape_cast %21 : vector<16xf32> to vector<16x1xf32>
    %23 = arith.maximumf %20, %22 : vector<16x1xf32>
    %24 = arith.subf %20, %23 : vector<16x1xf32>
    %25 = math.exp %24 : vector<16x1xf32>
    %26 = vector.broadcast %23 : vector<16x1xf32> to vector<16x16xf32>
    %27 = arith.subf %19, %26 : vector<16x16xf32>
    %28 = math.exp %27 : vector<16x16xf32>
    %c0_14 = arith.constant 0 : index
    %c0_15 = arith.constant 0 : index
    %29 = vector.load %arg9[%c0_14, %c0_15] : memref<16x1xf32, #tpu.memory_space<vmem>>, vector<16x1xf32>
    %30 = arith.mulf %25, %29 : vector<16x1xf32>
    %cst_16 = arith.constant dense<0.000000e+00> : vector<16xf32>
    %31 = vector.multi_reduction <add>, %28, %cst_16 [1] : vector<16x16xf32> to vector<16xf32>
    %32 = vector.shape_cast %31 : vector<16xf32> to vector<16x1xf32>
    %33 = arith.addf %30, %32 : vector<16x1xf32>
    %c0_17 = arith.constant 0 : index
    %c0_18 = arith.constant 0 : index
    %34 = vector.load %arg9[%c0_17, %c0_18] : memref<16x1xf32, #tpu.memory_space<vmem>>, vector<16x1xf32>
    tpu.vector_store %arg9[%c0_17, %c0_18], %33 {strides = array<i32>} : memref<16x1xf32, #tpu.memory_space<vmem>>, vector<16x1xf32>,
    %c0_19 = arith.constant 0 : index
    %c0_20 = arith.constant 0 : index
    %35 = vector.load %arg10[%c0_19, %c0_20] : memref<16x128xf32, #tpu.memory_space<vmem>>, vector<16x128xf32>
    %36 = vector.broadcast %25 : vector<16x1xf32> to vector<16x128xf32>
    %37 = arith.mulf %36, %35 : vector<16x128xf32>
    %38 = arith.truncf %28 : vector<16x16xf32> to vector<16x16xbf16>
    %cst_21 = arith.constant dense<0.000000e+00> : vector<16x128xf32>
    %39 = tpu.matmul %38, %8, %cst_21 {dimension_numbers = #tpu.dot_dimension_numbers<[1], [0], [0], [1], [0, 0, 1, 1], [], []>} : vector<16x16xbf16>, vector<16x128xbf16>, vector<16x128xf32> -> vector<16x128xf32>
    %40 = arith.addf %37, %39 : vector<16x128xf32>
    %c0_22 = arith.constant 0 : index
    %c0_23 = arith.constant 0 : index
    %41 = vector.load %arg10[%c0_22, %c0_23] : memref<16x128xf32, #tpu.memory_space<vmem>>, vector<16x128xf32>
    tpu.vector_store %arg10[%c0_22, %c0_23], %40 {strides = array<i32>} : memref<16x128xf32, #tpu.memory_space<vmem>>, vector<16x128xf32>,
    %c0_24 = arith.constant 0 : index
    %c0_25 = arith.constant 0 : index
    %42 = vector.load %arg8[%c0_24, %c0_25] : memref<16x1xf32, #tpu.memory_space<vmem>>, vector<16x1xf32>
    tpu.vector_store %arg8[%c0_24, %c0_25], %23 {strides = array<i32>} : memref<16x1xf32, #tpu.memory_space<vmem>>, vector<16x1xf32>,
    %c0_i32_26 = arith.constant 0 : i32
    %43 = arith.cmpi eq, %arg3, %c0_i32_26 : i32
    %44 = arith.extui %43 : i1 to i32
    %c0_i32_27 = arith.constant 0 : i32
    %45 = arith.cmpi ne, %44, %c0_i32_27 : i32
    scf.if %45 {
      %c0_28 = arith.constant 0 : index
      %c0_29 = arith.constant 0 : index
      %46 = vector.load %arg10[%c0_28, %c0_29] : memref<16x128xf32, #tpu.memory_space<vmem>>, vector<16x128xf32>
      %c0_30 = arith.constant 0 : index
      %c0_31 = arith.constant 0 : index
      %47 = vector.load %arg9[%c0_30, %c0_31] : memref<16x1xf32, #tpu.memory_space<vmem>>, vector<16x1xf32>
      %48 = tpu.reciprocal %47 {approx = true} : vector<16x1xf32> -> vector<16x1xf32>
      %49 = vector.broadcast %48 : vector<16x1xf32> to vector<16x128xf32>
      %50 = arith.mulf %46, %49 : vector<16x128xf32>
      %51 = arith.truncf %50 : vector<16x128xf32> to vector<16x128xbf16>
      %c0_32 = arith.constant 0 : index
      %c0_33 = arith.constant 0 : index
      %c0_34 = arith.constant 0 : index
      %52 = vector.load %arg7[%c0_32, %c0_33, %c0_34] : memref<1x16x128xbf16, #tpu.memory_space<vmem>>, vector<1x16x128xbf16>
      %53 = vector.shape_cast %52 : vector<1x16x128xbf16> to vector<16x128xbf16>
      %54 = vector.shape_cast %51 : vector<16x128xbf16> to vector<1x16x128xbf16>
      tpu.vector_store %arg7[%c0_32, %c0_33, %c0_34], %54 {strides = array<i32>} : memref<1x16x128xbf16, #tpu.memory_space<vmem>>, vector<1x16x128xbf16>,
    } else {
    }
    return
  }
  func.func @transform_0(%arg0: i32, %arg1: i32, %arg2: i32, %arg3: i32) -> (i32, i32, i32) {
    %c0_i32 = arith.constant 0 : i32
    %0 = arith.addi %c0_i32, %arg1 : i32
    %c0_i32_0 = arith.constant 0 : i32
    return %arg0, %arg2, %0 : i32, i32, i32
  }
  func.func @transform_1(%arg0: i32, %arg1: i32, %arg2: i32, %arg3: i32) -> (i32, i32, i32) {
    %c0_i32 = arith.constant 0 : i32
    %0 = arith.addi %c0_i32, %arg1 : i32
    %c0_i32_0 = arith.constant 0 : i32
    return %arg0, %arg3, %0 : i32, i32, i32
  }
  func.func @transform_2(%arg0: i32, %arg1: i32, %arg2: i32, %arg3: i32) -> (i32, i32, i32) {
    %c4_i32 = arith.constant 4 : i32
    %0 = arith.addi %c4_i32, %arg1 : i32
    %c0_i32 = arith.constant 0 : i32
    return %arg0, %arg3, %0 : i32, i32, i32
  }
  func.func @transform_3(%arg0: i32, %arg1: i32, %arg2: i32, %arg3: i32) -> (i32, i32, i32) {
    %c0_i32 = arith.constant 0 : i32
    return %arg0, %arg2, %arg1 : i32, i32, i32
  }
}

module attributes {stable_mosaic.version = 11 : i64} {
  func.func @_linear_kernel(%arg0: i32, %arg1: i32, %arg2: i32, %arg3: memref<32x128xf32, #tpu.memory_space<vmem>>, %arg4: memref<128x128xbf16, #tpu.memory_space<vmem>>, %arg5: memref<1x128xf32, #tpu.memory_space<vmem>>, %arg6: memref<32x128xf32, #tpu.memory_space<vmem>>, %arg7: memref<32x128xf32, #tpu.memory_space<vmem>>) attributes {dimension_semantics = [#tpu.dimension_semantics<parallel>, #tpu.dimension_semantics<parallel>, #tpu.dimension_semantics<arbitrary>], iteration_bounds = array<i64: 1, 1, 1>, scalar_prefetch = 0 : i64, scratch_operands = 1 : i64, tpu.core_type = #tpu.core_type<tc>, window_params = [{transform_indices = @transform_0, window_bounds = array<i64: 32, 128>}, {transform_indices = @transform_1, window_bounds = array<i64: 128, 128>}, {transform_indices = @transform_2, window_bounds = array<i64: 1, 128>}, {transform_indices = @transform_3, window_bounds = array<i64: 32, 128>}]} {
    %c0_i32 = arith.constant 0 : i32
    %0 = arith.cmpi eq, %arg2, %c0_i32 : i32
    %1 = arith.extui %0 : i1 to i32
    %c0_i32_0 = arith.constant 0 : i32
    %2 = arith.cmpi ne, %1, %c0_i32_0 : i32
    scf.if %2 {
      %cst_10 = arith.constant 0.000000e+00 : f32
      %13 = vector.broadcast %cst_10 : f32 to vector<32x128xf32>
      %c0_11 = arith.constant 0 : index
      %c0_12 = arith.constant 0 : index
      %14 = vector.load %arg7[%c0_11, %c0_12] : memref<32x128xf32, #tpu.memory_space<vmem>>, vector<32x128xf32>
      tpu.vector_store %arg7[%c0_11, %c0_12], %13 {strides = array<i32>} : memref<32x128xf32, #tpu.memory_space<vmem>>, vector<32x128xf32>,
    } else {
    }
    %c0 = arith.constant 0 : index
    %c0_1 = arith.constant 0 : index
    %3 = vector.load %arg7[%c0, %c0_1] : memref<32x128xf32, #tpu.memory_space<vmem>>, vector<32x128xf32>
    %c0_2 = arith.constant 0 : index
    %c0_3 = arith.constant 0 : index
    %4 = vector.load %arg3[%c0_2, %c0_3] : memref<32x128xf32, #tpu.memory_space<vmem>>, vector<32x128xf32>
    %5 = arith.truncf %4 : vector<32x128xf32> to vector<32x128xbf16>
    %c0_4 = arith.constant 0 : index
    %c0_5 = arith.constant 0 : index
    %6 = vector.load %arg4[%c0_4, %c0_5] : memref<128x128xbf16, #tpu.memory_space<vmem>>, vector<128x128xbf16>
    %cst = arith.constant dense<0.000000e+00> : vector<32x128xf32>
    %7 = tpu.matmul %5, %6, %cst {dimension_numbers = #tpu.dot_dimension_numbers<[1], [0], [0], [1], [0, 0, 1, 1], [], []>} : vector<32x128xbf16>, vector<128x128xbf16>, vector<32x128xf32> -> vector<32x128xf32>
    %8 = arith.addf %3, %7 : vector<32x128xf32>
    %c0_6 = arith.constant 0 : index
    %c0_7 = arith.constant 0 : index
    %9 = vector.load %arg7[%c0_6, %c0_7] : memref<32x128xf32, #tpu.memory_space<vmem>>, vector<32x128xf32>
    tpu.vector_store %arg7[%c0_6, %c0_7], %8 {strides = array<i32>} : memref<32x128xf32, #tpu.memory_space<vmem>>, vector<32x128xf32>,
    %c0_i32_8 = arith.constant 0 : i32
    %10 = arith.cmpi eq, %arg2, %c0_i32_8 : i32
    %11 = arith.extui %10 : i1 to i32
    %c0_i32_9 = arith.constant 0 : i32
    %12 = arith.cmpi ne, %11, %c0_i32_9 : i32
    scf.if %12 {
      %c0_10 = arith.constant 0 : index
      %c0_11 = arith.constant 0 : index
      %13 = vector.load %arg7[%c0_10, %c0_11] : memref<32x128xf32, #tpu.memory_space<vmem>>, vector<32x128xf32>
      %c0_12 = arith.constant 0 : index
      %c0_13 = arith.constant 0 : index
      %14 = vector.load %arg5[%c0_12, %c0_13] : memref<1x128xf32, #tpu.memory_space<vmem>>, vector<1x128xf32>
      %15 = vector.broadcast %14 : vector<1x128xf32> to vector<32x128xf32>
      %16 = arith.addf %13, %15 : vector<32x128xf32>
      %c0_14 = arith.constant 0 : index
      %c0_15 = arith.constant 0 : index
      %17 = vector.load %arg6[%c0_14, %c0_15] : memref<32x128xf32, #tpu.memory_space<vmem>>, vector<32x128xf32>
      tpu.vector_store %arg6[%c0_14, %c0_15], %16 {strides = array<i32>} : memref<32x128xf32, #tpu.memory_space<vmem>>, vector<32x128xf32>,
    } else {
    }
    return
  }
  func.func @transform_0(%arg0: i32, %arg1: i32, %arg2: i32) -> (i32, i32) {
    %c0_i32 = arith.constant 0 : i32
    return %arg0, %arg2 : i32, i32
  }
  func.func @transform_1(%arg0: i32, %arg1: i32, %arg2: i32) -> (i32, i32) {
    %c0_i32 = arith.constant 0 : i32
    return %arg2, %arg1 : i32, i32
  }
  func.func @transform_2(%arg0: i32, %arg1: i32, %arg2: i32) -> (i32, i32) {
    %c0_i32 = arith.constant 0 : i32
    %c0_i32_0 = arith.constant 0 : i32
    return %c0_i32, %arg1 : i32, i32
  }
  func.func @transform_3(%arg0: i32, %arg1: i32, %arg2: i32) -> (i32, i32) {
    %c0_i32 = arith.constant 0 : i32
    return %arg0, %arg1 : i32, i32
  }
}

</mosaic_0001>

<llo_original>
// kernel: vit_forward.42
$region0: #{vit_forward.42}
  #allocation0 [shape = 'u32[]', space=smem, size = 0x4, offset = 0x4, fixed_abs, tag = 'smem constant byte address 0x4 - core index']
  #allocation1 [shape = 'u32[144,128]{1,0:T(1,128)}', space=vmem, size = 0x12000, scoped, tag = 'internal scratch']
  #allocation2 [shape = 'f32[16,1]{1,0:T(8,128)}', space=vmem, size = 0x2000, scoped, tag = 'scratch operand']
  #allocation3 [shape = 'f32[16,1]{1,0:T(8,128)}', space=vmem, size = 0x2000, scoped, tag = 'scratch operand']
  #allocation4 [shape = 'f32[16,128]{1,0:T(8,128)}', space=vmem, size = 0x2000, scoped, tag = 'scratch operand']
  %s0 = inlined_call_operand.vmem [shape: bf16[2,16,1536], index: 0, kind: input, shape index: {}, may-alias: {0,1,2}]
  %s1 = inlined_call_operand.vmem [shape: bf16[2,16,1536], index: 1, kind: input, shape index: {}, may-alias: {0,1,2}]
  %s2 = inlined_call_operand.vmem [shape: bf16[2,16,1536], index: 2, kind: input, shape index: {}, may-alias: {0,1,2}]
  %s3 = inlined_call_operand.vmem [shape: f32[2,1,16], index: 3, kind: input, shape index: {}]
  %s4 = inlined_call_operand.vmem [shape: bf16[2,16,512], index: 4, kind: output, shape index: {}]
  %s5 = sld [smem:[#allocation0]]
  $region221: #{vit_forward.42} parent=0
    _
  %s7 = ssub.s32 1, %s5
  %s8 = scalar_select 0, %s7, %s5
  $region1: #{vit_forward.42} parent=0
    #allocation5 [shape = 'u8[8192]{0}', space=vmem, size = 0x2000, scoped, tag = 'input window, operand 0']
    #allocation6 [shape = 'u8[8192]{0}', space=vmem, size = 0x2000, scoped, tag = 'input window, operand 1']
    #allocation7 [shape = 'u8[8192]{0}', space=vmem, size = 0x2000, scoped, tag = 'input window, operand 2']
    #allocation8 [shape = 'u8[8192]{0}', space=vmem, size = 0x2000, scoped, tag = 'output window, operand 0']
    loop: start=0, step=1, limit=10
    $region2: #{vit_forward.42} parent=1 // loop_pre_header
      _
    $region3: #{vit_forward.42} parent=1 // loop_header
      %s10 = sphi 0, %s14
      %p11 = scmp.ge.s32.totalorder %s10, 10
      %s17 = sphi 0, %s43
      %s18 = sphi 0, %s39
      %s19 = sphi 0, %s35
      %s20 = sphi 0, %s31
      %s21 = sphi 0, %s17
      %s22 = sphi 0, %s18
      %s23 = sphi 0, %s19
      %s24 = sphi 0, %s20
      %s25 = sphi 0, %s21
      %s26 = sphi 0, %s22
      %s27 = sphi 0, %s23
      %s28 = sphi 0, %s24
      %s50 = sphi 0, %s52
      %s53 = sphi 0, %s50
      %s54 = sphi 0, %s53
      %s70 = sphi 0, %s54
      %s82 = sphi 0, %s84
      %s85 = sphi 0, %s82
      %s86 = sphi 0, %s85
      %s102 = sphi 0, %s86
      %s114 = sphi 0, %s116
      %s117 = sphi 0, %s114
      %s118 = sphi 0, %s117
      %s134 = sphi 0, %s118
      %s142 = sphi 0, %s144
      %s145 = sphi 0, %s142
      %s146 = sphi 0, %s145
      %s162 = sphi 0, %s146
      %s172 = sphi 0, %s174
      %s175 = sphi 0, %s172
      %s176 = sphi 0, %s175
      %s192 = sphi 0, %s176
    $region4: #{vit_forward.42} parent=1 // loop_header_branch
      %13 = sbr.rel (%p11) target = $region8
    $region5: #{vit_forward.42} parent=1 // loop_body
      %s15 = ssub.s32 %s10, 1
      %s16 = ssub.s32 %s10, 2
      %s29 = sadd.s32 1, %s20
      %p30 = scmp.ge.s32.totalorder %s29, 1
      %s31 = scalar_select %p30, 0, %s29
      %s32 = sadd.s32 1, %s19
      %s33 = scalar_select %p30, %s32, %s19
      %p34 = scmp.ge.s32.totalorder %s33, 1
      %s35 = scalar_select %p34, 0, %s33
      %s36 = sadd.s32 1, %s18
      %s37 = scalar_select %p34, %s36, %s18
      %p38 = scmp.ge.s32.totalorder %s37, 4
      %s39 = scalar_select %p38, 0, %s37
      %s40 = sadd.s32 1, %s17
      %s41 = scalar_select %p38, %s40, %s17
      %p42 = scmp.ge.s32.totalorder %s41, 2
      %s43 = scalar_select %p42, 0, %s41
      %s44 = ssub.s32 %s17, %s43
      %s45 = ssub.s32 %s19, %s35
      %s46 = sor.u32 %s44, %s45
      %s47 = ssub.s32 %s18, %s39
      %s48 = sor.u32 %s46, %s47
      %p49 = scmp.eq.s32.totalorder %s48, 0
      %s51 = sadd.s32 %s50, 1
      %s52 = scalar_select %p49, %s50, %s51
      %p55 = pneg %p49
      %p56 = scmp.eq.s32.totalorder %s10, 7
      %p57 = por %p55, %p56
      %p58 = scmp.ne.s32.totalorder %s50, %s53
      %p59 = scmp.eq.s32.totalorder %s10, 0
      %p60 = por %p58, %p59
      %p61 = scmp.ne.s32.totalorder %s50, %s53
      %p62 = scmp.eq.s32.totalorder %s15, 7
      %p63 = por %p61, %p62
      %p64 = scmp.ne.s32.totalorder %s53, %s54
      %p65 = scmp.eq.s32.totalorder %s15, 0
      %p66 = por %p64, %p65
      %p67 = scmp.ne.s32.totalorder %s53, %s54
      %p68 = scmp.eq.s32.totalorder %s16, 7
      %p69 = por %p67, %p68
      %p71 = scmp.ne.s32.totalorder %s54, %s70
      %p72 = scmp.eq.s32.totalorder %s16, 0
      %p73 = por %p71, %p72
      %s74 = sadd.s32 %s18, 4
      %s75 = sadd.s32 %s39, 4
      %s76 = ssub.s32 %s17, %s43
      %s77 = ssub.s32 %s20, %s31
      %s78 = sor.u32 %s76, %s77
      %s79 = ssub.s32 %s74, %s75
      %s80 = sor.u32 %s78, %s79
      %p81 = scmp.eq.s32.totalorder %s80, 0
      %s83 = sadd.s32 %s82, 1
      %s84 = scalar_select %p81, %s82, %s83
      %p87 = pneg %p81
      %p88 = scmp.eq.s32.totalorder %s10, 7
      %p89 = por %p87, %p88
      %p90 = scmp.ne.s32.totalorder %s82, %s85
      %p91 = scmp.eq.s32.totalorder %s10, 0
      %p92 = por %p90, %p91
      %p93 = scmp.ne.s32.totalorder %s82, %s85
      %p94 = scmp.eq.s32.totalorder %s15, 7
      %p95 = por %p93, %p94
      %p96 = scmp.ne.s32.totalorder %s85, %s86
      %p97 = scmp.eq.s32.totalorder %s15, 0
      %p98 = por %p96, %p97
      %p99 = scmp.ne.s32.totalorder %s85, %s86
      %p100 = scmp.eq.s32.totalorder %s16, 7
      %p101 = por %p99, %p100
      %p103 = scmp.ne.s32.totalorder %s86, %s102
      %p104 = scmp.eq.s32.totalorder %s16, 0
      %p105 = por %p103, %p104
      %s106 = sadd.s32 %s18, 8
      %s107 = sadd.s32 %s39, 8
      %s108 = ssub.s32 %s17, %s43
      %s109 = ssub.s32 %s20, %s31
      %s110 = sor.u32 %s108, %s109
      %s111 = ssub.s32 %s106, %s107
      %s112 = sor.u32 %s110, %s111
      %p113 = scmp.eq.s32.totalorder %s112, 0
      %s115 = sadd.s32 %s114, 1
      %s116 = scalar_select %p113, %s114, %s115
      %p119 = pneg %p113
      %p120 = scmp.eq.s32.totalorder %s10, 7
      %p121 = por %p119, %p120
      %p122 = scmp.ne.s32.totalorder %s114, %s117
      %p123 = scmp.eq.s32.totalorder %s10, 0
      %p124 = por %p122, %p123
      %p125 = scmp.ne.s32.totalorder %s114, %s117
      %p126 = scmp.eq.s32.totalorder %s15, 7
      %p127 = por %p125, %p126
      %p128 = scmp.ne.s32.totalorder %s117, %s118
      %p129 = scmp.eq.s32.totalorder %s15, 0
      %p130 = por %p128, %p129
      %p131 = scmp.ne.s32.totalorder %s117, %s118
      %p132 = scmp.eq.s32.totalorder %s16, 7
      %p133 = por %p131, %p132
      %p135 = scmp.ne.s32.totalorder %s118, %s134
      %p136 = scmp.eq.s32.totalorder %s16, 0
      %p137 = por %p135, %p136
      %s138 = ssub.s32 %s17, %s43
      %s139 = ssub.s32 %s20, %s31
      %s140 = sor.u32 %s138, %s139
      %p141 = scmp.eq.s32.totalorder %s140, 0
      %s143 = sadd.s32 %s142, 1
      %s144 = scalar_select %p141, %s142, %s143
      %p147 = pneg %p141
      %p148 = scmp.eq.s32.totalorder %s10, 7
      %p149 = por %p147, %p148
      %p150 = scmp.ne.s32.totalorder %s142, %s145
      %p151 = scmp.eq.s32.totalorder %s10, 0
      %p152 = por %p150, %p151
      %p153 = scmp.ne.s32.totalorder %s142, %s145
      %p154 = scmp.eq.s32.totalorder %s15, 7
      %p155 = por %p153, %p154
      %p156 = scmp.ne.s32.totalorder %s145, %s146
      %p157 = scmp.eq.s32.totalorder %s15, 0
      %p158 = por %p156, %p157
      %p159 = scmp.ne.s32.totalorder %s145, %s146
      %p160 = scmp.eq.s32.totalorder %s16, 7
      %p161 = por %p159, %p160
      %p163 = scmp.ne.s32.totalorder %s146, %s162
      %p164 = scmp.eq.s32.totalorder %s16, 0
      %p165 = por %p163, %p164
      %s166 = ssub.s32 %s17, %s43
      %s167 = ssub.s32 %s19, %s35
      %s168 = sor.u32 %s166, %s167
      %s169 = ssub.s32 %s18, %s39
      %s170 = sor.u32 %s168, %s169
      %p171 = scmp.eq.s32.totalorder %s170, 0
      %s173 = sadd.s32 %s172, 1
      %s174 = scalar_select %p171, %s172, %s173
      %p177 = pneg %p171
      %p178 = scmp.eq.s32.totalorder %s10, 7
      %p179 = por %p177, %p178
      %p180 = scmp.ne.s32.totalorder %s172, %s175
      %p181 = scmp.eq.s32.totalorder %s10, 0
      %p182 = por %p180, %p181
      %p183 = scmp.ne.s32.totalorder %s172, %s175
      %p184 = scmp.eq.s32.totalorder %s15, 7
      %p185 = por %p183, %p184
      %p186 = scmp.ne.s32.totalorder %s175, %s176
      %p187 = scmp.eq.s32.totalorder %s15, 0
      %p188 = por %p186, %p187
      %p189 = scmp.ne.s32.totalorder %s175, %s176
      %p190 = scmp.eq.s32.totalorder %s16, 7
      %p191 = por %p189, %p190
      %p193 = scmp.ne.s32.totalorder %s176, %s192
      %p194 = scmp.eq.s32.totalorder %s16, 0
      %p195 = por %p193, %p194
      %p196 = scmp.le.s32.totalorder 1, %s10
      %p197 = scmp.lt.s32.totalorder %s10, 9
      %p198 = pnand %p196, %p197
      %p199 = pneg %p198
      // Predicated region
      $region9: #{vit_forward.42} parent=5 // pred_check
        _
      $region10: #{vit_forward.42} parent=5 // pred_check_branch
        %201 = sbr.rel (%p198) target = $region12
      $region11: #{vit_forward.42} parent=5 // pred_region
        %s202 = ssub.s32 %s10, 1
      $region12: #{vit_forward.42} parent=5 // pred_fallthru
        _
      %p203 = scmp.lt.s32.totalorder %s10, 8
      // Predicated region
      $region13: #{vit_forward.42} parent=5 // pred_check
        %p204 = pneg %p203
      $region14: #{vit_forward.42} parent=5 // pred_check_branch
        %206 = sbr.rel (%p204) target = $region16
      $region15: #{vit_forward.42} parent=5 // pred_region
        // Predicated region
        $region17: #{vit_forward.42} parent=15 // pred_check
          %p207 = pneg %p60
        $region18: #{vit_forward.42} parent=15 // pred_check_branch
          %209 = sbr.rel (%p207) target = $region20
        $region19: #{vit_forward.42} parent=15 // pred_region
          %s210 = sand.u32 %s50, 1
          %s211 = sand.u32 %s50, 1
          %s212 = smul.addr %s211, 8
          %s213 = scalar_lea.vmem [#allocation5], %s212
          %s214 = smul.u32 2, %s19
          %s215 = smul.addr %s214, 12
          %s216 = sadd.s32 %s18, %s215
          %s217 = smul.addr %s17, 24
          %s218 = sadd.s32 %s216, %s217
          %s219 = smul.addr %s218, 4
          %s220 = scalar_lea.vmem %s0, %s219
          // Predicated region
          $region21: #{vit_forward.42} parent=19 // pred_check
            _
          $region22: #{vit_forward.42} parent=19 // pred_check_branch
            %222 = sbr.rel (0) target = $region24
          $region23: #{vit_forward.42} parent=19 // pred_region
            // Predicated region
            $region25: #{vit_forward.42} parent=23 // pred_check
              _
            $region26: #{vit_forward.42} parent=23 // pred_check_branch
              %224 = sbr.rel target = $region28
            $region27: #{vit_forward.42} parent=23 // pred_region
              // Predicated region
              $region40: #{vit_forward.42} parent=27 // pred_check
                _
              $region41: #{vit_forward.42} parent=27 // pred_check_branch
                %241 = sbr.rel (0) target = $region43
              $region42: #{vit_forward.42} parent=27 // pred_region
                loop: start=0, step=1, limit=1
                $region44: #{vit_forward.42} parent=42 // loop_pre_header
                  _
                $region45: #{vit_forward.42} parent=42 // loop_header
                  %s243 = sphi 0, %s247
                  %p244 = scmp.ge.s32.totalorder %s243, 1
                  %s248 = sphi %s220, %s220
                  %s249 = sphi %s213, %s213
                $region46: #{vit_forward.42} parent=42 // loop_header_branch
                  %246 = sbr.rel (%p244) target = $region50
                $region47: #{vit_forward.42} parent=42 // loop_body
                  _
                $region48: #{vit_forward.42} parent=42 // loop_footer
                  %s247 = sadd.s32 1, %s243
                $region49: #{vit_forward.42} parent=42 // loop_footer_branch
                  %242 = sbr.rel target = $region45
                $region50: #{vit_forward.42} parent=42 // loop_exit
                  _
                loop: start=0, step=1, limit=1
                $region51: #{vit_forward.42} parent=42 // loop_pre_header
                  _
                $region52: #{vit_forward.42} parent=42 // loop_header
                  %s252 = sphi 0, %s256
                  %p253 = scmp.ge.s32.totalorder %s252, 1
                  %s257 = sphi %s220, %s220
                  %s258 = sphi %s213, %s213
                $region53: #{vit_forward.42} parent=42 // loop_header_branch
                  %255 = sbr.rel (%p253) target = $region57
                $region54: #{vit_forward.42} parent=42 // loop_body
                  %v259 = vld [vmem:[%s257] sm:$0xf]
                  %260 = vst [vmem:[%s258] sm:$0xf] %v259
                  %v261 = vld [vmem:[%s257 + $0x30] sm:$0xf]
                  %262 = vst [vmem:[%s258 + $0x4] sm:$0xf] %v261
                $region55: #{vit_forward.42} parent=42 // loop_footer
                  %s256 = sadd.s32 1, %s252
                $region56: #{vit_forward.42} parent=42 // loop_footer_branch
                  %251 = sbr.rel target = $region52
                $region57: #{vit_forward.42} parent=42 // loop_exit
                  _
              $region43: #{vit_forward.42} parent=27 // pred_fallthru
                _
            $region28: #{vit_forward.42} parent=23 // pred_fallthru
              _
            // Predicated region
            $region29: #{vit_forward.42} parent=23 // pred_check
              _
            $region30: #{vit_forward.42} parent=23 // pred_check_branch
              %226 = sbr.rel (0) target = $region32
            $region31: #{vit_forward.42} parent=23 // pred_region
              loop: start=0, step=1, limit=1
              $region33: #{vit_forward.42} parent=31 // loop_pre_header
                _
              $region34: #{vit_forward.42} parent=31 // loop_header
                %s229 = sphi 0, %s233
                %p230 = scmp.ge.s32.totalorder %s229, 1
                %s234 = sphi %s220, %s220
                %s235 = sphi %s213, %s213
              $region35: #{vit_forward.42} parent=31 // loop_header_branch
                %232 = sbr.rel (%p230) target = $region39
              $region36: #{vit_forward.42} parent=31 // loop_body
                %v236 = vld [vmem:[%s234] sm:$0xf]
                %237 = vst [vmem:[%s235] sm:$0xf] %v236
                %v238 = vld [vmem:[%s234 + $0x30] sm:$0xf]
                %239 = vst [vmem:[%s235 + $0x4] sm:$0xf] %v238
              $region37: #{vit_forward.42} parent=31 // loop_footer
                %s233 = sadd.s32 1, %s229
              $region38: #{vit_forward.42} parent=31 // loop_footer_branch
                %228 = sbr.rel target = $region34
              $region39: #{vit_forward.42} parent=31 // loop_exit
                _
            $region32: #{vit_forward.42} parent=23 // pred_fallthru
              _
          $region24: #{vit_forward.42} parent=19 // pred_fallthru
            _
          %263 = vnop
        $region20: #{vit_forward.42} parent=15 // pred_fallthru
          _
        // Predicated region
        $region58: #{vit_forward.42} parent=15 // pred_check
          %p264 = pneg %p92
        $region59: #{vit_forward.42} parent=15 // pred_check_branch
          %266 = sbr.rel (%p264) target = $region61
        $region60: #{vit_forward.42} parent=15 // pred_region
          %s267 = sand.u32 %s82, 1
          %s268 = sand.u32 %s82, 1
          %s269 = smul.addr %s268, 8
          %s270 = scalar_lea.vmem [#allocation6], %s269
          %s271 = sadd.s32 %s18, 4
          %s272 = smul.u32 2, %s20
          %s273 = smul.addr %s272, 12
          %s274 = sadd.s32 %s271, %s273
          %s275 = smul.addr %s17, 24
          %s276 = sadd.s32 %s274, %s275
          %s277 = smul.addr %s276, 4
          %s278 = scalar_lea.vmem %s1, %s277
          // Predicated region
          $region62: #{vit_forward.42} parent=60 // pred_check
            _
          $region63: #{vit_forward.42} parent=60 // pred_check_branch
            %280 = sbr.rel (0) target = $region65
          $region64: #{vit_forward.42} parent=60 // pred_region
            // Predicated region
            $region66: #{vit_forward.42} parent=64 // pred_check
              _
            $region67: #{vit_forward.42} parent=64 // pred_check_branch
              %282 = sbr.rel target = $region69
            $region68: #{vit_forward.42} parent=64 // pred_region
              // Predicated region
              $region81: #{vit_forward.42} parent=68 // pred_check
                _
              $region82: #{vit_forward.42} parent=68 // pred_check_branch
                %299 = sbr.rel (0) target = $region84
              $region83: #{vit_forward.42} parent=68 // pred_region
                loop: start=0, step=1, limit=1
                $region85: #{vit_forward.42} parent=83 // loop_pre_header
                  _
                $region86: #{vit_forward.42} parent=83 // loop_header
                  %s301 = sphi 0, %s305
                  %p302 = scmp.ge.s32.totalorder %s301, 1
                  %s306 = sphi %s278, %s278
                  %s307 = sphi %s270, %s270
                $region87: #{vit_forward.42} parent=83 // loop_header_branch
                  %304 = sbr.rel (%p302) target = $region91
                $region88: #{vit_forward.42} parent=83 // loop_body
                  _
                $region89: #{vit_forward.42} parent=83 // loop_footer
                  %s305 = sadd.s32 1, %s301
                $region90: #{vit_forward.42} parent=83 // loop_footer_branch
                  %300 = sbr.rel target = $region86
                $region91: #{vit_forward.42} parent=83 // loop_exit
                  _
                loop: start=0, step=1, limit=1
                $region92: #{vit_forward.42} parent=83 // loop_pre_header
                  _
                $region93: #{vit_forward.42} parent=83 // loop_header
                  %s310 = sphi 0, %s314
                  %p311 = scmp.ge.s32.totalorder %s310, 1
                  %s315 = sphi %s278, %s278
                  %s316 = sphi %s270, %s270
                $region94: #{vit_forward.42} parent=83 // loop_header_branch
                  %313 = sbr.rel (%p311) target = $region98
                $region95: #{vit_forward.42} parent=83 // loop_body
                  %v317 = vld [vmem:[%s315] sm:$0xf]
                  %318 = vst [vmem:[%s316] sm:$0xf] %v317
                  %v319 = vld [vmem:[%s315 + $0x30] sm:$0xf]
                  %320 = vst [vmem:[%s316 + $0x4] sm:$0xf] %v319
                $region96: #{vit_forward.42} parent=83 // loop_footer
                  %s314 = sadd.s32 1, %s310
                $region97: #{vit_forward.42} parent=83 // loop_footer_branch
                  %309 = sbr.rel target = $region93
                $region98: #{vit_forward.42} parent=83 // loop_exit
                  _
              $region84: #{vit_forward.42} parent=68 // pred_fallthru
                _
            $region69: #{vit_forward.42} parent=64 // pred_fallthru
              _
            // Predicated region
            $region70: #{vit_forward.42} parent=64 // pred_check
              _
            $region71: #{vit_forward.42} parent=64 // pred_check_branch
              %284 = sbr.rel (0) target = $region73
            $region72: #{vit_forward.42} parent=64 // pred_region
              loop: start=0, step=1, limit=1
              $region74: #{vit_forward.42} parent=72 // loop_pre_header
                _
              $region75: #{vit_forward.42} parent=72 // loop_header
                %s287 = sphi 0, %s291
                %p288 = scmp.ge.s32.totalorder %s287, 1
                %s292 = sphi %s278, %s278
                %s293 = sphi %s270, %s270
              $region76: #{vit_forward.42} parent=72 // loop_header_branch
                %290 = sbr.rel (%p288) target = $region80
              $region77: #{vit_forward.42} parent=72 // loop_body
                %v294 = vld [vmem:[%s292] sm:$0xf]
                %295 = vst [vmem:[%s293] sm:$0xf] %v294
                %v296 = vld [vmem:[%s292 + $0x30] sm:$0xf]
                %297 = vst [vmem:[%s293 + $0x4] sm:$0xf] %v296
              $region78: #{vit_forward.42} parent=72 // loop_footer
                %s291 = sadd.s32 1, %s287
              $region79: #{vit_forward.42} parent=72 // loop_footer_branch
                %286 = sbr.rel target = $region75
              $region80: #{vit_forward.42} parent=72 // loop_exit
                _
            $region73: #{vit_forward.42} parent=64 // pred_fallthru
              _
          $region65: #{vit_forward.42} parent=60 // pred_fallthru
            _
          %321 = vnop
        $region61: #{vit_forward.42} parent=15 // pred_fallthru
          _
        // Predicated region
        $region99: #{vit_forward.42} parent=15 // pred_check
          %p322 = pneg %p124
        $region100: #{vit_forward.42} parent=15 // pred_check_branch
          %324 = sbr.rel (%p322) target = $region102
        $region101: #{vit_forward.42} parent=15 // pred_region
          %s325 = sand.u32 %s114, 1
          %s326 = sand.u32 %s114, 1
          %s327 = smul.addr %s326, 8
          %s328 = scalar_lea.vmem [#allocation7], %s327
          %s329 = sadd.s32 %s18, 8
          %s330 = smul.u32 2, %s20
          %s331 = smul.addr %s330, 12
          %s332 = sadd.s32 %s329, %s331
          %s333 = smul.addr %s17, 24
          %s334 = sadd.s32 %s332, %s333
          %s335 = smul.addr %s334, 4
          %s336 = scalar_lea.vmem %s2, %s335
          // Predicated region
          $region103: #{vit_forward.42} parent=101 // pred_check
            _
          $region104: #{vit_forward.42} parent=101 // pred_check_branch
            %338 = sbr.rel (0) target = $region106
          $region105: #{vit_forward.42} parent=101 // pred_region
            // Predicated region
            $region107: #{vit_forward.42} parent=105 // pred_check
              _
            $region108: #{vit_forward.42} parent=105 // pred_check_branch
              %340 = sbr.rel target = $region110
            $region109: #{vit_forward.42} parent=105 // pred_region
              // Predicated region
              $region122: #{vit_forward.42} parent=109 // pred_check
                _
              $region123: #{vit_forward.42} parent=109 // pred_check_branch
                %357 = sbr.rel (0) target = $region125
              $region124: #{vit_forward.42} parent=109 // pred_region
                loop: start=0, step=1, limit=1
                $region126: #{vit_forward.42} parent=124 // loop_pre_header
                  _
                $region127: #{vit_forward.42} parent=124 // loop_header
                  %s359 = sphi 0, %s363
                  %p360 = scmp.ge.s32.totalorder %s359, 1
                  %s364 = sphi %s336, %s336
                  %s365 = sphi %s328, %s328
                $region128: #{vit_forward.42} parent=124 // loop_header_branch
                  %362 = sbr.rel (%p360) target = $region132
                $region129: #{vit_forward.42} parent=124 // loop_body
                  _
                $region130: #{vit_forward.42} parent=124 // loop_footer
                  %s363 = sadd.s32 1, %s359
                $region131: #{vit_forward.42} parent=124 // loop_footer_branch
                  %358 = sbr.rel target = $region127
                $region132: #{vit_forward.42} parent=124 // loop_exit
                  _
                loop: start=0, step=1, limit=1
                $region133: #{vit_forward.42} parent=124 // loop_pre_header
                  _
                $region134: #{vit_forward.42} parent=124 // loop_header
                  %s368 = sphi 0, %s372
                  %p369 = scmp.ge.s32.totalorder %s368, 1
                  %s373 = sphi %s336, %s336
                  %s374 = sphi %s328, %s328
                $region135: #{vit_forward.42} parent=124 // loop_header_branch
                  %371 = sbr.rel (%p369) target = $region139
                $region136: #{vit_forward.42} parent=124 // loop_body
                  %v375 = vld [vmem:[%s373] sm:$0xf]
                  %376 = vst [vmem:[%s374] sm:$0xf] %v375
                  %v377 = vld [vmem:[%s373 + $0x30] sm:$0xf]
                  %378 = vst [vmem:[%s374 + $0x4] sm:$0xf] %v377
                $region137: #{vit_forward.42} parent=124 // loop_footer
                  %s372 = sadd.s32 1, %s368
                $region138: #{vit_forward.42} parent=124 // loop_footer_branch
                  %367 = sbr.rel target = $region134
                $region139: #{vit_forward.42} parent=124 // loop_exit
                  _
              $region125: #{vit_forward.42} parent=109 // pred_fallthru
                _
            $region110: #{vit_forward.42} parent=105 // pred_fallthru
              _
            // Predicated region
            $region111: #{vit_forward.42} parent=105 // pred_check
              _
            $region112: #{vit_forward.42} parent=105 // pred_check_branch
              %342 = sbr.rel (0) target = $region114
            $region113: #{vit_forward.42} parent=105 // pred_region
              loop: start=0, step=1, limit=1
              $region115: #{vit_forward.42} parent=113 // loop_pre_header
                _
              $region116: #{vit_forward.42} parent=113 // loop_header
                %s345 = sphi 0, %s349
                %p346 = scmp.ge.s32.totalorder %s345, 1
                %s350 = sphi %s336, %s336
                %s351 = sphi %s328, %s328
              $region117: #{vit_forward.42} parent=113 // loop_header_branch
                %348 = sbr.rel (%p346) target = $region121
              $region118: #{vit_forward.42} parent=113 // loop_body
                %v352 = vld [vmem:[%s350] sm:$0xf]
                %353 = vst [vmem:[%s351] sm:$0xf] %v352
                %v354 = vld [vmem:[%s350 + $0x30] sm:$0xf]
                %355 = vst [vmem:[%s351 + $0x4] sm:$0xf] %v354
              $region119: #{vit_forward.42} parent=113 // loop_footer
                %s349 = sadd.s32 1, %s345
              $region120: #{vit_forward.42} parent=113 // loop_footer_branch
                %344 = sbr.rel target = $region116
              $region121: #{vit_forward.42} parent=113 // loop_exit
                _
            $region114: #{vit_forward.42} parent=105 // pred_fallthru
              _
          $region106: #{vit_forward.42} parent=101 // pred_fallthru
            _
          %379 = vnop
        $region102: #{vit_forward.42} parent=15 // pred_fallthru
          _
        // Predicated region
        $region140: #{vit_forward.42} parent=15 // pred_check
          %p380 = pneg %p152
        $region141: #{vit_forward.42} parent=15 // pred_check_branch
          %382 = sbr.rel (%p380) target = $region143
        $region142: #{vit_forward.42} parent=15 // pred_region
          %p383 = scmp.lt.s32.totalorder %s17, 1
          %s384 = scalar_select %p383, %s17, 1
          %p385 = scmp.lt.s32.totalorder %s20, 0
          %s386 = scalar_select %p385, %s20, 0
          %s387 = sadd.s32 %s386, %s384
          %s388 = scalar_lea.vmem %s3, %s387
        $region143: #{vit_forward.42} parent=15 // pred_fallthru
          _
      $region16: #{vit_forward.42} parent=5 // pred_fallthru
        _
      %p389 = scmp.le.s32.totalorder 1, %s10
      %p390 = scmp.lt.s32.totalorder %s10, 9
      %p391 = pnand %p389, %p390
      %p392 = pneg %p391
      // Predicated region
      $region144: #{vit_forward.42} parent=5 // pred_check
        _
      $region145: #{vit_forward.42} parent=5 // pred_check_branch
        %394 = sbr.rel (%p391) target = $region147
      $region146: #{vit_forward.42} parent=5 // pred_region
        %s395 = ssub.s32 %s10, 1
        %s396 = sand.u32 %s53, 1
        %s397 = sand.u32 %s53, 1
        %s398 = smul.addr %s397, 8
        %s399 = scalar_lea.vmem [#allocation5], %s398
        // Predicated region
        $region148: #{vit_forward.42} parent=146 // pred_check
          %p400 = pneg %p66
        $region149: #{vit_forward.42} parent=146 // pred_check_branch
          %402 = sbr.rel (%p400) target = $region151
        $region150: #{vit_forward.42} parent=146 // pred_region
          _
        $region151: #{vit_forward.42} parent=146 // pred_fallthru
          _
        %s403 = sand.u32 %s85, 1
        %s404 = sand.u32 %s85, 1
        %s405 = smul.addr %s404, 8
        %s406 = scalar_lea.vmem [#allocation6], %s405
        // Predicated region
        $region152: #{vit_forward.42} parent=146 // pred_check
          %p407 = pneg %p98
        $region153: #{vit_forward.42} parent=146 // pred_check_branch
          %409 = sbr.rel (%p407) target = $region155
        $region154: #{vit_forward.42} parent=146 // pred_region
          _
        $region155: #{vit_forward.42} parent=146 // pred_fallthru
          _
        %s410 = sand.u32 %s117, 1
        %s411 = sand.u32 %s117, 1
        %s412 = smul.addr %s411, 8
        %s413 = scalar_lea.vmem [#allocation7], %s412
        // Predicated region
        $region156: #{vit_forward.42} parent=146 // pred_check
          %p414 = pneg %p130
        $region157: #{vit_forward.42} parent=146 // pred_check_branch
          %416 = sbr.rel (%p414) target = $region159
        $region158: #{vit_forward.42} parent=146 // pred_region
          _
        $region159: #{vit_forward.42} parent=146 // pred_fallthru
          _
        %s417 = sand.u32 %s53, 1
        %s418 = sand.u32 %s53, 1
        %s419 = smul.addr %s418, 8
        %s420 = scalar_lea.vmem [#allocation5], %s419
        %p421 = pneg %p66
        %p422 = pneg %p63
        %s423 = sand.u32 %s85, 1
        %s424 = sand.u32 %s85, 1
        %s425 = smul.addr %s424, 8
        %s426 = scalar_lea.vmem [#allocation6], %s425
        %p427 = pneg %p98
        %p428 = pneg %p95
        %s429 = sand.u32 %s117, 1
        %s430 = sand.u32 %s117, 1
        %s431 = smul.addr %s430, 8
        %s432 = scalar_lea.vmem [#allocation7], %s431
        %p433 = pneg %p130
        %p434 = pneg %p127
        %p435 = scmp.lt.s32.totalorder %s21, 1
        %s436 = scalar_select %p435, %s21, 1
        %p437 = scmp.lt.s32.totalorder %s24, 0
        %s438 = scalar_select %p437, %s24, 0
        %s439 = sadd.s32 %s438, %s436
        %s440 = scalar_lea.vmem %s3, %s439
        %p441 = pneg %p158
        %p442 = pneg %p155
        %p443 = pneg %p188
        %p444 = pneg %p185
        %s445 = sand.u32 %s175, 1
        %s446 = sand.u32 %s175, 1
        %s447 = smul.addr %s446, 8
        %s448 = scalar_lea.vmem [#allocation8], %s447
        %s449 = smul.u32 2, %s23
        %s450 = sadd.s32 %s22, 4
        %s451 = smul.u32 2, %s24
        %s452 = sadd.s32 %s22, 8
        %s453 = smul.u32 2, %s24
        %p454 = scmp.lt.s32.totalorder %s21, 1
        %s455 = scalar_select %p454, %s21, 1
        %p456 = scmp.lt.s32.totalorder %s24, 0
        %s457 = scalar_select %p456, %s24, 0
        %s458 = sadd.s32 %s457, %s455
        %s459 = scalar_lea.vmem %s3, %s458
        %s460 = smul.u32 2, %s23
        %p462 = scmp.eq.s32.totalorder %s24, 0
        // Predicated region
        $region160: #{vit_forward.42} parent=146 // pred_check
          %p463 = pneg %p462
        $region161: #{vit_forward.42} parent=146 // pred_check_branch
          %465 = sbr.rel (%p463) target = $region163
        $region162: #{vit_forward.42} parent=146 // pred_region
          %vm466 = vcmask 7168
          %467 = vst.msk [vmem:[#allocation2] sm:$0xff] %vm466, -1e+30
          %468 = vst.msk [vmem:[#allocation2 + $0x8] sm:$0xff] %vm466, -1e+30
          %469 = vst.msk [vmem:[#allocation3] sm:$0xff] %vm466, 0.0
          %470 = vst.msk [vmem:[#allocation3 + $0x8] sm:$0xff] %vm466, 0.0
          %471 = vst [vmem:[#allocation4] sm:$0xff] 0.0
          %472 = vst [vmem:[#allocation4 + $0x8] sm:$0xff] 0.0
        $region163: #{vit_forward.42} parent=146 // pred_fallthru
          _
        %s473 = smul.u32 %s24, 16
        %s474 = sadd.s32 %s23, 1
        %s475 = smul.u32 %s474, 16
        %s476 = ssub.s32 %s475, 1
        %p477 = scmp.le.s32.totalorder %s473, %s476
        // Predicated region
        $region164: #{vit_forward.42} parent=146 // pred_check
          %p478 = pneg %p477
        $region165: #{vit_forward.42} parent=146 // pred_check_branch
          %480 = sbr.rel (%p478) target = $region167
        $region166: #{vit_forward.42} parent=146 // pred_region
          %v481 = vld [vmem:[%s399] sm:$0xf]
          %v482 = vld [vmem:[%s399 + $0x4] sm:$0xf]
          %v483 = vld [vmem:[%s406] sm:$0xf]
          %v484 = vld [vmem:[%s406 + $0x4] sm:$0xf]
          %v485 = vld [vmem:[%s413] sm:$0xf]
          %v486 = vld [vmem:[%s413 + $0x4] sm:$0xf]
          %v489 = vunpack.c.l.b16 %v481
          %v490 = vunpack.c.l.b16 %v482
          %v491 = vpack.c.b16 %v490, %v489
          %v495 = vunpack.c.l.b16 %v483
          %v496 = vunpack.c.l.b16 %v484
          %v497 = vpack.c.b16 %v496, %v495
          %499 = vmatprep.subr.bf16.mxu0 0
          %500 = vmatpush1.bf16.xpose.msra.mxu0 %v497
          %501 = vmatprep.subr.bf16.mxu0 0
          %502 = vmatpush1.bf16.xpose.msra.mxu0 0
          %503 = vmatprep.subr.bf16.mxu0 0
          %504 = vmatpush1.bf16.xpose.msra.mxu0 0
          %505 = vmatprep.subr.bf16.mxu0 0
          %506 = vmatpush1.bf16.xpose.msra.mxu0 0
          %507 = vmatprep.subr.bf16.mxu0 0
          %508 = vmatpush1.bf16.xpose.msra.mxu0 0
          %509 = vmatprep.subr.bf16.mxu0 0
          %510 = vmatpush1.bf16.xpose.msra.mxu0 0
          %511 = vmatprep.subr.bf16.mxu0 0
          %512 = vmatpush1.bf16.xpose.msra.mxu0 0
          %513 = vmatprep.subr.bf16.mxu0 0
          %514 = vmatpush1.bf16.xpose.msra.mxu0 0
          %515 = vmatprep.subr.bf16.mxu0 0
          %516 = vmatpush1.bf16.xpose.msra.mxu0 0
          %517 = vmatprep.subr.bf16.mxu0 0
          %518 = vmatpush1.bf16.xpose.msra.mxu0 0
          %519 = vmatprep.subr.bf16.mxu0 0
          %520 = vmatpush1.bf16.xpose.msra.mxu0 0
          %521 = vmatprep.subr.bf16.mxu0 0
          %522 = vmatpush1.bf16.xpose.msra.mxu0 0
          %523 = vmatprep.subr.bf16.mxu0 0
          %524 = vmatpush1.bf16.xpose.msra.mxu0 0
          %525 = vmatprep.subr.bf16.mxu0 0
          %526 = vmatpush1.bf16.xpose.msra.mxu0 0
          %527 = vmatprep.subr.bf16.mxu0 0
          %528 = vmatpush1.bf16.xpose.msra.mxu0 0
          %529 = vmatprep.subr.bf16.mxu0 0
          %530 = vmatpush1.bf16.xpose.msra.mxu0 0
          %531 = vmatprep.mubr.bf16.mxu0 0
          %532 = vmatmul.mubr.bf16.gmra.mrb[0].mxu0 %v491
          %v533 = vpop.f32.mrb[0].mxu0
          %v534 = vadd.f32 0.0, %v533
          %v535 = vpop.f32.mrb[0].mxu0
          %v536 = vpop.f32.mrb[0].mxu0
          %v537 = vadd.f32 0.0, %v536
          %v538 = vpop.f32.mrb[0].mxu0
          %539 = vdwg.mxu0
          %v540 = vmul.f32 %v534, 0.35355338
          %v541 = vmul.f32 %v537, 0.35355338
          %v542 = vld [vmem:[%s459] sm:$0x1]
          %v544 = vlaneseq
          %v545 = vshrl.u32 %v544, 7
          %v546 = vsub.s32 0, %v545
          %v547 = vrot.slane %v542, %v546
          %v549 = vadd.f32 %v540, %v547
          %v550 = vadd.f32 %v541, %v547
          %v551 = vlaneseq
          %v552 = vand.u32 %v551, 127
          %v553 = vstv %s473
          %v554 = vadd.s32 %v553, %v552
          %vm555 = vcmp.lt.s32.totalorder %v554, 6
          %s556 = smul.u32 %s23, 16
          %v557 = vlaneseq
          %v558 = vshrl.u32 %v557, 7
          %v559 = vadd.s32 %v558, 8
          %v560 = vstv %s556
          %v561 = vadd.s32 %v560, %v558
          %v562 = vadd.s32 %v560, %v559
          %vm563 = vcmp.le.s32.totalorder %v554, %v561
          %vm564 = vcmp.le.s32.totalorder %v554, %v562
          %vm565 = vmand %vm555, %vm563
          %vm566 = vmand %vm555, %vm564
          %v567 = vsel %vm565, %v549, -1e+30
          %v568 = vsel %vm566, %v550, -1e+30
          %v569 = vld [vmem:[#allocation2] sm:$0xff]
          %v570 = vld [vmem:[#allocation2 + $0x8] sm:$0xff]
          %vm571 = vcmask 130048
          %v572 = vsel %vm571, %v567, -inf
          %573 = vmax.xlane.f32.xlu0 %v572
          %v574 = vpop.xlane.xlu0 %573
          %v575 = vsel %vm571, %v568, -inf
          %576 = vmax.xlane.f32.xlu0 %v575
          %v577 = vpop.xlane.xlu0 %576
          %v578 = vmax.f32 %v569, %v574
          %v579 = vmax.f32 %v570, %v577
          %v580 = vsub.f32 %v569, %v578
          %v581 = vsub.f32 %v570, %v579
          %v582 = vmul.f32 %v580, 1.442695
          %v583 = vpow.pop %v582
          %v584 = vmul.f32 %v581, 1.442695
          %v585 = vpow.pop %v584
          %587 = vset.pattern.permute.xlu0 0
          %588 = vperm.xlu0 %587, %v578
          %v589 = vpop.permute.xlu0 %588
          %592 = vset.pattern.permute.xlu0 0
          %593 = vperm.xlu0 %592, %v579
          %v594 = vpop.permute.xlu0 %593
          %v596 = vsub.f32 %v567, %v589
          %v597 = vsub.f32 %v568, %v594
          %v598 = vmul.f32 %v596, 1.442695
          %v599 = vpow.pop %v598
          %v600 = vmul.f32 %v597, 1.442695
          %v601 = vpow.pop %v600
          %v602 = vld [vmem:[#allocation3] sm:$0xff]
          %v603 = vld [vmem:[#allocation3 + $0x8] sm:$0xff]
          %v604 = vmul.f32 %v583, %v602
          %v605 = vmul.f32 %v585, %v603
          %v606 = vsel %vm571, %v599, 0.0
          %607 = vadd.xlane.f32.xlu0 %v606
          %v608 = vpop.xlane.xlu0 %607
          %v609 = vsel %vm571, %v601, 0.0
          %610 = vadd.xlane.f32.xlu0 %v609
          %v611 = vpop.xlane.xlu0 %610
          %v612 = vadd.f32 %v604, %v608
          %v613 = vadd.f32 %v605, %v611
          %vm614 = vcmask 7168
          %615 = vst.msk [vmem:[#allocation3] sm:$0xff] %vm614, %v612
          %616 = vst.msk [vmem:[#allocation3 + $0x8] sm:$0xff] %vm614, %v613
          %v617 = vld [vmem:[#allocation4] sm:$0xff]
          %v618 = vld [vmem:[#allocation4 + $0x8] sm:$0xff]
          %620 = vset.pattern.permute.xlu0 0
          %621 = vperm.xlu0 %620, %v583
          %v622 = vpop.permute.xlu0 %621
          %625 = vset.pattern.permute.xlu0 0
          %626 = vperm.xlu0 %625, %v585
          %v627 = vpop.permute.xlu0 %626
          %v629 = vmul.f32 %v622, %v617
          %v630 = vmul.f32 %v627, %v618
          %v631 = vpack.c.bf16 %v601, %v599
          %v634 = vunpack.c.l.b16 %v485
          %v635 = vunpack.c.l.b16 %v486
          %v636 = vpack.c.b16 %v635, %v634
          %v639 = vsel %vm571, %v631, 0
          %641 = vmatprep.subr.bf16.mxu0 0
          %642 = vmatpush1.bf16.msra.mxu0 %v636
          %643 = vmatprep.subr.bf16.mxu0 0
          %644 = vmatpush1.bf16.msra.mxu0 0
          %645 = vmatprep.subr.bf16.mxu0 0
          %646 = vmatpush1.bf16.msra.mxu0 0
          %647 = vmatprep.subr.bf16.mxu0 0
          %648 = vmatpush1.bf16.msra.mxu0 0
          %649 = vmatprep.subr.bf16.mxu0 0
          %650 = vmatpush1.bf16.msra.mxu0 0
          %651 = vmatprep.subr.bf16.mxu0 0
          %652 = vmatpush1.bf16.msra.mxu0 0
          %653 = vmatprep.subr.bf16.mxu0 0
          %654 = vmatpush1.bf16.msra.mxu0 0
          %655 = vmatprep.subr.bf16.mxu0 0
          %656 = vmatpush1.bf16.msra.mxu0 0
          %657 = vmatprep.subr.bf16.mxu0 0
          %658 = vmatpush1.bf16.msra.mxu0 0
          %659 = vmatprep.subr.bf16.mxu0 0
          %660 = vmatpush1.bf16.msra.mxu0 0
          %661 = vmatprep.subr.bf16.mxu0 0
          %662 = vmatpush1.bf16.msra.mxu0 0
          %663 = vmatprep.subr.bf16.mxu0 0
          %664 = vmatpush1.bf16.msra.mxu0 0
          %665 = vmatprep.subr.bf16.mxu0 0
          %666 = vmatpush1.bf16.msra.mxu0 0
          %667 = vmatprep.subr.bf16.mxu0 0
          %668 = vmatpush1.bf16.msra.mxu0 0
          %669 = vmatprep.subr.bf16.mxu0 0
          %670 = vmatpush1.bf16.msra.mxu0 0
          %671 = vmatprep.subr.bf16.mxu0 0
          %672 = vmatpush1.bf16.msra.mxu0 0
          %673 = vmatprep.mubr.bf16.mxu0 0
          %674 = vmatmul.mubr.bf16.gmra.mrb[0].mxu0 %v639
          %v675 = vpop.f32.mrb[0].mxu0
          %v676 = vadd.f32 0.0, %v675
          %v677 = vpop.f32.mrb[0].mxu0
          %v678 = vpop.f32.mrb[0].mxu0
          %v679 = vadd.f32 0.0, %v678
          %v680 = vpop.f32.mrb[0].mxu0
          %681 = vdwg.mxu0
          %v682 = vadd.f32 %v629, %v676
          %v683 = vadd.f32 %v630, %v679
          %684 = vst [vmem:[#allocation4] sm:$0xff] %v682
          %685 = vst [vmem:[#allocation4 + $0x8] sm:$0xff] %v683
          %686 = vst.msk [vmem:[#allocation2] sm:$0xff] %vm614, %v578
          %687 = vst.msk [vmem:[#allocation2 + $0x8] sm:$0xff] %vm614, %v579
        $region167: #{vit_forward.42} parent=146 // pred_fallthru
          _
        // Predicated region
        $region168: #{vit_forward.42} parent=146 // pred_check
          %p688 = pneg %p462
        $region169: #{vit_forward.42} parent=146 // pred_check_branch
          %690 = sbr.rel (%p688) target = $region171
        $region170: #{vit_forward.42} parent=146 // pred_region
          %v691 = vld [vmem:[#allocation4] sm:$0xff]
          %v692 = vld [vmem:[#allocation4 + $0x8] sm:$0xff]
          %v693 = vld [vmem:[#allocation3] sm:$0xff]
          %v694 = vld [vmem:[#allocation3 + $0x8] sm:$0xff]
          %v695 = vrcp.pop %v693
          %v696 = vrcp.pop %v694
          %698 = vset.pattern.permute.xlu0 0
          %699 = vperm.xlu0 %698, %v695
          %v700 = vpop.permute.xlu0 %699
          %703 = vset.pattern.permute.xlu0 0
          %704 = vperm.xlu0 %703, %v696
          %v705 = vpop.permute.xlu0 %704
          %v707 = vmul.f32 %v691, %v700
          %v708 = vmul.f32 %v692, %v705
          %v709 = vpack.c.bf16 %v708, %v707
          %v711 = vunpack.c.l.b16 %v709
          %v712 = vunpack.c.h.b16 %v709
          %v713 = vpack.c.b16 %v711, %v711
          %v714 = vpack.c.b16 %v712, %v712
          %717 = vst [vmem:[%s448] sm:$0xf] %v713
          %718 = vst [vmem:[%s448 + $0x4] sm:$0xf] %v714
        $region171: #{vit_forward.42} parent=146 // pred_fallthru
          _
        %s719 = sand.u32 %s175, 1
        %s720 = sand.u32 %s175, 1
        %s721 = smul.addr %s720, 8
        %s722 = scalar_lea.vmem [#allocation8], %s721
        // Predicated region
        $region172: #{vit_forward.42} parent=146 // pred_check
          %p723 = pneg %p185
        $region173: #{vit_forward.42} parent=146 // pred_check_branch
          %725 = sbr.rel (%p723) target = $region175
        $region174: #{vit_forward.42} parent=146 // pred_region
          %s726 = smul.u32 2, %s23
          %s727 = smul.addr %s726, 4
          %s728 = sadd.s32 %s22, %s727
          %s729 = smul.addr %s21, 8
          %s730 = sadd.s32 %s728, %s729
          %s731 = smul.addr %s730, 4
          %s732 = scalar_lea.vmem %s4, %s731
          // Predicated region
          $region176: #{vit_forward.42} parent=174 // pred_check
            _
          $region177: #{vit_forward.42} parent=174 // pred_check_branch
            %734 = sbr.rel (0) target = $region179
          $region178: #{vit_forward.42} parent=174 // pred_region
            // Predicated region
            $region180: #{vit_forward.42} parent=178 // pred_check
              _
            $region181: #{vit_forward.42} parent=178 // pred_check_branch
              %736 = sbr.rel target = $region183
            $region182: #{vit_forward.42} parent=178 // pred_region
              // Predicated region
              $region195: #{vit_forward.42} parent=182 // pred_check
                _
              $region196: #{vit_forward.42} parent=182 // pred_check_branch
                %753 = sbr.rel (0) target = $region198
              $region197: #{vit_forward.42} parent=182 // pred_region
                loop: start=0, step=1, limit=1
                $region199: #{vit_forward.42} parent=197 // loop_pre_header
                  _
                $region200: #{vit_forward.42} parent=197 // loop_header
                  %s755 = sphi 0, %s759
                  %p756 = scmp.ge.s32.totalorder %s755, 1
                  %s760 = sphi %s722, %s722
                  %s761 = sphi %s732, %s732
                $region201: #{vit_forward.42} parent=197 // loop_header_branch
                  %758 = sbr.rel (%p756) target = $region205
                $region202: #{vit_forward.42} parent=197 // loop_body
                  _
                $region203: #{vit_forward.42} parent=197 // loop_footer
                  %s759 = sadd.s32 1, %s755
                $region204: #{vit_forward.42} parent=197 // loop_footer_branch
                  %754 = sbr.rel target = $region200
                $region205: #{vit_forward.42} parent=197 // loop_exit
                  _
                loop: start=0, step=1, limit=1
                $region206: #{vit_forward.42} parent=197 // loop_pre_header
                  _
                $region207: #{vit_forward.42} parent=197 // loop_header
                  %s764 = sphi 0, %s768
                  %p765 = scmp.ge.s32.totalorder %s764, 1
                  %s769 = sphi %s722, %s722
                  %s770 = sphi %s732, %s732
                $region208: #{vit_forward.42} parent=197 // loop_header_branch
                  %767 = sbr.rel (%p765) target = $region212
                $region209: #{vit_forward.42} parent=197 // loop_body
                  %v771 = vld [vmem:[%s769] sm:$0xf]
                  %772 = vst [vmem:[%s770] sm:$0xf] %v771
                  %v773 = vld [vmem:[%s769 + $0x4] sm:$0xf]
                  %774 = vst [vmem:[%s770 + $0x10] sm:$0xf] %v773
                $region210: #{vit_forward.42} parent=197 // loop_footer
                  %s768 = sadd.s32 1, %s764
                $region211: #{vit_forward.42} parent=197 // loop_footer_branch
                  %763 = sbr.rel target = $region207
                $region212: #{vit_forward.42} parent=197 // loop_exit
                  _
              $region198: #{vit_forward.42} parent=182 // pred_fallthru
                _
            $region183: #{vit_forward.42} parent=178 // pred_fallthru
              _
            // Predicated region
            $region184: #{vit_forward.42} parent=178 // pred_check
              _
            $region185: #{vit_forward.42} parent=178 // pred_check_branch
              %738 = sbr.rel (0) target = $region187
            $region186: #{vit_forward.42} parent=178 // pred_region
              loop: start=0, step=1, limit=1
              $region188: #{vit_forward.42} parent=186 // loop_pre_header
                _
              $region189: #{vit_forward.42} parent=186 // loop_header
                %s741 = sphi 0, %s745
                %p742 = scmp.ge.s32.totalorder %s741, 1
                %s746 = sphi %s722, %s722
                %s747 = sphi %s732, %s732
              $region190: #{vit_forward.42} parent=186 // loop_header_branch
                %744 = sbr.rel (%p742) target = $region194
              $region191: #{vit_forward.42} parent=186 // loop_body
                %v748 = vld [vmem:[%s746] sm:$0xf]
                %749 = vst [vmem:[%s747] sm:$0xf] %v748
                %v750 = vld [vmem:[%s746 + $0x4] sm:$0xf]
                %751 = vst [vmem:[%s747 + $0x10] sm:$0xf] %v750
              $region192: #{vit_forward.42} parent=186 // loop_footer
                %s745 = sadd.s32 1, %s741
              $region193: #{vit_forward.42} parent=186 // loop_footer_branch
                %740 = sbr.rel target = $region189
              $region194: #{vit_forward.42} parent=186 // loop_exit
                _
            $region187: #{vit_forward.42} parent=178 // pred_fallthru
              _
          $region179: #{vit_forward.42} parent=174 // pred_fallthru
            _
          %775 = vnop
        $region175: #{vit_forward.42} parent=146 // pred_fallthru
          _
      $region147: #{vit_forward.42} parent=5 // pred_fallthru
        _
      %p776 = scmp.le.s32.totalorder 2, %s10
      // Predicated region
      $region213: #{vit_forward.42} parent=5 // pred_check
        %p777 = pneg %p776
      $region214: #{vit_forward.42} parent=5 // pred_check_branch
        %779 = sbr.rel (%p777) target = $region216
      $region215: #{vit_forward.42} parent=5 // pred_region
        %s780 = ssub.s32 %s10, 2
        // Predicated region
        $region217: #{vit_forward.42} parent=215 // pred_check
          %p781 = pneg %p191
        $region218: #{vit_forward.42} parent=215 // pred_check_branch
          %783 = sbr.rel (%p781) target = $region220
        $region219: #{vit_forward.42} parent=215 // pred_region
          %s784 = sand.u32 %s176, 1
          %s785 = sand.u32 %s176, 1
          %s786 = smul.addr %s785, 8
          %s787 = scalar_lea.vmem [#allocation8], %s786
        $region220: #{vit_forward.42} parent=215 // pred_fallthru
          _
      $region216: #{vit_forward.42} parent=5 // pred_fallthru
        _
    $region6: #{vit_forward.42} parent=1 // loop_footer
      %s14 = sadd.s32 1, %s10
    $region7: #{vit_forward.42} parent=1 // loop_footer_branch
      %9 = sbr.rel target = $region3
    $region8: #{vit_forward.42} parent=1 // loop_exit
      _

// kernel: vit_forward.44
$region0: #{vit_forward.44}
  #allocation0 [shape = 'u32[]', space=smem, size = 0x4, offset = 0x4, fixed_abs, tag = 'smem constant byte address 0x4 - core index']
  #allocation1 [shape = 'u32[144,128]{1,0:T(1,128)}', space=vmem, size = 0x12000, scoped, tag = 'internal scratch']
  #allocation2 [shape = 'f32[32,512]{1,0:T(8,128)}', space=vmem, size = 0x10000, scoped, tag = 'scratch operand']
  %s0 = inlined_call_operand.vmem [shape: f32[32,128], index: 0, kind: input, shape index: {}]
  %s1 = inlined_call_operand.vmem [shape: bf16[128,512], index: 1, kind: input, shape index: {}]
  %s2 = inlined_call_operand.vmem [shape: f32[1,512], index: 2, kind: input, shape index: {}]
  %s3 = inlined_call_operand.vmem [shape: bf16[32,512], index: 3, kind: output, shape index: {}]
  %s4 = sld [smem:[#allocation0]]
  $region30: #{vit_forward.44} parent=0
    _
  %s6 = ssub.s32 1, %s4
  %s7 = scalar_select 0, %s6, %s4
  // Predicated region
  $region2: #{vit_forward.44} parent=0 // pred_check
    _
  $region3: #{vit_forward.44} parent=0 // pred_check_branch
    %9 = sbr.rel (0) target = $region5
  $region4: #{vit_forward.44} parent=0 // pred_region
    _
  $region5: #{vit_forward.44} parent=0 // pred_fallthru
    _
  // Predicated region
  $region6: #{vit_forward.44} parent=0 // pred_check
    _
  $region7: #{vit_forward.44} parent=0 // pred_check_branch
    %11 = sbr.rel (0) target = $region9
  $region8: #{vit_forward.44} parent=0 // pred_region
    _
  $region9: #{vit_forward.44} parent=0 // pred_fallthru
    _
  // Predicated region
  $region10: #{vit_forward.44} parent=0 // pred_check
    _
  $region11: #{vit_forward.44} parent=0 // pred_check_branch
    %13 = sbr.rel (0) target = $region13
  $region12: #{vit_forward.44} parent=0 // pred_region
    _
  $region13: #{vit_forward.44} parent=0 // pred_fallthru
    _
  %p15 = scmp.eq.s32.totalorder 0, 0
  // Predicated region
  $region14: #{vit_forward.44} parent=0 // pred_check
    %p16 = pneg %p15
  $region15: #{vit_forward.44} parent=0 // pred_check_branch
    %18 = sbr.rel (%p16) target = $region17
  $region16: #{vit_forward.44} parent=0 // pred_region
    %19 = vst [vmem:[#allocation2] sm:$0xff] 0.0
    %20 = vst [vmem:[#allocation2 + $0x8] sm:$0xff] 0.0
    %21 = vst [vmem:[#allocation2 + $0x10] sm:$0xff] 0.0
    %22 = vst [vmem:[#allocation2 + $0x18] sm:$0xff] 0.0
    %23 = vst [vmem:[#allocation2 + $0x20] sm:$0xff] 0.0
    %24 = vst [vmem:[#allocation2 + $0x28] sm:$0xff] 0.0
    %25 = vst [vmem:[#allocation2 + $0x30] sm:$0xff] 0.0
    %26 = vst [vmem:[#allocation2 + $0x38] sm:$0xff] 0.0
    %27 = vst [vmem:[#allocation2 + $0x40] sm:$0xff] 0.0
    %28 = vst [vmem:[#allocation2 + $0x48] sm:$0xff] 0.0
    %29 = vst [vmem:[#allocation2 + $0x50] sm:$0xff] 0.0
    %30 = vst [vmem:[#allocation2 + $0x58] sm:$0xff] 0.0
    %31 = vst [vmem:[#allocation2 + $0x60] sm:$0xff] 0.0
    %32 = vst [vmem:[#allocation2 + $0x68] sm:$0xff] 0.0
    %33 = vst [vmem:[#allocation2 + $0x70] sm:$0xff] 0.0
    %34 = vst [vmem:[#allocation2 + $0x78] sm:$0xff] 0.0
  $region17: #{vit_forward.44} parent=0 // pred_fallthru
    _
  %v35 = vld [vmem:[#allocation2] sm:$0xff]
  %v36 = vld [vmem:[#allocation2 + $0x8] sm:$0xff]
  %v37 = vld [vmem:[#allocation2 + $0x10] sm:$0xff]
  %v38 = vld [vmem:[#allocation2 + $0x18] sm:$0xff]
  %v39 = vld [vmem:[#allocation2 + $0x20] sm:$0xff]
  %v40 = vld [vmem:[#allocation2 + $0x28] sm:$0xff]
  %v41 = vld [vmem:[#allocation2 + $0x30] sm:$0xff]
  %v42 = vld [vmem:[#allocation2 + $0x38] sm:$0xff]
  %v43 = vld [vmem:[#allocation2 + $0x40] sm:$0xff]
  %v44 = vld [vmem:[#allocation2 + $0x48] sm:$0xff]
  %v45 = vld [vmem:[#allocation2 + $0x50] sm:$0xff]
  %v46 = vld [vmem:[#allocation2 + $0x58] sm:$0xff]
  %v47 = vld [vmem:[#allocation2 + $0x60] sm:$0xff]
  %v48 = vld [vmem:[#allocation2 + $0x68] sm:$0xff]
  %v49 = vld [vmem:[#allocation2 + $0x70] sm:$0xff]
  %v50 = vld [vmem:[#allocation2 + $0x78] sm:$0xff]
  %v51 = vld [vmem:[%s0] sm:$0xff]
  %v52 = vld [vmem:[%s0 + $0x8] sm:$0xff]
  %v53 = vld [vmem:[%s0 + $0x10] sm:$0xff]
  %v54 = vld [vmem:[%s0 + $0x18] sm:$0xff]
  %v55 = vpack.c.bf16 %v52, %v51
  %v56 = vpack.c.bf16 %v54, %v53
  %v57 = vld [vmem:[%s1] sm:$0xff]
  %v58 = vld [vmem:[%s1 + $0x8] sm:$0xff]
  %v59 = vld [vmem:[%s1 + $0x10] sm:$0xff]
  %v60 = vld [vmem:[%s1 + $0x18] sm:$0xff]
  %v61 = vld [vmem:[%s1 + $0x20] sm:$0xff]
  %v62 = vld [vmem:[%s1 + $0x28] sm:$0xff]
  %v63 = vld [vmem:[%s1 + $0x30] sm:$0xff]
  %v64 = vld [vmem:[%s1 + $0x38] sm:$0xff]
  %v65 = vld [vmem:[%s1 + $0x40] sm:$0xff]
  %v66 = vld [vmem:[%s1 + $0x48] sm:$0xff]
  %v67 = vld [vmem:[%s1 + $0x50] sm:$0xff]
  %v68 = vld [vmem:[%s1 + $0x58] sm:$0xff]
  %v69 = vld [vmem:[%s1 + $0x60] sm:$0xff]
  %v70 = vld [vmem:[%s1 + $0x68] sm:$0xff]
  %v71 = vld [vmem:[%s1 + $0x70] sm:$0xff]
  %v72 = vld [vmem:[%s1 + $0x78] sm:$0xff]
  %v73 = vld [vmem:[%s1 + $0x80] sm:$0xff]
  %v74 = vld [vmem:[%s1 + $0x88] sm:$0xff]
  %v75 = vld [vmem:[%s1 + $0x90] sm:$0xff]
  %v76 = vld [vmem:[%s1 + $0x98] sm:$0xff]
  %v77 = vld [vmem:[%s1 + $0xa0] sm:$0xff]
  %v78 = vld [vmem:[%s1 + $0xa8] sm:$0xff]
  %v79 = vld [vmem:[%s1 + $0xb0] sm:$0xff]
  %v80 = vld [vmem:[%s1 + $0xb8] sm:$0xff]
  %v81 = vld [vmem:[%s1 + $0xc0] sm:$0xff]
  %v82 = vld [vmem:[%s1 + $0xc8] sm:$0xff]
  %v83 = vld [vmem:[%s1 + $0xd0] sm:$0xff]
  %v84 = vld [vmem:[%s1 + $0xd8] sm:$0xff]
  %v85 = vld [vmem:[%s1 + $0xe0] sm:$0xff]
  %v86 = vld [vmem:[%s1 + $0xe8] sm:$0xff]
  %v87 = vld [vmem:[%s1 + $0xf0] sm:$0xff]
  %v88 = vld [vmem:[%s1 + $0xf8] sm:$0xff]
  %v121 = vunpack.c.l.b16 %v57
  %v122 = vunpack.c.h.b16 %v57
  %v123 = vunpack.c.l.b16 %v58
  %v124 = vunpack.c.h.b16 %v58
  %v125 = vunpack.c.l.b16 %v59
  %v126 = vunpack.c.h.b16 %v59
  %v127 = vunpack.c.l.b16 %v60
  %v128 = vunpack.c.h.b16 %v60
  %v129 = vunpack.c.l.b16 %v61
  %v130 = vunpack.c.h.b16 %v61
  %v131 = vunpack.c.l.b16 %v62
  %v132 = vunpack.c.h.b16 %v62
  %v133 = vunpack.c.l.b16 %v63
  %v134 = vunpack.c.h.b16 %v63
  %v135 = vunpack.c.l.b16 %v64
  %v136 = vunpack.c.h.b16 %v64
  %v137 = vunpack.c.l.b16 %v65
  %v138 = vunpack.c.h.b16 %v65
  %v139 = vunpack.c.l.b16 %v66
  %v140 = vunpack.c.h.b16 %v66
  %v141 = vunpack.c.l.b16 %v67
  %v142 = vunpack.c.h.b16 %v67
  %v143 = vunpack.c.l.b16 %v68
  %v144 = vunpack.c.h.b16 %v68
  %v145 = vunpack.c.l.b16 %v69
  %v146 = vunpack.c.h.b16 %v69
  %v147 = vunpack.c.l.b16 %v70
  %v148 = vunpack.c.h.b16 %v70
  %v149 = vunpack.c.l.b16 %v71
  %v150 = vunpack.c.h.b16 %v71
  %v151 = vunpack.c.l.b16 %v72
  %v152 = vunpack.c.h.b16 %v72
  %v153 = vunpack.c.l.b16 %v73
  %v154 = vunpack.c.h.b16 %v73
  %v155 = vunpack.c.l.b16 %v74
  %v156 = vunpack.c.h.b16 %v74
  %v157 = vunpack.c.l.b16 %v75
  %v158 = vunpack.c.h.b16 %v75
  %v159 = vunpack.c.l.b16 %v76
  %v160 = vunpack.c.h.b16 %v76
  %v161 = vunpack.c.l.b16 %v77
  %v162 = vunpack.c.h.b16 %v77
  %v163 = vunpack.c.l.b16 %v78
  %v164 = vunpack.c.h.b16 %v78
  %v165 = vunpack.c.l.b16 %v79
  %v166 = vunpack.c.h.b16 %v79
  %v167 = vunpack.c.l.b16 %v80
  %v168 = vunpack.c.h.b16 %v80
  %v169 = vunpack.c.l.b16 %v81
  %v170 = vunpack.c.h.b16 %v81
  %v171 = vunpack.c.l.b16 %v82
  %v172 = vunpack.c.h.b16 %v82
  %v173 = vunpack.c.l.b16 %v83
  %v174 = vunpack.c.h.b16 %v83
  %v175 = vunpack.c.l.b16 %v84
  %v176 = vunpack.c.h.b16 %v84
  %v177 = vunpack.c.l.b16 %v85
  %v178 = vunpack.c.h.b16 %v85
  %v179 = vunpack.c.l.b16 %v86
  %v180 = vunpack.c.h.b16 %v86
  %v181 = vunpack.c.l.b16 %v87
  %v182 = vunpack.c.h.b16 %v87
  %v183 = vunpack.c.l.b16 %v88
  %v184 = vunpack.c.h.b16 %v88
  %v185 = vpack.c.b16 %v125, %v121
  %v186 = vpack.c.b16 %v126, %v122
  %v187 = vpack.c.b16 %v127, %v123
  %v188 = vpack.c.b16 %v128, %v124
  %v189 = vpack.c.b16 %v133, %v129
  %v190 = vpack.c.b16 %v134, %v130
  %v191 = vpack.c.b16 %v135, %v131
  %v192 = vpack.c.b16 %v136, %v132
  %v193 = vpack.c.b16 %v141, %v137
  %v194 = vpack.c.b16 %v142, %v138
  %v195 = vpack.c.b16 %v143, %v139
  %v196 = vpack.c.b16 %v144, %v140
  %v197 = vpack.c.b16 %v149, %v145
  %v198 = vpack.c.b16 %v150, %v146
  %v199 = vpack.c.b16 %v151, %v147
  %v200 = vpack.c.b16 %v152, %v148
  %v201 = vpack.c.b16 %v157, %v153
  %v202 = vpack.c.b16 %v158, %v154
  %v203 = vpack.c.b16 %v159, %v155
  %v204 = vpack.c.b16 %v160, %v156
  %v205 = vpack.c.b16 %v165, %v161
  %v206 = vpack.c.b16 %v166, %v162
  %v207 = vpack.c.b16 %v167, %v163
  %v208 = vpack.c.b16 %v168, %v164
  %v209 = vpack.c.b16 %v173, %v169
  %v210 = vpack.c.b16 %v174, %v170
  %v211 = vpack.c.b16 %v175, %v171
  %v212 = vpack.c.b16 %v176, %v172
  %v213 = vpack.c.b16 %v181, %v177
  %v214 = vpack.c.b16 %v182, %v178
  %v215 = vpack.c.b16 %v183, %v179
  %v216 = vpack.c.b16 %v184, %v180
  %249 = vmatprep.subr.bf16.mxu0 %v186
  %250 = vmatpush1.bf16.msra.mxu0 %v185
  %251 = vmatprep.subr.bf16.mxu0 %v190
  %252 = vmatpush1.bf16.msra.mxu0 %v189
  %253 = vmatprep.subr.bf16.mxu0 %v194
  %254 = vmatpush1.bf16.msra.mxu0 %v193
  %255 = vmatprep.subr.bf16.mxu0 %v198
  %256 = vmatpush1.bf16.msra.mxu0 %v197
  %257 = vmatprep.subr.bf16.mxu0 %v202
  %258 = vmatpush1.bf16.msra.mxu0 %v201
  %259 = vmatprep.subr.bf16.mxu0 %v206
  %260 = vmatpush1.bf16.msra.mxu0 %v205
  %261 = vmatprep.subr.bf16.mxu0 %v210
  %262 = vmatpush1.bf16.msra.mxu0 %v209
  %263 = vmatprep.subr.bf16.mxu0 %v214
  %264 = vmatpush1.bf16.msra.mxu0 %v213
  %265 = vmatprep.subr.bf16.mxu0 0
  %266 = vmatpush1.bf16.msra.mxu0 0
  %267 = vmatprep.subr.bf16.mxu0 0
  %268 = vmatpush1.bf16.msra.mxu0 0
  %269 = vmatprep.subr.bf16.mxu0 0
  %270 = vmatpush1.bf16.msra.mxu0 0
  %271 = vmatprep.subr.bf16.mxu0 0
  %272 = vmatpush1.bf16.msra.mxu0 0
  %273 = vmatprep.subr.bf16.mxu0 0
  %274 = vmatpush1.bf16.msra.mxu0 0
  %275 = vmatprep.subr.bf16.mxu0 0
  %276 = vmatpush1.bf16.msra.mxu0 0
  %277 = vmatprep.subr.bf16.mxu0 0
  %278 = vmatpush1.bf16.msra.mxu0 0
  %279 = vmatprep.subr.bf16.mxu0 0
  %280 = vmatpush1.bf16.msra.mxu0 0
  %281 = vmatprep.mubr.bf16.mxu0 0
  %282 = vmatmul.mubr.bf16.gmra.mrb[0].mxu0 %v55
  %v283 = vpop.f32.mrb[0].mxu0
  %v284 = vadd.f32 0.0, %v283
  %v285 = vpop.f32.mrb[0].mxu0
  %v286 = vadd.f32 0.0, %v285
  %v287 = vpop.f32.mrb[0].mxu0
  %v288 = vadd.f32 0.0, %v287
  %v289 = vpop.f32.mrb[0].mxu0
  %v290 = vadd.f32 0.0, %v289
  %291 = vmatprep.mubr.bf16.mxu0 0
  %292 = vmatmul.mubr.bf16.gmra.mrb[0].mxu0 %v56
  %v293 = vpop.f32.mrb[0].mxu0
  %v294 = vadd.f32 0.0, %v293
  %v295 = vpop.f32.mrb[0].mxu0
  %v296 = vadd.f32 0.0, %v295
  %v297 = vpop.f32.mrb[0].mxu0
  %v298 = vadd.f32 0.0, %v297
  %v299 = vpop.f32.mrb[0].mxu0
  %v300 = vadd.f32 0.0, %v299
  %301 = vdwg.mxu0
  %302 = vmatprep.subr.bf16.mxu0 %v188
  %303 = vmatpush1.bf16.msra.mxu0 %v187
  %304 = vmatprep.subr.bf16.mxu0 %v192
  %305 = vmatpush1.bf16.msra.mxu0 %v191
  %306 = vmatprep.subr.bf16.mxu0 %v196
  %307 = vmatpush1.bf16.msra.mxu0 %v195
  %308 = vmatprep.subr.bf16.mxu0 %v200
  %309 = vmatpush1.bf16.msra.mxu0 %v199
  %310 = vmatprep.subr.bf16.mxu0 %v204
  %311 = vmatpush1.bf16.msra.mxu0 %v203
  %312 = vmatprep.subr.bf16.mxu0 %v208
  %313 = vmatpush1.bf16.msra.mxu0 %v207
  %314 = vmatprep.subr.bf16.mxu0 %v212
  %315 = vmatpush1.bf16.msra.mxu0 %v211
  %316 = vmatprep.subr.bf16.mxu0 %v216
  %317 = vmatpush1.bf16.msra.mxu0 %v215
  %318 = vmatprep.subr.bf16.mxu0 0
  %319 = vmatpush1.bf16.msra.mxu0 0
  %320 = vmatprep.subr.bf16.mxu0 0
  %321 = vmatpush1.bf16.msra.mxu0 0
  %322 = vmatprep.subr.bf16.mxu0 0
  %323 = vmatpush1.bf16.msra.mxu0 0
  %324 = vmatprep.subr.bf16.mxu0 0
  %325 = vmatpush1.bf16.msra.mxu0 0
  %326 = vmatprep.subr.bf16.mxu0 0
  %327 = vmatpush1.bf16.msra.mxu0 0
  %328 = vmatprep.subr.bf16.mxu0 0
  %329 = vmatpush1.bf16.msra.mxu0 0
  %330 = vmatprep.subr.bf16.mxu0 0
  %331 = vmatpush1.bf16.msra.mxu0 0
  %332 = vmatprep.subr.bf16.mxu0 0
  %333 = vmatpush1.bf16.msra.mxu0 0
  %334 = vmatprep.mubr.bf16.mxu0 0
  %335 = vmatmul.mubr.bf16.gmra.mrb[0].mxu0 %v55
  %v336 = vpop.f32.mrb[0].mxu0
  %v337 = vadd.f32 0.0, %v336
  %v338 = vpop.f32.mrb[0].mxu0
  %v339 = vadd.f32 0.0, %v338
  %v340 = vpop.f32.mrb[0].mxu0
  %v341 = vadd.f32 0.0, %v340
  %v342 = vpop.f32.mrb[0].mxu0
  %v343 = vadd.f32 0.0, %v342
  %344 = vmatprep.mubr.bf16.mxu0 0
  %345 = vmatmul.mubr.bf16.gmra.mrb[0].mxu0 %v56
  %v346 = vpop.f32.mrb[0].mxu0
  %v347 = vadd.f32 0.0, %v346
  %v348 = vpop.f32.mrb[0].mxu0
  %v349 = vadd.f32 0.0, %v348
  %v350 = vpop.f32.mrb[0].mxu0
  %v351 = vadd.f32 0.0, %v350
  %v352 = vpop.f32.mrb[0].mxu0
  %v353 = vadd.f32 0.0, %v352
  %354 = vdwg.mxu0
  %v355 = vadd.f32 %v35, %v284
  %v356 = vadd.f32 %v36, %v286
  %v357 = vadd.f32 %v37, %v337
  %v358 = vadd.f32 %v38, %v339
  %v359 = vadd.f32 %v39, %v288
  %v360 = vadd.f32 %v40, %v290
  %v361 = vadd.f32 %v41, %v341
  %v362 = vadd.f32 %v42, %v343
  %v363 = vadd.f32 %v43, %v294
  %v364 = vadd.f32 %v44, %v296
  %v365 = vadd.f32 %v45, %v347
  %v366 = vadd.f32 %v46, %v349
  %v367 = vadd.f32 %v47, %v298
  %v368 = vadd.f32 %v48, %v300
  %v369 = vadd.f32 %v49, %v351
  %v370 = vadd.f32 %v50, %v353
  %371 = vst [vmem:[#allocation2] sm:$0xff] %v355
  %372 = vst [vmem:[#allocation2 + $0x8] sm:$0xff] %v356
  %373 = vst [vmem:[#allocation2 + $0x10] sm:$0xff] %v357
  %374 = vst [vmem:[#allocation2 + $0x18] sm:$0xff] %v358
  %375 = vst [vmem:[#allocation2 + $0x20] sm:$0xff] %v359
  %376 = vst [vmem:[#allocation2 + $0x28] sm:$0xff] %v360
  %377 = vst [vmem:[#allocation2 + $0x30] sm:$0xff] %v361
  %378 = vst [vmem:[#allocation2 + $0x38] sm:$0xff] %v362
  %379 = vst [vmem:[#allocation2 + $0x40] sm:$0xff] %v363
  %380 = vst [vmem:[#allocation2 + $0x48] sm:$0xff] %v364
  %381 = vst [vmem:[#allocation2 + $0x50] sm:$0xff] %v365
  %382 = vst [vmem:[#allocation2 + $0x58] sm:$0xff] %v366
  %383 = vst [vmem:[#allocation2 + $0x60] sm:$0xff] %v367
  %384 = vst [vmem:[#allocation2 + $0x68] sm:$0xff] %v368
  %385 = vst [vmem:[#allocation2 + $0x70] sm:$0xff] %v369
  %386 = vst [vmem:[#allocation2 + $0x78] sm:$0xff] %v370
  // Predicated region
  $region18: #{vit_forward.44} parent=0 // pred_check
    %p387 = pneg %p15
  $region19: #{vit_forward.44} parent=0 // pred_check_branch
    %389 = sbr.rel (%p387) target = $region21
  $region20: #{vit_forward.44} parent=0 // pred_region
    %v390 = vld [vmem:[#allocation2] sm:$0xff]
    %v391 = vld [vmem:[#allocation2 + $0x8] sm:$0xff]
    %v392 = vld [vmem:[#allocation2 + $0x10] sm:$0xff]
    %v393 = vld [vmem:[#allocation2 + $0x18] sm:$0xff]
    %v394 = vld [vmem:[#allocation2 + $0x20] sm:$0xff]
    %v395 = vld [vmem:[#allocation2 + $0x28] sm:$0xff]
    %v396 = vld [vmem:[#allocation2 + $0x30] sm:$0xff]
    %v397 = vld [vmem:[#allocation2 + $0x38] sm:$0xff]
    %v398 = vld [vmem:[#allocation2 + $0x40] sm:$0xff]
    %v399 = vld [vmem:[#allocation2 + $0x48] sm:$0xff]
    %v400 = vld [vmem:[#allocation2 + $0x50] sm:$0xff]
    %v401 = vld [vmem:[#allocation2 + $0x58] sm:$0xff]
    %v402 = vld [vmem:[#allocation2 + $0x60] sm:$0xff]
    %v403 = vld [vmem:[#allocation2 + $0x68] sm:$0xff]
    %v404 = vld [vmem:[#allocation2 + $0x70] sm:$0xff]
    %v405 = vld [vmem:[#allocation2 + $0x78] sm:$0xff]
    %v406 = vld [vmem:[%s2] sm:$0xf]
    %v408 = vlaneseq
    %v409 = vshrl.u32 %v408, 7
    %v410 = vsub.s32 0, %v409
    %v411 = vrot.slane %v406, %v410
    %v412 = vlaneseq
    %v413 = vshrl.u32 %v412, 7
    %v414 = vsub.s32 1, %v413
    %v415 = vrot.slane %v406, %v414
    %v416 = vlaneseq
    %v417 = vshrl.u32 %v416, 7
    %v418 = vsub.s32 2, %v417
    %v419 = vrot.slane %v406, %v418
    %v420 = vlaneseq
    %v421 = vshrl.u32 %v420, 7
    %v422 = vsub.s32 3, %v421
    %v423 = vrot.slane %v406, %v422
    %v428 = vadd.f32 %v390, %v411
    %v429 = vadd.f32 %v391, %v415
    %v430 = vadd.f32 %v392, %v419
    %v431 = vadd.f32 %v393, %v423
    %v432 = vadd.f32 %v394, %v411
    %v433 = vadd.f32 %v395, %v415
    %v434 = vadd.f32 %v396, %v419
    %v435 = vadd.f32 %v397, %v423
    %v436 = vadd.f32 %v398, %v411
    %v437 = vadd.f32 %v399, %v415
    %v438 = vadd.f32 %v400, %v419
    %v439 = vadd.f32 %v401, %v423
    %v440 = vadd.f32 %v402, %v411
    %v441 = vadd.f32 %v403, %v415
    %v442 = vadd.f32 %v404, %v419
    %v443 = vadd.f32 %v405, %v423
    %v444 = vpack.c.bf16 %v432, %v428
    %v445 = vpack.c.bf16 %v433, %v429
    %v446 = vpack.c.bf16 %v434, %v430
    %v447 = vpack.c.bf16 %v435, %v431
    %v448 = vpack.c.bf16 %v440, %v436
    %v449 = vpack.c.bf16 %v441, %v437
    %v450 = vpack.c.bf16 %v442, %v438
    %v451 = vpack.c.bf16 %v443, %v439
    %v460 = vunpack.c.l.b16 %v444
    %v461 = vunpack.c.l.b16 %v445
    %v462 = vunpack.c.l.b16 %v446
    %v463 = vunpack.c.l.b16 %v447
    %v464 = vunpack.c.h.b16 %v444
    %v465 = vunpack.c.h.b16 %v445
    %v466 = vunpack.c.h.b16 %v446
    %v467 = vunpack.c.h.b16 %v447
    %v468 = vunpack.c.l.b16 %v448
    %v469 = vunpack.c.l.b16 %v449
    %v470 = vunpack.c.l.b16 %v450
    %v471 = vunpack.c.l.b16 %v451
    %v472 = vunpack.c.h.b16 %v448
    %v473 = vunpack.c.h.b16 %v449
    %v474 = vunpack.c.h.b16 %v450
    %v475 = vunpack.c.h.b16 %v451
    %v476 = vpack.c.b16 %v461, %v460
    %v477 = vpack.c.b16 %v463, %v462
    %v478 = vpack.c.b16 %v465, %v464
    %v479 = vpack.c.b16 %v467, %v466
    %v480 = vpack.c.b16 %v469, %v468
    %v481 = vpack.c.b16 %v471, %v470
    %v482 = vpack.c.b16 %v473, %v472
    %v483 = vpack.c.b16 %v475, %v474
    %492 = vst [vmem:[%s3] sm:$0xff] %v476
    %493 = vst [vmem:[%s3 + $0x8] sm:$0xff] %v477
    %494 = vst [vmem:[%s3 + $0x10] sm:$0xff] %v478
    %495 = vst [vmem:[%s3 + $0x18] sm:$0xff] %v479
    %496 = vst [vmem:[%s3 + $0x20] sm:$0xff] %v480
    %497 = vst [vmem:[%s3 + $0x28] sm:$0xff] %v481
    %498 = vst [vmem:[%s3 + $0x30] sm:$0xff] %v482
    %499 = vst [vmem:[%s3 + $0x38] sm:$0xff] %v483
  $region21: #{vit_forward.44} parent=0 // pred_fallthru
    _
  // Predicated region
  $region22: #{vit_forward.44} parent=0 // pred_check
    _
  $region23: #{vit_forward.44} parent=0 // pred_check_branch
    %501 = sbr.rel (0) target = $region25
  $region24: #{vit_forward.44} parent=0 // pred_region
    _
  $region25: #{vit_forward.44} parent=0 // pred_fallthru
    _
  // Predicated region
  $region26: #{vit_forward.44} parent=0 // pred_check
    _
  $region27: #{vit_forward.44} parent=0 // pred_check_branch
    %503 = sbr.rel (0) target = $region29
  $region28: #{vit_forward.44} parent=0 // pred_region
    _
  $region29: #{vit_forward.44} parent=0 // pred_fallthru
    _

// kernel: vit_forward.41
$region0: #{vit_forward.41}
  #allocation0 [shape = 'u32[]', space=smem, size = 0x4, offset = 0x4, fixed_abs, tag = 'smem constant byte address 0x4 - core index']
  #allocation1 [shape = 'u32[144,128]{1,0:T(1,128)}', space=vmem, size = 0x12000, scoped, tag = 'internal scratch']
  #allocation2 [shape = 'f32[32,512]{1,0:T(8,128)}', space=vmem, size = 0x10000, scoped, tag = 'scratch operand']
  %s0 = inlined_call_operand.vmem [shape: f32[32,128], index: 0, kind: input, shape index: {}]
  %s1 = inlined_call_operand.hbm [shape: bf16[128,1536], index: 1, kind: input, shape index: {}]
  %s2 = inlined_call_operand.vmem [shape: f32[1,1536], index: 2, kind: input, shape index: {}]
  %s3 = inlined_call_operand.vmem [shape: bf16[32,1536], index: 3, kind: output, shape index: {}]
  %s4 = sld [smem:[#allocation0]]
  $region76: #{vit_forward.41} parent=0
    _
  %s6 = ssub.s32 1, %s4
  %s7 = scalar_select 0, %s6, %s4
  $region1: #{vit_forward.41} parent=0
    #allocation3 [shape = 'u8[262144]{0}', space=vmem, size = 0x40000, scoped, tag = 'input window, operand 1']
    #allocation4 [shape = 's32[2]{0}', space=sflag, size = 0x8, scoped, tag = 'scoped memory for vit_forward.41']
    #allocation5 [shape = 'u8[65536]{0}', space=vmem, size = 0x10000, scoped, tag = 'output window, operand 0']
    %8 = vsyncpa [#allocation4], 0
    %s9 = scalar_lea.sflag [#allocation4], 1
    %10 = vsyncpa %s9, 0
    loop: start=0, step=1, limit=5
    $region2: #{vit_forward.41} parent=1 // loop_pre_header
      _
    $region3: #{vit_forward.41} parent=1 // loop_header
      %s12 = sphi 0, %s16
      %p13 = scmp.ge.s32.totalorder %s12, 5
      %s19 = sphi 0, %s38
      %s20 = sphi 0, %s34
      %s21 = sphi 0, %s30
      %s22 = sphi 0, %s19
      %s23 = sphi 0, %s20
      %s24 = sphi 0, %s21
      %s25 = sphi 0, %s22
      %s26 = sphi 0, %s23
      %s27 = sphi 0, %s24
      %s43 = sphi 0, %s45
      %s46 = sphi 0, %s43
      %s47 = sphi 0, %s46
      %s63 = sphi 0, %s47
      %s71 = sphi 0, %s73
      %s74 = sphi 0, %s71
      %s75 = sphi 0, %s74
      %s91 = sphi 0, %s75
      %s97 = sphi 0, %s99
      %s100 = sphi 0, %s97
      %s101 = sphi 0, %s100
      %s117 = sphi 0, %s101
      %s125 = sphi 0, %s127
      %s128 = sphi 0, %s125
      %s129 = sphi 0, %s128
      %s145 = sphi 0, %s129
    $region4: #{vit_forward.41} parent=1 // loop_header_branch
      %15 = sbr.rel (%p13) target = $region8
    $region5: #{vit_forward.41} parent=1 // loop_body
      %s17 = ssub.s32 %s12, 1
      %s18 = ssub.s32 %s12, 2
      %s28 = sadd.s32 1, %s21
      %p29 = scmp.ge.s32.totalorder %s28, 1
      %s30 = scalar_select %p29, 0, %s28
      %s31 = sadd.s32 1, %s20
      %s32 = scalar_select %p29, %s31, %s20
      %p33 = scmp.ge.s32.totalorder %s32, 3
      %s34 = scalar_select %p33, 0, %s32
      %s35 = sadd.s32 1, %s19
      %s36 = scalar_select %p33, %s35, %s19
      %p37 = scmp.ge.s32.totalorder %s36, 1
      %s38 = scalar_select %p37, 0, %s36
      %s39 = ssub.s32 %s19, %s38
      %s40 = ssub.s32 %s21, %s30
      %s41 = sor.u32 %s39, %s40
      %p42 = scmp.eq.s32.totalorder %s41, 0
      %s44 = sadd.s32 %s43, 1
      %s45 = scalar_select %p42, %s43, %s44
      %p48 = pneg %p42
      %p49 = scmp.eq.s32.totalorder %s12, 2
      %p50 = por %p48, %p49
      %p51 = scmp.ne.s32.totalorder %s43, %s46
      %p52 = scmp.eq.s32.totalorder %s12, 0
      %p53 = por %p51, %p52
      %p54 = scmp.ne.s32.totalorder %s43, %s46
      %p55 = scmp.eq.s32.totalorder %s17, 2
      %p56 = por %p54, %p55
      %p57 = scmp.ne.s32.totalorder %s46, %s47
      %p58 = scmp.eq.s32.totalorder %s17, 0
      %p59 = por %p57, %p58
      %p60 = scmp.ne.s32.totalorder %s46, %s47
      %p61 = scmp.eq.s32.totalorder %s18, 2
      %p62 = por %p60, %p61
      %p64 = scmp.ne.s32.totalorder %s47, %s63
      %p65 = scmp.eq.s32.totalorder %s18, 0
      %p66 = por %p64, %p65
      %s67 = ssub.s32 %s21, %s30
      %s68 = ssub.s32 %s20, %s34
      %s69 = sor.u32 %s67, %s68
      %p70 = scmp.eq.s32.totalorder %s69, 0
      %s72 = sadd.s32 %s71, 1
      %s73 = scalar_select %p70, %s71, %s72
      %p76 = pneg %p70
      %p77 = scmp.eq.s32.totalorder %s12, 2
      %p78 = por %p76, %p77
      %p79 = scmp.ne.s32.totalorder %s71, %s74
      %p80 = scmp.eq.s32.totalorder %s12, 0
      %p81 = por %p79, %p80
      %p82 = scmp.ne.s32.totalorder %s71, %s74
      %p83 = scmp.eq.s32.totalorder %s17, 2
      %p84 = por %p82, %p83
      %p85 = scmp.ne.s32.totalorder %s74, %s75
      %p86 = scmp.eq.s32.totalorder %s17, 0
      %p87 = por %p85, %p86
      %p88 = scmp.ne.s32.totalorder %s74, %s75
      %p89 = scmp.eq.s32.totalorder %s18, 2
      %p90 = por %p88, %p89
      %p92 = scmp.ne.s32.totalorder %s75, %s91
      %p93 = scmp.eq.s32.totalorder %s18, 0
      %p94 = por %p92, %p93
      %s95 = ssub.s32 %s20, %s34
      %p96 = scmp.eq.s32.totalorder %s95, 0
      %s98 = sadd.s32 %s97, 1
      %s99 = scalar_select %p96, %s97, %s98
      %p102 = pneg %p96
      %p103 = scmp.eq.s32.totalorder %s12, 2
      %p104 = por %p102, %p103
      %p105 = scmp.ne.s32.totalorder %s97, %s100
      %p106 = scmp.eq.s32.totalorder %s12, 0
      %p107 = por %p105, %p106
      %p108 = scmp.ne.s32.totalorder %s97, %s100
      %p109 = scmp.eq.s32.totalorder %s17, 2
      %p110 = por %p108, %p109
      %p111 = scmp.ne.s32.totalorder %s100, %s101
      %p112 = scmp.eq.s32.totalorder %s17, 0
      %p113 = por %p111, %p112
      %p114 = scmp.ne.s32.totalorder %s100, %s101
      %p115 = scmp.eq.s32.totalorder %s18, 2
      %p116 = por %p114, %p115
      %p118 = scmp.ne.s32.totalorder %s101, %s117
      %p119 = scmp.eq.s32.totalorder %s18, 0
      %p120 = por %p118, %p119
      %s121 = ssub.s32 %s19, %s38
      %s122 = ssub.s32 %s20, %s34
      %s123 = sor.u32 %s121, %s122
      %p124 = scmp.eq.s32.totalorder %s123, 0
      %s126 = sadd.s32 %s125, 1
      %s127 = scalar_select %p124, %s125, %s126
      %p130 = pneg %p124
      %p131 = scmp.eq.s32.totalorder %s12, 2
      %p132 = por %p130, %p131
      %p133 = scmp.ne.s32.totalorder %s125, %s128
      %p134 = scmp.eq.s32.totalorder %s12, 0
      %p135 = por %p133, %p134
      %p136 = scmp.ne.s32.totalorder %s125, %s128
      %p137 = scmp.eq.s32.totalorder %s17, 2
      %p138 = por %p136, %p137
      %p139 = scmp.ne.s32.totalorder %s128, %s129
      %p140 = scmp.eq.s32.totalorder %s17, 0
      %p141 = por %p139, %p140
      %p142 = scmp.ne.s32.totalorder %s128, %s129
      %p143 = scmp.eq.s32.totalorder %s18, 2
      %p144 = por %p142, %p143
      %p146 = scmp.ne.s32.totalorder %s129, %s145
      %p147 = scmp.eq.s32.totalorder %s18, 0
      %p148 = por %p146, %p147
      %p149 = scmp.le.s32.totalorder 1, %s12
      %p150 = scmp.lt.s32.totalorder %s12, 4
      %p151 = pnand %p149, %p150
      %p152 = pneg %p151
      // Predicated region
      $region9: #{vit_forward.41} parent=5 // pred_check
        _
      $region10: #{vit_forward.41} parent=5 // pred_check_branch
        %154 = sbr.rel (%p151) target = $region12
      $region11: #{vit_forward.41} parent=5 // pred_region
        %s155 = ssub.s32 %s12, 1
        // Predicated region
        $region13: #{vit_forward.41} parent=11 // pred_check
          %p156 = pneg %p59
        $region14: #{vit_forward.41} parent=11 // pred_check_branch
          %158 = sbr.rel (%p156) target = $region16
        $region15: #{vit_forward.41} parent=11 // pred_region
          %s159 = smul.u32 4, %s22
          %p160 = scmp.lt.s32.totalorder %s159, 3
          %s161 = scalar_select %p160, %s159, 3
          %p162 = scmp.lt.s32.totalorder %s24, 0
          %s163 = scalar_select %p162, %s24, 0
          %s164 = sadd.s32 %s163, %s161
          %s165 = smul.addr %s164, 8
          %s166 = scalar_lea.vmem %s0, %s165
          %s167 = smul.u32 4, %s22
        $region16: #{vit_forward.41} parent=11 // pred_fallthru
          _
      $region12: #{vit_forward.41} parent=5 // pred_fallthru
        _
      %p168 = scmp.lt.s32.totalorder %s12, 3
      // Predicated region
      $region17: #{vit_forward.41} parent=5 // pred_check
        %p169 = pneg %p168
      $region18: #{vit_forward.41} parent=5 // pred_check_branch
        %171 = sbr.rel (%p169) target = $region20
      $region19: #{vit_forward.41} parent=5 // pred_region
        // Predicated region
        $region21: #{vit_forward.41} parent=19 // pred_check
          %p172 = pneg %p81
        $region22: #{vit_forward.41} parent=19 // pred_check_branch
          %174 = sbr.rel (%p172) target = $region24
        $region23: #{vit_forward.41} parent=19 // pred_region
          %s175 = sand.u32 %s71, 1
          %s176 = scalar_lea.sflag [#allocation4], %s175
          %s177 = sand.u32 %s71, 1
          %s178 = smul.addr %s177, 256
          %s179 = scalar_lea.vmem [#allocation3], %s178
          %s180 = smul.u32 16, %s21
          %s181 = smul.u32 4, %s20
          %s183 = ssub.s32 4096, 4096
          %184 = vsyncadd %s176, %s183
          %s185 = smul.addr %s180, 12
          %s186 = sadd.s32 %s181, %s185
          %s187 = smul.addr %s186, 64
          %s188 = scalar_lea.hbm %s1, %s187
          %s189 = sshll.u32 %s179, 4
          %s190 = int_to_ptr.vmem [resolvable:$true] %s189
          %195 = dma.hbm_to_vmem [thread:$0]  %s188, 4096, %s190, %s176, 768, 256, 16
        $region24: #{vit_forward.41} parent=19 // pred_fallthru
          _
        // Predicated region
        $region25: #{vit_forward.41} parent=19 // pred_check
          %p196 = pneg %p107
        $region26: #{vit_forward.41} parent=19 // pred_check_branch
          %198 = sbr.rel (%p196) target = $region28
        $region27: #{vit_forward.41} parent=19 // pred_region
          %s199 = smul.u32 4, %s20
          %p200 = scmp.lt.s32.totalorder %s199, 11
          %s201 = scalar_select %p200, %s199, 11
          %s202 = scalar_lea.vmem %s2, %s201
          %s203 = smul.u32 4, %s20
        $region28: #{vit_forward.41} parent=19 // pred_fallthru
          _
      $region20: #{vit_forward.41} parent=5 // pred_fallthru
        _
      %p204 = scmp.le.s32.totalorder 1, %s12
      %p205 = scmp.lt.s32.totalorder %s12, 4
      %p206 = pnand %p204, %p205
      %p207 = pneg %p206
      // Predicated region
      $region29: #{vit_forward.41} parent=5 // pred_check
        _
      $region30: #{vit_forward.41} parent=5 // pred_check_branch
        %209 = sbr.rel (%p206) target = $region32
      $region31: #{vit_forward.41} parent=5 // pred_region
        %s210 = ssub.s32 %s12, 1
        %s211 = sand.u32 %s74, 1
        %s212 = scalar_lea.sflag [#allocation4], %s211
        %s213 = sand.u32 %s74, 1
        %s214 = smul.addr %s213, 256
        %s215 = scalar_lea.vmem [#allocation3], %s214
        // Predicated region
        $region33: #{vit_forward.41} parent=31 // pred_check
          %p216 = pneg %p87
        $region34: #{vit_forward.41} parent=31 // pred_check_branch
          %218 = sbr.rel (%p216) target = $region36
        $region35: #{vit_forward.41} parent=31 // pred_region
          %219 = dma.done %s212, 4096
        $region36: #{vit_forward.41} parent=31 // pred_fallthru
          _
        %s220 = smul.u32 4, %s22
        %p221 = scmp.lt.s32.totalorder %s220, 3
        %s222 = scalar_select %p221, %s220, 3
        %p223 = scmp.lt.s32.totalorder %s24, 0
        %s224 = scalar_select %p223, %s24, 0
        %s225 = sadd.s32 %s224, %s222
        %s226 = smul.addr %s225, 8
        %s227 = scalar_lea.vmem %s0, %s226
        %p228 = pneg %p59
        %p229 = pneg %p56
        %s230 = sand.u32 %s74, 1
        %s231 = scalar_lea.sflag [#allocation4], %s230
        %s232 = sand.u32 %s74, 1
        %s233 = smul.addr %s232, 256
        %s234 = scalar_lea.vmem [#allocation3], %s233
        %p235 = pneg %p87
        %p236 = pneg %p84
        %s237 = smul.u32 4, %s23
        %p238 = scmp.lt.s32.totalorder %s237, 11
        %s239 = scalar_select %p238, %s237, 11
        %s240 = scalar_lea.vmem %s2, %s239
        %p241 = pneg %p113
        %p242 = pneg %p110
        %p243 = pneg %p141
        %p244 = pneg %p138
        %s245 = sand.u32 %s128, 1
        %s246 = sand.u32 %s128, 1
        %s247 = smul.addr %s246, 64
        %s248 = scalar_lea.vmem [#allocation5], %s247
        %s249 = smul.u32 4, %s22
        %p250 = scmp.lt.s32.totalorder %s249, 3
        %s251 = scalar_select %p250, %s249, 3
        %p252 = scmp.lt.s32.totalorder %s24, 0
        %s253 = scalar_select %p252, %s24, 0
        %s254 = sadd.s32 %s253, %s251
        %s255 = smul.addr %s254, 8
        %s256 = scalar_lea.vmem %s0, %s255
        %s257 = smul.u32 4, %s22
        %s258 = smul.u32 16, %s24
        %s259 = smul.u32 4, %s23
        %s260 = smul.u32 4, %s23
        %p261 = scmp.lt.s32.totalorder %s260, 11
        %s262 = scalar_select %p261, %s260, 11
        %s263 = scalar_lea.vmem %s2, %s262
        %s264 = smul.u32 4, %s23
        %s265 = smul.u32 4, %s22
        %s266 = smul.u32 4, %s23
        %p268 = scmp.eq.s32.totalorder %s24, 0
        // Predicated region
        $region37: #{vit_forward.41} parent=31 // pred_check
          %p269 = pneg %p268
        $region38: #{vit_forward.41} parent=31 // pred_check_branch
          %271 = sbr.rel (%p269) target = $region40
        $region39: #{vit_forward.41} parent=31 // pred_region
          %272 = vst [vmem:[#allocation2] sm:$0xff] 0.0
          %273 = vst [vmem:[#allocation2 + $0x8] sm:$0xff] 0.0
          %274 = vst [vmem:[#allocation2 + $0x10] sm:$0xff] 0.0
          %275 = vst [vmem:[#allocation2 + $0x18] sm:$0xff] 0.0
          %276 = vst [vmem:[#allocation2 + $0x20] sm:$0xff] 0.0
          %277 = vst [vmem:[#allocation2 + $0x28] sm:$0xff] 0.0
          %278 = vst [vmem:[#allocation2 + $0x30] sm:$0xff] 0.0
          %279 = vst [vmem:[#allocation2 + $0x38] sm:$0xff] 0.0
          %280 = vst [vmem:[#allocation2 + $0x40] sm:$0xff] 0.0
          %281 = vst [vmem:[#allocation2 + $0x48] sm:$0xff] 0.0
          %282 = vst [vmem:[#allocation2 + $0x50] sm:$0xff] 0.0
          %283 = vst [vmem:[#allocation2 + $0x58] sm:$0xff] 0.0
          %284 = vst [vmem:[#allocation2 + $0x60] sm:$0xff] 0.0
          %285 = vst [vmem:[#allocation2 + $0x68] sm:$0xff] 0.0
          %286 = vst [vmem:[#allocation2 + $0x70] sm:$0xff] 0.0
          %287 = vst [vmem:[#allocation2 + $0x78] sm:$0xff] 0.0
        $region40: #{vit_forward.41} parent=31 // pred_fallthru
          _
        %v288 = vld [vmem:[#allocation2] sm:$0xff]
        %v289 = vld [vmem:[#allocation2 + $0x8] sm:$0xff]
        %v290 = vld [vmem:[#allocation2 + $0x10] sm:$0xff]
        %v291 = vld [vmem:[#allocation2 + $0x18] sm:$0xff]
        %v292 = vld [vmem:[#allocation2 + $0x20] sm:$0xff]
        %v293 = vld [vmem:[#allocation2 + $0x28] sm:$0xff]
        %v294 = vld [vmem:[#allocation2 + $0x30] sm:$0xff]
        %v295 = vld [vmem:[#allocation2 + $0x38] sm:$0xff]
        %v296 = vld [vmem:[#allocation2 + $0x40] sm:$0xff]
        %v297 = vld [vmem:[#allocation2 + $0x48] sm:$0xff]
        %v298 = vld [vmem:[#allocation2 + $0x50] sm:$0xff]
        %v299 = vld [vmem:[#allocation2 + $0x58] sm:$0xff]
        %v300 = vld [vmem:[#allocation2 + $0x60] sm:$0xff]
        %v301 = vld [vmem:[#allocation2 + $0x68] sm:$0xff]
        %v302 = vld [vmem:[#allocation2 + $0x70] sm:$0xff]
        %v303 = vld [vmem:[#allocation2 + $0x78] sm:$0xff]
        %v304 = vld [vmem:[%s256] sm:$0xff]
        %v305 = vld [vmem:[%s256 + $0x8] sm:$0xff]
        %v306 = vld [vmem:[%s256 + $0x10] sm:$0xff]
        %v307 = vld [vmem:[%s256 + $0x18] sm:$0xff]
        %v308 = vpack.c.bf16 %v305, %v304
        %v309 = vpack.c.bf16 %v307, %v306
        %v310 = vld [vmem:[%s215] sm:$0xff]
        %v311 = vld [vmem:[%s215 + $0x8] sm:$0xff]
        %v312 = vld [vmem:[%s215 + $0x10] sm:$0xff]
        %v313 = vld [vmem:[%s215 + $0x18] sm:$0xff]
        %v314 = vld [vmem:[%s215 + $0x20] sm:$0xff]
        %v315 = vld [vmem:[%s215 + $0x28] sm:$0xff]
        %v316 = vld [vmem:[%s215 + $0x30] sm:$0xff]
        %v317 = vld [vmem:[%s215 + $0x38] sm:$0xff]
        %v318 = vld [vmem:[%s215 + $0x40] sm:$0xff]
        %v319 = vld [vmem:[%s215 + $0x48] sm:$0xff]
        %v320 = vld [vmem:[%s215 + $0x50] sm:$0xff]
        %v321 = vld [vmem:[%s215 + $0x58] sm:$0xff]
        %v322 = vld [vmem:[%s215 + $0x60] sm:$0xff]
        %v323 = vld [vmem:[%s215 + $0x68] sm:$0xff]
        %v324 = vld [vmem:[%s215 + $0x70] sm:$0xff]
        %v325 = vld [vmem:[%s215 + $0x78] sm:$0xff]
        %v326 = vld [vmem:[%s215 + $0x80] sm:$0xff]
        %v327 = vld [vmem:[%s215 + $0x88] sm:$0xff]
        %v328 = vld [vmem:[%s215 + $0x90] sm:$0xff]
        %v329 = vld [vmem:[%s215 + $0x98] sm:$0xff]
        %v330 = vld [vmem:[%s215 + $0xa0] sm:$0xff]
        %v331 = vld [vmem:[%s215 + $0xa8] sm:$0xff]
        %v332 = vld [vmem:[%s215 + $0xb0] sm:$0xff]
        %v333 = vld [vmem:[%s215 + $0xb8] sm:$0xff]
        %v334 = vld [vmem:[%s215 + $0xc0] sm:$0xff]
        %v335 = vld [vmem:[%s215 + $0xc8] sm:$0xff]
        %v336 = vld [vmem:[%s215 + $0xd0] sm:$0xff]
        %v337 = vld [vmem:[%s215 + $0xd8] sm:$0xff]
        %v338 = vld [vmem:[%s215 + $0xe0] sm:$0xff]
        %v339 = vld [vmem:[%s215 + $0xe8] sm:$0xff]
        %v340 = vld [vmem:[%s215 + $0xf0] sm:$0xff]
        %v341 = vld [vmem:[%s215 + $0xf8] sm:$0xff]
        %v374 = vunpack.c.l.b16 %v310
        %v375 = vunpack.c.h.b16 %v310
        %v376 = vunpack.c.l.b16 %v311
        %v377 = vunpack.c.h.b16 %v311
        %v378 = vunpack.c.l.b16 %v312
        %v379 = vunpack.c.h.b16 %v312
        %v380 = vunpack.c.l.b16 %v313
        %v381 = vunpack.c.h.b16 %v313
        %v382 = vunpack.c.l.b16 %v314
        %v383 = vunpack.c.h.b16 %v314
        %v384 = vunpack.c.l.b16 %v315
        %v385 = vunpack.c.h.b16 %v315
        %v386 = vunpack.c.l.b16 %v316
        %v387 = vunpack.c.h.b16 %v316
        %v388 = vunpack.c.l.b16 %v317
        %v389 = vunpack.c.h.b16 %v317
        %v390 = vunpack.c.l.b16 %v318
        %v391 = vunpack.c.h.b16 %v318
        %v392 = vunpack.c.l.b16 %v319
        %v393 = vunpack.c.h.b16 %v319
        %v394 = vunpack.c.l.b16 %v320
        %v395 = vunpack.c.h.b16 %v320
        %v396 = vunpack.c.l.b16 %v321
        %v397 = vunpack.c.h.b16 %v321
        %v398 = vunpack.c.l.b16 %v322
        %v399 = vunpack.c.h.b16 %v322
        %v400 = vunpack.c.l.b16 %v323
        %v401 = vunpack.c.h.b16 %v323
        %v402 = vunpack.c.l.b16 %v324
        %v403 = vunpack.c.h.b16 %v324
        %v404 = vunpack.c.l.b16 %v325
        %v405 = vunpack.c.h.b16 %v325
        %v406 = vunpack.c.l.b16 %v326
        %v407 = vunpack.c.h.b16 %v326
        %v408 = vunpack.c.l.b16 %v327
        %v409 = vunpack.c.h.b16 %v327
        %v410 = vunpack.c.l.b16 %v328
        %v411 = vunpack.c.h.b16 %v328
        %v412 = vunpack.c.l.b16 %v329
        %v413 = vunpack.c.h.b16 %v329
        %v414 = vunpack.c.l.b16 %v330
        %v415 = vunpack.c.h.b16 %v330
        %v416 = vunpack.c.l.b16 %v331
        %v417 = vunpack.c.h.b16 %v331
        %v418 = vunpack.c.l.b16 %v332
        %v419 = vunpack.c.h.b16 %v332
        %v420 = vunpack.c.l.b16 %v333
        %v421 = vunpack.c.h.b16 %v333
        %v422 = vunpack.c.l.b16 %v334
        %v423 = vunpack.c.h.b16 %v334
        %v424 = vunpack.c.l.b16 %v335
        %v425 = vunpack.c.h.b16 %v335
        %v426 = vunpack.c.l.b16 %v336
        %v427 = vunpack.c.h.b16 %v336
        %v428 = vunpack.c.l.b16 %v337
        %v429 = vunpack.c.h.b16 %v337
        %v430 = vunpack.c.l.b16 %v338
        %v431 = vunpack.c.h.b16 %v338
        %v432 = vunpack.c.l.b16 %v339
        %v433 = vunpack.c.h.b16 %v339
        %v434 = vunpack.c.l.b16 %v340
        %v435 = vunpack.c.h.b16 %v340
        %v436 = vunpack.c.l.b16 %v341
        %v437 = vunpack.c.h.b16 %v341
        %v438 = vpack.c.b16 %v378, %v374
        %v439 = vpack.c.b16 %v379, %v375
        %v440 = vpack.c.b16 %v380, %v376
        %v441 = vpack.c.b16 %v381, %v377
        %v442 = vpack.c.b16 %v386, %v382
        %v443 = vpack.c.b16 %v387, %v383
        %v444 = vpack.c.b16 %v388, %v384
        %v445 = vpack.c.b16 %v389, %v385
        %v446 = vpack.c.b16 %v394, %v390
        %v447 = vpack.c.b16 %v395, %v391
        %v448 = vpack.c.b16 %v396, %v392
        %v449 = vpack.c.b16 %v397, %v393
        %v450 = vpack.c.b16 %v402, %v398
        %v451 = vpack.c.b16 %v403, %v399
        %v452 = vpack.c.b16 %v404, %v400
        %v453 = vpack.c.b16 %v405, %v401
        %v454 = vpack.c.b16 %v410, %v406
        %v455 = vpack.c.b16 %v411, %v407
        %v456 = vpack.c.b16 %v412, %v408
        %v457 = vpack.c.b16 %v413, %v409
        %v458 = vpack.c.b16 %v418, %v414
        %v459 = vpack.c.b16 %v419, %v415
        %v460 = vpack.c.b16 %v420, %v416
        %v461 = vpack.c.b16 %v421, %v417
        %v462 = vpack.c.b16 %v426, %v422
        %v463 = vpack.c.b16 %v427, %v423
        %v464 = vpack.c.b16 %v428, %v424
        %v465 = vpack.c.b16 %v429, %v425
        %v466 = vpack.c.b16 %v434, %v430
        %v467 = vpack.c.b16 %v435, %v431
        %v468 = vpack.c.b16 %v436, %v432
        %v469 = vpack.c.b16 %v437, %v433
        %502 = vmatprep.subr.bf16.mxu0 %v439
        %503 = vmatpush1.bf16.msra.mxu0 %v438
        %504 = vmatprep.subr.bf16.mxu0 %v443
        %505 = vmatpush1.bf16.msra.mxu0 %v442
        %506 = vmatprep.subr.bf16.mxu0 %v447
        %507 = vmatpush1.bf16.msra.mxu0 %v446
        %508 = vmatprep.subr.bf16.mxu0 %v451
        %509 = vmatpush1.bf16.msra.mxu0 %v450
        %510 = vmatprep.subr.bf16.mxu0 %v455
        %511 = vmatpush1.bf16.msra.mxu0 %v454
        %512 = vmatprep.subr.bf16.mxu0 %v459
        %513 = vmatpush1.bf16.msra.mxu0 %v458
        %514 = vmatprep.subr.bf16.mxu0 %v463
        %515 = vmatpush1.bf16.msra.mxu0 %v462
        %516 = vmatprep.subr.bf16.mxu0 %v467
        %517 = vmatpush1.bf16.msra.mxu0 %v466
        %518 = vmatprep.subr.bf16.mxu0 0
        %519 = vmatpush1.bf16.msra.mxu0 0
        %520 = vmatprep.subr.bf16.mxu0 0
        %521 = vmatpush1.bf16.msra.mxu0 0
        %522 = vmatprep.subr.bf16.mxu0 0
        %523 = vmatpush1.bf16.msra.mxu0 0
        %524 = vmatprep.subr.bf16.mxu0 0
        %525 = vmatpush1.bf16.msra.mxu0 0
        %526 = vmatprep.subr.bf16.mxu0 0
        %527 = vmatpush1.bf16.msra.mxu0 0
        %528 = vmatprep.subr.bf16.mxu0 0
        %529 = vmatpush1.bf16.msra.mxu0 0
        %530 = vmatprep.subr.bf16.mxu0 0
        %531 = vmatpush1.bf16.msra.mxu0 0
        %532 = vmatprep.subr.bf16.mxu0 0
        %533 = vmatpush1.bf16.msra.mxu0 0
        %534 = vmatprep.mubr.bf16.mxu0 0
        %535 = vmatmul.mubr.bf16.gmra.mrb[0].mxu0 %v308
        %v536 = vpop.f32.mrb[0].mxu0
        %v537 = vadd.f32 0.0, %v536
        %v538 = vpop.f32.mrb[0].mxu0
        %v539 = vadd.f32 0.0, %v538
        %v540 = vpop.f32.mrb[0].mxu0
        %v541 = vadd.f32 0.0, %v540
        %v542 = vpop.f32.mrb[0].mxu0
        %v543 = vadd.f32 0.0, %v542
        %544 = vmatprep.mubr.bf16.mxu0 0
        %545 = vmatmul.mubr.bf16.gmra.mrb[0].mxu0 %v309
        %v546 = vpop.f32.mrb[0].mxu0
        %v547 = vadd.f32 0.0, %v546
        %v548 = vpop.f32.mrb[0].mxu0
        %v549 = vadd.f32 0.0, %v548
        %v550 = vpop.f32.mrb[0].mxu0
        %v551 = vadd.f32 0.0, %v550
        %v552 = vpop.f32.mrb[0].mxu0
        %v553 = vadd.f32 0.0, %v552
        %554 = vdwg.mxu0
        %555 = vmatprep.subr.bf16.mxu0 %v441
        %556 = vmatpush1.bf16.msra.mxu0 %v440
        %557 = vmatprep.subr.bf16.mxu0 %v445
        %558 = vmatpush1.bf16.msra.mxu0 %v444
        %559 = vmatprep.subr.bf16.mxu0 %v449
        %560 = vmatpush1.bf16.msra.mxu0 %v448
        %561 = vmatprep.subr.bf16.mxu0 %v453
        %562 = vmatpush1.bf16.msra.mxu0 %v452
        %563 = vmatprep.subr.bf16.mxu0 %v457
        %564 = vmatpush1.bf16.msra.mxu0 %v456
        %565 = vmatprep.subr.bf16.mxu0 %v461
        %566 = vmatpush1.bf16.msra.mxu0 %v460
        %567 = vmatprep.subr.bf16.mxu0 %v465
        %568 = vmatpush1.bf16.msra.mxu0 %v464
        %569 = vmatprep.subr.bf16.mxu0 %v469
        %570 = vmatpush1.bf16.msra.mxu0 %v468
        %571 = vmatprep.subr.bf16.mxu0 0
        %572 = vmatpush1.bf16.msra.mxu0 0
        %573 = vmatprep.subr.bf16.mxu0 0
        %574 = vmatpush1.bf16.msra.mxu0 0
        %575 = vmatprep.subr.bf16.mxu0 0
        %576 = vmatpush1.bf16.msra.mxu0 0
        %577 = vmatprep.subr.bf16.mxu0 0
        %578 = vmatpush1.bf16.msra.mxu0 0
        %579 = vmatprep.subr.bf16.mxu0 0
        %580 = vmatpush1.bf16.msra.mxu0 0
        %581 = vmatprep.subr.bf16.mxu0 0
        %582 = vmatpush1.bf16.msra.mxu0 0
        %583 = vmatprep.subr.bf16.mxu0 0
        %584 = vmatpush1.bf16.msra.mxu0 0
        %585 = vmatprep.subr.bf16.mxu0 0
        %586 = vmatpush1.bf16.msra.mxu0 0
        %587 = vmatprep.mubr.bf16.mxu0 0
        %588 = vmatmul.mubr.bf16.gmra.mrb[0].mxu0 %v308
        %v589 = vpop.f32.mrb[0].mxu0
        %v590 = vadd.f32 0.0, %v589
        %v591 = vpop.f32.mrb[0].mxu0
        %v592 = vadd.f32 0.0, %v591
        %v593 = vpop.f32.mrb[0].mxu0
        %v594 = vadd.f32 0.0, %v593
        %v595 = vpop.f32.mrb[0].mxu0
        %v596 = vadd.f32 0.0, %v595
        %597 = vmatprep.mubr.bf16.mxu0 0
        %598 = vmatmul.mubr.bf16.gmra.mrb[0].mxu0 %v309
        %v599 = vpop.f32.mrb[0].mxu0
        %v600 = vadd.f32 0.0, %v599
        %v601 = vpop.f32.mrb[0].mxu0
        %v602 = vadd.f32 0.0, %v601
        %v603 = vpop.f32.mrb[0].mxu0
        %v604 = vadd.f32 0.0, %v603
        %v605 = vpop.f32.mrb[0].mxu0
        %v606 = vadd.f32 0.0, %v605
        %607 = vdwg.mxu0
        %v608 = vadd.f32 %v288, %v537
        %v609 = vadd.f32 %v289, %v539
        %v610 = vadd.f32 %v290, %v590
        %v611 = vadd.f32 %v291, %v592
        %v612 = vadd.f32 %v292, %v541
        %v613 = vadd.f32 %v293, %v543
        %v614 = vadd.f32 %v294, %v594
        %v615 = vadd.f32 %v295, %v596
        %v616 = vadd.f32 %v296, %v547
        %v617 = vadd.f32 %v297, %v549
        %v618 = vadd.f32 %v298, %v600
        %v619 = vadd.f32 %v299, %v602
        %v620 = vadd.f32 %v300, %v551
        %v621 = vadd.f32 %v301, %v553
        %v622 = vadd.f32 %v302, %v604
        %v623 = vadd.f32 %v303, %v606
        %624 = vst [vmem:[#allocation2] sm:$0xff] %v608
        %625 = vst [vmem:[#allocation2 + $0x8] sm:$0xff] %v609
        %626 = vst [vmem:[#allocation2 + $0x10] sm:$0xff] %v610
        %627 = vst [vmem:[#allocation2 + $0x18] sm:$0xff] %v611
        %628 = vst [vmem:[#allocation2 + $0x20] sm:$0xff] %v612
        %629 = vst [vmem:[#allocation2 + $0x28] sm:$0xff] %v613
        %630 = vst [vmem:[#allocation2 + $0x30] sm:$0xff] %v614
        %631 = vst [vmem:[#allocation2 + $0x38] sm:$0xff] %v615
        %632 = vst [vmem:[#allocation2 + $0x40] sm:$0xff] %v616
        %633 = vst [vmem:[#allocation2 + $0x48] sm:$0xff] %v617
        %634 = vst [vmem:[#allocation2 + $0x50] sm:$0xff] %v618
        %635 = vst [vmem:[#allocation2 + $0x58] sm:$0xff] %v619
        %636 = vst [vmem:[#allocation2 + $0x60] sm:$0xff] %v620
        %637 = vst [vmem:[#allocation2 + $0x68] sm:$0xff] %v621
        %638 = vst [vmem:[#allocation2 + $0x70] sm:$0xff] %v622
        %639 = vst [vmem:[#allocation2 + $0x78] sm:$0xff] %v623
        // Predicated region
        $region41: #{vit_forward.41} parent=31 // pred_check
          %p640 = pneg %p268
        $region42: #{vit_forward.41} parent=31 // pred_check_branch
          %642 = sbr.rel (%p640) target = $region44
        $region43: #{vit_forward.41} parent=31 // pred_region
          %v643 = vld [vmem:[#allocation2] sm:$0xff]
          %v644 = vld [vmem:[#allocation2 + $0x8] sm:$0xff]
          %v645 = vld [vmem:[#allocation2 + $0x10] sm:$0xff]
          %v646 = vld [vmem:[#allocation2 + $0x18] sm:$0xff]
          %v647 = vld [vmem:[#allocation2 + $0x20] sm:$0xff]
          %v648 = vld [vmem:[#allocation2 + $0x28] sm:$0xff]
          %v649 = vld [vmem:[#allocation2 + $0x30] sm:$0xff]
          %v650 = vld [vmem:[#allocation2 + $0x38] sm:$0xff]
          %v651 = vld [vmem:[#allocation2 + $0x40] sm:$0xff]
          %v652 = vld [vmem:[#allocation2 + $0x48] sm:$0xff]
          %v653 = vld [vmem:[#allocation2 + $0x50] sm:$0xff]
          %v654 = vld [vmem:[#allocation2 + $0x58] sm:$0xff]
          %v655 = vld [vmem:[#allocation2 + $0x60] sm:$0xff]
          %v656 = vld [vmem:[#allocation2 + $0x68] sm:$0xff]
          %v657 = vld [vmem:[#allocation2 + $0x70] sm:$0xff]
          %v658 = vld [vmem:[#allocation2 + $0x78] sm:$0xff]
          %v659 = vld [vmem:[%s263] sm:$0xf]
          %v661 = vlaneseq
          %v662 = vshrl.u32 %v661, 7
          %v663 = vsub.s32 0, %v662
          %v664 = vrot.slane %v659, %v663
          %v665 = vlaneseq
          %v666 = vshrl.u32 %v665, 7
          %v667 = vsub.s32 1, %v666
          %v668 = vrot.slane %v659, %v667
          %v669 = vlaneseq
          %v670 = vshrl.u32 %v669, 7
          %v671 = vsub.s32 2, %v670
          %v672 = vrot.slane %v659, %v671
          %v673 = vlaneseq
          %v674 = vshrl.u32 %v673, 7
          %v675 = vsub.s32 3, %v674
          %v676 = vrot.slane %v659, %v675
          %v681 = vadd.f32 %v643, %v664
          %v682 = vadd.f32 %v644, %v668
          %v683 = vadd.f32 %v645, %v672
          %v684 = vadd.f32 %v646, %v676
          %v685 = vadd.f32 %v647, %v664
          %v686 = vadd.f32 %v648, %v668
          %v687 = vadd.f32 %v649, %v672
          %v688 = vadd.f32 %v650, %v676
          %v689 = vadd.f32 %v651, %v664
          %v690 = vadd.f32 %v652, %v668
          %v691 = vadd.f32 %v653, %v672
          %v692 = vadd.f32 %v654, %v676
          %v693 = vadd.f32 %v655, %v664
          %v694 = vadd.f32 %v656, %v668
          %v695 = vadd.f32 %v657, %v672
          %v696 = vadd.f32 %v658, %v676
          %v697 = vpack.c.bf16 %v685, %v681
          %v698 = vpack.c.bf16 %v686, %v682
          %v699 = vpack.c.bf16 %v687, %v683
          %v700 = vpack.c.bf16 %v688, %v684
          %v701 = vpack.c.bf16 %v693, %v689
          %v702 = vpack.c.bf16 %v694, %v690
          %v703 = vpack.c.bf16 %v695, %v691
          %v704 = vpack.c.bf16 %v696, %v692
          %v713 = vunpack.c.l.b16 %v697
          %v714 = vunpack.c.l.b16 %v698
          %v715 = vunpack.c.l.b16 %v699
          %v716 = vunpack.c.l.b16 %v700
          %v717 = vunpack.c.h.b16 %v697
          %v718 = vunpack.c.h.b16 %v698
          %v719 = vunpack.c.h.b16 %v699
          %v720 = vunpack.c.h.b16 %v700
          %v721 = vunpack.c.l.b16 %v701
          %v722 = vunpack.c.l.b16 %v702
          %v723 = vunpack.c.l.b16 %v703
          %v724 = vunpack.c.l.b16 %v704
          %v725 = vunpack.c.h.b16 %v701
          %v726 = vunpack.c.h.b16 %v702
          %v727 = vunpack.c.h.b16 %v703
          %v728 = vunpack.c.h.b16 %v704
          %v729 = vpack.c.b16 %v714, %v713
          %v730 = vpack.c.b16 %v716, %v715
          %v731 = vpack.c.b16 %v718, %v717
          %v732 = vpack.c.b16 %v720, %v719
          %v733 = vpack.c.b16 %v722, %v721
          %v734 = vpack.c.b16 %v724, %v723
          %v735 = vpack.c.b16 %v726, %v725
          %v736 = vpack.c.b16 %v728, %v727
          %745 = vst [vmem:[%s248] sm:$0xff] %v729
          %746 = vst [vmem:[%s248 + $0x8] sm:$0xff] %v730
          %747 = vst [vmem:[%s248 + $0x10] sm:$0xff] %v731
          %748 = vst [vmem:[%s248 + $0x18] sm:$0xff] %v732
          %749 = vst [vmem:[%s248 + $0x20] sm:$0xff] %v733
          %750 = vst [vmem:[%s248 + $0x28] sm:$0xff] %v734
          %751 = vst [vmem:[%s248 + $0x30] sm:$0xff] %v735
          %752 = vst [vmem:[%s248 + $0x38] sm:$0xff] %v736
        $region44: #{vit_forward.41} parent=31 // pred_fallthru
          _
        %s753 = sand.u32 %s128, 1
        %s754 = sand.u32 %s128, 1
        %s755 = smul.addr %s754, 64
        %s756 = scalar_lea.vmem [#allocation5], %s755
        // Predicated region
        $region45: #{vit_forward.41} parent=31 // pred_check
          %p757 = pneg %p138
        $region46: #{vit_forward.41} parent=31 // pred_check_branch
          %759 = sbr.rel (%p757) target = $region48
        $region47: #{vit_forward.41} parent=31 // pred_region
          %s760 = smul.u32 4, %s22
          %s761 = smul.u32 4, %s23
          %s762 = smul.addr %s760, 12
          %s763 = sadd.s32 %s761, %s762
          %s764 = smul.addr %s763, 4
          %s765 = scalar_lea.vmem %s3, %s764
          // Predicated region
          $region49: #{vit_forward.41} parent=47 // pred_check
            _
          $region50: #{vit_forward.41} parent=47 // pred_check_branch
            %767 = sbr.rel (0) target = $region52
          $region51: #{vit_forward.41} parent=47 // pred_region
            // Predicated region
            $region53: #{vit_forward.41} parent=51 // pred_check
              _
            $region54: #{vit_forward.41} parent=51 // pred_check_branch
              %769 = sbr.rel (0) target = $region56
            $region55: #{vit_forward.41} parent=51 // pred_region
              loop: start=0, step=1, limit=1
              $region57: #{vit_forward.41} parent=55 // loop_pre_header
                _
              $region58: #{vit_forward.41} parent=55 // loop_header
                %s771 = sphi 0, %s775
                %p772 = scmp.ge.s32.totalorder %s771, 1
                %s776 = sphi %s756, %s756
                %s777 = sphi %s765, %s765
              $region59: #{vit_forward.41} parent=55 // loop_header_branch
                %774 = sbr.rel (%p772) target = $region63
              $region60: #{vit_forward.41} parent=55 // loop_body
                %v778 = vld [vmem:[%s776] sm:$0xff]
                %779 = vst [vmem:[%s777] sm:$0xff] %v778
                %v780 = vld [vmem:[%s776 + $0x8] sm:$0xff]
                %781 = vst [vmem:[%s777 + $0x8] sm:$0xff] %v780
                %v782 = vld [vmem:[%s776 + $0x10] sm:$0xff]
                %783 = vst [vmem:[%s777 + $0x30] sm:$0xff] %v782
                %v784 = vld [vmem:[%s776 + $0x18] sm:$0xff]
                %785 = vst [vmem:[%s777 + $0x38] sm:$0xff] %v784
                %v786 = vld [vmem:[%s776 + $0x20] sm:$0xff]
                %787 = vst [vmem:[%s777 + $0x60] sm:$0xff] %v786
                %v788 = vld [vmem:[%s776 + $0x28] sm:$0xff]
                %789 = vst [vmem:[%s777 + $0x68] sm:$0xff] %v788
                %v790 = vld [vmem:[%s776 + $0x30] sm:$0xff]
                %791 = vst [vmem:[%s777 + $0x90] sm:$0xff] %v790
                %v792 = vld [vmem:[%s776 + $0x38] sm:$0xff]
                %793 = vst [vmem:[%s777 + $0x98] sm:$0xff] %v792
              $region61: #{vit_forward.41} parent=55 // loop_footer
                %s775 = sadd.s32 1, %s771
              $region62: #{vit_forward.41} parent=55 // loop_footer_branch
                %770 = sbr.rel target = $region58
              $region63: #{vit_forward.41} parent=55 // loop_exit
                _
            $region56: #{vit_forward.41} parent=51 // pred_fallthru
              _
            // Predicated region
            $region64: #{vit_forward.41} parent=51 // pred_check
              _
            $region65: #{vit_forward.41} parent=51 // pred_check_branch
              %795 = sbr.rel target = $region67
            $region66: #{vit_forward.41} parent=51 // pred_region
              _
            $region67: #{vit_forward.41} parent=51 // pred_fallthru
              _
          $region52: #{vit_forward.41} parent=47 // pred_fallthru
            _
          %796 = vnop
        $region48: #{vit_forward.41} parent=31 // pred_fallthru
          _
      $region32: #{vit_forward.41} parent=5 // pred_fallthru
        _
      %p797 = scmp.le.s32.totalorder 2, %s12
      // Predicated region
      $region68: #{vit_forward.41} parent=5 // pred_check
        %p798 = pneg %p797
      $region69: #{vit_forward.41} parent=5 // pred_check_branch
        %800 = sbr.rel (%p798) target = $region71
      $region70: #{vit_forward.41} parent=5 // pred_region
        %s801 = ssub.s32 %s12, 2
        // Predicated region
        $region72: #{vit_forward.41} parent=70 // pred_check
          %p802 = pneg %p144
        $region73: #{vit_forward.41} parent=70 // pred_check_branch
          %804 = sbr.rel (%p802) target = $region75
        $region74: #{vit_forward.41} parent=70 // pred_region
          %s805 = sand.u32 %s129, 1
          %s806 = sand.u32 %s129, 1
          %s807 = smul.addr %s806, 64
          %s808 = scalar_lea.vmem [#allocation5], %s807
        $region75: #{vit_forward.41} parent=70 // pred_fallthru
          _
      $region71: #{vit_forward.41} parent=5 // pred_fallthru
        _
    $region6: #{vit_forward.41} parent=1 // loop_footer
      %s16 = sadd.s32 1, %s12
    $region7: #{vit_forward.41} parent=1 // loop_footer_branch
      %11 = sbr.rel target = $region3
    $region8: #{vit_forward.41} parent=1 // loop_exit
      _
    %809 = vsyncpa [#allocation4], 1
    %s810 = scalar_lea.sflag [#allocation4], 1
    %811 = vsyncpa %s810, 1

// kernel: vit_forward.43
$region0: #{vit_forward.43}
  #allocation0 [shape = 'u32[]', space=smem, size = 0x4, offset = 0x4, fixed_abs, tag = 'smem constant byte address 0x4 - core index']
  #allocation1 [shape = 'u32[144,128]{1,0:T(1,128)}', space=vmem, size = 0x12000, scoped, tag = 'internal scratch']
  #allocation2 [shape = 'f32[32,128]{1,0:T(8,128)}', space=vmem, size = 0x4000, scoped, tag = 'scratch operand']
  %s0 = inlined_call_operand.vmem [shape: bf16[32,512], index: 0, kind: input, shape index: {}]
  %s1 = inlined_call_operand.vmem [shape: bf16[512,128], index: 1, kind: input, shape index: {}]
  %s2 = inlined_call_operand.vmem [shape: f32[1,128], index: 2, kind: input, shape index: {}]
  %s3 = inlined_call_operand.vmem [shape: f32[32,128], index: 3, kind: input, shape index: {}]
  %s4 = inlined_call_operand.vmem [shape: f32[1,128], index: 4, kind: input, shape index: {}]
  %s5 = inlined_call_operand.vmem [shape: f32[1,128], index: 5, kind: input, shape index: {}]
  %s6 = inlined_call_operand.vmem [shape: f32[32,128], index: 6, kind: output, shape index: {}]
  %s7 = sld [smem:[#allocation0]]
  $region42: #{vit_forward.43} parent=0
    _
  %s9 = ssub.s32 1, %s7
  %s10 = scalar_select 0, %s9, %s7
  // Predicated region
  $region2: #{vit_forward.43} parent=0 // pred_check
    _
  $region3: #{vit_forward.43} parent=0 // pred_check_branch
    %12 = sbr.rel (0) target = $region5
  $region4: #{vit_forward.43} parent=0 // pred_region
    _
  $region5: #{vit_forward.43} parent=0 // pred_fallthru
    _
  // Predicated region
  $region6: #{vit_forward.43} parent=0 // pred_check
    _
  $region7: #{vit_forward.43} parent=0 // pred_check_branch
    %14 = sbr.rel (0) target = $region9
  $region8: #{vit_forward.43} parent=0 // pred_region
    _
  $region9: #{vit_forward.43} parent=0 // pred_fallthru
    _
  // Predicated region
  $region10: #{vit_forward.43} parent=0 // pred_check
    _
  $region11: #{vit_forward.43} parent=0 // pred_check_branch
    %16 = sbr.rel (0) target = $region13
  $region12: #{vit_forward.43} parent=0 // pred_region
    _
  $region13: #{vit_forward.43} parent=0 // pred_fallthru
    _
  // Predicated region
  $region14: #{vit_forward.43} parent=0 // pred_check
    _
  $region15: #{vit_forward.43} parent=0 // pred_check_branch
    %18 = sbr.rel (0) target = $region17
  $region16: #{vit_forward.43} parent=0 // pred_region
    _
  $region17: #{vit_forward.43} parent=0 // pred_fallthru
    _
  // Predicated region
  $region18: #{vit_forward.43} parent=0 // pred_check
    _
  $region19: #{vit_forward.43} parent=0 // pred_check_branch
    %20 = sbr.rel (0) target = $region21
  $region20: #{vit_forward.43} parent=0 // pred_region
    _
  $region21: #{vit_forward.43} parent=0 // pred_fallthru
    _
  // Predicated region
  $region22: #{vit_forward.43} parent=0 // pred_check
    _
  $region23: #{vit_forward.43} parent=0 // pred_check_branch
    %22 = sbr.rel (0) target = $region25
  $region24: #{vit_forward.43} parent=0 // pred_region
    _
  $region25: #{vit_forward.43} parent=0 // pred_fallthru
    _
  %p24 = scmp.eq.s32.totalorder 0, 0
  // Predicated region
  $region26: #{vit_forward.43} parent=0 // pred_check
    %p25 = pneg %p24
  $region27: #{vit_forward.43} parent=0 // pred_check_branch
    %27 = sbr.rel (%p25) target = $region29
  $region28: #{vit_forward.43} parent=0 // pred_region
    %28 = vst [vmem:[#allocation2] sm:$0xff] 0.0
    %29 = vst [vmem:[#allocation2 + $0x8] sm:$0xff] 0.0
    %30 = vst [vmem:[#allocation2 + $0x10] sm:$0xff] 0.0
    %31 = vst [vmem:[#allocation2 + $0x18] sm:$0xff] 0.0
  $region29: #{vit_forward.43} parent=0 // pred_fallthru
    _
  %v32 = vld [vmem:[#allocation2] sm:$0xff]
  %v33 = vld [vmem:[#allocation2 + $0x8] sm:$0xff]
  %v34 = vld [vmem:[#allocation2 + $0x10] sm:$0xff]
  %v35 = vld [vmem:[#allocation2 + $0x18] sm:$0xff]
  %v36 = vld [vmem:[%s0] sm:$0xff]
  %v37 = vld [vmem:[%s0 + $0x8] sm:$0xff]
  %v38 = vld [vmem:[%s0 + $0x10] sm:$0xff]
  %v39 = vld [vmem:[%s0 + $0x18] sm:$0xff]
  %v40 = vld [vmem:[%s0 + $0x20] sm:$0xff]
  %v41 = vld [vmem:[%s0 + $0x28] sm:$0xff]
  %v42 = vld [vmem:[%s0 + $0x30] sm:$0xff]
  %v43 = vld [vmem:[%s0 + $0x38] sm:$0xff]
  %v44 = vld [vmem:[%s1] sm:$0xf]
  %v45 = vld [vmem:[%s1 + $0x4] sm:$0xf]
  %v46 = vld [vmem:[%s1 + $0x8] sm:$0xf]
  %v47 = vld [vmem:[%s1 + $0xc] sm:$0xf]
  %v48 = vld [vmem:[%s1 + $0x10] sm:$0xf]
  %v49 = vld [vmem:[%s1 + $0x14] sm:$0xf]
  %v50 = vld [vmem:[%s1 + $0x18] sm:$0xf]
  %v51 = vld [vmem:[%s1 + $0x1c] sm:$0xf]
  %v52 = vld [vmem:[%s1 + $0x20] sm:$0xf]
  %v53 = vld [vmem:[%s1 + $0x24] sm:$0xf]
  %v54 = vld [vmem:[%s1 + $0x28] sm:$0xf]
  %v55 = vld [vmem:[%s1 + $0x2c] sm:$0xf]
  %v56 = vld [vmem:[%s1 + $0x30] sm:$0xf]
  %v57 = vld [vmem:[%s1 + $0x34] sm:$0xf]
  %v58 = vld [vmem:[%s1 + $0x38] sm:$0xf]
  %v59 = vld [vmem:[%s1 + $0x3c] sm:$0xf]
  %v60 = vld [vmem:[%s1 + $0x40] sm:$0xf]
  %v61 = vld [vmem:[%s1 + $0x44] sm:$0xf]
  %v62 = vld [vmem:[%s1 + $0x48] sm:$0xf]
  %v63 = vld [vmem:[%s1 + $0x4c] sm:$0xf]
  %v64 = vld [vmem:[%s1 + $0x50] sm:$0xf]
  %v65 = vld [vmem:[%s1 + $0x54] sm:$0xf]
  %v66 = vld [vmem:[%s1 + $0x58] sm:$0xf]
  %v67 = vld [vmem:[%s1 + $0x5c] sm:$0xf]
  %v68 = vld [vmem:[%s1 + $0x60] sm:$0xf]
  %v69 = vld [vmem:[%s1 + $0x64] sm:$0xf]
  %v70 = vld [vmem:[%s1 + $0x68] sm:$0xf]
  %v71 = vld [vmem:[%s1 + $0x6c] sm:$0xf]
  %v72 = vld [vmem:[%s1 + $0x70] sm:$0xf]
  %v73 = vld [vmem:[%s1 + $0x74] sm:$0xf]
  %v74 = vld [vmem:[%s1 + $0x78] sm:$0xf]
  %v75 = vld [vmem:[%s1 + $0x7c] sm:$0xf]
  %v76 = vld [vmem:[%s1 + $0x80] sm:$0xf]
  %v77 = vld [vmem:[%s1 + $0x84] sm:$0xf]
  %v78 = vld [vmem:[%s1 + $0x88] sm:$0xf]
  %v79 = vld [vmem:[%s1 + $0x8c] sm:$0xf]
  %v80 = vld [vmem:[%s1 + $0x90] sm:$0xf]
  %v81 = vld [vmem:[%s1 + $0x94] sm:$0xf]
  %v82 = vld [vmem:[%s1 + $0x98] sm:$0xf]
  %v83 = vld [vmem:[%s1 + $0x9c] sm:$0xf]
  %v84 = vld [vmem:[%s1 + $0xa0] sm:$0xf]
  %v85 = vld [vmem:[%s1 + $0xa4] sm:$0xf]
  %v86 = vld [vmem:[%s1 + $0xa8] sm:$0xf]
  %v87 = vld [vmem:[%s1 + $0xac] sm:$0xf]
  %v88 = vld [vmem:[%s1 + $0xb0] sm:$0xf]
  %v89 = vld [vmem:[%s1 + $0xb4] sm:$0xf]
  %v90 = vld [vmem:[%s1 + $0xb8] sm:$0xf]
  %v91 = vld [vmem:[%s1 + $0xbc] sm:$0xf]
  %v92 = vld [vmem:[%s1 + $0xc0] sm:$0xf]
  %v93 = vld [vmem:[%s1 + $0xc4] sm:$0xf]
  %v94 = vld [vmem:[%s1 + $0xc8] sm:$0xf]
  %v95 = vld [vmem:[%s1 + $0xcc] sm:$0xf]
  %v96 = vld [vmem:[%s1 + $0xd0] sm:$0xf]
  %v97 = vld [vmem:[%s1 + $0xd4] sm:$0xf]
  %v98 = vld [vmem:[%s1 + $0xd8] sm:$0xf]
  %v99 = vld [vmem:[%s1 + $0xdc] sm:$0xf]
  %v100 = vld [vmem:[%s1 + $0xe0] sm:$0xf]
  %v101 = vld [vmem:[%s1 + $0xe4] sm:$0xf]
  %v102 = vld [vmem:[%s1 + $0xe8] sm:$0xf]
  %v103 = vld [vmem:[%s1 + $0xec] sm:$0xf]
  %v104 = vld [vmem:[%s1 + $0xf0] sm:$0xf]
  %v105 = vld [vmem:[%s1 + $0xf4] sm:$0xf]
  %v106 = vld [vmem:[%s1 + $0xf8] sm:$0xf]
  %v107 = vld [vmem:[%s1 + $0xfc] sm:$0xf]
  %v116 = vunpack.c.l.b16 %v36
  %v117 = vunpack.c.h.b16 %v36
  %v118 = vunpack.c.l.b16 %v37
  %v119 = vunpack.c.h.b16 %v37
  %v120 = vunpack.c.l.b16 %v38
  %v121 = vunpack.c.h.b16 %v38
  %v122 = vunpack.c.l.b16 %v39
  %v123 = vunpack.c.h.b16 %v39
  %v124 = vunpack.c.l.b16 %v40
  %v125 = vunpack.c.h.b16 %v40
  %v126 = vunpack.c.l.b16 %v41
  %v127 = vunpack.c.h.b16 %v41
  %v128 = vunpack.c.l.b16 %v42
  %v129 = vunpack.c.h.b16 %v42
  %v130 = vunpack.c.l.b16 %v43
  %v131 = vunpack.c.h.b16 %v43
  %v132 = vpack.c.b16 %v120, %v116
  %v133 = vpack.c.b16 %v121, %v117
  %v134 = vpack.c.b16 %v122, %v118
  %v135 = vpack.c.b16 %v123, %v119
  %v136 = vpack.c.b16 %v128, %v124
  %v137 = vpack.c.b16 %v129, %v125
  %v138 = vpack.c.b16 %v130, %v126
  %v139 = vpack.c.b16 %v131, %v127
  %v212 = vunpack.c.l.b16 %v44
  %v213 = vunpack.c.l.b16 %v45
  %v214 = vunpack.c.l.b16 %v46
  %v215 = vunpack.c.l.b16 %v47
  %v216 = vunpack.c.l.b16 %v48
  %v217 = vunpack.c.l.b16 %v49
  %v218 = vunpack.c.l.b16 %v50
  %v219 = vunpack.c.l.b16 %v51
  %v220 = vunpack.c.l.b16 %v52
  %v221 = vunpack.c.l.b16 %v53
  %v222 = vunpack.c.l.b16 %v54
  %v223 = vunpack.c.l.b16 %v55
  %v224 = vunpack.c.l.b16 %v56
  %v225 = vunpack.c.l.b16 %v57
  %v226 = vunpack.c.l.b16 %v58
  %v227 = vunpack.c.l.b16 %v59
  %v228 = vunpack.c.l.b16 %v60
  %v229 = vunpack.c.l.b16 %v61
  %v230 = vunpack.c.l.b16 %v62
  %v231 = vunpack.c.l.b16 %v63
  %v232 = vunpack.c.l.b16 %v64
  %v233 = vunpack.c.l.b16 %v65
  %v234 = vunpack.c.l.b16 %v66
  %v235 = vunpack.c.l.b16 %v67
  %v236 = vunpack.c.l.b16 %v68
  %v237 = vunpack.c.l.b16 %v69
  %v238 = vunpack.c.l.b16 %v70
  %v239 = vunpack.c.l.b16 %v71
  %v240 = vunpack.c.l.b16 %v72
  %v241 = vunpack.c.l.b16 %v73
  %v242 = vunpack.c.l.b16 %v74
  %v243 = vunpack.c.l.b16 %v75
  %v244 = vunpack.c.l.b16 %v76
  %v245 = vunpack.c.l.b16 %v77
  %v246 = vunpack.c.l.b16 %v78
  %v247 = vunpack.c.l.b16 %v79
  %v248 = vunpack.c.l.b16 %v80
  %v249 = vunpack.c.l.b16 %v81
  %v250 = vunpack.c.l.b16 %v82
  %v251 = vunpack.c.l.b16 %v83
  %v252 = vunpack.c.l.b16 %v84
  %v253 = vunpack.c.l.b16 %v85
  %v254 = vunpack.c.l.b16 %v86
  %v255 = vunpack.c.l.b16 %v87
  %v256 = vunpack.c.l.b16 %v88
  %v257 = vunpack.c.l.b16 %v89
  %v258 = vunpack.c.l.b16 %v90
  %v259 = vunpack.c.l.b16 %v91
  %v260 = vunpack.c.l.b16 %v92
  %v261 = vunpack.c.l.b16 %v93
  %v262 = vunpack.c.l.b16 %v94
  %v263 = vunpack.c.l.b16 %v95
  %v264 = vunpack.c.l.b16 %v96
  %v265 = vunpack.c.l.b16 %v97
  %v266 = vunpack.c.l.b16 %v98
  %v267 = vunpack.c.l.b16 %v99
  %v268 = vunpack.c.l.b16 %v100
  %v269 = vunpack.c.l.b16 %v101
  %v270 = vunpack.c.l.b16 %v102
  %v271 = vunpack.c.l.b16 %v103
  %v272 = vunpack.c.l.b16 %v104
  %v273 = vunpack.c.l.b16 %v105
  %v274 = vunpack.c.l.b16 %v106
  %v275 = vunpack.c.l.b16 %v107
  %v276 = vpack.c.b16 %v213, %v212
  %v277 = vpack.c.b16 %v215, %v214
  %v278 = vpack.c.b16 %v217, %v216
  %v279 = vpack.c.b16 %v219, %v218
  %v280 = vpack.c.b16 %v221, %v220
  %v281 = vpack.c.b16 %v223, %v222
  %v282 = vpack.c.b16 %v225, %v224
  %v283 = vpack.c.b16 %v227, %v226
  %v284 = vpack.c.b16 %v229, %v228
  %v285 = vpack.c.b16 %v231, %v230
  %v286 = vpack.c.b16 %v233, %v232
  %v287 = vpack.c.b16 %v235, %v234
  %v288 = vpack.c.b16 %v237, %v236
  %v289 = vpack.c.b16 %v239, %v238
  %v290 = vpack.c.b16 %v241, %v240
  %v291 = vpack.c.b16 %v243, %v242
  %v292 = vpack.c.b16 %v245, %v244
  %v293 = vpack.c.b16 %v247, %v246
  %v294 = vpack.c.b16 %v249, %v248
  %v295 = vpack.c.b16 %v251, %v250
  %v296 = vpack.c.b16 %v253, %v252
  %v297 = vpack.c.b16 %v255, %v254
  %v298 = vpack.c.b16 %v257, %v256
  %v299 = vpack.c.b16 %v259, %v258
  %v300 = vpack.c.b16 %v261, %v260
  %v301 = vpack.c.b16 %v263, %v262
  %v302 = vpack.c.b16 %v265, %v264
  %v303 = vpack.c.b16 %v267, %v266
  %v304 = vpack.c.b16 %v269, %v268
  %v305 = vpack.c.b16 %v271, %v270
  %v306 = vpack.c.b16 %v273, %v272
  %v307 = vpack.c.b16 %v275, %v274
  %340 = vmatprep.subr.bf16.mxu0 0
  %341 = vmatpush1.bf16.msra.mxu0 %v276
  %342 = vmatprep.subr.bf16.mxu0 0
  %343 = vmatpush1.bf16.msra.mxu0 %v277
  %344 = vmatprep.subr.bf16.mxu0 0
  %345 = vmatpush1.bf16.msra.mxu0 %v278
  %346 = vmatprep.subr.bf16.mxu0 0
  %347 = vmatpush1.bf16.msra.mxu0 %v279
  %348 = vmatprep.subr.bf16.mxu0 0
  %349 = vmatpush1.bf16.msra.mxu0 %v280
  %350 = vmatprep.subr.bf16.mxu0 0
  %351 = vmatpush1.bf16.msra.mxu0 %v281
  %352 = vmatprep.subr.bf16.mxu0 0
  %353 = vmatpush1.bf16.msra.mxu0 %v282
  %354 = vmatprep.subr.bf16.mxu0 0
  %355 = vmatpush1.bf16.msra.mxu0 %v283
  %356 = vmatprep.subr.bf16.mxu0 0
  %357 = vmatpush1.bf16.msra.mxu0 %v284
  %358 = vmatprep.subr.bf16.mxu0 0
  %359 = vmatpush1.bf16.msra.mxu0 %v285
  %360 = vmatprep.subr.bf16.mxu0 0
  %361 = vmatpush1.bf16.msra.mxu0 %v286
  %362 = vmatprep.subr.bf16.mxu0 0
  %363 = vmatpush1.bf16.msra.mxu0 %v287
  %364 = vmatprep.subr.bf16.mxu0 0
  %365 = vmatpush1.bf16.msra.mxu0 %v288
  %366 = vmatprep.subr.bf16.mxu0 0
  %367 = vmatpush1.bf16.msra.mxu0 %v289
  %368 = vmatprep.subr.bf16.mxu0 0
  %369 = vmatpush1.bf16.msra.mxu0 %v290
  %370 = vmatprep.subr.bf16.mxu0 0
  %371 = vmatpush1.bf16.msra.mxu0 %v291
  %372 = vmatprep.mubr.bf16.mxu0 %v133
  %373 = vmatmul.mubr.bf16.gmra.mrb[0].mxu0 %v132
  %v374 = vpop.f32.mrb[0].mxu0
  %v375 = vadd.f32 0.0, %v374
  %v376 = vpop.f32.mrb[0].mxu0
  %v377 = vpop.f32.mrb[0].mxu0
  %v378 = vadd.f32 0.0, %v377
  %v379 = vpop.f32.mrb[0].mxu0
  %380 = vmatprep.mubr.bf16.mxu0 %v137
  %381 = vmatmul.mubr.bf16.gmra.mrb[0].mxu0 %v136
  %v382 = vpop.f32.mrb[0].mxu0
  %v383 = vadd.f32 0.0, %v382
  %v384 = vpop.f32.mrb[0].mxu0
  %v385 = vpop.f32.mrb[0].mxu0
  %v386 = vadd.f32 0.0, %v385
  %v387 = vpop.f32.mrb[0].mxu0
  %388 = vdwg.mxu0
  %389 = vmatprep.subr.bf16.mxu0 0
  %390 = vmatpush1.bf16.msra.mxu0 %v292
  %391 = vmatprep.subr.bf16.mxu0 0
  %392 = vmatpush1.bf16.msra.mxu0 %v293
  %393 = vmatprep.subr.bf16.mxu0 0
  %394 = vmatpush1.bf16.msra.mxu0 %v294
  %395 = vmatprep.subr.bf16.mxu0 0
  %396 = vmatpush1.bf16.msra.mxu0 %v295
  %397 = vmatprep.subr.bf16.mxu0 0
  %398 = vmatpush1.bf16.msra.mxu0 %v296
  %399 = vmatprep.subr.bf16.mxu0 0
  %400 = vmatpush1.bf16.msra.mxu0 %v297
  %401 = vmatprep.subr.bf16.mxu0 0
  %402 = vmatpush1.bf16.msra.mxu0 %v298
  %403 = vmatprep.subr.bf16.mxu0 0
  %404 = vmatpush1.bf16.msra.mxu0 %v299
  %405 = vmatprep.subr.bf16.mxu0 0
  %406 = vmatpush1.bf16.msra.mxu0 %v300
  %407 = vmatprep.subr.bf16.mxu0 0
  %408 = vmatpush1.bf16.msra.mxu0 %v301
  %409 = vmatprep.subr.bf16.mxu0 0
  %410 = vmatpush1.bf16.msra.mxu0 %v302
  %411 = vmatprep.subr.bf16.mxu0 0
  %412 = vmatpush1.bf16.msra.mxu0 %v303
  %413 = vmatprep.subr.bf16.mxu0 0
  %414 = vmatpush1.bf16.msra.mxu0 %v304
  %415 = vmatprep.subr.bf16.mxu0 0
  %416 = vmatpush1.bf16.msra.mxu0 %v305
  %417 = vmatprep.subr.bf16.mxu0 0
  %418 = vmatpush1.bf16.msra.mxu0 %v306
  %419 = vmatprep.subr.bf16.mxu0 0
  %420 = vmatpush1.bf16.msra.mxu0 %v307
  %421 = vmatprep.mubr.bf16.mxu0 %v135
  %422 = vmatmul.mubr.bf16.gmra.mrb[0].mxu0 %v134
  %v423 = vpop.f32.mrb[0].mxu0
  %v424 = vadd.f32 %v375, %v423
  %v425 = vpop.f32.mrb[0].mxu0
  %v426 = vpop.f32.mrb[0].mxu0
  %v427 = vadd.f32 %v378, %v426
  %v428 = vpop.f32.mrb[0].mxu0
  %429 = vmatprep.mubr.bf16.mxu0 %v139
  %430 = vmatmul.mubr.bf16.gmra.mrb[0].mxu0 %v138
  %v431 = vpop.f32.mrb[0].mxu0
  %v432 = vadd.f32 %v383, %v431
  %v433 = vpop.f32.mrb[0].mxu0
  %v434 = vpop.f32.mrb[0].mxu0
  %v435 = vadd.f32 %v386, %v434
  %v436 = vpop.f32.mrb[0].mxu0
  %437 = vdwg.mxu0
  %v438 = vadd.f32 %v32, %v424
  %v439 = vadd.f32 %v33, %v427
  %v440 = vadd.f32 %v34, %v432
  %v441 = vadd.f32 %v35, %v435
  %442 = vst [vmem:[#allocation2] sm:$0xff] %v438
  %443 = vst [vmem:[#allocation2 + $0x8] sm:$0xff] %v439
  %444 = vst [vmem:[#allocation2 + $0x10] sm:$0xff] %v440
  %445 = vst [vmem:[#allocation2 + $0x18] sm:$0xff] %v441
  // Predicated region
  $region30: #{vit_forward.43} parent=0 // pred_check
    %p446 = pneg %p24
  $region31: #{vit_forward.43} parent=0 // pred_check_branch
    %448 = sbr.rel (%p446) target = $region33
  $region32: #{vit_forward.43} parent=0 // pred_region
    %v449 = vld [vmem:[#allocation2] sm:$0xff]
    %v450 = vld [vmem:[#allocation2 + $0x8] sm:$0xff]
    %v451 = vld [vmem:[#allocation2 + $0x10] sm:$0xff]
    %v452 = vld [vmem:[#allocation2 + $0x18] sm:$0xff]
    %v453 = vld [vmem:[%s2] sm:$0x1]
    %v455 = vlaneseq
    %v456 = vshrl.u32 %v455, 7
    %v457 = vsub.s32 0, %v456
    %v458 = vrot.slane %v453, %v457
    %v460 = vadd.f32 %v449, %v458
    %v461 = vadd.f32 %v450, %v458
    %v462 = vadd.f32 %v451, %v458
    %v463 = vadd.f32 %v452, %v458
    %v464 = vld [vmem:[%s3] sm:$0xff]
    %v465 = vld [vmem:[%s3 + $0x8] sm:$0xff]
    %v466 = vld [vmem:[%s3 + $0x10] sm:$0xff]
    %v467 = vld [vmem:[%s3 + $0x18] sm:$0xff]
    %v468 = vadd.f32 %v460, %v464
    %v469 = vadd.f32 %v461, %v465
    %v470 = vadd.f32 %v462, %v466
    %v471 = vadd.f32 %v463, %v467
    %472 = vadd.xlane.f32.xlu0 %v468
    %v473 = vpop.xlane.xlu0 %472
    %474 = vadd.xlane.f32.xlu0 %v469
    %v475 = vpop.xlane.xlu0 %474
    %476 = vadd.xlane.f32.xlu0 %v470
    %v477 = vpop.xlane.xlu0 %476
    %478 = vadd.xlane.f32.xlu0 %v471
    %v479 = vpop.xlane.xlu0 %478
    %v480 = vmul.f32 %v473, 0.03125
    %v481 = vmul.f32 %v475, 0.03125
    %v482 = vmul.f32 %v477, 0.03125
    %v483 = vmul.f32 %v479, 0.03125
    %v484 = vmul.f32 %v468, %v468
    %v485 = vmul.f32 %v469, %v469
    %v486 = vmul.f32 %v470, %v470
    %v487 = vmul.f32 %v471, %v471
    %488 = vadd.xlane.f32.xlu0 %v484
    %v489 = vpop.xlane.xlu0 %488
    %490 = vadd.xlane.f32.xlu0 %v485
    %v491 = vpop.xlane.xlu0 %490
    %492 = vadd.xlane.f32.xlu0 %v486
    %v493 = vpop.xlane.xlu0 %492
    %494 = vadd.xlane.f32.xlu0 %v487
    %v495 = vpop.xlane.xlu0 %494
    %v496 = vmul.f32 %v489, 0.03125
    %v497 = vmul.f32 %v491, 0.03125
    %v498 = vmul.f32 %v493, 0.03125
    %v499 = vmul.f32 %v495, 0.03125
    %v500 = vmul.f32 %v480, %v480
    %v501 = vmul.f32 %v481, %v481
    %v502 = vmul.f32 %v482, %v482
    %v503 = vmul.f32 %v483, %v483
    %v504 = vsub.f32 %v496, %v500
    %v505 = vsub.f32 %v497, %v501
    %v506 = vsub.f32 %v498, %v502
    %v507 = vsub.f32 %v499, %v503
    %v508 = vsub.f32 %v468, %v480
    %v509 = vsub.f32 %v469, %v481
    %v510 = vsub.f32 %v470, %v482
    %v511 = vsub.f32 %v471, %v483
    %v512 = vadd.f32 %v504, 1e-05
    %v513 = vadd.f32 %v505, 1e-05
    %v514 = vadd.f32 %v506, 1e-05
    %v515 = vadd.f32 %v507, 1e-05
    %v516 = vrsqrt.pop %v512
    %v517 = vrsqrt.pop %v513
    %v518 = vrsqrt.pop %v514
    %v519 = vrsqrt.pop %v515
    %v520 = vmul.f32 %v508, %v516
    %v521 = vmul.f32 %v509, %v517
    %v522 = vmul.f32 %v510, %v518
    %v523 = vmul.f32 %v511, %v519
    %v524 = vld [vmem:[%s4] sm:$0x1]
    %v526 = vlaneseq
    %v527 = vshrl.u32 %v526, 7
    %v528 = vsub.s32 0, %v527
    %v529 = vrot.slane %v524, %v528
    %v531 = vmul.f32 %v520, %v529
    %v532 = vmul.f32 %v521, %v529
    %v533 = vmul.f32 %v522, %v529
    %v534 = vmul.f32 %v523, %v529
    %v535 = vld [vmem:[%s5] sm:$0x1]
    %v537 = vlaneseq
    %v538 = vshrl.u32 %v537, 7
    %v539 = vsub.s32 0, %v538
    %v540 = vrot.slane %v535, %v539
    %v542 = vadd.f32 %v531, %v540
    %v543 = vadd.f32 %v532, %v540
    %v544 = vadd.f32 %v533, %v540
    %v545 = vadd.f32 %v534, %v540
    %546 = vst [vmem:[%s6] sm:$0xff] %v542
    %547 = vst [vmem:[%s6 + $0x8] sm:$0xff] %v543
    %548 = vst [vmem:[%s6 + $0x10] sm:$0xff] %v544
    %549 = vst [vmem:[%s6 + $0x18] sm:$0xff] %v545
  $region33: #{vit_forward.43} parent=0 // pred_fallthru
    _
  // Predicated region
  $region34: #{vit_forward.43} parent=0 // pred_check
    _
  $region35: #{vit_forward.43} parent=0 // pred_check_branch
    %551 = sbr.rel (0) target = $region37
  $region36: #{vit_forward.43} parent=0 // pred_region
    _
  $region37: #{vit_forward.43} parent=0 // pred_fallthru
    _
  // Predicated region
  $region38: #{vit_forward.43} parent=0 // pred_check
    _
  $region39: #{vit_forward.43} parent=0 // pred_check_branch
    %553 = sbr.rel (0) target = $region41
  $region40: #{vit_forward.43} parent=0 // pred_region
    _
  $region41: #{vit_forward.43} parent=0 // pred_fallthru
    _

// kernel: vit_forward.30
$region0: #{vit_forward.30}
  #allocation0 [shape = 'u32[]', space=smem, size = 0x4, offset = 0x4, fixed_abs, tag = 'smem constant byte address 0x4 - core index']
  #allocation1 [shape = 'u32[144,128]{1,0:T(1,128)}', space=vmem, size = 0x12000, scoped, tag = 'internal scratch']
  #allocation2 [shape = 'f32[8,128]{1,0:T(8,128)}', space=vmem, size = 0x1000, scoped, tag = 'scratch operand']
  %s0 = inlined_call_operand.vmem [shape: f32[8,128], index: 0, kind: input, shape index: {}]
  %s1 = inlined_call_operand.vmem [shape: bf16[128,128], index: 1, kind: input, shape index: {}]
  %s2 = inlined_call_operand.vmem [shape: f32[1,128], index: 2, kind: input, shape index: {}]
  %s3 = inlined_call_operand.vmem [shape: f32[8,128], index: 3, kind: output, shape index: {}]
  %s4 = sld [smem:[#allocation0]]
  $region30: #{vit_forward.30} parent=0
    _
  %s6 = ssub.s32 1, %s4
  %s7 = scalar_select 0, %s6, %s4
  // Predicated region
  $region2: #{vit_forward.30} parent=0 // pred_check
    _
  $region3: #{vit_forward.30} parent=0 // pred_check_branch
    %9 = sbr.rel (0) target = $region5
  $region4: #{vit_forward.30} parent=0 // pred_region
    _
  $region5: #{vit_forward.30} parent=0 // pred_fallthru
    _
  // Predicated region
  $region6: #{vit_forward.30} parent=0 // pred_check
    _
  $region7: #{vit_forward.30} parent=0 // pred_check_branch
    %11 = sbr.rel (0) target = $region9
  $region8: #{vit_forward.30} parent=0 // pred_region
    _
  $region9: #{vit_forward.30} parent=0 // pred_fallthru
    _
  // Predicated region
  $region10: #{vit_forward.30} parent=0 // pred_check
    _
  $region11: #{vit_forward.30} parent=0 // pred_check_branch
    %13 = sbr.rel (0) target = $region13
  $region12: #{vit_forward.30} parent=0 // pred_region
    _
  $region13: #{vit_forward.30} parent=0 // pred_fallthru
    _
  %p15 = scmp.eq.s32.totalorder 0, 0
  // Predicated region
  $region14: #{vit_forward.30} parent=0 // pred_check
    %p16 = pneg %p15
  $region15: #{vit_forward.30} parent=0 // pred_check_branch
    %18 = sbr.rel (%p16) target = $region17
  $region16: #{vit_forward.30} parent=0 // pred_region
    %19 = vst [vmem:[#allocation2] sm:$0xff] 0.0
  $region17: #{vit_forward.30} parent=0 // pred_fallthru
    _
  %v20 = vld [vmem:[#allocation2] sm:$0xff]
  %v21 = vld [vmem:[%s0] sm:$0xff]
  %v22 = vpack.c.bf16 %v21, %v21
  %v23 = vld [vmem:[%s1] sm:$0xf]
  %v24 = vld [vmem:[%s1 + $0x4] sm:$0xf]
  %v25 = vld [vmem:[%s1 + $0x8] sm:$0xf]
  %v26 = vld [vmem:[%s1 + $0xc] sm:$0xf]
  %v27 = vld [vmem:[%s1 + $0x10] sm:$0xf]
  %v28 = vld [vmem:[%s1 + $0x14] sm:$0xf]
  %v29 = vld [vmem:[%s1 + $0x18] sm:$0xf]
  %v30 = vld [vmem:[%s1 + $0x1c] sm:$0xf]
  %v31 = vld [vmem:[%s1 + $0x20] sm:$0xf]
  %v32 = vld [vmem:[%s1 + $0x24] sm:$0xf]
  %v33 = vld [vmem:[%s1 + $0x28] sm:$0xf]
  %v34 = vld [vmem:[%s1 + $0x2c] sm:$0xf]
  %v35 = vld [vmem:[%s1 + $0x30] sm:$0xf]
  %v36 = vld [vmem:[%s1 + $0x34] sm:$0xf]
  %v37 = vld [vmem:[%s1 + $0x38] sm:$0xf]
  %v38 = vld [vmem:[%s1 + $0x3c] sm:$0xf]
  %v55 = vunpack.c.l.b16 %v23
  %v56 = vunpack.c.l.b16 %v24
  %v57 = vunpack.c.l.b16 %v25
  %v58 = vunpack.c.l.b16 %v26
  %v59 = vunpack.c.l.b16 %v27
  %v60 = vunpack.c.l.b16 %v28
  %v61 = vunpack.c.l.b16 %v29
  %v62 = vunpack.c.l.b16 %v30
  %v63 = vunpack.c.l.b16 %v31
  %v64 = vunpack.c.l.b16 %v32
  %v65 = vunpack.c.l.b16 %v33
  %v66 = vunpack.c.l.b16 %v34
  %v67 = vunpack.c.l.b16 %v35
  %v68 = vunpack.c.l.b16 %v36
  %v69 = vunpack.c.l.b16 %v37
  %v70 = vunpack.c.l.b16 %v38
  %v71 = vpack.c.b16 %v56, %v55
  %v72 = vpack.c.b16 %v58, %v57
  %v73 = vpack.c.b16 %v60, %v59
  %v74 = vpack.c.b16 %v62, %v61
  %v75 = vpack.c.b16 %v64, %v63
  %v76 = vpack.c.b16 %v66, %v65
  %v77 = vpack.c.b16 %v68, %v67
  %v78 = vpack.c.b16 %v70, %v69
  %87 = vmatprep.subr.bf16.mxu0 0
  %88 = vmatpush1.bf16.msra.mxu0 %v71
  %89 = vmatprep.subr.bf16.mxu0 0
  %90 = vmatpush1.bf16.msra.mxu0 %v72
  %91 = vmatprep.subr.bf16.mxu0 0
  %92 = vmatpush1.bf16.msra.mxu0 %v73
  %93 = vmatprep.subr.bf16.mxu0 0
  %94 = vmatpush1.bf16.msra.mxu0 %v74
  %95 = vmatprep.subr.bf16.mxu0 0
  %96 = vmatpush1.bf16.msra.mxu0 %v75
  %97 = vmatprep.subr.bf16.mxu0 0
  %98 = vmatpush1.bf16.msra.mxu0 %v76
  %99 = vmatprep.subr.bf16.mxu0 0
  %100 = vmatpush1.bf16.msra.mxu0 %v77
  %101 = vmatprep.subr.bf16.mxu0 0
  %102 = vmatpush1.bf16.msra.mxu0 %v78
  %103 = vmatprep.subr.bf16.mxu0 0
  %104 = vmatpush1.bf16.msra.mxu0 0
  %105 = vmatprep.subr.bf16.mxu0 0
  %106 = vmatpush1.bf16.msra.mxu0 0
  %107 = vmatprep.subr.bf16.mxu0 0
  %108 = vmatpush1.bf16.msra.mxu0 0
  %109 = vmatprep.subr.bf16.mxu0 0
  %110 = vmatpush1.bf16.msra.mxu0 0
  %111 = vmatprep.subr.bf16.mxu0 0
  %112 = vmatpush1.bf16.msra.mxu0 0
  %113 = vmatprep.subr.bf16.mxu0 0
  %114 = vmatpush1.bf16.msra.mxu0 0
  %115 = vmatprep.subr.bf16.mxu0 0
  %116 = vmatpush1.bf16.msra.mxu0 0
  %117 = vmatprep.subr.bf16.mxu0 0
  %118 = vmatpush1.bf16.msra.mxu0 0
  %119 = vmatprep.mubr.bf16.mxu0 0
  %120 = vmatmul.mubr.bf16.gmra.mrb[0].mxu0 %v22
  %v121 = vpop.f32.mrb[0].mxu0
  %v122 = vadd.f32 0.0, %v121
  %v123 = vpop.f32.mrb[0].mxu0
  %v124 = vpop.f32.mrb[0].mxu0
  %v125 = vpop.f32.mrb[0].mxu0
  %126 = vdwg.mxu0
  %v127 = vadd.f32 %v20, %v122
  %128 = vst [vmem:[#allocation2] sm:$0xff] %v127
  // Predicated region
  $region18: #{vit_forward.30} parent=0 // pred_check
    %p129 = pneg %p15
  $region19: #{vit_forward.30} parent=0 // pred_check_branch
    %131 = sbr.rel (%p129) target = $region21
  $region20: #{vit_forward.30} parent=0 // pred_region
    %v132 = vld [vmem:[#allocation2] sm:$0xff]
    %v133 = vld [vmem:[%s2] sm:$0x1]
    %v135 = vlaneseq
    %v136 = vshrl.u32 %v135, 7
    %v137 = vsub.s32 0, %v136
    %v138 = vrot.slane %v133, %v137
    %v140 = vadd.f32 %v132, %v138
    %141 = vst [vmem:[%s3] sm:$0xff] %v140
  $region21: #{vit_forward.30} parent=0 // pred_fallthru
    _
  // Predicated region
  $region22: #{vit_forward.30} parent=0 // pred_check
    _
  $region23: #{vit_forward.30} parent=0 // pred_check_branch
    %143 = sbr.rel (0) target = $region25
  $region24: #{vit_forward.30} parent=0 // pred_region
    _
  $region25: #{vit_forward.30} parent=0 // pred_fallthru
    _
  // Predicated region
  $region26: #{vit_forward.30} parent=0 // pred_check
    _
  $region27: #{vit_forward.30} parent=0 // pred_check_branch
    %145 = sbr.rel (0) target = $region29
  $region28: #{vit_forward.30} parent=0 // pred_region
    _
  $region29: #{vit_forward.30} parent=0 // pred_fallthru
    _

// kernel: vit_forward.32
$region0: #{vit_forward.32}
  #allocation0 [shape = 'u32[]', space=smem, size = 0x4, offset = 0x4, fixed_abs, tag = 'smem constant byte address 0x4 - core index']
  #allocation1 [shape = 'u32[144,128]{1,0:T(1,128)}', space=vmem, size = 0x12000, scoped, tag = 'internal scratch']
  #allocation2 [shape = 'f32[16,1]{1,0:T(8,128)}', space=vmem, size = 0x2000, scoped, tag = 'scratch operand']
  #allocation3 [shape = 'f32[16,1]{1,0:T(8,128)}', space=vmem, size = 0x2000, scoped, tag = 'scratch operand']
  #allocation4 [shape = 'f32[16,128]{1,0:T(8,128)}', space=vmem, size = 0x2000, scoped, tag = 'scratch operand']
  %s0 = inlined_call_operand.vmem [shape: bf16[2,16,1536], index: 0, kind: input, shape index: {}, may-alias: {0,1,2}]
  %s1 = inlined_call_operand.vmem [shape: bf16[2,16,1536], index: 1, kind: input, shape index: {}, may-alias: {0,1,2}]
  %s2 = inlined_call_operand.vmem [shape: bf16[2,16,1536], index: 2, kind: input, shape index: {}, may-alias: {0,1,2}]
  %s3 = inlined_call_operand.vmem [shape: bf16[2,16,512], index: 3, kind: output, shape index: {}]
  %s4 = sld [smem:[#allocation0]]
  $region213: #{vit_forward.32} parent=0
    _
  %s6 = ssub.s32 1, %s4
  %s7 = scalar_select 0, %s6, %s4
  $region1: #{vit_forward.32} parent=0
    #allocation5 [shape = 'u8[8192]{0}', space=vmem, size = 0x2000, scoped, tag = 'input window, operand 0']
    #allocation6 [shape = 'u8[8192]{0}', space=vmem, size = 0x2000, scoped, tag = 'input window, operand 1']
    #allocation7 [shape = 'u8[8192]{0}', space=vmem, size = 0x2000, scoped, tag = 'input window, operand 2']
    #allocation8 [shape = 'u8[8192]{0}', space=vmem, size = 0x2000, scoped, tag = 'output window, operand 0']
    loop: start=0, step=1, limit=10
    $region2: #{vit_forward.32} parent=1 // loop_pre_header
      _
    $region3: #{vit_forward.32} parent=1 // loop_header
      %s9 = sphi 0, %s13
      %p10 = scmp.ge.s32.totalorder %s9, 10
      %s16 = sphi 0, %s42
      %s17 = sphi 0, %s38
      %s18 = sphi 0, %s34
      %s19 = sphi 0, %s30
      %s20 = sphi 0, %s16
      %s21 = sphi 0, %s17
      %s22 = sphi 0, %s18
      %s23 = sphi 0, %s19
      %s24 = sphi 0, %s20
      %s25 = sphi 0, %s21
      %s26 = sphi 0, %s22
      %s27 = sphi 0, %s23
      %s49 = sphi 0, %s51
      %s52 = sphi 0, %s49
      %s53 = sphi 0, %s52
      %s69 = sphi 0, %s53
      %s81 = sphi 0, %s83
      %s84 = sphi 0, %s81
      %s85 = sphi 0, %s84
      %s101 = sphi 0, %s85
      %s113 = sphi 0, %s115
      %s116 = sphi 0, %s113
      %s117 = sphi 0, %s116
      %s133 = sphi 0, %s117
      %s143 = sphi 0, %s145
      %s146 = sphi 0, %s143
      %s147 = sphi 0, %s146
      %s163 = sphi 0, %s147
    $region4: #{vit_forward.32} parent=1 // loop_header_branch
      %12 = sbr.rel (%p10) target = $region8
    $region5: #{vit_forward.32} parent=1 // loop_body
      %s14 = ssub.s32 %s9, 1
      %s15 = ssub.s32 %s9, 2
      %s28 = sadd.s32 1, %s19
      %p29 = scmp.ge.s32.totalorder %s28, 1
      %s30 = scalar_select %p29, 0, %s28
      %s31 = sadd.s32 1, %s18
      %s32 = scalar_select %p29, %s31, %s18
      %p33 = scmp.ge.s32.totalorder %s32, 1
      %s34 = scalar_select %p33, 0, %s32
      %s35 = sadd.s32 1, %s17
      %s36 = scalar_select %p33, %s35, %s17
      %p37 = scmp.ge.s32.totalorder %s36, 4
      %s38 = scalar_select %p37, 0, %s36
      %s39 = sadd.s32 1, %s16
      %s40 = scalar_select %p37, %s39, %s16
      %p41 = scmp.ge.s32.totalorder %s40, 2
      %s42 = scalar_select %p41, 0, %s40
      %s43 = ssub.s32 %s16, %s42
      %s44 = ssub.s32 %s18, %s34
      %s45 = sor.u32 %s43, %s44
      %s46 = ssub.s32 %s17, %s38
      %s47 = sor.u32 %s45, %s46
      %p48 = scmp.eq.s32.totalorder %s47, 0
      %s50 = sadd.s32 %s49, 1
      %s51 = scalar_select %p48, %s49, %s50
      %p54 = pneg %p48
      %p55 = scmp.eq.s32.totalorder %s9, 7
      %p56 = por %p54, %p55
      %p57 = scmp.ne.s32.totalorder %s49, %s52
      %p58 = scmp.eq.s32.totalorder %s9, 0
      %p59 = por %p57, %p58
      %p60 = scmp.ne.s32.totalorder %s49, %s52
      %p61 = scmp.eq.s32.totalorder %s14, 7
      %p62 = por %p60, %p61
      %p63 = scmp.ne.s32.totalorder %s52, %s53
      %p64 = scmp.eq.s32.totalorder %s14, 0
      %p65 = por %p63, %p64
      %p66 = scmp.ne.s32.totalorder %s52, %s53
      %p67 = scmp.eq.s32.totalorder %s15, 7
      %p68 = por %p66, %p67
      %p70 = scmp.ne.s32.totalorder %s53, %s69
      %p71 = scmp.eq.s32.totalorder %s15, 0
      %p72 = por %p70, %p71
      %s73 = sadd.s32 %s17, 4
      %s74 = sadd.s32 %s38, 4
      %s75 = ssub.s32 %s16, %s42
      %s76 = ssub.s32 %s19, %s30
      %s77 = sor.u32 %s75, %s76
      %s78 = ssub.s32 %s73, %s74
      %s79 = sor.u32 %s77, %s78
      %p80 = scmp.eq.s32.totalorder %s79, 0
      %s82 = sadd.s32 %s81, 1
      %s83 = scalar_select %p80, %s81, %s82
      %p86 = pneg %p80
      %p87 = scmp.eq.s32.totalorder %s9, 7
      %p88 = por %p86, %p87
      %p89 = scmp.ne.s32.totalorder %s81, %s84
      %p90 = scmp.eq.s32.totalorder %s9, 0
      %p91 = por %p89, %p90
      %p92 = scmp.ne.s32.totalorder %s81, %s84
      %p93 = scmp.eq.s32.totalorder %s14, 7
      %p94 = por %p92, %p93
      %p95 = scmp.ne.s32.totalorder %s84, %s85
      %p96 = scmp.eq.s32.totalorder %s14, 0
      %p97 = por %p95, %p96
      %p98 = scmp.ne.s32.totalorder %s84, %s85
      %p99 = scmp.eq.s32.totalorder %s15, 7
      %p100 = por %p98, %p99
      %p102 = scmp.ne.s32.totalorder %s85, %s101
      %p103 = scmp.eq.s32.totalorder %s15, 0
      %p104 = por %p102, %p103
      %s105 = sadd.s32 %s17, 8
      %s106 = sadd.s32 %s38, 8
      %s107 = ssub.s32 %s16, %s42
      %s108 = ssub.s32 %s19, %s30
      %s109 = sor.u32 %s107, %s108
      %s110 = ssub.s32 %s105, %s106
      %s111 = sor.u32 %s109, %s110
      %p112 = scmp.eq.s32.totalorder %s111, 0
      %s114 = sadd.s32 %s113, 1
      %s115 = scalar_select %p112, %s113, %s114
      %p118 = pneg %p112
      %p119 = scmp.eq.s32.totalorder %s9, 7
      %p120 = por %p118, %p119
      %p121 = scmp.ne.s32.totalorder %s113, %s116
      %p122 = scmp.eq.s32.totalorder %s9, 0
      %p123 = por %p121, %p122
      %p124 = scmp.ne.s32.totalorder %s113, %s116
      %p125 = scmp.eq.s32.totalorder %s14, 7
      %p126 = por %p124, %p125
      %p127 = scmp.ne.s32.totalorder %s116, %s117
      %p128 = scmp.eq.s32.totalorder %s14, 0
      %p129 = por %p127, %p128
      %p130 = scmp.ne.s32.totalorder %s116, %s117
      %p131 = scmp.eq.s32.totalorder %s15, 7
      %p132 = por %p130, %p131
      %p134 = scmp.ne.s32.totalorder %s117, %s133
      %p135 = scmp.eq.s32.totalorder %s15, 0
      %p136 = por %p134, %p135
      %s137 = ssub.s32 %s16, %s42
      %s138 = ssub.s32 %s18, %s34
      %s139 = sor.u32 %s137, %s138
      %s140 = ssub.s32 %s17, %s38
      %s141 = sor.u32 %s139, %s140
      %p142 = scmp.eq.s32.totalorder %s141, 0
      %s144 = sadd.s32 %s143, 1
      %s145 = scalar_select %p142, %s143, %s144
      %p148 = pneg %p142
      %p149 = scmp.eq.s32.totalorder %s9, 7
      %p150 = por %p148, %p149
      %p151 = scmp.ne.s32.totalorder %s143, %s146
      %p152 = scmp.eq.s32.totalorder %s9, 0
      %p153 = por %p151, %p152
      %p154 = scmp.ne.s32.totalorder %s143, %s146
      %p155 = scmp.eq.s32.totalorder %s14, 7
      %p156 = por %p154, %p155
      %p157 = scmp.ne.s32.totalorder %s146, %s147
      %p158 = scmp.eq.s32.totalorder %s14, 0
      %p159 = por %p157, %p158
      %p160 = scmp.ne.s32.totalorder %s146, %s147
      %p161 = scmp.eq.s32.totalorder %s15, 7
      %p162 = por %p160, %p161
      %p164 = scmp.ne.s32.totalorder %s147, %s163
      %p165 = scmp.eq.s32.totalorder %s15, 0
      %p166 = por %p164, %p165
      %p167 = scmp.le.s32.totalorder 1, %s9
      %p168 = scmp.lt.s32.totalorder %s9, 9
      %p169 = pnand %p167, %p168
      %p170 = pneg %p169
      // Predicated region
      $region9: #{vit_forward.32} parent=5 // pred_check
        _
      $region10: #{vit_forward.32} parent=5 // pred_check_branch
        %172 = sbr.rel (%p169) target = $region12
      $region11: #{vit_forward.32} parent=5 // pred_region
        %s173 = ssub.s32 %s9, 1
      $region12: #{vit_forward.32} parent=5 // pred_fallthru
        _
      %p174 = scmp.lt.s32.totalorder %s9, 8
      // Predicated region
      $region13: #{vit_forward.32} parent=5 // pred_check
        %p175 = pneg %p174
      $region14: #{vit_forward.32} parent=5 // pred_check_branch
        %177 = sbr.rel (%p175) target = $region16
      $region15: #{vit_forward.32} parent=5 // pred_region
        // Predicated region
        $region17: #{vit_forward.32} parent=15 // pred_check
          %p178 = pneg %p59
        $region18: #{vit_forward.32} parent=15 // pred_check_branch
          %180 = sbr.rel (%p178) target = $region20
        $region19: #{vit_forward.32} parent=15 // pred_region
          %s181 = sand.u32 %s49, 1
          %s182 = sand.u32 %s49, 1
          %s183 = smul.addr %s182, 8
          %s184 = scalar_lea.vmem [#allocation5], %s183
          %s185 = smul.u32 2, %s18
          %s186 = smul.addr %s185, 12
          %s187 = sadd.s32 %s17, %s186
          %s188 = smul.addr %s16, 24
          %s189 = sadd.s32 %s187, %s188
          %s190 = smul.addr %s189, 4
          %s191 = scalar_lea.vmem %s0, %s190
          // Predicated region
          $region21: #{vit_forward.32} parent=19 // pred_check
            _
          $region22: #{vit_forward.32} parent=19 // pred_check_branch
            %193 = sbr.rel (0) target = $region24
          $region23: #{vit_forward.32} parent=19 // pred_region
            // Predicated region
            $region25: #{vit_forward.32} parent=23 // pred_check
              _
            $region26: #{vit_forward.32} parent=23 // pred_check_branch
              %195 = sbr.rel target = $region28
            $region27: #{vit_forward.32} parent=23 // pred_region
              // Predicated region
              $region40: #{vit_forward.32} parent=27 // pred_check
                _
              $region41: #{vit_forward.32} parent=27 // pred_check_branch
                %212 = sbr.rel (0) target = $region43
              $region42: #{vit_forward.32} parent=27 // pred_region
                loop: start=0, step=1, limit=1
                $region44: #{vit_forward.32} parent=42 // loop_pre_header
                  _
                $region45: #{vit_forward.32} parent=42 // loop_header
                  %s214 = sphi 0, %s218
                  %p215 = scmp.ge.s32.totalorder %s214, 1
                  %s219 = sphi %s191, %s191
                  %s220 = sphi %s184, %s184
                $region46: #{vit_forward.32} parent=42 // loop_header_branch
                  %217 = sbr.rel (%p215) target = $region50
                $region47: #{vit_forward.32} parent=42 // loop_body
                  _
                $region48: #{vit_forward.32} parent=42 // loop_footer
                  %s218 = sadd.s32 1, %s214
                $region49: #{vit_forward.32} parent=42 // loop_footer_branch
                  %213 = sbr.rel target = $region45
                $region50: #{vit_forward.32} parent=42 // loop_exit
                  _
                loop: start=0, step=1, limit=1
                $region51: #{vit_forward.32} parent=42 // loop_pre_header
                  _
                $region52: #{vit_forward.32} parent=42 // loop_header
                  %s223 = sphi 0, %s227
                  %p224 = scmp.ge.s32.totalorder %s223, 1
                  %s228 = sphi %s191, %s191
                  %s229 = sphi %s184, %s184
                $region53: #{vit_forward.32} parent=42 // loop_header_branch
                  %226 = sbr.rel (%p224) target = $region57
                $region54: #{vit_forward.32} parent=42 // loop_body
                  %v230 = vld [vmem:[%s228] sm:$0xf]
                  %231 = vst [vmem:[%s229] sm:$0xf] %v230
                  %v232 = vld [vmem:[%s228 + $0x30] sm:$0xf]
                  %233 = vst [vmem:[%s229 + $0x4] sm:$0xf] %v232
                $region55: #{vit_forward.32} parent=42 // loop_footer
                  %s227 = sadd.s32 1, %s223
                $region56: #{vit_forward.32} parent=42 // loop_footer_branch
                  %222 = sbr.rel target = $region52
                $region57: #{vit_forward.32} parent=42 // loop_exit
                  _
              $region43: #{vit_forward.32} parent=27 // pred_fallthru
                _
            $region28: #{vit_forward.32} parent=23 // pred_fallthru
              _
            // Predicated region
            $region29: #{vit_forward.32} parent=23 // pred_check
              _
            $region30: #{vit_forward.32} parent=23 // pred_check_branch
              %197 = sbr.rel (0) target = $region32
            $region31: #{vit_forward.32} parent=23 // pred_region
              loop: start=0, step=1, limit=1
              $region33: #{vit_forward.32} parent=31 // loop_pre_header
                _
              $region34: #{vit_forward.32} parent=31 // loop_header
                %s200 = sphi 0, %s204
                %p201 = scmp.ge.s32.totalorder %s200, 1
                %s205 = sphi %s191, %s191
                %s206 = sphi %s184, %s184
              $region35: #{vit_forward.32} parent=31 // loop_header_branch
                %203 = sbr.rel (%p201) target = $region39
              $region36: #{vit_forward.32} parent=31 // loop_body
                %v207 = vld [vmem:[%s205] sm:$0xf]
                %208 = vst [vmem:[%s206] sm:$0xf] %v207
                %v209 = vld [vmem:[%s205 + $0x30] sm:$0xf]
                %210 = vst [vmem:[%s206 + $0x4] sm:$0xf] %v209
              $region37: #{vit_forward.32} parent=31 // loop_footer
                %s204 = sadd.s32 1, %s200
              $region38: #{vit_forward.32} parent=31 // loop_footer_branch
                %199 = sbr.rel target = $region34
              $region39: #{vit_forward.32} parent=31 // loop_exit
                _
            $region32: #{vit_forward.32} parent=23 // pred_fallthru
              _
          $region24: #{vit_forward.32} parent=19 // pred_fallthru
            _
          %234 = vnop
        $region20: #{vit_forward.32} parent=15 // pred_fallthru
          _
        // Predicated region
        $region58: #{vit_forward.32} parent=15 // pred_check
          %p235 = pneg %p91
        $region59: #{vit_forward.32} parent=15 // pred_check_branch
          %237 = sbr.rel (%p235) target = $region61
        $region60: #{vit_forward.32} parent=15 // pred_region
          %s238 = sand.u32 %s81, 1
          %s239 = sand.u32 %s81, 1
          %s240 = smul.addr %s239, 8
          %s241 = scalar_lea.vmem [#allocation6], %s240
          %s242 = sadd.s32 %s17, 4
          %s243 = smul.u32 2, %s19
          %s244 = smul.addr %s243, 12
          %s245 = sadd.s32 %s242, %s244
          %s246 = smul.addr %s16, 24
          %s247 = sadd.s32 %s245, %s246
          %s248 = smul.addr %s247, 4
          %s249 = scalar_lea.vmem %s1, %s248
          // Predicated region
          $region62: #{vit_forward.32} parent=60 // pred_check
            _
          $region63: #{vit_forward.32} parent=60 // pred_check_branch
            %251 = sbr.rel (0) target = $region65
          $region64: #{vit_forward.32} parent=60 // pred_region
            // Predicated region
            $region66: #{vit_forward.32} parent=64 // pred_check
              _
            $region67: #{vit_forward.32} parent=64 // pred_check_branch
              %253 = sbr.rel target = $region69
            $region68: #{vit_forward.32} parent=64 // pred_region
              // Predicated region
              $region81: #{vit_forward.32} parent=68 // pred_check
                _
              $region82: #{vit_forward.32} parent=68 // pred_check_branch
                %270 = sbr.rel (0) target = $region84
              $region83: #{vit_forward.32} parent=68 // pred_region
                loop: start=0, step=1, limit=1
                $region85: #{vit_forward.32} parent=83 // loop_pre_header
                  _
                $region86: #{vit_forward.32} parent=83 // loop_header
                  %s272 = sphi 0, %s276
                  %p273 = scmp.ge.s32.totalorder %s272, 1
                  %s277 = sphi %s249, %s249
                  %s278 = sphi %s241, %s241
                $region87: #{vit_forward.32} parent=83 // loop_header_branch
                  %275 = sbr.rel (%p273) target = $region91
                $region88: #{vit_forward.32} parent=83 // loop_body
                  _
                $region89: #{vit_forward.32} parent=83 // loop_footer
                  %s276 = sadd.s32 1, %s272
                $region90: #{vit_forward.32} parent=83 // loop_footer_branch
                  %271 = sbr.rel target = $region86
                $region91: #{vit_forward.32} parent=83 // loop_exit
                  _
                loop: start=0, step=1, limit=1
                $region92: #{vit_forward.32} parent=83 // loop_pre_header
                  _
                $region93: #{vit_forward.32} parent=83 // loop_header
                  %s281 = sphi 0, %s285
                  %p282 = scmp.ge.s32.totalorder %s281, 1
                  %s286 = sphi %s249, %s249
                  %s287 = sphi %s241, %s241
                $region94: #{vit_forward.32} parent=83 // loop_header_branch
                  %284 = sbr.rel (%p282) target = $region98
                $region95: #{vit_forward.32} parent=83 // loop_body
                  %v288 = vld [vmem:[%s286] sm:$0xf]
                  %289 = vst [vmem:[%s287] sm:$0xf] %v288
                  %v290 = vld [vmem:[%s286 + $0x30] sm:$0xf]
                  %291 = vst [vmem:[%s287 + $0x4] sm:$0xf] %v290
                $region96: #{vit_forward.32} parent=83 // loop_footer
                  %s285 = sadd.s32 1, %s281
                $region97: #{vit_forward.32} parent=83 // loop_footer_branch
                  %280 = sbr.rel target = $region93
                $region98: #{vit_forward.32} parent=83 // loop_exit
                  _
              $region84: #{vit_forward.32} parent=68 // pred_fallthru
                _
            $region69: #{vit_forward.32} parent=64 // pred_fallthru
              _
            // Predicated region
            $region70: #{vit_forward.32} parent=64 // pred_check
              _
            $region71: #{vit_forward.32} parent=64 // pred_check_branch
              %255 = sbr.rel (0) target = $region73
            $region72: #{vit_forward.32} parent=64 // pred_region
              loop: start=0, step=1, limit=1
              $region74: #{vit_forward.32} parent=72 // loop_pre_header
                _
              $region75: #{vit_forward.32} parent=72 // loop_header
                %s258 = sphi 0, %s262
                %p259 = scmp.ge.s32.totalorder %s258, 1
                %s263 = sphi %s249, %s249
                %s264 = sphi %s241, %s241
              $region76: #{vit_forward.32} parent=72 // loop_header_branch
                %261 = sbr.rel (%p259) target = $region80
              $region77: #{vit_forward.32} parent=72 // loop_body
                %v265 = vld [vmem:[%s263] sm:$0xf]
                %266 = vst [vmem:[%s264] sm:$0xf] %v265
                %v267 = vld [vmem:[%s263 + $0x30] sm:$0xf]
                %268 = vst [vmem:[%s264 + $0x4] sm:$0xf] %v267
              $region78: #{vit_forward.32} parent=72 // loop_footer
                %s262 = sadd.s32 1, %s258
              $region79: #{vit_forward.32} parent=72 // loop_footer_branch
                %257 = sbr.rel target = $region75
              $region80: #{vit_forward.32} parent=72 // loop_exit
                _
            $region73: #{vit_forward.32} parent=64 // pred_fallthru
              _
          $region65: #{vit_forward.32} parent=60 // pred_fallthru
            _
          %292 = vnop
        $region61: #{vit_forward.32} parent=15 // pred_fallthru
          _
        // Predicated region
        $region99: #{vit_forward.32} parent=15 // pred_check
          %p293 = pneg %p123
        $region100: #{vit_forward.32} parent=15 // pred_check_branch
          %295 = sbr.rel (%p293) target = $region102
        $region101: #{vit_forward.32} parent=15 // pred_region
          %s296 = sand.u32 %s113, 1
          %s297 = sand.u32 %s113, 1
          %s298 = smul.addr %s297, 8
          %s299 = scalar_lea.vmem [#allocation7], %s298
          %s300 = sadd.s32 %s17, 8
          %s301 = smul.u32 2, %s19
          %s302 = smul.addr %s301, 12
          %s303 = sadd.s32 %s300, %s302
          %s304 = smul.addr %s16, 24
          %s305 = sadd.s32 %s303, %s304
          %s306 = smul.addr %s305, 4
          %s307 = scalar_lea.vmem %s2, %s306
          // Predicated region
          $region103: #{vit_forward.32} parent=101 // pred_check
            _
          $region104: #{vit_forward.32} parent=101 // pred_check_branch
            %309 = sbr.rel (0) target = $region106
          $region105: #{vit_forward.32} parent=101 // pred_region
            // Predicated region
            $region107: #{vit_forward.32} parent=105 // pred_check
              _
            $region108: #{vit_forward.32} parent=105 // pred_check_branch
              %311 = sbr.rel target = $region110
            $region109: #{vit_forward.32} parent=105 // pred_region
              // Predicated region
              $region122: #{vit_forward.32} parent=109 // pred_check
                _
              $region123: #{vit_forward.32} parent=109 // pred_check_branch
                %328 = sbr.rel (0) target = $region125
              $region124: #{vit_forward.32} parent=109 // pred_region
                loop: start=0, step=1, limit=1
                $region126: #{vit_forward.32} parent=124 // loop_pre_header
                  _
                $region127: #{vit_forward.32} parent=124 // loop_header
                  %s330 = sphi 0, %s334
                  %p331 = scmp.ge.s32.totalorder %s330, 1
                  %s335 = sphi %s307, %s307
                  %s336 = sphi %s299, %s299
                $region128: #{vit_forward.32} parent=124 // loop_header_branch
                  %333 = sbr.rel (%p331) target = $region132
                $region129: #{vit_forward.32} parent=124 // loop_body
                  _
                $region130: #{vit_forward.32} parent=124 // loop_footer
                  %s334 = sadd.s32 1, %s330
                $region131: #{vit_forward.32} parent=124 // loop_footer_branch
                  %329 = sbr.rel target = $region127
                $region132: #{vit_forward.32} parent=124 // loop_exit
                  _
                loop: start=0, step=1, limit=1
                $region133: #{vit_forward.32} parent=124 // loop_pre_header
                  _
                $region134: #{vit_forward.32} parent=124 // loop_header
                  %s339 = sphi 0, %s343
                  %p340 = scmp.ge.s32.totalorder %s339, 1
                  %s344 = sphi %s307, %s307
                  %s345 = sphi %s299, %s299
                $region135: #{vit_forward.32} parent=124 // loop_header_branch
                  %342 = sbr.rel (%p340) target = $region139
                $region136: #{vit_forward.32} parent=124 // loop_body
                  %v346 = vld [vmem:[%s344] sm:$0xf]
                  %347 = vst [vmem:[%s345] sm:$0xf] %v346
                  %v348 = vld [vmem:[%s344 + $0x30] sm:$0xf]
                  %349 = vst [vmem:[%s345 + $0x4] sm:$0xf] %v348
                $region137: #{vit_forward.32} parent=124 // loop_footer
                  %s343 = sadd.s32 1, %s339
                $region138: #{vit_forward.32} parent=124 // loop_footer_branch
                  %338 = sbr.rel target = $region134
                $region139: #{vit_forward.32} parent=124 // loop_exit
                  _
              $region125: #{vit_forward.32} parent=109 // pred_fallthru
                _
            $region110: #{vit_forward.32} parent=105 // pred_fallthru
              _
            // Predicated region
            $region111: #{vit_forward.32} parent=105 // pred_check
              _
            $region112: #{vit_forward.32} parent=105 // pred_check_branch
              %313 = sbr.rel (0) target = $region114
            $region113: #{vit_forward.32} parent=105 // pred_region
              loop: start=0, step=1, limit=1
              $region115: #{vit_forward.32} parent=113 // loop_pre_header
                _
              $region116: #{vit_forward.32} parent=113 // loop_header
                %s316 = sphi 0, %s320
                %p317 = scmp.ge.s32.totalorder %s316, 1
                %s321 = sphi %s307, %s307
                %s322 = sphi %s299, %s299
              $region117: #{vit_forward.32} parent=113 // loop_header_branch
                %319 = sbr.rel (%p317) target = $region121
              $region118: #{vit_forward.32} parent=113 // loop_body
                %v323 = vld [vmem:[%s321] sm:$0xf]
                %324 = vst [vmem:[%s322] sm:$0xf] %v323
                %v325 = vld [vmem:[%s321 + $0x30] sm:$0xf]
                %326 = vst [vmem:[%s322 + $0x4] sm:$0xf] %v325
              $region119: #{vit_forward.32} parent=113 // loop_footer
                %s320 = sadd.s32 1, %s316
              $region120: #{vit_forward.32} parent=113 // loop_footer_branch
                %315 = sbr.rel target = $region116
              $region121: #{vit_forward.32} parent=113 // loop_exit
                _
            $region114: #{vit_forward.32} parent=105 // pred_fallthru
              _
          $region106: #{vit_forward.32} parent=101 // pred_fallthru
            _
          %350 = vnop
        $region102: #{vit_forward.32} parent=15 // pred_fallthru
          _
      $region16: #{vit_forward.32} parent=5 // pred_fallthru
        _
      %p351 = scmp.le.s32.totalorder 1, %s9
      %p352 = scmp.lt.s32.totalorder %s9, 9
      %p353 = pnand %p351, %p352
      %p354 = pneg %p353
      // Predicated region
      $region140: #{vit_forward.32} parent=5 // pred_check
        _
      $region141: #{vit_forward.32} parent=5 // pred_check_branch
        %356 = sbr.rel (%p353) target = $region143
      $region142: #{vit_forward.32} parent=5 // pred_region
        %s357 = ssub.s32 %s9, 1
        %s358 = sand.u32 %s52, 1
        %s359 = sand.u32 %s52, 1
        %s360 = smul.addr %s359, 8
        %s361 = scalar_lea.vmem [#allocation5], %s360
        // Predicated region
        $region144: #{vit_forward.32} parent=142 // pred_check
          %p362 = pneg %p65
        $region145: #{vit_forward.32} parent=142 // pred_check_branch
          %364 = sbr.rel (%p362) target = $region147
        $region146: #{vit_forward.32} parent=142 // pred_region
          _
        $region147: #{vit_forward.32} parent=142 // pred_fallthru
          _
        %s365 = sand.u32 %s84, 1
        %s366 = sand.u32 %s84, 1
        %s367 = smul.addr %s366, 8
        %s368 = scalar_lea.vmem [#allocation6], %s367
        // Predicated region
        $region148: #{vit_forward.32} parent=142 // pred_check
          %p369 = pneg %p97
        $region149: #{vit_forward.32} parent=142 // pred_check_branch
          %371 = sbr.rel (%p369) target = $region151
        $region150: #{vit_forward.32} parent=142 // pred_region
          _
        $region151: #{vit_forward.32} parent=142 // pred_fallthru
          _
        %s372 = sand.u32 %s116, 1
        %s373 = sand.u32 %s116, 1
        %s374 = smul.addr %s373, 8
        %s375 = scalar_lea.vmem [#allocation7], %s374
        // Predicated region
        $region152: #{vit_forward.32} parent=142 // pred_check
          %p376 = pneg %p129
        $region153: #{vit_forward.32} parent=142 // pred_check_branch
          %378 = sbr.rel (%p376) target = $region155
        $region154: #{vit_forward.32} parent=142 // pred_region
          _
        $region155: #{vit_forward.32} parent=142 // pred_fallthru
          _
        %s379 = sand.u32 %s52, 1
        %s380 = sand.u32 %s52, 1
        %s381 = smul.addr %s380, 8
        %s382 = scalar_lea.vmem [#allocation5], %s381
        %p383 = pneg %p65
        %p384 = pneg %p62
        %s385 = sand.u32 %s84, 1
        %s386 = sand.u32 %s84, 1
        %s387 = smul.addr %s386, 8
        %s388 = scalar_lea.vmem [#allocation6], %s387
        %p389 = pneg %p97
        %p390 = pneg %p94
        %s391 = sand.u32 %s116, 1
        %s392 = sand.u32 %s116, 1
        %s393 = smul.addr %s392, 8
        %s394 = scalar_lea.vmem [#allocation7], %s393
        %p395 = pneg %p129
        %p396 = pneg %p126
        %p397 = pneg %p159
        %p398 = pneg %p156
        %s399 = sand.u32 %s146, 1
        %s400 = sand.u32 %s146, 1
        %s401 = smul.addr %s400, 8
        %s402 = scalar_lea.vmem [#allocation8], %s401
        %s403 = smul.u32 2, %s22
        %s404 = sadd.s32 %s21, 4
        %s405 = smul.u32 2, %s23
        %s406 = sadd.s32 %s21, 8
        %s407 = smul.u32 2, %s23
        %s408 = smul.u32 2, %s22
        %p410 = scmp.eq.s32.totalorder %s23, 0
        // Predicated region
        $region156: #{vit_forward.32} parent=142 // pred_check
          %p411 = pneg %p410
        $region157: #{vit_forward.32} parent=142 // pred_check_branch
          %413 = sbr.rel (%p411) target = $region159
        $region158: #{vit_forward.32} parent=142 // pred_region
          %vm414 = vcmask 7168
          %415 = vst.msk [vmem:[#allocation2] sm:$0xff] %vm414, -1e+30
          %416 = vst.msk [vmem:[#allocation2 + $0x8] sm:$0xff] %vm414, -1e+30
          %417 = vst.msk [vmem:[#allocation3] sm:$0xff] %vm414, 0.0
          %418 = vst.msk [vmem:[#allocation3 + $0x8] sm:$0xff] %vm414, 0.0
          %419 = vst [vmem:[#allocation4] sm:$0xff] 0.0
          %420 = vst [vmem:[#allocation4 + $0x8] sm:$0xff] 0.0
        $region159: #{vit_forward.32} parent=142 // pred_fallthru
          _
        %v421 = vld [vmem:[%s361] sm:$0xf]
        %v422 = vld [vmem:[%s361 + $0x4] sm:$0xf]
        %v423 = vld [vmem:[%s368] sm:$0xf]
        %v424 = vld [vmem:[%s368 + $0x4] sm:$0xf]
        %v425 = vld [vmem:[%s375] sm:$0xf]
        %v426 = vld [vmem:[%s375 + $0x4] sm:$0xf]
        %v429 = vunpack.c.l.b16 %v421
        %v430 = vunpack.c.l.b16 %v422
        %v431 = vpack.c.b16 %v430, %v429
        %v435 = vunpack.c.l.b16 %v423
        %v436 = vunpack.c.l.b16 %v424
        %v437 = vpack.c.b16 %v436, %v435
        %439 = vmatprep.subr.bf16.mxu0 0
        %440 = vmatpush1.bf16.xpose.msra.mxu0 %v437
        %441 = vmatprep.subr.bf16.mxu0 0
        %442 = vmatpush1.bf16.xpose.msra.mxu0 0
        %443 = vmatprep.subr.bf16.mxu0 0
        %444 = vmatpush1.bf16.xpose.msra.mxu0 0
        %445 = vmatprep.subr.bf16.mxu0 0
        %446 = vmatpush1.bf16.xpose.msra.mxu0 0
        %447 = vmatprep.subr.bf16.mxu0 0
        %448 = vmatpush1.bf16.xpose.msra.mxu0 0
        %449 = vmatprep.subr.bf16.mxu0 0
        %450 = vmatpush1.bf16.xpose.msra.mxu0 0
        %451 = vmatprep.subr.bf16.mxu0 0
        %452 = vmatpush1.bf16.xpose.msra.mxu0 0
        %453 = vmatprep.subr.bf16.mxu0 0
        %454 = vmatpush1.bf16.xpose.msra.mxu0 0
        %455 = vmatprep.subr.bf16.mxu0 0
        %456 = vmatpush1.bf16.xpose.msra.mxu0 0
        %457 = vmatprep.subr.bf16.mxu0 0
        %458 = vmatpush1.bf16.xpose.msra.mxu0 0
        %459 = vmatprep.subr.bf16.mxu0 0
        %460 = vmatpush1.bf16.xpose.msra.mxu0 0
        %461 = vmatprep.subr.bf16.mxu0 0
        %462 = vmatpush1.bf16.xpose.msra.mxu0 0
        %463 = vmatprep.subr.bf16.mxu0 0
        %464 = vmatpush1.bf16.xpose.msra.mxu0 0
        %465 = vmatprep.subr.bf16.mxu0 0
        %466 = vmatpush1.bf16.xpose.msra.mxu0 0
        %467 = vmatprep.subr.bf16.mxu0 0
        %468 = vmatpush1.bf16.xpose.msra.mxu0 0
        %469 = vmatprep.subr.bf16.mxu0 0
        %470 = vmatpush1.bf16.xpose.msra.mxu0 0
        %471 = vmatprep.mubr.bf16.mxu0 0
        %472 = vmatmul.mubr.bf16.gmra.mrb[0].mxu0 %v431
        %v473 = vpop.f32.mrb[0].mxu0
        %v474 = vadd.f32 0.0, %v473
        %v475 = vpop.f32.mrb[0].mxu0
        %v476 = vpop.f32.mrb[0].mxu0
        %v477 = vadd.f32 0.0, %v476
        %v478 = vpop.f32.mrb[0].mxu0
        %479 = vdwg.mxu0
        %v480 = vmul.f32 %v474, 0.35355338
        %v481 = vmul.f32 %v477, 0.35355338
        %s482 = smul.u32 %s23, 16
        %v483 = vlaneseq
        %v484 = vand.u32 %v483, 127
        %v485 = vstv %s482
        %v486 = vadd.s32 %v485, %v484
        %vm487 = vcmp.lt.s32.totalorder %v486, 5
        %v488 = vsel %vm487, %v480, -1e+30
        %v489 = vsel %vm487, %v481, -1e+30
        %v490 = vld [vmem:[#allocation2] sm:$0xff]
        %v491 = vld [vmem:[#allocation2 + $0x8] sm:$0xff]
        %vm492 = vcmask 130048
        %v493 = vsel %vm492, %v488, -inf
        %494 = vmax.xlane.f32.xlu0 %v493
        %v495 = vpop.xlane.xlu0 %494
        %v496 = vsel %vm492, %v489, -inf
        %497 = vmax.xlane.f32.xlu0 %v496
        %v498 = vpop.xlane.xlu0 %497
        %v499 = vmax.f32 %v490, %v495
        %v500 = vmax.f32 %v491, %v498
        %v501 = vsub.f32 %v490, %v499
        %v502 = vsub.f32 %v491, %v500
        %v503 = vmul.f32 %v501, 1.442695
        %v504 = vpow.pop %v503
        %v505 = vmul.f32 %v502, 1.442695
        %v506 = vpow.pop %v505
        %508 = vset.pattern.permute.xlu0 0
        %509 = vperm.xlu0 %508, %v499
        %v510 = vpop.permute.xlu0 %509
        %513 = vset.pattern.permute.xlu0 0
        %514 = vperm.xlu0 %513, %v500
        %v515 = vpop.permute.xlu0 %514
        %v517 = vsub.f32 %v488, %v510
        %v518 = vsub.f32 %v489, %v515
        %v519 = vmul.f32 %v517, 1.442695
        %v520 = vpow.pop %v519
        %v521 = vmul.f32 %v518, 1.442695
        %v522 = vpow.pop %v521
        %v523 = vld [vmem:[#allocation3] sm:$0xff]
        %v524 = vld [vmem:[#allocation3 + $0x8] sm:$0xff]
        %v525 = vmul.f32 %v504, %v523
        %v526 = vmul.f32 %v506, %v524
        %v527 = vsel %vm492, %v520, 0.0
        %528 = vadd.xlane.f32.xlu0 %v527
        %v529 = vpop.xlane.xlu0 %528
        %v530 = vsel %vm492, %v522, 0.0
        %531 = vadd.xlane.f32.xlu0 %v530
        %v532 = vpop.xlane.xlu0 %531
        %v533 = vadd.f32 %v525, %v529
        %v534 = vadd.f32 %v526, %v532
        %vm535 = vcmask 7168
        %536 = vst.msk [vmem:[#allocation3] sm:$0xff] %vm535, %v533
        %537 = vst.msk [vmem:[#allocation3 + $0x8] sm:$0xff] %vm535, %v534
        %v538 = vld [vmem:[#allocation4] sm:$0xff]
        %v539 = vld [vmem:[#allocation4 + $0x8] sm:$0xff]
        %541 = vset.pattern.permute.xlu0 0
        %542 = vperm.xlu0 %541, %v504
        %v543 = vpop.permute.xlu0 %542
        %546 = vset.pattern.permute.xlu0 0
        %547 = vperm.xlu0 %546, %v506
        %v548 = vpop.permute.xlu0 %547
        %v550 = vmul.f32 %v543, %v538
        %v551 = vmul.f32 %v548, %v539
        %v552 = vpack.c.bf16 %v522, %v520
        %v555 = vunpack.c.l.b16 %v425
        %v556 = vunpack.c.l.b16 %v426
        %v557 = vpack.c.b16 %v556, %v555
        %v560 = vsel %vm492, %v552, 0
        %562 = vmatprep.subr.bf16.mxu0 0
        %563 = vmatpush1.bf16.msra.mxu0 %v557
        %564 = vmatprep.subr.bf16.mxu0 0
        %565 = vmatpush1.bf16.msra.mxu0 0
        %566 = vmatprep.subr.bf16.mxu0 0
        %567 = vmatpush1.bf16.msra.mxu0 0
        %568 = vmatprep.subr.bf16.mxu0 0
        %569 = vmatpush1.bf16.msra.mxu0 0
        %570 = vmatprep.subr.bf16.mxu0 0
        %571 = vmatpush1.bf16.msra.mxu0 0
        %572 = vmatprep.subr.bf16.mxu0 0
        %573 = vmatpush1.bf16.msra.mxu0 0
        %574 = vmatprep.subr.bf16.mxu0 0
        %575 = vmatpush1.bf16.msra.mxu0 0
        %576 = vmatprep.subr.bf16.mxu0 0
        %577 = vmatpush1.bf16.msra.mxu0 0
        %578 = vmatprep.subr.bf16.mxu0 0
        %579 = vmatpush1.bf16.msra.mxu0 0
        %580 = vmatprep.subr.bf16.mxu0 0
        %581 = vmatpush1.bf16.msra.mxu0 0
        %582 = vmatprep.subr.bf16.mxu0 0
        %583 = vmatpush1.bf16.msra.mxu0 0
        %584 = vmatprep.subr.bf16.mxu0 0
        %585 = vmatpush1.bf16.msra.mxu0 0
        %586 = vmatprep.subr.bf16.mxu0 0
        %587 = vmatpush1.bf16.msra.mxu0 0
        %588 = vmatprep.subr.bf16.mxu0 0
        %589 = vmatpush1.bf16.msra.mxu0 0
        %590 = vmatprep.subr.bf16.mxu0 0
        %591 = vmatpush1.bf16.msra.mxu0 0
        %592 = vmatprep.subr.bf16.mxu0 0
        %593 = vmatpush1.bf16.msra.mxu0 0
        %594 = vmatprep.mubr.bf16.mxu0 0
        %595 = vmatmul.mubr.bf16.gmra.mrb[0].mxu0 %v560
        %v596 = vpop.f32.mrb[0].mxu0
        %v597 = vadd.f32 0.0, %v596
        %v598 = vpop.f32.mrb[0].mxu0
        %v599 = vpop.f32.mrb[0].mxu0
        %v600 = vadd.f32 0.0, %v599
        %v601 = vpop.f32.mrb[0].mxu0
        %602 = vdwg.mxu0
        %v603 = vadd.f32 %v550, %v597
        %v604 = vadd.f32 %v551, %v600
        %605 = vst [vmem:[#allocation4] sm:$0xff] %v603
        %606 = vst [vmem:[#allocation4 + $0x8] sm:$0xff] %v604
        %607 = vst.msk [vmem:[#allocation2] sm:$0xff] %vm535, %v499
        %608 = vst.msk [vmem:[#allocation2 + $0x8] sm:$0xff] %vm535, %v500
        // Predicated region
        $region160: #{vit_forward.32} parent=142 // pred_check
          %p609 = pneg %p410
        $region161: #{vit_forward.32} parent=142 // pred_check_branch
          %611 = sbr.rel (%p609) target = $region163
        $region162: #{vit_forward.32} parent=142 // pred_region
          %v612 = vld [vmem:[#allocation4] sm:$0xff]
          %v613 = vld [vmem:[#allocation4 + $0x8] sm:$0xff]
          %v614 = vld [vmem:[#allocation3] sm:$0xff]
          %v615 = vld [vmem:[#allocation3 + $0x8] sm:$0xff]
          %v616 = vrcp.pop %v614
          %v617 = vrcp.pop %v615
          %619 = vset.pattern.permute.xlu0 0
          %620 = vperm.xlu0 %619, %v616
          %v621 = vpop.permute.xlu0 %620
          %624 = vset.pattern.permute.xlu0 0
          %625 = vperm.xlu0 %624, %v617
          %v626 = vpop.permute.xlu0 %625
          %v628 = vmul.f32 %v612, %v621
          %v629 = vmul.f32 %v613, %v626
          %v630 = vpack.c.bf16 %v629, %v628
          %v632 = vunpack.c.l.b16 %v630
          %v633 = vunpack.c.h.b16 %v630
          %v634 = vpack.c.b16 %v632, %v632
          %v635 = vpack.c.b16 %v633, %v633
          %638 = vst [vmem:[%s402] sm:$0xf] %v634
          %639 = vst [vmem:[%s402 + $0x4] sm:$0xf] %v635
        $region163: #{vit_forward.32} parent=142 // pred_fallthru
          _
        %s640 = sand.u32 %s146, 1
        %s641 = sand.u32 %s146, 1
        %s642 = smul.addr %s641, 8
        %s643 = scalar_lea.vmem [#allocation8], %s642
        // Predicated region
        $region164: #{vit_forward.32} parent=142 // pred_check
          %p644 = pneg %p156
        $region165: #{vit_forward.32} parent=142 // pred_check_branch
          %646 = sbr.rel (%p644) target = $region167
        $region166: #{vit_forward.32} parent=142 // pred_region
          %s647 = smul.u32 2, %s22
          %s648 = smul.addr %s647, 4
          %s649 = sadd.s32 %s21, %s648
          %s650 = smul.addr %s20, 8
          %s651 = sadd.s32 %s649, %s650
          %s652 = smul.addr %s651, 4
          %s653 = scalar_lea.vmem %s3, %s652
          // Predicated region
          $region168: #{vit_forward.32} parent=166 // pred_check
            _
          $region169: #{vit_forward.32} parent=166 // pred_check_branch
            %655 = sbr.rel (0) target = $region171
          $region170: #{vit_forward.32} parent=166 // pred_region
            // Predicated region
            $region172: #{vit_forward.32} parent=170 // pred_check
              _
            $region173: #{vit_forward.32} parent=170 // pred_check_branch
              %657 = sbr.rel target = $region175
            $region174: #{vit_forward.32} parent=170 // pred_region
              // Predicated region
              $region187: #{vit_forward.32} parent=174 // pred_check
                _
              $region188: #{vit_forward.32} parent=174 // pred_check_branch
                %674 = sbr.rel (0) target = $region190
              $region189: #{vit_forward.32} parent=174 // pred_region
                loop: start=0, step=1, limit=1
                $region191: #{vit_forward.32} parent=189 // loop_pre_header
                  _
                $region192: #{vit_forward.32} parent=189 // loop_header
                  %s676 = sphi 0, %s680
                  %p677 = scmp.ge.s32.totalorder %s676, 1
                  %s681 = sphi %s643, %s643
                  %s682 = sphi %s653, %s653
                $region193: #{vit_forward.32} parent=189 // loop_header_branch
                  %679 = sbr.rel (%p677) target = $region197
                $region194: #{vit_forward.32} parent=189 // loop_body
                  _
                $region195: #{vit_forward.32} parent=189 // loop_footer
                  %s680 = sadd.s32 1, %s676
                $region196: #{vit_forward.32} parent=189 // loop_footer_branch
                  %675 = sbr.rel target = $region192
                $region197: #{vit_forward.32} parent=189 // loop_exit
                  _
                loop: start=0, step=1, limit=1
                $region198: #{vit_forward.32} parent=189 // loop_pre_header
                  _
                $region199: #{vit_forward.32} parent=189 // loop_header
                  %s685 = sphi 0, %s689
                  %p686 = scmp.ge.s32.totalorder %s685, 1
                  %s690 = sphi %s643, %s643
                  %s691 = sphi %s653, %s653
                $region200: #{vit_forward.32} parent=189 // loop_header_branch
                  %688 = sbr.rel (%p686) target = $region204
                $region201: #{vit_forward.32} parent=189 // loop_body
                  %v692 = vld [vmem:[%s690] sm:$0xf]
                  %693 = vst [vmem:[%s691] sm:$0xf] %v692
                  %v694 = vld [vmem:[%s690 + $0x4] sm:$0xf]
                  %695 = vst [vmem:[%s691 + $0x10] sm:$0xf] %v694
                $region202: #{vit_forward.32} parent=189 // loop_footer
                  %s689 = sadd.s32 1, %s685
                $region203: #{vit_forward.32} parent=189 // loop_footer_branch
                  %684 = sbr.rel target = $region199
                $region204: #{vit_forward.32} parent=189 // loop_exit
                  _
              $region190: #{vit_forward.32} parent=174 // pred_fallthru
                _
            $region175: #{vit_forward.32} parent=170 // pred_fallthru
              _
            // Predicated region
            $region176: #{vit_forward.32} parent=170 // pred_check
              _
            $region177: #{vit_forward.32} parent=170 // pred_check_branch
              %659 = sbr.rel (0) target = $region179
            $region178: #{vit_forward.32} parent=170 // pred_region
              loop: start=0, step=1, limit=1
              $region180: #{vit_forward.32} parent=178 // loop_pre_header
                _
              $region181: #{vit_forward.32} parent=178 // loop_header
                %s662 = sphi 0, %s666
                %p663 = scmp.ge.s32.totalorder %s662, 1
                %s667 = sphi %s643, %s643
                %s668 = sphi %s653, %s653
              $region182: #{vit_forward.32} parent=178 // loop_header_branch
                %665 = sbr.rel (%p663) target = $region186
              $region183: #{vit_forward.32} parent=178 // loop_body
                %v669 = vld [vmem:[%s667] sm:$0xf]
                %670 = vst [vmem:[%s668] sm:$0xf] %v669
                %v671 = vld [vmem:[%s667 + $0x4] sm:$0xf]
                %672 = vst [vmem:[%s668 + $0x10] sm:$0xf] %v671
              $region184: #{vit_forward.32} parent=178 // loop_footer
                %s666 = sadd.s32 1, %s662
              $region185: #{vit_forward.32} parent=178 // loop_footer_branch
                %661 = sbr.rel target = $region181
              $region186: #{vit_forward.32} parent=178 // loop_exit
                _
            $region179: #{vit_forward.32} parent=170 // pred_fallthru
              _
          $region171: #{vit_forward.32} parent=166 // pred_fallthru
            _
          %696 = vnop
        $region167: #{vit_forward.32} parent=142 // pred_fallthru
          _
      $region143: #{vit_forward.32} parent=5 // pred_fallthru
        _
      %p697 = scmp.le.s32.totalorder 2, %s9
      // Predicated region
      $region205: #{vit_forward.32} parent=5 // pred_check
        %p698 = pneg %p697
      $region206: #{vit_forward.32} parent=5 // pred_check_branch
        %700 = sbr.rel (%p698) target = $region208
      $region207: #{vit_forward.32} parent=5 // pred_region
        %s701 = ssub.s32 %s9, 2
        // Predicated region
        $region209: #{vit_forward.32} parent=207 // pred_check
          %p702 = pneg %p162
        $region210: #{vit_forward.32} parent=207 // pred_check_branch
          %704 = sbr.rel (%p702) target = $region212
        $region211: #{vit_forward.32} parent=207 // pred_region
          %s705 = sand.u32 %s147, 1
          %s706 = sand.u32 %s147, 1
          %s707 = smul.addr %s706, 8
          %s708 = scalar_lea.vmem [#allocation8], %s707
        $region212: #{vit_forward.32} parent=207 // pred_fallthru
          _
      $region208: #{vit_forward.32} parent=5 // pred_fallthru
        _
    $region6: #{vit_forward.32} parent=1 // loop_footer
      %s13 = sadd.s32 1, %s9
    $region7: #{vit_forward.32} parent=1 // loop_footer_branch
      %8 = sbr.rel target = $region3
    $region8: #{vit_forward.32} parent=1 // loop_exit
      _

// kernel: vit_forward.34
$region0: #{vit_forward.34}
  #allocation0 [shape = 'u32[]', space=smem, size = 0x4, offset = 0x4, fixed_abs, tag = 'smem constant byte address 0x4 - core index']
  #allocation1 [shape = 'u32[144,128]{1,0:T(1,128)}', space=vmem, size = 0x12000, scoped, tag = 'internal scratch']
  #allocation2 [shape = 'f32[32,128]{1,0:T(8,128)}', space=vmem, size = 0x4000, scoped, tag = 'scratch operand']
  %s0 = inlined_call_operand.vmem [shape: f32[32,128], index: 0, kind: input, shape index: {}]
  %s1 = inlined_call_operand.vmem [shape: bf16[128,128], index: 1, kind: input, shape index: {}]
  %s2 = inlined_call_operand.vmem [shape: f32[1,128], index: 2, kind: input, shape index: {}]
  %s3 = inlined_call_operand.vmem [shape: bf16[32,128], index: 3, kind: output, shape index: {}]
  %s4 = sld [smem:[#allocation0]]
  $region30: #{vit_forward.34} parent=0
    _
  %s6 = ssub.s32 1, %s4
  %s7 = scalar_select 0, %s6, %s4
  // Predicated region
  $region2: #{vit_forward.34} parent=0 // pred_check
    _
  $region3: #{vit_forward.34} parent=0 // pred_check_branch
    %9 = sbr.rel (0) target = $region5
  $region4: #{vit_forward.34} parent=0 // pred_region
    _
  $region5: #{vit_forward.34} parent=0 // pred_fallthru
    _
  // Predicated region
  $region6: #{vit_forward.34} parent=0 // pred_check
    _
  $region7: #{vit_forward.34} parent=0 // pred_check_branch
    %11 = sbr.rel (0) target = $region9
  $region8: #{vit_forward.34} parent=0 // pred_region
    _
  $region9: #{vit_forward.34} parent=0 // pred_fallthru
    _
  // Predicated region
  $region10: #{vit_forward.34} parent=0 // pred_check
    _
  $region11: #{vit_forward.34} parent=0 // pred_check_branch
    %13 = sbr.rel (0) target = $region13
  $region12: #{vit_forward.34} parent=0 // pred_region
    _
  $region13: #{vit_forward.34} parent=0 // pred_fallthru
    _
  %p15 = scmp.eq.s32.totalorder 0, 0
  // Predicated region
  $region14: #{vit_forward.34} parent=0 // pred_check
    %p16 = pneg %p15
  $region15: #{vit_forward.34} parent=0 // pred_check_branch
    %18 = sbr.rel (%p16) target = $region17
  $region16: #{vit_forward.34} parent=0 // pred_region
    %19 = vst [vmem:[#allocation2] sm:$0xff] 0.0
    %20 = vst [vmem:[#allocation2 + $0x8] sm:$0xff] 0.0
    %21 = vst [vmem:[#allocation2 + $0x10] sm:$0xff] 0.0
    %22 = vst [vmem:[#allocation2 + $0x18] sm:$0xff] 0.0
  $region17: #{vit_forward.34} parent=0 // pred_fallthru
    _
  %v23 = vld [vmem:[#allocation2] sm:$0xff]
  %v24 = vld [vmem:[#allocation2 + $0x8] sm:$0xff]
  %v25 = vld [vmem:[#allocation2 + $0x10] sm:$0xff]
  %v26 = vld [vmem:[#allocation2 + $0x18] sm:$0xff]
  %v27 = vld [vmem:[%s0] sm:$0xff]
  %v28 = vld [vmem:[%s0 + $0x8] sm:$0xff]
  %v29 = vld [vmem:[%s0 + $0x10] sm:$0xff]
  %v30 = vld [vmem:[%s0 + $0x18] sm:$0xff]
  %v31 = vpack.c.bf16 %v28, %v27
  %v32 = vpack.c.bf16 %v30, %v29
  %v33 = vld [vmem:[%s1] sm:$0xf]
  %v34 = vld [vmem:[%s1 + $0x4] sm:$0xf]
  %v35 = vld [vmem:[%s1 + $0x8] sm:$0xf]
  %v36 = vld [vmem:[%s1 + $0xc] sm:$0xf]
  %v37 = vld [vmem:[%s1 + $0x10] sm:$0xf]
  %v38 = vld [vmem:[%s1 + $0x14] sm:$0xf]
  %v39 = vld [vmem:[%s1 + $0x18] sm:$0xf]
  %v40 = vld [vmem:[%s1 + $0x1c] sm:$0xf]
  %v41 = vld [vmem:[%s1 + $0x20] sm:$0xf]
  %v42 = vld [vmem:[%s1 + $0x24] sm:$0xf]
  %v43 = vld [vmem:[%s1 + $0x28] sm:$0xf]
  %v44 = vld [vmem:[%s1 + $0x2c] sm:$0xf]
  %v45 = vld [vmem:[%s1 + $0x30] sm:$0xf]
  %v46 = vld [vmem:[%s1 + $0x34] sm:$0xf]
  %v47 = vld [vmem:[%s1 + $0x38] sm:$0xf]
  %v48 = vld [vmem:[%s1 + $0x3c] sm:$0xf]
  %v65 = vunpack.c.l.b16 %v33
  %v66 = vunpack.c.l.b16 %v34
  %v67 = vunpack.c.l.b16 %v35
  %v68 = vunpack.c.l.b16 %v36
  %v69 = vunpack.c.l.b16 %v37
  %v70 = vunpack.c.l.b16 %v38
  %v71 = vunpack.c.l.b16 %v39
  %v72 = vunpack.c.l.b16 %v40
  %v73 = vunpack.c.l.b16 %v41
  %v74 = vunpack.c.l.b16 %v42
  %v75 = vunpack.c.l.b16 %v43
  %v76 = vunpack.c.l.b16 %v44
  %v77 = vunpack.c.l.b16 %v45
  %v78 = vunpack.c.l.b16 %v46
  %v79 = vunpack.c.l.b16 %v47
  %v80 = vunpack.c.l.b16 %v48
  %v81 = vpack.c.b16 %v66, %v65
  %v82 = vpack.c.b16 %v68, %v67
  %v83 = vpack.c.b16 %v70, %v69
  %v84 = vpack.c.b16 %v72, %v71
  %v85 = vpack.c.b16 %v74, %v73
  %v86 = vpack.c.b16 %v76, %v75
  %v87 = vpack.c.b16 %v78, %v77
  %v88 = vpack.c.b16 %v80, %v79
  %97 = vmatprep.subr.bf16.mxu0 0
  %98 = vmatpush1.bf16.msra.mxu0 %v81
  %99 = vmatprep.subr.bf16.mxu0 0
  %100 = vmatpush1.bf16.msra.mxu0 %v82
  %101 = vmatprep.subr.bf16.mxu0 0
  %102 = vmatpush1.bf16.msra.mxu0 %v83
  %103 = vmatprep.subr.bf16.mxu0 0
  %104 = vmatpush1.bf16.msra.mxu0 %v84
  %105 = vmatprep.subr.bf16.mxu0 0
  %106 = vmatpush1.bf16.msra.mxu0 %v85
  %107 = vmatprep.subr.bf16.mxu0 0
  %108 = vmatpush1.bf16.msra.mxu0 %v86
  %109 = vmatprep.subr.bf16.mxu0 0
  %110 = vmatpush1.bf16.msra.mxu0 %v87
  %111 = vmatprep.subr.bf16.mxu0 0
  %112 = vmatpush1.bf16.msra.mxu0 %v88
  %113 = vmatprep.subr.bf16.mxu0 0
  %114 = vmatpush1.bf16.msra.mxu0 0
  %115 = vmatprep.subr.bf16.mxu0 0
  %116 = vmatpush1.bf16.msra.mxu0 0
  %117 = vmatprep.subr.bf16.mxu0 0
  %118 = vmatpush1.bf16.msra.mxu0 0
  %119 = vmatprep.subr.bf16.mxu0 0
  %120 = vmatpush1.bf16.msra.mxu0 0
  %121 = vmatprep.subr.bf16.mxu0 0
  %122 = vmatpush1.bf16.msra.mxu0 0
  %123 = vmatprep.subr.bf16.mxu0 0
  %124 = vmatpush1.bf16.msra.mxu0 0
  %125 = vmatprep.subr.bf16.mxu0 0
  %126 = vmatpush1.bf16.msra.mxu0 0
  %127 = vmatprep.subr.bf16.mxu0 0
  %128 = vmatpush1.bf16.msra.mxu0 0
  %129 = vmatprep.mubr.bf16.mxu0 0
  %130 = vmatmul.mubr.bf16.gmra.mrb[0].mxu0 %v31
  %v131 = vpop.f32.mrb[0].mxu0
  %v132 = vadd.f32 0.0, %v131
  %v133 = vpop.f32.mrb[0].mxu0
  %v134 = vpop.f32.mrb[0].mxu0
  %v135 = vadd.f32 0.0, %v134
  %v136 = vpop.f32.mrb[0].mxu0
  %137 = vmatprep.mubr.bf16.mxu0 0
  %138 = vmatmul.mubr.bf16.gmra.mrb[0].mxu0 %v32
  %v139 = vpop.f32.mrb[0].mxu0
  %v140 = vadd.f32 0.0, %v139
  %v141 = vpop.f32.mrb[0].mxu0
  %v142 = vpop.f32.mrb[0].mxu0
  %v143 = vadd.f32 0.0, %v142
  %v144 = vpop.f32.mrb[0].mxu0
  %145 = vdwg.mxu0
  %v146 = vadd.f32 %v23, %v132
  %v147 = vadd.f32 %v24, %v135
  %v148 = vadd.f32 %v25, %v140
  %v149 = vadd.f32 %v26, %v143
  %150 = vst [vmem:[#allocation2] sm:$0xff] %v146
  %151 = vst [vmem:[#allocation2 + $0x8] sm:$0xff] %v147
  %152 = vst [vmem:[#allocation2 + $0x10] sm:$0xff] %v148
  %153 = vst [vmem:[#allocation2 + $0x18] sm:$0xff] %v149
  // Predicated region
  $region18: #{vit_forward.34} parent=0 // pred_check
    %p154 = pneg %p15
  $region19: #{vit_forward.34} parent=0 // pred_check_branch
    %156 = sbr.rel (%p154) target = $region21
  $region20: #{vit_forward.34} parent=0 // pred_region
    %v157 = vld [vmem:[#allocation2] sm:$0xff]
    %v158 = vld [vmem:[#allocation2 + $0x8] sm:$0xff]
    %v159 = vld [vmem:[#allocation2 + $0x10] sm:$0xff]
    %v160 = vld [vmem:[#allocation2 + $0x18] sm:$0xff]
    %v161 = vld [vmem:[%s2] sm:$0x1]
    %v163 = vlaneseq
    %v164 = vshrl.u32 %v163, 7
    %v165 = vsub.s32 0, %v164
    %v166 = vrot.slane %v161, %v165
    %v168 = vadd.f32 %v157, %v166
    %v169 = vadd.f32 %v158, %v166
    %v170 = vadd.f32 %v159, %v166
    %v171 = vadd.f32 %v160, %v166
    %v172 = vmul.f32 %v168, 0.5
    %v173 = vmul.f32 %v169, 0.5
    %v174 = vmul.f32 %v170, 0.5
    %v175 = vmul.f32 %v171, 0.5
    %v176 = vmul.f32 %v168, 0.70710677
    %v177 = vmul.f32 %v169, 0.70710677
    %v178 = vmul.f32 %v170, 0.70710677
    %v179 = vmul.f32 %v171, 0.70710677
    %vm180 = vcmp.lt.f32.partialorder %v176, 0.0
    %vm181 = vcmp.lt.f32.partialorder %v177, 0.0
    %vm182 = vcmp.lt.f32.partialorder %v178, 0.0
    %vm183 = vcmp.lt.f32.partialorder %v179, 0.0
    %v184 = vsel %vm180, -1.0, 1.0
    %v185 = vsel %vm181, -1.0, 1.0
    %v186 = vsel %vm182, -1.0, 1.0
    %v187 = vsel %vm183, -1.0, 1.0
    %v188 = vand.u32 2147483647, %v176
    %v189 = vand.u32 2147483647, %v177
    %v190 = vand.u32 2147483647, %v178
    %v191 = vand.u32 2147483647, %v179
    %v192 = vmul.f32 %v188, 0.3275911
    %v193 = vmul.f32 %v189, 0.3275911
    %v194 = vmul.f32 %v190, 0.3275911
    %v195 = vmul.f32 %v191, 0.3275911
    %v196 = vadd.f32 %v192, 1.0
    %v197 = vadd.f32 %v193, 1.0
    %v198 = vadd.f32 %v194, 1.0
    %v199 = vadd.f32 %v195, 1.0
    %v200 = vrcp.pop %v196
    %v201 = vrcp.pop %v197
    %v202 = vrcp.pop %v198
    %v203 = vrcp.pop %v199
    %v204 = vmul.f32 %v200, 1.0614054
    %v205 = vmul.f32 %v201, 1.0614054
    %v206 = vmul.f32 %v202, 1.0614054
    %v207 = vmul.f32 %v203, 1.0614054
    %v208 = vadd.f32 %v204, -1.4531521
    %v209 = vadd.f32 %v205, -1.4531521
    %v210 = vadd.f32 %v206, -1.4531521
    %v211 = vadd.f32 %v207, -1.4531521
    %v212 = vmul.f32 %v208, %v200
    %v213 = vmul.f32 %v209, %v201
    %v214 = vmul.f32 %v210, %v202
    %v215 = vmul.f32 %v211, %v203
    %v216 = vadd.f32 %v212, 1.4214138
    %v217 = vadd.f32 %v213, 1.4214138
    %v218 = vadd.f32 %v214, 1.4214138
    %v219 = vadd.f32 %v215, 1.4214138
    %v220 = vmul.f32 %v216, %v200
    %v221 = vmul.f32 %v217, %v201
    %v222 = vmul.f32 %v218, %v202
    %v223 = vmul.f32 %v219, %v203
    %v224 = vadd.f32 %v220, -0.28449672
    %v225 = vadd.f32 %v221, -0.28449672
    %v226 = vadd.f32 %v222, -0.28449672
    %v227 = vadd.f32 %v223, -0.28449672
    %v228 = vmul.f32 %v224, %v200
    %v229 = vmul.f32 %v225, %v201
    %v230 = vmul.f32 %v226, %v202
    %v231 = vmul.f32 %v227, %v203
    %v232 = vadd.f32 %v228, 0.2548296
    %v233 = vadd.f32 %v229, 0.2548296
    %v234 = vadd.f32 %v230, 0.2548296
    %v235 = vadd.f32 %v231, 0.2548296
    %v236 = vmul.f32 %v232, %v200
    %v237 = vmul.f32 %v233, %v201
    %v238 = vmul.f32 %v234, %v202
    %v239 = vmul.f32 %v235, %v203
    %v240 = vsub.f32 0.0, %v188
    %v241 = vsub.f32 0.0, %v189
    %v242 = vsub.f32 0.0, %v190
    %v243 = vsub.f32 0.0, %v191
    %v244 = vmul.f32 %v240, %v188
    %v245 = vmul.f32 %v241, %v189
    %v246 = vmul.f32 %v242, %v190
    %v247 = vmul.f32 %v243, %v191
    %v248 = vmul.f32 %v244, 1.442695
    %v249 = vpow.pop %v248
    %v250 = vmul.f32 %v245, 1.442695
    %v251 = vpow.pop %v250
    %v252 = vmul.f32 %v246, 1.442695
    %v253 = vpow.pop %v252
    %v254 = vmul.f32 %v247, 1.442695
    %v255 = vpow.pop %v254
    %v256 = vmul.f32 %v236, %v249
    %v257 = vmul.f32 %v237, %v251
    %v258 = vmul.f32 %v238, %v253
    %v259 = vmul.f32 %v239, %v255
    %v260 = vsub.f32 1.0, %v256
    %v261 = vsub.f32 1.0, %v257
    %v262 = vsub.f32 1.0, %v258
    %v263 = vsub.f32 1.0, %v259
    %v264 = vmul.f32 %v184, %v260
    %v265 = vmul.f32 %v185, %v261
    %v266 = vmul.f32 %v186, %v262
    %v267 = vmul.f32 %v187, %v263
    %v268 = vadd.f32 %v264, 1.0
    %v269 = vadd.f32 %v265, 1.0
    %v270 = vadd.f32 %v266, 1.0
    %v271 = vadd.f32 %v267, 1.0
    %v272 = vmul.f32 %v172, %v268
    %v273 = vmul.f32 %v173, %v269
    %v274 = vmul.f32 %v174, %v270
    %v275 = vmul.f32 %v175, %v271
    %v276 = vpack.c.bf16 %v273, %v272
    %v277 = vpack.c.bf16 %v275, %v274
    %v280 = vunpack.c.l.b16 %v276
    %v281 = vunpack.c.h.b16 %v276
    %v282 = vunpack.c.l.b16 %v277
    %v283 = vunpack.c.h.b16 %v277
    %v284 = vpack.c.b16 %v280, %v280
    %v285 = vpack.c.b16 %v281, %v281
    %v286 = vpack.c.b16 %v282, %v282
    %v287 = vpack.c.b16 %v283, %v283
    %292 = vst [vmem:[%s3] sm:$0xf] %v284
    %293 = vst [vmem:[%s3 + $0x4] sm:$0xf] %v285
    %294 = vst [vmem:[%s3 + $0x8] sm:$0xf] %v286
    %295 = vst [vmem:[%s3 + $0xc] sm:$0xf] %v287
  $region21: #{vit_forward.34} parent=0 // pred_fallthru
    _
  // Predicated region
  $region22: #{vit_forward.34} parent=0 // pred_check
    _
  $region23: #{vit_forward.34} parent=0 // pred_check_branch
    %297 = sbr.rel (0) target = $region25
  $region24: #{vit_forward.34} parent=0 // pred_region
    _
  $region25: #{vit_forward.34} parent=0 // pred_fallthru
    _
  // Predicated region
  $region26: #{vit_forward.34} parent=0 // pred_check
    _
  $region27: #{vit_forward.34} parent=0 // pred_check_branch
    %299 = sbr.rel (0) target = $region29
  $region28: #{vit_forward.34} parent=0 // pred_region
    _
  $region29: #{vit_forward.34} parent=0 // pred_fallthru
    _

// kernel: vit_forward.31
$region0: #{vit_forward.31}
  #allocation0 [shape = 'u32[]', space=smem, size = 0x4, offset = 0x4, fixed_abs, tag = 'smem constant byte address 0x4 - core index']
  #allocation1 [shape = 'u32[144,128]{1,0:T(1,128)}', space=vmem, size = 0x12000, scoped, tag = 'internal scratch']
  #allocation2 [shape = 'f32[32,512]{1,0:T(8,128)}', space=vmem, size = 0x10000, scoped, tag = 'scratch operand']
  %s0 = inlined_call_operand.vmem [shape: f32[32,128], index: 0, kind: input, shape index: {}]
  %s1 = inlined_call_operand.vmem [shape: bf16[128,1536], index: 1, kind: input, shape index: {}]
  %s2 = inlined_call_operand.vmem [shape: f32[1,1536], index: 2, kind: input, shape index: {}]
  %s3 = inlined_call_operand.vmem [shape: bf16[32,1536], index: 3, kind: output, shape index: {}]
  %s4 = sld [smem:[#allocation0]]
  $region95: #{vit_forward.31} parent=0
    _
  %s6 = ssub.s32 1, %s4
  %s7 = scalar_select 0, %s6, %s4
  $region1: #{vit_forward.31} parent=0
    #allocation3 [shape = 'u8[262144]{0}', space=vmem, size = 0x40000, scoped, tag = 'input window, operand 1']
    #allocation4 [shape = 'u8[65536]{0}', space=vmem, size = 0x10000, scoped, tag = 'output window, operand 0']
    loop: start=0, step=1, limit=5
    $region2: #{vit_forward.31} parent=1 // loop_pre_header
      _
    $region3: #{vit_forward.31} parent=1 // loop_header
      %s9 = sphi 0, %s13
      %p10 = scmp.ge.s32.totalorder %s9, 5
      %s16 = sphi 0, %s35
      %s17 = sphi 0, %s31
      %s18 = sphi 0, %s27
      %s19 = sphi 0, %s16
      %s20 = sphi 0, %s17
      %s21 = sphi 0, %s18
      %s22 = sphi 0, %s19
      %s23 = sphi 0, %s20
      %s24 = sphi 0, %s21
      %s40 = sphi 0, %s42
      %s43 = sphi 0, %s40
      %s44 = sphi 0, %s43
      %s60 = sphi 0, %s44
      %s68 = sphi 0, %s70
      %s71 = sphi 0, %s68
      %s72 = sphi 0, %s71
      %s88 = sphi 0, %s72
      %s94 = sphi 0, %s96
      %s97 = sphi 0, %s94
      %s98 = sphi 0, %s97
      %s114 = sphi 0, %s98
      %s122 = sphi 0, %s124
      %s125 = sphi 0, %s122
      %s126 = sphi 0, %s125
      %s142 = sphi 0, %s126
    $region4: #{vit_forward.31} parent=1 // loop_header_branch
      %12 = sbr.rel (%p10) target = $region8
    $region5: #{vit_forward.31} parent=1 // loop_body
      %s14 = ssub.s32 %s9, 1
      %s15 = ssub.s32 %s9, 2
      %s25 = sadd.s32 1, %s18
      %p26 = scmp.ge.s32.totalorder %s25, 1
      %s27 = scalar_select %p26, 0, %s25
      %s28 = sadd.s32 1, %s17
      %s29 = scalar_select %p26, %s28, %s17
      %p30 = scmp.ge.s32.totalorder %s29, 3
      %s31 = scalar_select %p30, 0, %s29
      %s32 = sadd.s32 1, %s16
      %s33 = scalar_select %p30, %s32, %s16
      %p34 = scmp.ge.s32.totalorder %s33, 1
      %s35 = scalar_select %p34, 0, %s33
      %s36 = ssub.s32 %s16, %s35
      %s37 = ssub.s32 %s18, %s27
      %s38 = sor.u32 %s36, %s37
      %p39 = scmp.eq.s32.totalorder %s38, 0
      %s41 = sadd.s32 %s40, 1
      %s42 = scalar_select %p39, %s40, %s41
      %p45 = pneg %p39
      %p46 = scmp.eq.s32.totalorder %s9, 2
      %p47 = por %p45, %p46
      %p48 = scmp.ne.s32.totalorder %s40, %s43
      %p49 = scmp.eq.s32.totalorder %s9, 0
      %p50 = por %p48, %p49
      %p51 = scmp.ne.s32.totalorder %s40, %s43
      %p52 = scmp.eq.s32.totalorder %s14, 2
      %p53 = por %p51, %p52
      %p54 = scmp.ne.s32.totalorder %s43, %s44
      %p55 = scmp.eq.s32.totalorder %s14, 0
      %p56 = por %p54, %p55
      %p57 = scmp.ne.s32.totalorder %s43, %s44
      %p58 = scmp.eq.s32.totalorder %s15, 2
      %p59 = por %p57, %p58
      %p61 = scmp.ne.s32.totalorder %s44, %s60
      %p62 = scmp.eq.s32.totalorder %s15, 0
      %p63 = por %p61, %p62
      %s64 = ssub.s32 %s18, %s27
      %s65 = ssub.s32 %s17, %s31
      %s66 = sor.u32 %s64, %s65
      %p67 = scmp.eq.s32.totalorder %s66, 0
      %s69 = sadd.s32 %s68, 1
      %s70 = scalar_select %p67, %s68, %s69
      %p73 = pneg %p67
      %p74 = scmp.eq.s32.totalorder %s9, 2
      %p75 = por %p73, %p74
      %p76 = scmp.ne.s32.totalorder %s68, %s71
      %p77 = scmp.eq.s32.totalorder %s9, 0
      %p78 = por %p76, %p77
      %p79 = scmp.ne.s32.totalorder %s68, %s71
      %p80 = scmp.eq.s32.totalorder %s14, 2
      %p81 = por %p79, %p80
      %p82 = scmp.ne.s32.totalorder %s71, %s72
      %p83 = scmp.eq.s32.totalorder %s14, 0
      %p84 = por %p82, %p83
      %p85 = scmp.ne.s32.totalorder %s71, %s72
      %p86 = scmp.eq.s32.totalorder %s15, 2
      %p87 = por %p85, %p86
      %p89 = scmp.ne.s32.totalorder %s72, %s88
      %p90 = scmp.eq.s32.totalorder %s15, 0
      %p91 = por %p89, %p90
      %s92 = ssub.s32 %s17, %s31
      %p93 = scmp.eq.s32.totalorder %s92, 0
      %s95 = sadd.s32 %s94, 1
      %s96 = scalar_select %p93, %s94, %s95
      %p99 = pneg %p93
      %p100 = scmp.eq.s32.totalorder %s9, 2
      %p101 = por %p99, %p100
      %p102 = scmp.ne.s32.totalorder %s94, %s97
      %p103 = scmp.eq.s32.totalorder %s9, 0
      %p104 = por %p102, %p103
      %p105 = scmp.ne.s32.totalorder %s94, %s97
      %p106 = scmp.eq.s32.totalorder %s14, 2
      %p107 = por %p105, %p106
      %p108 = scmp.ne.s32.totalorder %s97, %s98
      %p109 = scmp.eq.s32.totalorder %s14, 0
      %p110 = por %p108, %p109
      %p111 = scmp.ne.s32.totalorder %s97, %s98
      %p112 = scmp.eq.s32.totalorder %s15, 2
      %p113 = por %p111, %p112
      %p115 = scmp.ne.s32.totalorder %s98, %s114
      %p116 = scmp.eq.s32.totalorder %s15, 0
      %p117 = por %p115, %p116
      %s118 = ssub.s32 %s16, %s35
      %s119 = ssub.s32 %s17, %s31
      %s120 = sor.u32 %s118, %s119
      %p121 = scmp.eq.s32.totalorder %s120, 0
      %s123 = sadd.s32 %s122, 1
      %s124 = scalar_select %p121, %s122, %s123
      %p127 = pneg %p121
      %p128 = scmp.eq.s32.totalorder %s9, 2
      %p129 = por %p127, %p128
      %p130 = scmp.ne.s32.totalorder %s122, %s125
      %p131 = scmp.eq.s32.totalorder %s9, 0
      %p132 = por %p130, %p131
      %p133 = scmp.ne.s32.totalorder %s122, %s125
      %p134 = scmp.eq.s32.totalorder %s14, 2
      %p135 = por %p133, %p134
      %p136 = scmp.ne.s32.totalorder %s125, %s126
      %p137 = scmp.eq.s32.totalorder %s14, 0
      %p138 = por %p136, %p137
      %p139 = scmp.ne.s32.totalorder %s125, %s126
      %p140 = scmp.eq.s32.totalorder %s15, 2
      %p141 = por %p139, %p140
      %p143 = scmp.ne.s32.totalorder %s126, %s142
      %p144 = scmp.eq.s32.totalorder %s15, 0
      %p145 = por %p143, %p144
      %p146 = scmp.le.s32.totalorder 1, %s9
      %p147 = scmp.lt.s32.totalorder %s9, 4
      %p148 = pnand %p146, %p147
      %p149 = pneg %p148
      // Predicated region
      $region9: #{vit_forward.31} parent=5 // pred_check
        _
      $region10: #{vit_forward.31} parent=5 // pred_check_branch
        %151 = sbr.rel (%p148) target = $region12
      $region11: #{vit_forward.31} parent=5 // pred_region
        %s152 = ssub.s32 %s9, 1
        // Predicated region
        $region13: #{vit_forward.31} parent=11 // pred_check
          %p153 = pneg %p56
        $region14: #{vit_forward.31} parent=11 // pred_check_branch
          %155 = sbr.rel (%p153) target = $region16
        $region15: #{vit_forward.31} parent=11 // pred_region
          %s156 = smul.u32 4, %s19
          %p157 = scmp.lt.s32.totalorder %s156, 3
          %s158 = scalar_select %p157, %s156, 3
          %p159 = scmp.lt.s32.totalorder %s21, 0
          %s160 = scalar_select %p159, %s21, 0
          %s161 = sadd.s32 %s160, %s158
          %s162 = smul.addr %s161, 8
          %s163 = scalar_lea.vmem %s0, %s162
          %s164 = smul.u32 4, %s19
        $region16: #{vit_forward.31} parent=11 // pred_fallthru
          _
      $region12: #{vit_forward.31} parent=5 // pred_fallthru
        _
      %p165 = scmp.lt.s32.totalorder %s9, 3
      // Predicated region
      $region17: #{vit_forward.31} parent=5 // pred_check
        %p166 = pneg %p165
      $region18: #{vit_forward.31} parent=5 // pred_check_branch
        %168 = sbr.rel (%p166) target = $region20
      $region19: #{vit_forward.31} parent=5 // pred_region
        // Predicated region
        $region21: #{vit_forward.31} parent=19 // pred_check
          %p169 = pneg %p78
        $region22: #{vit_forward.31} parent=19 // pred_check_branch
          %171 = sbr.rel (%p169) target = $region24
        $region23: #{vit_forward.31} parent=19 // pred_region
          %s172 = sand.u32 %s68, 1
          %s173 = sand.u32 %s68, 1
          %s174 = smul.addr %s173, 256
          %s175 = scalar_lea.vmem [#allocation3], %s174
          %s176 = smul.u32 16, %s18
          %s177 = smul.u32 4, %s17
          %s178 = smul.addr %s176, 12
          %s179 = sadd.s32 %s177, %s178
          %s180 = smul.addr %s179, 4
          %s181 = scalar_lea.vmem %s1, %s180
          // Predicated region
          $region25: #{vit_forward.31} parent=23 // pred_check
            _
          $region26: #{vit_forward.31} parent=23 // pred_check_branch
            %183 = sbr.rel (0) target = $region28
          $region27: #{vit_forward.31} parent=23 // pred_region
            // Predicated region
            $region29: #{vit_forward.31} parent=27 // pred_check
              _
            $region30: #{vit_forward.31} parent=27 // pred_check_branch
              %185 = sbr.rel (0) target = $region32
            $region31: #{vit_forward.31} parent=27 // pred_region
              loop: start=0, step=1, limit=1
              $region33: #{vit_forward.31} parent=31 // loop_pre_header
                _
              $region34: #{vit_forward.31} parent=31 // loop_header
                %s187 = sphi 0, %s191
                %p188 = scmp.ge.s32.totalorder %s187, 1
                %s192 = sphi %s181, %s181
                %s193 = sphi %s175, %s175
              $region35: #{vit_forward.31} parent=31 // loop_header_branch
                %190 = sbr.rel (%p188) target = $region39
              $region36: #{vit_forward.31} parent=31 // loop_body
                %v194 = vld [vmem:[%s192] sm:$0xff]
                %195 = vst [vmem:[%s193] sm:$0xff] %v194
                %v196 = vld [vmem:[%s192 + $0x8] sm:$0xff]
                %197 = vst [vmem:[%s193 + $0x8] sm:$0xff] %v196
                %v198 = vld [vmem:[%s192 + $0x30] sm:$0xff]
                %199 = vst [vmem:[%s193 + $0x10] sm:$0xff] %v198
                %v200 = vld [vmem:[%s192 + $0x38] sm:$0xff]
                %201 = vst [vmem:[%s193 + $0x18] sm:$0xff] %v200
                %v202 = vld [vmem:[%s192 + $0x60] sm:$0xff]
                %203 = vst [vmem:[%s193 + $0x20] sm:$0xff] %v202
                %v204 = vld [vmem:[%s192 + $0x68] sm:$0xff]
                %205 = vst [vmem:[%s193 + $0x28] sm:$0xff] %v204
                %v206 = vld [vmem:[%s192 + $0x90] sm:$0xff]
                %207 = vst [vmem:[%s193 + $0x30] sm:$0xff] %v206
                %v208 = vld [vmem:[%s192 + $0x98] sm:$0xff]
                %209 = vst [vmem:[%s193 + $0x38] sm:$0xff] %v208
                %v210 = vld [vmem:[%s192 + $0xc0] sm:$0xff]
                %211 = vst [vmem:[%s193 + $0x40] sm:$0xff] %v210
                %v212 = vld [vmem:[%s192 + $0xc8] sm:$0xff]
                %213 = vst [vmem:[%s193 + $0x48] sm:$0xff] %v212
                %v214 = vld [vmem:[%s192 + $0xf0] sm:$0xff]
                %215 = vst [vmem:[%s193 + $0x50] sm:$0xff] %v214
                %v216 = vld [vmem:[%s192 + $0xf8] sm:$0xff]
                %217 = vst [vmem:[%s193 + $0x58] sm:$0xff] %v216
                %v218 = vld [vmem:[%s192 + $0x120] sm:$0xff]
                %219 = vst [vmem:[%s193 + $0x60] sm:$0xff] %v218
                %v220 = vld [vmem:[%s192 + $0x128] sm:$0xff]
                %221 = vst [vmem:[%s193 + $0x68] sm:$0xff] %v220
                %v222 = vld [vmem:[%s192 + $0x150] sm:$0xff]
                %223 = vst [vmem:[%s193 + $0x70] sm:$0xff] %v222
                %v224 = vld [vmem:[%s192 + $0x158] sm:$0xff]
                %225 = vst [vmem:[%s193 + $0x78] sm:$0xff] %v224
                %v226 = vld [vmem:[%s192 + $0x180] sm:$0xff]
                %227 = vst [vmem:[%s193 + $0x80] sm:$0xff] %v226
                %v228 = vld [vmem:[%s192 + $0x188] sm:$0xff]
                %229 = vst [vmem:[%s193 + $0x88] sm:$0xff] %v228
                %v230 = vld [vmem:[%s192 + $0x1b0] sm:$0xff]
                %231 = vst [vmem:[%s193 + $0x90] sm:$0xff] %v230
                %v232 = vld [vmem:[%s192 + $0x1b8] sm:$0xff]
                %233 = vst [vmem:[%s193 + $0x98] sm:$0xff] %v232
                %v234 = vld [vmem:[%s192 + $0x1e0] sm:$0xff]
                %235 = vst [vmem:[%s193 + $0xa0] sm:$0xff] %v234
                %v236 = vld [vmem:[%s192 + $0x1e8] sm:$0xff]
                %237 = vst [vmem:[%s193 + $0xa8] sm:$0xff] %v236
                %v238 = vld [vmem:[%s192 + $0x210] sm:$0xff]
                %239 = vst [vmem:[%s193 + $0xb0] sm:$0xff] %v238
                %v240 = vld [vmem:[%s192 + $0x218] sm:$0xff]
                %241 = vst [vmem:[%s193 + $0xb8] sm:$0xff] %v240
                %v242 = vld [vmem:[%s192 + $0x240] sm:$0xff]
                %243 = vst [vmem:[%s193 + $0xc0] sm:$0xff] %v242
                %v244 = vld [vmem:[%s192 + $0x248] sm:$0xff]
                %245 = vst [vmem:[%s193 + $0xc8] sm:$0xff] %v244
                %v246 = vld [vmem:[%s192 + $0x270] sm:$0xff]
                %247 = vst [vmem:[%s193 + $0xd0] sm:$0xff] %v246
                %v248 = vld [vmem:[%s192 + $0x278] sm:$0xff]
                %249 = vst [vmem:[%s193 + $0xd8] sm:$0xff] %v248
                %v250 = vld [vmem:[%s192 + $0x2a0] sm:$0xff]
                %251 = vst [vmem:[%s193 + $0xe0] sm:$0xff] %v250
                %v252 = vld [vmem:[%s192 + $0x2a8] sm:$0xff]
                %253 = vst [vmem:[%s193 + $0xe8] sm:$0xff] %v252
                %v254 = vld [vmem:[%s192 + $0x2d0] sm:$0xff]
                %255 = vst [vmem:[%s193 + $0xf0] sm:$0xff] %v254
                %v256 = vld [vmem:[%s192 + $0x2d8] sm:$0xff]
                %257 = vst [vmem:[%s193 + $0xf8] sm:$0xff] %v256
              $region37: #{vit_forward.31} parent=31 // loop_footer
                %s191 = sadd.s32 1, %s187
              $region38: #{vit_forward.31} parent=31 // loop_footer_branch
                %186 = sbr.rel target = $region34
              $region39: #{vit_forward.31} parent=31 // loop_exit
                _
            $region32: #{vit_forward.31} parent=27 // pred_fallthru
              _
            // Predicated region
            $region40: #{vit_forward.31} parent=27 // pred_check
              _
            $region41: #{vit_forward.31} parent=27 // pred_check_branch
              %259 = sbr.rel target = $region43
            $region42: #{vit_forward.31} parent=27 // pred_region
              _
            $region43: #{vit_forward.31} parent=27 // pred_fallthru
              _
          $region28: #{vit_forward.31} parent=23 // pred_fallthru
            _
          %260 = vnop
        $region24: #{vit_forward.31} parent=19 // pred_fallthru
          _
        // Predicated region
        $region44: #{vit_forward.31} parent=19 // pred_check
          %p261 = pneg %p104
        $region45: #{vit_forward.31} parent=19 // pred_check_branch
          %263 = sbr.rel (%p261) target = $region47
        $region46: #{vit_forward.31} parent=19 // pred_region
          %s264 = smul.u32 4, %s17
          %p265 = scmp.lt.s32.totalorder %s264, 11
          %s266 = scalar_select %p265, %s264, 11
          %s267 = scalar_lea.vmem %s2, %s266
          %s268 = smul.u32 4, %s17
        $region47: #{vit_forward.31} parent=19 // pred_fallthru
          _
      $region20: #{vit_forward.31} parent=5 // pred_fallthru
        _
      %p269 = scmp.le.s32.totalorder 1, %s9
      %p270 = scmp.lt.s32.totalorder %s9, 4
      %p271 = pnand %p269, %p270
      %p272 = pneg %p271
      // Predicated region
      $region48: #{vit_forward.31} parent=5 // pred_check
        _
      $region49: #{vit_forward.31} parent=5 // pred_check_branch
        %274 = sbr.rel (%p271) target = $region51
      $region50: #{vit_forward.31} parent=5 // pred_region
        %s275 = ssub.s32 %s9, 1
        %s276 = sand.u32 %s71, 1
        %s277 = sand.u32 %s71, 1
        %s278 = smul.addr %s277, 256
        %s279 = scalar_lea.vmem [#allocation3], %s278
        // Predicated region
        $region52: #{vit_forward.31} parent=50 // pred_check
          %p280 = pneg %p84
        $region53: #{vit_forward.31} parent=50 // pred_check_branch
          %282 = sbr.rel (%p280) target = $region55
        $region54: #{vit_forward.31} parent=50 // pred_region
          _
        $region55: #{vit_forward.31} parent=50 // pred_fallthru
          _
        %s283 = smul.u32 4, %s19
        %p284 = scmp.lt.s32.totalorder %s283, 3
        %s285 = scalar_select %p284, %s283, 3
        %p286 = scmp.lt.s32.totalorder %s21, 0
        %s287 = scalar_select %p286, %s21, 0
        %s288 = sadd.s32 %s287, %s285
        %s289 = smul.addr %s288, 8
        %s290 = scalar_lea.vmem %s0, %s289
        %p291 = pneg %p56
        %p292 = pneg %p53
        %s293 = sand.u32 %s71, 1
        %s294 = sand.u32 %s71, 1
        %s295 = smul.addr %s294, 256
        %s296 = scalar_lea.vmem [#allocation3], %s295
        %p297 = pneg %p84
        %p298 = pneg %p81
        %s299 = smul.u32 4, %s20
        %p300 = scmp.lt.s32.totalorder %s299, 11
        %s301 = scalar_select %p300, %s299, 11
        %s302 = scalar_lea.vmem %s2, %s301
        %p303 = pneg %p110
        %p304 = pneg %p107
        %p305 = pneg %p138
        %p306 = pneg %p135
        %s307 = sand.u32 %s125, 1
        %s308 = sand.u32 %s125, 1
        %s309 = smul.addr %s308, 64
        %s310 = scalar_lea.vmem [#allocation4], %s309
        %s311 = smul.u32 4, %s19
        %p312 = scmp.lt.s32.totalorder %s311, 3
        %s313 = scalar_select %p312, %s311, 3
        %p314 = scmp.lt.s32.totalorder %s21, 0
        %s315 = scalar_select %p314, %s21, 0
        %s316 = sadd.s32 %s315, %s313
        %s317 = smul.addr %s316, 8
        %s318 = scalar_lea.vmem %s0, %s317
        %s319 = smul.u32 4, %s19
        %s320 = smul.u32 16, %s21
        %s321 = smul.u32 4, %s20
        %s322 = smul.u32 4, %s20
        %p323 = scmp.lt.s32.totalorder %s322, 11
        %s324 = scalar_select %p323, %s322, 11
        %s325 = scalar_lea.vmem %s2, %s324
        %s326 = smul.u32 4, %s20
        %s327 = smul.u32 4, %s19
        %s328 = smul.u32 4, %s20
        %p330 = scmp.eq.s32.totalorder %s21, 0
        // Predicated region
        $region56: #{vit_forward.31} parent=50 // pred_check
          %p331 = pneg %p330
        $region57: #{vit_forward.31} parent=50 // pred_check_branch
          %333 = sbr.rel (%p331) target = $region59
        $region58: #{vit_forward.31} parent=50 // pred_region
          %334 = vst [vmem:[#allocation2] sm:$0xff] 0.0
          %335 = vst [vmem:[#allocation2 + $0x8] sm:$0xff] 0.0
          %336 = vst [vmem:[#allocation2 + $0x10] sm:$0xff] 0.0
          %337 = vst [vmem:[#allocation2 + $0x18] sm:$0xff] 0.0
          %338 = vst [vmem:[#allocation2 + $0x20] sm:$0xff] 0.0
          %339 = vst [vmem:[#allocation2 + $0x28] sm:$0xff] 0.0
          %340 = vst [vmem:[#allocation2 + $0x30] sm:$0xff] 0.0
          %341 = vst [vmem:[#allocation2 + $0x38] sm:$0xff] 0.0
          %342 = vst [vmem:[#allocation2 + $0x40] sm:$0xff] 0.0
          %343 = vst [vmem:[#allocation2 + $0x48] sm:$0xff] 0.0
          %344 = vst [vmem:[#allocation2 + $0x50] sm:$0xff] 0.0
          %345 = vst [vmem:[#allocation2 + $0x58] sm:$0xff] 0.0
          %346 = vst [vmem:[#allocation2 + $0x60] sm:$0xff] 0.0
          %347 = vst [vmem:[#allocation2 + $0x68] sm:$0xff] 0.0
          %348 = vst [vmem:[#allocation2 + $0x70] sm:$0xff] 0.0
          %349 = vst [vmem:[#allocation2 + $0x78] sm:$0xff] 0.0
        $region59: #{vit_forward.31} parent=50 // pred_fallthru
          _
        %v350 = vld [vmem:[#allocation2] sm:$0xff]
        %v351 = vld [vmem:[#allocation2 + $0x8] sm:$0xff]
        %v352 = vld [vmem:[#allocation2 + $0x10] sm:$0xff]
        %v353 = vld [vmem:[#allocation2 + $0x18] sm:$0xff]
        %v354 = vld [vmem:[#allocation2 + $0x20] sm:$0xff]
        %v355 = vld [vmem:[#allocation2 + $0x28] sm:$0xff]
        %v356 = vld [vmem:[#allocation2 + $0x30] sm:$0xff]
        %v357 = vld [vmem:[#allocation2 + $0x38] sm:$0xff]
        %v358 = vld [vmem:[#allocation2 + $0x40] sm:$0xff]
        %v359 = vld [vmem:[#allocation2 + $0x48] sm:$0xff]
        %v360 = vld [vmem:[#allocation2 + $0x50] sm:$0xff]
        %v361 = vld [vmem:[#allocation2 + $0x58] sm:$0xff]
        %v362 = vld [vmem:[#allocation2 + $0x60] sm:$0xff]
        %v363 = vld [vmem:[#allocation2 + $0x68] sm:$0xff]
        %v364 = vld [vmem:[#allocation2 + $0x70] sm:$0xff]
        %v365 = vld [vmem:[#allocation2 + $0x78] sm:$0xff]
        %v366 = vld [vmem:[%s318] sm:$0xff]
        %v367 = vld [vmem:[%s318 + $0x8] sm:$0xff]
        %v368 = vld [vmem:[%s318 + $0x10] sm:$0xff]
        %v369 = vld [vmem:[%s318 + $0x18] sm:$0xff]
        %v370 = vpack.c.bf16 %v367, %v366
        %v371 = vpack.c.bf16 %v369, %v368
        %v372 = vld [vmem:[%s279] sm:$0xff]
        %v373 = vld [vmem:[%s279 + $0x8] sm:$0xff]
        %v374 = vld [vmem:[%s279 + $0x10] sm:$0xff]
        %v375 = vld [vmem:[%s279 + $0x18] sm:$0xff]
        %v376 = vld [vmem:[%s279 + $0x20] sm:$0xff]
        %v377 = vld [vmem:[%s279 + $0x28] sm:$0xff]
        %v378 = vld [vmem:[%s279 + $0x30] sm:$0xff]
        %v379 = vld [vmem:[%s279 + $0x38] sm:$0xff]
        %v380 = vld [vmem:[%s279 + $0x40] sm:$0xff]
        %v381 = vld [vmem:[%s279 + $0x48] sm:$0xff]
        %v382 = vld [vmem:[%s279 + $0x50] sm:$0xff]
        %v383 = vld [vmem:[%s279 + $0x58] sm:$0xff]
        %v384 = vld [vmem:[%s279 + $0x60] sm:$0xff]
        %v385 = vld [vmem:[%s279 + $0x68] sm:$0xff]
        %v386 = vld [vmem:[%s279 + $0x70] sm:$0xff]
        %v387 = vld [vmem:[%s279 + $0x78] sm:$0xff]
        %v388 = vld [vmem:[%s279 + $0x80] sm:$0xff]
        %v389 = vld [vmem:[%s279 + $0x88] sm:$0xff]
        %v390 = vld [vmem:[%s279 + $0x90] sm:$0xff]
        %v391 = vld [vmem:[%s279 + $0x98] sm:$0xff]
        %v392 = vld [vmem:[%s279 + $0xa0] sm:$0xff]
        %v393 = vld [vmem:[%s279 + $0xa8] sm:$0xff]
        %v394 = vld [vmem:[%s279 + $0xb0] sm:$0xff]
        %v395 = vld [vmem:[%s279 + $0xb8] sm:$0xff]
        %v396 = vld [vmem:[%s279 + $0xc0] sm:$0xff]
        %v397 = vld [vmem:[%s279 + $0xc8] sm:$0xff]
        %v398 = vld [vmem:[%s279 + $0xd0] sm:$0xff]
        %v399 = vld [vmem:[%s279 + $0xd8] sm:$0xff]
        %v400 = vld [vmem:[%s279 + $0xe0] sm:$0xff]
        %v401 = vld [vmem:[%s279 + $0xe8] sm:$0xff]
        %v402 = vld [vmem:[%s279 + $0xf0] sm:$0xff]
        %v403 = vld [vmem:[%s279 + $0xf8] sm:$0xff]
        %v436 = vunpack.c.l.b16 %v372
        %v437 = vunpack.c.h.b16 %v372
        %v438 = vunpack.c.l.b16 %v373
        %v439 = vunpack.c.h.b16 %v373
        %v440 = vunpack.c.l.b16 %v374
        %v441 = vunpack.c.h.b16 %v374
        %v442 = vunpack.c.l.b16 %v375
        %v443 = vunpack.c.h.b16 %v375
        %v444 = vunpack.c.l.b16 %v376
        %v445 = vunpack.c.h.b16 %v376
        %v446 = vunpack.c.l.b16 %v377
        %v447 = vunpack.c.h.b16 %v377
        %v448 = vunpack.c.l.b16 %v378
        %v449 = vunpack.c.h.b16 %v378
        %v450 = vunpack.c.l.b16 %v379
        %v451 = vunpack.c.h.b16 %v379
        %v452 = vunpack.c.l.b16 %v380
        %v453 = vunpack.c.h.b16 %v380
        %v454 = vunpack.c.l.b16 %v381
        %v455 = vunpack.c.h.b16 %v381
        %v456 = vunpack.c.l.b16 %v382
        %v457 = vunpack.c.h.b16 %v382
        %v458 = vunpack.c.l.b16 %v383
        %v459 = vunpack.c.h.b16 %v383
        %v460 = vunpack.c.l.b16 %v384
        %v461 = vunpack.c.h.b16 %v384
        %v462 = vunpack.c.l.b16 %v385
        %v463 = vunpack.c.h.b16 %v385
        %v464 = vunpack.c.l.b16 %v386
        %v465 = vunpack.c.h.b16 %v386
        %v466 = vunpack.c.l.b16 %v387
        %v467 = vunpack.c.h.b16 %v387
        %v468 = vunpack.c.l.b16 %v388
        %v469 = vunpack.c.h.b16 %v388
        %v470 = vunpack.c.l.b16 %v389
        %v471 = vunpack.c.h.b16 %v389
        %v472 = vunpack.c.l.b16 %v390
        %v473 = vunpack.c.h.b16 %v390
        %v474 = vunpack.c.l.b16 %v391
        %v475 = vunpack.c.h.b16 %v391
        %v476 = vunpack.c.l.b16 %v392
        %v477 = vunpack.c.h.b16 %v392
        %v478 = vunpack.c.l.b16 %v393
        %v479 = vunpack.c.h.b16 %v393
        %v480 = vunpack.c.l.b16 %v394
        %v481 = vunpack.c.h.b16 %v394
        %v482 = vunpack.c.l.b16 %v395
        %v483 = vunpack.c.h.b16 %v395
        %v484 = vunpack.c.l.b16 %v396
        %v485 = vunpack.c.h.b16 %v396
        %v486 = vunpack.c.l.b16 %v397
        %v487 = vunpack.c.h.b16 %v397
        %v488 = vunpack.c.l.b16 %v398
        %v489 = vunpack.c.h.b16 %v398
        %v490 = vunpack.c.l.b16 %v399
        %v491 = vunpack.c.h.b16 %v399
        %v492 = vunpack.c.l.b16 %v400
        %v493 = vunpack.c.h.b16 %v400
        %v494 = vunpack.c.l.b16 %v401
        %v495 = vunpack.c.h.b16 %v401
        %v496 = vunpack.c.l.b16 %v402
        %v497 = vunpack.c.h.b16 %v402
        %v498 = vunpack.c.l.b16 %v403
        %v499 = vunpack.c.h.b16 %v403
        %v500 = vpack.c.b16 %v440, %v436
        %v501 = vpack.c.b16 %v441, %v437
        %v502 = vpack.c.b16 %v442, %v438
        %v503 = vpack.c.b16 %v443, %v439
        %v504 = vpack.c.b16 %v448, %v444
        %v505 = vpack.c.b16 %v449, %v445
        %v506 = vpack.c.b16 %v450, %v446
        %v507 = vpack.c.b16 %v451, %v447
        %v508 = vpack.c.b16 %v456, %v452
        %v509 = vpack.c.b16 %v457, %v453
        %v510 = vpack.c.b16 %v458, %v454
        %v511 = vpack.c.b16 %v459, %v455
        %v512 = vpack.c.b16 %v464, %v460
        %v513 = vpack.c.b16 %v465, %v461
        %v514 = vpack.c.b16 %v466, %v462
        %v515 = vpack.c.b16 %v467, %v463
        %v516 = vpack.c.b16 %v472, %v468
        %v517 = vpack.c.b16 %v473, %v469
        %v518 = vpack.c.b16 %v474, %v470
        %v519 = vpack.c.b16 %v475, %v471
        %v520 = vpack.c.b16 %v480, %v476
        %v521 = vpack.c.b16 %v481, %v477
        %v522 = vpack.c.b16 %v482, %v478
        %v523 = vpack.c.b16 %v483, %v479
        %v524 = vpack.c.b16 %v488, %v484
        %v525 = vpack.c.b16 %v489, %v485
        %v526 = vpack.c.b16 %v490, %v486
        %v527 = vpack.c.b16 %v491, %v487
        %v528 = vpack.c.b16 %v496, %v492
        %v529 = vpack.c.b16 %v497, %v493
        %v530 = vpack.c.b16 %v498, %v494
        %v531 = vpack.c.b16 %v499, %v495
        %564 = vmatprep.subr.bf16.mxu0 %v501
        %565 = vmatpush1.bf16.msra.mxu0 %v500
        %566 = vmatprep.subr.bf16.mxu0 %v505
        %567 = vmatpush1.bf16.msra.mxu0 %v504
        %568 = vmatprep.subr.bf16.mxu0 %v509
        %569 = vmatpush1.bf16.msra.mxu0 %v508
        %570 = vmatprep.subr.bf16.mxu0 %v513
        %571 = vmatpush1.bf16.msra.mxu0 %v512
        %572 = vmatprep.subr.bf16.mxu0 %v517
        %573 = vmatpush1.bf16.msra.mxu0 %v516
        %574 = vmatprep.subr.bf16.mxu0 %v521
        %575 = vmatpush1.bf16.msra.mxu0 %v520
        %576 = vmatprep.subr.bf16.mxu0 %v525
        %577 = vmatpush1.bf16.msra.mxu0 %v524
        %578 = vmatprep.subr.bf16.mxu0 %v529
        %579 = vmatpush1.bf16.msra.mxu0 %v528
        %580 = vmatprep.subr.bf16.mxu0 0
        %581 = vmatpush1.bf16.msra.mxu0 0
        %582 = vmatprep.subr.bf16.mxu0 0
        %583 = vmatpush1.bf16.msra.mxu0 0
        %584 = vmatprep.subr.bf16.mxu0 0
        %585 = vmatpush1.bf16.msra.mxu0 0
        %586 = vmatprep.subr.bf16.mxu0 0
        %587 = vmatpush1.bf16.msra.mxu0 0
        %588 = vmatprep.subr.bf16.mxu0 0
        %589 = vmatpush1.bf16.msra.mxu0 0
        %590 = vmatprep.subr.bf16.mxu0 0
        %591 = vmatpush1.bf16.msra.mxu0 0
        %592 = vmatprep.subr.bf16.mxu0 0
        %593 = vmatpush1.bf16.msra.mxu0 0
        %594 = vmatprep.subr.bf16.mxu0 0
        %595 = vmatpush1.bf16.msra.mxu0 0
        %596 = vmatprep.mubr.bf16.mxu0 0
        %597 = vmatmul.mubr.bf16.gmra.mrb[0].mxu0 %v370
        %v598 = vpop.f32.mrb[0].mxu0
        %v599 = vadd.f32 0.0, %v598
        %v600 = vpop.f32.mrb[0].mxu0
        %v601 = vadd.f32 0.0, %v600
        %v602 = vpop.f32.mrb[0].mxu0
        %v603 = vadd.f32 0.0, %v602
        %v604 = vpop.f32.mrb[0].mxu0
        %v605 = vadd.f32 0.0, %v604
        %606 = vmatprep.mubr.bf16.mxu0 0
        %607 = vmatmul.mubr.bf16.gmra.mrb[0].mxu0 %v371
        %v608 = vpop.f32.mrb[0].mxu0
        %v609 = vadd.f32 0.0, %v608
        %v610 = vpop.f32.mrb[0].mxu0
        %v611 = vadd.f32 0.0, %v610
        %v612 = vpop.f32.mrb[0].mxu0
        %v613 = vadd.f32 0.0, %v612
        %v614 = vpop.f32.mrb[0].mxu0
        %v615 = vadd.f32 0.0, %v614
        %616 = vdwg.mxu0
        %617 = vmatprep.subr.bf16.mxu0 %v503
        %618 = vmatpush1.bf16.msra.mxu0 %v502
        %619 = vmatprep.subr.bf16.mxu0 %v507
        %620 = vmatpush1.bf16.msra.mxu0 %v506
        %621 = vmatprep.subr.bf16.mxu0 %v511
        %622 = vmatpush1.bf16.msra.mxu0 %v510
        %623 = vmatprep.subr.bf16.mxu0 %v515
        %624 = vmatpush1.bf16.msra.mxu0 %v514
        %625 = vmatprep.subr.bf16.mxu0 %v519
        %626 = vmatpush1.bf16.msra.mxu0 %v518
        %627 = vmatprep.subr.bf16.mxu0 %v523
        %628 = vmatpush1.bf16.msra.mxu0 %v522
        %629 = vmatprep.subr.bf16.mxu0 %v527
        %630 = vmatpush1.bf16.msra.mxu0 %v526
        %631 = vmatprep.subr.bf16.mxu0 %v531
        %632 = vmatpush1.bf16.msra.mxu0 %v530
        %633 = vmatprep.subr.bf16.mxu0 0
        %634 = vmatpush1.bf16.msra.mxu0 0
        %635 = vmatprep.subr.bf16.mxu0 0
        %636 = vmatpush1.bf16.msra.mxu0 0
        %637 = vmatprep.subr.bf16.mxu0 0
        %638 = vmatpush1.bf16.msra.mxu0 0
        %639 = vmatprep.subr.bf16.mxu0 0
        %640 = vmatpush1.bf16.msra.mxu0 0
        %641 = vmatprep.subr.bf16.mxu0 0
        %642 = vmatpush1.bf16.msra.mxu0 0
        %643 = vmatprep.subr.bf16.mxu0 0
        %644 = vmatpush1.bf16.msra.mxu0 0
        %645 = vmatprep.subr.bf16.mxu0 0
        %646 = vmatpush1.bf16.msra.mxu0 0
        %647 = vmatprep.subr.bf16.mxu0 0
        %648 = vmatpush1.bf16.msra.mxu0 0
        %649 = vmatprep.mubr.bf16.mxu0 0
        %650 = vmatmul.mubr.bf16.gmra.mrb[0].mxu0 %v370
        %v651 = vpop.f32.mrb[0].mxu0
        %v652 = vadd.f32 0.0, %v651
        %v653 = vpop.f32.mrb[0].mxu0
        %v654 = vadd.f32 0.0, %v653
        %v655 = vpop.f32.mrb[0].mxu0
        %v656 = vadd.f32 0.0, %v655
        %v657 = vpop.f32.mrb[0].mxu0
        %v658 = vadd.f32 0.0, %v657
        %659 = vmatprep.mubr.bf16.mxu0 0
        %660 = vmatmul.mubr.bf16.gmra.mrb[0].mxu0 %v371
        %v661 = vpop.f32.mrb[0].mxu0
        %v662 = vadd.f32 0.0, %v661
        %v663 = vpop.f32.mrb[0].mxu0
        %v664 = vadd.f32 0.0, %v663
        %v665 = vpop.f32.mrb[0].mxu0
        %v666 = vadd.f32 0.0, %v665
        %v667 = vpop.f32.mrb[0].mxu0
        %v668 = vadd.f32 0.0, %v667
        %669 = vdwg.mxu0
        %v670 = vadd.f32 %v350, %v599
        %v671 = vadd.f32 %v351, %v601
        %v672 = vadd.f32 %v352, %v652
        %v673 = vadd.f32 %v353, %v654
        %v674 = vadd.f32 %v354, %v603
        %v675 = vadd.f32 %v355, %v605
        %v676 = vadd.f32 %v356, %v656
        %v677 = vadd.f32 %v357, %v658
        %v678 = vadd.f32 %v358, %v609
        %v679 = vadd.f32 %v359, %v611
        %v680 = vadd.f32 %v360, %v662
        %v681 = vadd.f32 %v361, %v664
        %v682 = vadd.f32 %v362, %v613
        %v683 = vadd.f32 %v363, %v615
        %v684 = vadd.f32 %v364, %v666
        %v685 = vadd.f32 %v365, %v668
        %686 = vst [vmem:[#allocation2] sm:$0xff] %v670
        %687 = vst [vmem:[#allocation2 + $0x8] sm:$0xff] %v671
        %688 = vst [vmem:[#allocation2 + $0x10] sm:$0xff] %v672
        %689 = vst [vmem:[#allocation2 + $0x18] sm:$0xff] %v673
        %690 = vst [vmem:[#allocation2 + $0x20] sm:$0xff] %v674
        %691 = vst [vmem:[#allocation2 + $0x28] sm:$0xff] %v675
        %692 = vst [vmem:[#allocation2 + $0x30] sm:$0xff] %v676
        %693 = vst [vmem:[#allocation2 + $0x38] sm:$0xff] %v677
        %694 = vst [vmem:[#allocation2 + $0x40] sm:$0xff] %v678
        %695 = vst [vmem:[#allocation2 + $0x48] sm:$0xff] %v679
        %696 = vst [vmem:[#allocation2 + $0x50] sm:$0xff] %v680
        %697 = vst [vmem:[#allocation2 + $0x58] sm:$0xff] %v681
        %698 = vst [vmem:[#allocation2 + $0x60] sm:$0xff] %v682
        %699 = vst [vmem:[#allocation2 + $0x68] sm:$0xff] %v683
        %700 = vst [vmem:[#allocation2 + $0x70] sm:$0xff] %v684
        %701 = vst [vmem:[#allocation2 + $0x78] sm:$0xff] %v685
        // Predicated region
        $region60: #{vit_forward.31} parent=50 // pred_check
          %p702 = pneg %p330
        $region61: #{vit_forward.31} parent=50 // pred_check_branch
          %704 = sbr.rel (%p702) target = $region63
        $region62: #{vit_forward.31} parent=50 // pred_region
          %v705 = vld [vmem:[#allocation2] sm:$0xff]
          %v706 = vld [vmem:[#allocation2 + $0x8] sm:$0xff]
          %v707 = vld [vmem:[#allocation2 + $0x10] sm:$0xff]
          %v708 = vld [vmem:[#allocation2 + $0x18] sm:$0xff]
          %v709 = vld [vmem:[#allocation2 + $0x20] sm:$0xff]
          %v710 = vld [vmem:[#allocation2 + $0x28] sm:$0xff]
          %v711 = vld [vmem:[#allocation2 + $0x30] sm:$0xff]
          %v712 = vld [vmem:[#allocation2 + $0x38] sm:$0xff]
          %v713 = vld [vmem:[#allocation2 + $0x40] sm:$0xff]
          %v714 = vld [vmem:[#allocation2 + $0x48] sm:$0xff]
          %v715 = vld [vmem:[#allocation2 + $0x50] sm:$0xff]
          %v716 = vld [vmem:[#allocation2 + $0x58] sm:$0xff]
          %v717 = vld [vmem:[#allocation2 + $0x60] sm:$0xff]
          %v718 = vld [vmem:[#allocation2 + $0x68] sm:$0xff]
          %v719 = vld [vmem:[#allocation2 + $0x70] sm:$0xff]
          %v720 = vld [vmem:[#allocation2 + $0x78] sm:$0xff]
          %v721 = vld [vmem:[%s325] sm:$0xf]
          %v723 = vlaneseq
          %v724 = vshrl.u32 %v723, 7
          %v725 = vsub.s32 0, %v724
          %v726 = vrot.slane %v721, %v725
          %v727 = vlaneseq
          %v728 = vshrl.u32 %v727, 7
          %v729 = vsub.s32 1, %v728
          %v730 = vrot.slane %v721, %v729
          %v731 = vlaneseq
          %v732 = vshrl.u32 %v731, 7
          %v733 = vsub.s32 2, %v732
          %v734 = vrot.slane %v721, %v733
          %v735 = vlaneseq
          %v736 = vshrl.u32 %v735, 7
          %v737 = vsub.s32 3, %v736
          %v738 = vrot.slane %v721, %v737
          %v743 = vadd.f32 %v705, %v726
          %v744 = vadd.f32 %v706, %v730
          %v745 = vadd.f32 %v707, %v734
          %v746 = vadd.f32 %v708, %v738
          %v747 = vadd.f32 %v709, %v726
          %v748 = vadd.f32 %v710, %v730
          %v749 = vadd.f32 %v711, %v734
          %v750 = vadd.f32 %v712, %v738
          %v751 = vadd.f32 %v713, %v726
          %v752 = vadd.f32 %v714, %v730
          %v753 = vadd.f32 %v715, %v734
          %v754 = vadd.f32 %v716, %v738
          %v755 = vadd.f32 %v717, %v726
          %v756 = vadd.f32 %v718, %v730
          %v757 = vadd.f32 %v719, %v734
          %v758 = vadd.f32 %v720, %v738
          %v759 = vpack.c.bf16 %v747, %v743
          %v760 = vpack.c.bf16 %v748, %v744
          %v761 = vpack.c.bf16 %v749, %v745
          %v762 = vpack.c.bf16 %v750, %v746
          %v763 = vpack.c.bf16 %v755, %v751
          %v764 = vpack.c.bf16 %v756, %v752
          %v765 = vpack.c.bf16 %v757, %v753
          %v766 = vpack.c.bf16 %v758, %v754
          %v775 = vunpack.c.l.b16 %v759
          %v776 = vunpack.c.l.b16 %v760
          %v777 = vunpack.c.l.b16 %v761
          %v778 = vunpack.c.l.b16 %v762
          %v779 = vunpack.c.h.b16 %v759
          %v780 = vunpack.c.h.b16 %v760
          %v781 = vunpack.c.h.b16 %v761
          %v782 = vunpack.c.h.b16 %v762
          %v783 = vunpack.c.l.b16 %v763
          %v784 = vunpack.c.l.b16 %v764
          %v785 = vunpack.c.l.b16 %v765
          %v786 = vunpack.c.l.b16 %v766
          %v787 = vunpack.c.h.b16 %v763
          %v788 = vunpack.c.h.b16 %v764
          %v789 = vunpack.c.h.b16 %v765
          %v790 = vunpack.c.h.b16 %v766
          %v791 = vpack.c.b16 %v776, %v775
          %v792 = vpack.c.b16 %v778, %v777
          %v793 = vpack.c.b16 %v780, %v779
          %v794 = vpack.c.b16 %v782, %v781
          %v795 = vpack.c.b16 %v784, %v783
          %v796 = vpack.c.b16 %v786, %v785
          %v797 = vpack.c.b16 %v788, %v787
          %v798 = vpack.c.b16 %v790, %v789
          %807 = vst [vmem:[%s310] sm:$0xff] %v791
          %808 = vst [vmem:[%s310 + $0x8] sm:$0xff] %v792
          %809 = vst [vmem:[%s310 + $0x10] sm:$0xff] %v793
          %810 = vst [vmem:[%s310 + $0x18] sm:$0xff] %v794
          %811 = vst [vmem:[%s310 + $0x20] sm:$0xff] %v795
          %812 = vst [vmem:[%s310 + $0x28] sm:$0xff] %v796
          %813 = vst [vmem:[%s310 + $0x30] sm:$0xff] %v797
          %814 = vst [vmem:[%s310 + $0x38] sm:$0xff] %v798
        $region63: #{vit_forward.31} parent=50 // pred_fallthru
          _
        %s815 = sand.u32 %s125, 1
        %s816 = sand.u32 %s125, 1
        %s817 = smul.addr %s816, 64
        %s818 = scalar_lea.vmem [#allocation4], %s817
        // Predicated region
        $region64: #{vit_forward.31} parent=50 // pred_check
          %p819 = pneg %p135
        $region65: #{vit_forward.31} parent=50 // pred_check_branch
          %821 = sbr.rel (%p819) target = $region67
        $region66: #{vit_forward.31} parent=50 // pred_region
          %s822 = smul.u32 4, %s19
          %s823 = smul.u32 4, %s20
          %s824 = smul.addr %s822, 12
          %s825 = sadd.s32 %s823, %s824
          %s826 = smul.addr %s825, 4
          %s827 = scalar_lea.vmem %s3, %s826
          // Predicated region
          $region68: #{vit_forward.31} parent=66 // pred_check
            _
          $region69: #{vit_forward.31} parent=66 // pred_check_branch
            %829 = sbr.rel (0) target = $region71
          $region70: #{vit_forward.31} parent=66 // pred_region
            // Predicated region
            $region72: #{vit_forward.31} parent=70 // pred_check
              _
            $region73: #{vit_forward.31} parent=70 // pred_check_branch
              %831 = sbr.rel (0) target = $region75
            $region74: #{vit_forward.31} parent=70 // pred_region
              loop: start=0, step=1, limit=1
              $region76: #{vit_forward.31} parent=74 // loop_pre_header
                _
              $region77: #{vit_forward.31} parent=74 // loop_header
                %s833 = sphi 0, %s837
                %p834 = scmp.ge.s32.totalorder %s833, 1
                %s838 = sphi %s818, %s818
                %s839 = sphi %s827, %s827
              $region78: #{vit_forward.31} parent=74 // loop_header_branch
                %836 = sbr.rel (%p834) target = $region82
              $region79: #{vit_forward.31} parent=74 // loop_body
                %v840 = vld [vmem:[%s838] sm:$0xff]
                %841 = vst [vmem:[%s839] sm:$0xff] %v840
                %v842 = vld [vmem:[%s838 + $0x8] sm:$0xff]
                %843 = vst [vmem:[%s839 + $0x8] sm:$0xff] %v842
                %v844 = vld [vmem:[%s838 + $0x10] sm:$0xff]
                %845 = vst [vmem:[%s839 + $0x30] sm:$0xff] %v844
                %v846 = vld [vmem:[%s838 + $0x18] sm:$0xff]
                %847 = vst [vmem:[%s839 + $0x38] sm:$0xff] %v846
                %v848 = vld [vmem:[%s838 + $0x20] sm:$0xff]
                %849 = vst [vmem:[%s839 + $0x60] sm:$0xff] %v848
                %v850 = vld [vmem:[%s838 + $0x28] sm:$0xff]
                %851 = vst [vmem:[%s839 + $0x68] sm:$0xff] %v850
                %v852 = vld [vmem:[%s838 + $0x30] sm:$0xff]
                %853 = vst [vmem:[%s839 + $0x90] sm:$0xff] %v852
                %v854 = vld [vmem:[%s838 + $0x38] sm:$0xff]
                %855 = vst [vmem:[%s839 + $0x98] sm:$0xff] %v854
              $region80: #{vit_forward.31} parent=74 // loop_footer
                %s837 = sadd.s32 1, %s833
              $region81: #{vit_forward.31} parent=74 // loop_footer_branch
                %832 = sbr.rel target = $region77
              $region82: #{vit_forward.31} parent=74 // loop_exit
                _
            $region75: #{vit_forward.31} parent=70 // pred_fallthru
              _
            // Predicated region
            $region83: #{vit_forward.31} parent=70 // pred_check
              _
            $region84: #{vit_forward.31} parent=70 // pred_check_branch
              %857 = sbr.rel target = $region86
            $region85: #{vit_forward.31} parent=70 // pred_region
              _
            $region86: #{vit_forward.31} parent=70 // pred_fallthru
              _
          $region71: #{vit_forward.31} parent=66 // pred_fallthru
            _
          %858 = vnop
        $region67: #{vit_forward.31} parent=50 // pred_fallthru
          _
      $region51: #{vit_forward.31} parent=5 // pred_fallthru
        _
      %p859 = scmp.le.s32.totalorder 2, %s9
      // Predicated region
      $region87: #{vit_forward.31} parent=5 // pred_check
        %p860 = pneg %p859
      $region88: #{vit_forward.31} parent=5 // pred_check_branch
        %862 = sbr.rel (%p860) target = $region90
      $region89: #{vit_forward.31} parent=5 // pred_region
        %s863 = ssub.s32 %s9, 2
        // Predicated region
        $region91: #{vit_forward.31} parent=89 // pred_check
          %p864 = pneg %p141
        $region92: #{vit_forward.31} parent=89 // pred_check_branch
          %866 = sbr.rel (%p864) target = $region94
        $region93: #{vit_forward.31} parent=89 // pred_region
          %s867 = sand.u32 %s126, 1
          %s868 = sand.u32 %s126, 1
          %s869 = smul.addr %s868, 64
          %s870 = scalar_lea.vmem [#allocation4], %s869
        $region94: #{vit_forward.31} parent=89 // pred_fallthru
          _
      $region90: #{vit_forward.31} parent=5 // pred_fallthru
        _
    $region6: #{vit_forward.31} parent=1 // loop_footer
      %s13 = sadd.s32 1, %s9
    $region7: #{vit_forward.31} parent=1 // loop_footer_branch
      %8 = sbr.rel target = $region3
    $region8: #{vit_forward.31} parent=1 // loop_exit
      _

// kernel: vit_forward.35
$region0: #{vit_forward.35}
  #allocation0 [shape = 'u32[]', space=smem, size = 0x4, offset = 0x4, fixed_abs, tag = 'smem constant byte address 0x4 - core index']
  #allocation1 [shape = 'u32[144,128]{1,0:T(1,128)}', space=vmem, size = 0x12000, scoped, tag = 'internal scratch']
  #allocation2 [shape = 'f32[32,128]{1,0:T(8,128)}', space=vmem, size = 0x4000, scoped, tag = 'scratch operand']
  %s0 = inlined_call_operand.vmem [shape: bf16[32,128], index: 0, kind: input, shape index: {}]
  %s1 = inlined_call_operand.vmem [shape: bf16[128,128], index: 1, kind: input, shape index: {}]
  %s2 = inlined_call_operand.vmem [shape: f32[1,128], index: 2, kind: input, shape index: {}]
  %s3 = inlined_call_operand.vmem [shape: f32[32,128], index: 3, kind: input, shape index: {}]
  %s4 = inlined_call_operand.vmem [shape: f32[1,128], index: 4, kind: input, shape index: {}]
  %s5 = inlined_call_operand.vmem [shape: f32[1,128], index: 5, kind: input, shape index: {}]
  %s6 = inlined_call_operand.vmem [shape: f32[32,128], index: 6, kind: output, shape index: {}]
  %s7 = sld [smem:[#allocation0]]
  $region42: #{vit_forward.35} parent=0
    _
  %s9 = ssub.s32 1, %s7
  %s10 = scalar_select 0, %s9, %s7
  // Predicated region
  $region2: #{vit_forward.35} parent=0 // pred_check
    _
  $region3: #{vit_forward.35} parent=0 // pred_check_branch
    %12 = sbr.rel (0) target = $region5
  $region4: #{vit_forward.35} parent=0 // pred_region
    _
  $region5: #{vit_forward.35} parent=0 // pred_fallthru
    _
  // Predicated region
  $region6: #{vit_forward.35} parent=0 // pred_check
    _
  $region7: #{vit_forward.35} parent=0 // pred_check_branch
    %14 = sbr.rel (0) target = $region9
  $region8: #{vit_forward.35} parent=0 // pred_region
    _
  $region9: #{vit_forward.35} parent=0 // pred_fallthru
    _
  // Predicated region
  $region10: #{vit_forward.35} parent=0 // pred_check
    _
  $region11: #{vit_forward.35} parent=0 // pred_check_branch
    %16 = sbr.rel (0) target = $region13
  $region12: #{vit_forward.35} parent=0 // pred_region
    _
  $region13: #{vit_forward.35} parent=0 // pred_fallthru
    _
  // Predicated region
  $region14: #{vit_forward.35} parent=0 // pred_check
    _
  $region15: #{vit_forward.35} parent=0 // pred_check_branch
    %18 = sbr.rel (0) target = $region17
  $region16: #{vit_forward.35} parent=0 // pred_region
    _
  $region17: #{vit_forward.35} parent=0 // pred_fallthru
    _
  // Predicated region
  $region18: #{vit_forward.35} parent=0 // pred_check
    _
  $region19: #{vit_forward.35} parent=0 // pred_check_branch
    %20 = sbr.rel (0) target = $region21
  $region20: #{vit_forward.35} parent=0 // pred_region
    _
  $region21: #{vit_forward.35} parent=0 // pred_fallthru
    _
  // Predicated region
  $region22: #{vit_forward.35} parent=0 // pred_check
    _
  $region23: #{vit_forward.35} parent=0 // pred_check_branch
    %22 = sbr.rel (0) target = $region25
  $region24: #{vit_forward.35} parent=0 // pred_region
    _
  $region25: #{vit_forward.35} parent=0 // pred_fallthru
    _
  %p24 = scmp.eq.s32.totalorder 0, 0
  // Predicated region
  $region26: #{vit_forward.35} parent=0 // pred_check
    %p25 = pneg %p24
  $region27: #{vit_forward.35} parent=0 // pred_check_branch
    %27 = sbr.rel (%p25) target = $region29
  $region28: #{vit_forward.35} parent=0 // pred_region
    %28 = vst [vmem:[#allocation2] sm:$0xff] 0.0
    %29 = vst [vmem:[#allocation2 + $0x8] sm:$0xff] 0.0
    %30 = vst [vmem:[#allocation2 + $0x10] sm:$0xff] 0.0
    %31 = vst [vmem:[#allocation2 + $0x18] sm:$0xff] 0.0
  $region29: #{vit_forward.35} parent=0 // pred_fallthru
    _
  %v32 = vld [vmem:[#allocation2] sm:$0xff]
  %v33 = vld [vmem:[#allocation2 + $0x8] sm:$0xff]
  %v34 = vld [vmem:[#allocation2 + $0x10] sm:$0xff]
  %v35 = vld [vmem:[#allocation2 + $0x18] sm:$0xff]
  %v36 = vld [vmem:[%s0] sm:$0xf]
  %v37 = vld [vmem:[%s0 + $0x4] sm:$0xf]
  %v38 = vld [vmem:[%s0 + $0x8] sm:$0xf]
  %v39 = vld [vmem:[%s0 + $0xc] sm:$0xf]
  %v40 = vld [vmem:[%s1] sm:$0xf]
  %v41 = vld [vmem:[%s1 + $0x4] sm:$0xf]
  %v42 = vld [vmem:[%s1 + $0x8] sm:$0xf]
  %v43 = vld [vmem:[%s1 + $0xc] sm:$0xf]
  %v44 = vld [vmem:[%s1 + $0x10] sm:$0xf]
  %v45 = vld [vmem:[%s1 + $0x14] sm:$0xf]
  %v46 = vld [vmem:[%s1 + $0x18] sm:$0xf]
  %v47 = vld [vmem:[%s1 + $0x1c] sm:$0xf]
  %v48 = vld [vmem:[%s1 + $0x20] sm:$0xf]
  %v49 = vld [vmem:[%s1 + $0x24] sm:$0xf]
  %v50 = vld [vmem:[%s1 + $0x28] sm:$0xf]
  %v51 = vld [vmem:[%s1 + $0x2c] sm:$0xf]
  %v52 = vld [vmem:[%s1 + $0x30] sm:$0xf]
  %v53 = vld [vmem:[%s1 + $0x34] sm:$0xf]
  %v54 = vld [vmem:[%s1 + $0x38] sm:$0xf]
  %v55 = vld [vmem:[%s1 + $0x3c] sm:$0xf]
  %v60 = vunpack.c.l.b16 %v36
  %v61 = vunpack.c.l.b16 %v37
  %v62 = vunpack.c.l.b16 %v38
  %v63 = vunpack.c.l.b16 %v39
  %v64 = vpack.c.b16 %v61, %v60
  %v65 = vpack.c.b16 %v63, %v62
  %v84 = vunpack.c.l.b16 %v40
  %v85 = vunpack.c.l.b16 %v41
  %v86 = vunpack.c.l.b16 %v42
  %v87 = vunpack.c.l.b16 %v43
  %v88 = vunpack.c.l.b16 %v44
  %v89 = vunpack.c.l.b16 %v45
  %v90 = vunpack.c.l.b16 %v46
  %v91 = vunpack.c.l.b16 %v47
  %v92 = vunpack.c.l.b16 %v48
  %v93 = vunpack.c.l.b16 %v49
  %v94 = vunpack.c.l.b16 %v50
  %v95 = vunpack.c.l.b16 %v51
  %v96 = vunpack.c.l.b16 %v52
  %v97 = vunpack.c.l.b16 %v53
  %v98 = vunpack.c.l.b16 %v54
  %v99 = vunpack.c.l.b16 %v55
  %v100 = vpack.c.b16 %v85, %v84
  %v101 = vpack.c.b16 %v87, %v86
  %v102 = vpack.c.b16 %v89, %v88
  %v103 = vpack.c.b16 %v91, %v90
  %v104 = vpack.c.b16 %v93, %v92
  %v105 = vpack.c.b16 %v95, %v94
  %v106 = vpack.c.b16 %v97, %v96
  %v107 = vpack.c.b16 %v99, %v98
  %116 = vmatprep.subr.bf16.mxu0 0
  %117 = vmatpush1.bf16.msra.mxu0 %v100
  %118 = vmatprep.subr.bf16.mxu0 0
  %119 = vmatpush1.bf16.msra.mxu0 %v101
  %120 = vmatprep.subr.bf16.mxu0 0
  %121 = vmatpush1.bf16.msra.mxu0 %v102
  %122 = vmatprep.subr.bf16.mxu0 0
  %123 = vmatpush1.bf16.msra.mxu0 %v103
  %124 = vmatprep.subr.bf16.mxu0 0
  %125 = vmatpush1.bf16.msra.mxu0 %v104
  %126 = vmatprep.subr.bf16.mxu0 0
  %127 = vmatpush1.bf16.msra.mxu0 %v105
  %128 = vmatprep.subr.bf16.mxu0 0
  %129 = vmatpush1.bf16.msra.mxu0 %v106
  %130 = vmatprep.subr.bf16.mxu0 0
  %131 = vmatpush1.bf16.msra.mxu0 %v107
  %132 = vmatprep.subr.bf16.mxu0 0
  %133 = vmatpush1.bf16.msra.mxu0 0
  %134 = vmatprep.subr.bf16.mxu0 0
  %135 = vmatpush1.bf16.msra.mxu0 0
  %136 = vmatprep.subr.bf16.mxu0 0
  %137 = vmatpush1.bf16.msra.mxu0 0
  %138 = vmatprep.subr.bf16.mxu0 0
  %139 = vmatpush1.bf16.msra.mxu0 0
  %140 = vmatprep.subr.bf16.mxu0 0
  %141 = vmatpush1.bf16.msra.mxu0 0
  %142 = vmatprep.subr.bf16.mxu0 0
  %143 = vmatpush1.bf16.msra.mxu0 0
  %144 = vmatprep.subr.bf16.mxu0 0
  %145 = vmatpush1.bf16.msra.mxu0 0
  %146 = vmatprep.subr.bf16.mxu0 0
  %147 = vmatpush1.bf16.msra.mxu0 0
  %148 = vmatprep.mubr.bf16.mxu0 0
  %149 = vmatmul.mubr.bf16.gmra.mrb[0].mxu0 %v64
  %v150 = vpop.f32.mrb[0].mxu0
  %v151 = vadd.f32 0.0, %v150
  %v152 = vpop.f32.mrb[0].mxu0
  %v153 = vpop.f32.mrb[0].mxu0
  %v154 = vadd.f32 0.0, %v153
  %v155 = vpop.f32.mrb[0].mxu0
  %156 = vmatprep.mubr.bf16.mxu0 0
  %157 = vmatmul.mubr.bf16.gmra.mrb[0].mxu0 %v65
  %v158 = vpop.f32.mrb[0].mxu0
  %v159 = vadd.f32 0.0, %v158
  %v160 = vpop.f32.mrb[0].mxu0
  %v161 = vpop.f32.mrb[0].mxu0
  %v162 = vadd.f32 0.0, %v161
  %v163 = vpop.f32.mrb[0].mxu0
  %164 = vdwg.mxu0
  %v165 = vadd.f32 %v32, %v151
  %v166 = vadd.f32 %v33, %v154
  %v167 = vadd.f32 %v34, %v159
  %v168 = vadd.f32 %v35, %v162
  %169 = vst [vmem:[#allocation2] sm:$0xff] %v165
  %170 = vst [vmem:[#allocation2 + $0x8] sm:$0xff] %v166
  %171 = vst [vmem:[#allocation2 + $0x10] sm:$0xff] %v167
  %172 = vst [vmem:[#allocation2 + $0x18] sm:$0xff] %v168
  // Predicated region
  $region30: #{vit_forward.35} parent=0 // pred_check
    %p173 = pneg %p24
  $region31: #{vit_forward.35} parent=0 // pred_check_branch
    %175 = sbr.rel (%p173) target = $region33
  $region32: #{vit_forward.35} parent=0 // pred_region
    %v176 = vld [vmem:[#allocation2] sm:$0xff]
    %v177 = vld [vmem:[#allocation2 + $0x8] sm:$0xff]
    %v178 = vld [vmem:[#allocation2 + $0x10] sm:$0xff]
    %v179 = vld [vmem:[#allocation2 + $0x18] sm:$0xff]
    %v180 = vld [vmem:[%s2] sm:$0x1]
    %v182 = vlaneseq
    %v183 = vshrl.u32 %v182, 7
    %v184 = vsub.s32 0, %v183
    %v185 = vrot.slane %v180, %v184
    %v187 = vadd.f32 %v176, %v185
    %v188 = vadd.f32 %v177, %v185
    %v189 = vadd.f32 %v178, %v185
    %v190 = vadd.f32 %v179, %v185
    %v191 = vld [vmem:[%s3] sm:$0xff]
    %v192 = vld [vmem:[%s3 + $0x8] sm:$0xff]
    %v193 = vld [vmem:[%s3 + $0x10] sm:$0xff]
    %v194 = vld [vmem:[%s3 + $0x18] sm:$0xff]
    %v195 = vadd.f32 %v187, %v191
    %v196 = vadd.f32 %v188, %v192
    %v197 = vadd.f32 %v189, %v193
    %v198 = vadd.f32 %v190, %v194
    %199 = vadd.xlane.f32.xlu0 %v195
    %v200 = vpop.xlane.xlu0 %199
    %201 = vadd.xlane.f32.xlu0 %v196
    %v202 = vpop.xlane.xlu0 %201
    %203 = vadd.xlane.f32.xlu0 %v197
    %v204 = vpop.xlane.xlu0 %203
    %205 = vadd.xlane.f32.xlu0 %v198
    %v206 = vpop.xlane.xlu0 %205
    %v207 = vmul.f32 %v200, 0.03125
    %v208 = vmul.f32 %v202, 0.03125
    %v209 = vmul.f32 %v204, 0.03125
    %v210 = vmul.f32 %v206, 0.03125
    %v211 = vmul.f32 %v195, %v195
    %v212 = vmul.f32 %v196, %v196
    %v213 = vmul.f32 %v197, %v197
    %v214 = vmul.f32 %v198, %v198
    %215 = vadd.xlane.f32.xlu0 %v211
    %v216 = vpop.xlane.xlu0 %215
    %217 = vadd.xlane.f32.xlu0 %v212
    %v218 = vpop.xlane.xlu0 %217
    %219 = vadd.xlane.f32.xlu0 %v213
    %v220 = vpop.xlane.xlu0 %219
    %221 = vadd.xlane.f32.xlu0 %v214
    %v222 = vpop.xlane.xlu0 %221
    %v223 = vmul.f32 %v216, 0.03125
    %v224 = vmul.f32 %v218, 0.03125
    %v225 = vmul.f32 %v220, 0.03125
    %v226 = vmul.f32 %v222, 0.03125
    %v227 = vmul.f32 %v207, %v207
    %v228 = vmul.f32 %v208, %v208
    %v229 = vmul.f32 %v209, %v209
    %v230 = vmul.f32 %v210, %v210
    %v231 = vsub.f32 %v223, %v227
    %v232 = vsub.f32 %v224, %v228
    %v233 = vsub.f32 %v225, %v229
    %v234 = vsub.f32 %v226, %v230
    %v235 = vsub.f32 %v195, %v207
    %v236 = vsub.f32 %v196, %v208
    %v237 = vsub.f32 %v197, %v209
    %v238 = vsub.f32 %v198, %v210
    %v239 = vadd.f32 %v231, 1e-05
    %v240 = vadd.f32 %v232, 1e-05
    %v241 = vadd.f32 %v233, 1e-05
    %v242 = vadd.f32 %v234, 1e-05
    %v243 = vrsqrt.pop %v239
    %v244 = vrsqrt.pop %v240
    %v245 = vrsqrt.pop %v241
    %v246 = vrsqrt.pop %v242
    %v247 = vmul.f32 %v235, %v243
    %v248 = vmul.f32 %v236, %v244
    %v249 = vmul.f32 %v237, %v245
    %v250 = vmul.f32 %v238, %v246
    %v251 = vld [vmem:[%s4] sm:$0x1]
    %v253 = vlaneseq
    %v254 = vshrl.u32 %v253, 7
    %v255 = vsub.s32 0, %v254
    %v256 = vrot.slane %v251, %v255
    %v258 = vmul.f32 %v247, %v256
    %v259 = vmul.f32 %v248, %v256
    %v260 = vmul.f32 %v249, %v256
    %v261 = vmul.f32 %v250, %v256
    %v262 = vld [vmem:[%s5] sm:$0x1]
    %v264 = vlaneseq
    %v265 = vshrl.u32 %v264, 7
    %v266 = vsub.s32 0, %v265
    %v267 = vrot.slane %v262, %v266
    %v269 = vadd.f32 %v258, %v267
    %v270 = vadd.f32 %v259, %v267
    %v271 = vadd.f32 %v260, %v267
    %v272 = vadd.f32 %v261, %v267
    %273 = vst [vmem:[%s6] sm:$0xff] %v269
    %274 = vst [vmem:[%s6 + $0x8] sm:$0xff] %v270
    %275 = vst [vmem:[%s6 + $0x10] sm:$0xff] %v271
    %276 = vst [vmem:[%s6 + $0x18] sm:$0xff] %v272
  $region33: #{vit_forward.35} parent=0 // pred_fallthru
    _
  // Predicated region
  $region34: #{vit_forward.35} parent=0 // pred_check
    _
  $region35: #{vit_forward.35} parent=0 // pred_check_branch
    %278 = sbr.rel (0) target = $region37
  $region36: #{vit_forward.35} parent=0 // pred_region
    _
  $region37: #{vit_forward.35} parent=0 // pred_fallthru
    _
  // Predicated region
  $region38: #{vit_forward.35} parent=0 // pred_check
    _
  $region39: #{vit_forward.35} parent=0 // pred_check_branch
    %280 = sbr.rel (0) target = $region41
  $region40: #{vit_forward.35} parent=0 // pred_region
    _
  $region41: #{vit_forward.35} parent=0 // pred_fallthru
    _

// kernel: vit_forward.59
$region0: #{vit_forward.59}
  #allocation0 [shape = 'u32[]', space=smem, size = 0x4, offset = 0x4, fixed_abs, tag = 'smem constant byte address 0x4 - core index']
  #allocation1 [shape = 'u32[144,128]{1,0:T(1,128)}', space=vmem, size = 0x12000, scoped, tag = 'internal scratch']
  #allocation2 [shape = 'f32[32,128]{1,0:T(8,128)}', space=vmem, size = 0x4000, scoped, tag = 'scratch operand']
  %s0 = inlined_call_operand.vmem [shape: f32[32,128], index: 0, kind: input, shape index: {}]
  %s1 = inlined_call_operand.vmem [shape: bf16[128,128], index: 1, kind: input, shape index: {}]
  %s2 = inlined_call_operand.vmem [shape: f32[1,128], index: 2, kind: input, shape index: {}]
  %s3 = inlined_call_operand.vmem [shape: f32[32,128], index: 3, kind: output, shape index: {}]
  %s4 = sld [smem:[#allocation0]]
  $region30: #{vit_forward.59} parent=0
    _
  %s6 = ssub.s32 1, %s4
  %s7 = scalar_select 0, %s6, %s4
  // Predicated region
  $region2: #{vit_forward.59} parent=0 // pred_check
    _
  $region3: #{vit_forward.59} parent=0 // pred_check_branch
    %9 = sbr.rel (0) target = $region5
  $region4: #{vit_forward.59} parent=0 // pred_region
    _
  $region5: #{vit_forward.59} parent=0 // pred_fallthru
    _
  // Predicated region
  $region6: #{vit_forward.59} parent=0 // pred_check
    _
  $region7: #{vit_forward.59} parent=0 // pred_check_branch
    %11 = sbr.rel (0) target = $region9
  $region8: #{vit_forward.59} parent=0 // pred_region
    _
  $region9: #{vit_forward.59} parent=0 // pred_fallthru
    _
  // Predicated region
  $region10: #{vit_forward.59} parent=0 // pred_check
    _
  $region11: #{vit_forward.59} parent=0 // pred_check_branch
    %13 = sbr.rel (0) target = $region13
  $region12: #{vit_forward.59} parent=0 // pred_region
    _
  $region13: #{vit_forward.59} parent=0 // pred_fallthru
    _
  %p15 = scmp.eq.s32.totalorder 0, 0
  // Predicated region
  $region14: #{vit_forward.59} parent=0 // pred_check
    %p16 = pneg %p15
  $region15: #{vit_forward.59} parent=0 // pred_check_branch
    %18 = sbr.rel (%p16) target = $region17
  $region16: #{vit_forward.59} parent=0 // pred_region
    %19 = vst [vmem:[#allocation2] sm:$0xff] 0.0
    %20 = vst [vmem:[#allocation2 + $0x8] sm:$0xff] 0.0
    %21 = vst [vmem:[#allocation2 + $0x10] sm:$0xff] 0.0
    %22 = vst [vmem:[#allocation2 + $0x18] sm:$0xff] 0.0
  $region17: #{vit_forward.59} parent=0 // pred_fallthru
    _
  %v23 = vld [vmem:[#allocation2] sm:$0xff]
  %v24 = vld [vmem:[#allocation2 + $0x8] sm:$0xff]
  %v25 = vld [vmem:[#allocation2 + $0x10] sm:$0xff]
  %v26 = vld [vmem:[#allocation2 + $0x18] sm:$0xff]
  %v27 = vld [vmem:[%s0] sm:$0xff]
  %v28 = vld [vmem:[%s0 + $0x8] sm:$0xff]
  %v29 = vld [vmem:[%s0 + $0x10] sm:$0xff]
  %v30 = vld [vmem:[%s0 + $0x18] sm:$0xff]
  %v31 = vpack.c.bf16 %v28, %v27
  %v32 = vpack.c.bf16 %v30, %v29
  %v33 = vld [vmem:[%s1] sm:$0xf]
  %v34 = vld [vmem:[%s1 + $0x4] sm:$0xf]
  %v35 = vld [vmem:[%s1 + $0x8] sm:$0xf]
  %v36 = vld [vmem:[%s1 + $0xc] sm:$0xf]
  %v37 = vld [vmem:[%s1 + $0x10] sm:$0xf]
  %v38 = vld [vmem:[%s1 + $0x14] sm:$0xf]
  %v39 = vld [vmem:[%s1 + $0x18] sm:$0xf]
  %v40 = vld [vmem:[%s1 + $0x1c] sm:$0xf]
  %v41 = vld [vmem:[%s1 + $0x20] sm:$0xf]
  %v42 = vld [vmem:[%s1 + $0x24] sm:$0xf]
  %v43 = vld [vmem:[%s1 + $0x28] sm:$0xf]
  %v44 = vld [vmem:[%s1 + $0x2c] sm:$0xf]
  %v45 = vld [vmem:[%s1 + $0x30] sm:$0xf]
  %v46 = vld [vmem:[%s1 + $0x34] sm:$0xf]
  %v47 = vld [vmem:[%s1 + $0x38] sm:$0xf]
  %v48 = vld [vmem:[%s1 + $0x3c] sm:$0xf]
  %v65 = vunpack.c.l.b16 %v33
  %v66 = vunpack.c.l.b16 %v34
  %v67 = vunpack.c.l.b16 %v35
  %v68 = vunpack.c.l.b16 %v36
  %v69 = vunpack.c.l.b16 %v37
  %v70 = vunpack.c.l.b16 %v38
  %v71 = vunpack.c.l.b16 %v39
  %v72 = vunpack.c.l.b16 %v40
  %v73 = vunpack.c.l.b16 %v41
  %v74 = vunpack.c.l.b16 %v42
  %v75 = vunpack.c.l.b16 %v43
  %v76 = vunpack.c.l.b16 %v44
  %v77 = vunpack.c.l.b16 %v45
  %v78 = vunpack.c.l.b16 %v46
  %v79 = vunpack.c.l.b16 %v47
  %v80 = vunpack.c.l.b16 %v48
  %v81 = vpack.c.b16 %v66, %v65
  %v82 = vpack.c.b16 %v68, %v67
  %v83 = vpack.c.b16 %v70, %v69
  %v84 = vpack.c.b16 %v72, %v71
  %v85 = vpack.c.b16 %v74, %v73
  %v86 = vpack.c.b16 %v76, %v75
  %v87 = vpack.c.b16 %v78, %v77
  %v88 = vpack.c.b16 %v80, %v79
  %97 = vmatprep.subr.bf16.mxu0 0
  %98 = vmatpush1.bf16.msra.mxu0 %v81
  %99 = vmatprep.subr.bf16.mxu0 0
  %100 = vmatpush1.bf16.msra.mxu0 %v82
  %101 = vmatprep.subr.bf16.mxu0 0
  %102 = vmatpush1.bf16.msra.mxu0 %v83
  %103 = vmatprep.subr.bf16.mxu0 0
  %104 = vmatpush1.bf16.msra.mxu0 %v84
  %105 = vmatprep.subr.bf16.mxu0 0
  %106 = vmatpush1.bf16.msra.mxu0 %v85
  %107 = vmatprep.subr.bf16.mxu0 0
  %108 = vmatpush1.bf16.msra.mxu0 %v86
  %109 = vmatprep.subr.bf16.mxu0 0
  %110 = vmatpush1.bf16.msra.mxu0 %v87
  %111 = vmatprep.subr.bf16.mxu0 0
  %112 = vmatpush1.bf16.msra.mxu0 %v88
  %113 = vmatprep.subr.bf16.mxu0 0
  %114 = vmatpush1.bf16.msra.mxu0 0
  %115 = vmatprep.subr.bf16.mxu0 0
  %116 = vmatpush1.bf16.msra.mxu0 0
  %117 = vmatprep.subr.bf16.mxu0 0
  %118 = vmatpush1.bf16.msra.mxu0 0
  %119 = vmatprep.subr.bf16.mxu0 0
  %120 = vmatpush1.bf16.msra.mxu0 0
  %121 = vmatprep.subr.bf16.mxu0 0
  %122 = vmatpush1.bf16.msra.mxu0 0
  %123 = vmatprep.subr.bf16.mxu0 0
  %124 = vmatpush1.bf16.msra.mxu0 0
  %125 = vmatprep.subr.bf16.mxu0 0
  %126 = vmatpush1.bf16.msra.mxu0 0
  %127 = vmatprep.subr.bf16.mxu0 0
  %128 = vmatpush1.bf16.msra.mxu0 0
  %129 = vmatprep.mubr.bf16.mxu0 0
  %130 = vmatmul.mubr.bf16.gmra.mrb[0].mxu0 %v31
  %v131 = vpop.f32.mrb[0].mxu0
  %v132 = vadd.f32 0.0, %v131
  %v133 = vpop.f32.mrb[0].mxu0
  %v134 = vpop.f32.mrb[0].mxu0
  %v135 = vadd.f32 0.0, %v134
  %v136 = vpop.f32.mrb[0].mxu0
  %137 = vmatprep.mubr.bf16.mxu0 0
  %138 = vmatmul.mubr.bf16.gmra.mrb[0].mxu0 %v32
  %v139 = vpop.f32.mrb[0].mxu0
  %v140 = vadd.f32 0.0, %v139
  %v141 = vpop.f32.mrb[0].mxu0
  %v142 = vpop.f32.mrb[0].mxu0
  %v143 = vadd.f32 0.0, %v142
  %v144 = vpop.f32.mrb[0].mxu0
  %145 = vdwg.mxu0
  %v146 = vadd.f32 %v23, %v132
  %v147 = vadd.f32 %v24, %v135
  %v148 = vadd.f32 %v25, %v140
  %v149 = vadd.f32 %v26, %v143
  %150 = vst [vmem:[#allocation2] sm:$0xff] %v146
  %151 = vst [vmem:[#allocation2 + $0x8] sm:$0xff] %v147
  %152 = vst [vmem:[#allocation2 + $0x10] sm:$0xff] %v148
  %153 = vst [vmem:[#allocation2 + $0x18] sm:$0xff] %v149
  // Predicated region
  $region18: #{vit_forward.59} parent=0 // pred_check
    %p154 = pneg %p15
  $region19: #{vit_forward.59} parent=0 // pred_check_branch
    %156 = sbr.rel (%p154) target = $region21
  $region20: #{vit_forward.59} parent=0 // pred_region
    %v157 = vld [vmem:[#allocation2] sm:$0xff]
    %v158 = vld [vmem:[#allocation2 + $0x8] sm:$0xff]
    %v159 = vld [vmem:[#allocation2 + $0x10] sm:$0xff]
    %v160 = vld [vmem:[#allocation2 + $0x18] sm:$0xff]
    %v161 = vld [vmem:[%s2] sm:$0x1]
    %v163 = vlaneseq
    %v164 = vshrl.u32 %v163, 7
    %v165 = vsub.s32 0, %v164
    %v166 = vrot.slane %v161, %v165
    %v168 = vadd.f32 %v157, %v166
    %v169 = vadd.f32 %v158, %v166
    %v170 = vadd.f32 %v159, %v166
    %v171 = vadd.f32 %v160, %v166
    %172 = vst [vmem:[%s3] sm:$0xff] %v168
    %173 = vst [vmem:[%s3 + $0x8] sm:$0xff] %v169
    %174 = vst [vmem:[%s3 + $0x10] sm:$0xff] %v170
    %175 = vst [vmem:[%s3 + $0x18] sm:$0xff] %v171
  $region21: #{vit_forward.59} parent=0 // pred_fallthru
    _
  // Predicated region
  $region22: #{vit_forward.59} parent=0 // pred_check
    _
  $region23: #{vit_forward.59} parent=0 // pred_check_branch
    %177 = sbr.rel (0) target = $region25
  $region24: #{vit_forward.59} parent=0 // pred_region
    _
  $region25: #{vit_forward.59} parent=0 // pred_fallthru
    _
  // Predicated region
  $region26: #{vit_forward.59} parent=0 // pred_check
    _
  $region27: #{vit_forward.59} parent=0 // pred_check_branch
    %179 = sbr.rel (0) target = $region29
  $region28: #{vit_forward.59} parent=0 // pred_region
    _
  $region29: #{vit_forward.59} parent=0 // pred_fallthru
    _

// kernel: vit_forward.45
$region0: #{vit_forward.45}
  #allocation0 [shape = 'u32[]', space=smem, size = 0x4, offset = 0x4, fixed_abs, tag = 'smem constant byte address 0x4 - core index']
  #allocation1 [shape = 'u32[144,128]{1,0:T(1,128)}', space=vmem, size = 0x12000, scoped, tag = 'internal scratch']
  #allocation2 [shape = 'f32[32,512]{1,0:T(8,128)}', space=vmem, size = 0x10000, scoped, tag = 'scratch operand']
  %s0 = inlined_call_operand.vmem [shape: f32[32,128], index: 0, kind: input, shape index: {}]
  %s1 = inlined_call_operand.vmem [shape: bf16[128,1024], index: 1, kind: input, shape index: {}]
  %s2 = inlined_call_operand.vmem [shape: f32[1,1024], index: 2, kind: input, shape index: {}]
  %s3 = inlined_call_operand.vmem [shape: bf16[32,1024], index: 3, kind: output, shape index: {}]
  %s4 = sld [smem:[#allocation0]]
  $region95: #{vit_forward.45} parent=0
    _
  %s6 = ssub.s32 1, %s4
  %s7 = scalar_select 0, %s6, %s4
  $region1: #{vit_forward.45} parent=0
    #allocation3 [shape = 'u8[262144]{0}', space=vmem, size = 0x40000, scoped, tag = 'input window, operand 1']
    #allocation4 [shape = 'u8[65536]{0}', space=vmem, size = 0x10000, scoped, tag = 'output window, operand 0']
    loop: start=0, step=1, limit=4
    $region2: #{vit_forward.45} parent=1 // loop_pre_header
      _
    $region3: #{vit_forward.45} parent=1 // loop_header
      %s9 = sphi 0, %s13
      %p10 = scmp.ge.s32.totalorder %s9, 4
      %s16 = sphi 0, %s35
      %s17 = sphi 0, %s31
      %s18 = sphi 0, %s27
      %s19 = sphi 0, %s16
      %s20 = sphi 0, %s17
      %s21 = sphi 0, %s18
      %s22 = sphi 0, %s19
      %s23 = sphi 0, %s20
      %s24 = sphi 0, %s21
      %s40 = sphi 0, %s42
      %s43 = sphi 0, %s40
      %s44 = sphi 0, %s43
      %s60 = sphi 0, %s44
      %s68 = sphi 0, %s70
      %s71 = sphi 0, %s68
      %s72 = sphi 0, %s71
      %s88 = sphi 0, %s72
      %s94 = sphi 0, %s96
      %s97 = sphi 0, %s94
      %s98 = sphi 0, %s97
      %s114 = sphi 0, %s98
      %s122 = sphi 0, %s124
      %s125 = sphi 0, %s122
      %s126 = sphi 0, %s125
      %s142 = sphi 0, %s126
    $region4: #{vit_forward.45} parent=1 // loop_header_branch
      %12 = sbr.rel (%p10) target = $region8
    $region5: #{vit_forward.45} parent=1 // loop_body
      %s14 = ssub.s32 %s9, 1
      %s15 = ssub.s32 %s9, 2
      %s25 = sadd.s32 1, %s18
      %p26 = scmp.ge.s32.totalorder %s25, 1
      %s27 = scalar_select %p26, 0, %s25
      %s28 = sadd.s32 1, %s17
      %s29 = scalar_select %p26, %s28, %s17
      %p30 = scmp.ge.s32.totalorder %s29, 2
      %s31 = scalar_select %p30, 0, %s29
      %s32 = sadd.s32 1, %s16
      %s33 = scalar_select %p30, %s32, %s16
      %p34 = scmp.ge.s32.totalorder %s33, 1
      %s35 = scalar_select %p34, 0, %s33
      %s36 = ssub.s32 %s16, %s35
      %s37 = ssub.s32 %s18, %s27
      %s38 = sor.u32 %s36, %s37
      %p39 = scmp.eq.s32.totalorder %s38, 0
      %s41 = sadd.s32 %s40, 1
      %s42 = scalar_select %p39, %s40, %s41
      %p45 = pneg %p39
      %p46 = scmp.eq.s32.totalorder %s9, 1
      %p47 = por %p45, %p46
      %p48 = scmp.ne.s32.totalorder %s40, %s43
      %p49 = scmp.eq.s32.totalorder %s9, 0
      %p50 = por %p48, %p49
      %p51 = scmp.ne.s32.totalorder %s40, %s43
      %p52 = scmp.eq.s32.totalorder %s14, 1
      %p53 = por %p51, %p52
      %p54 = scmp.ne.s32.totalorder %s43, %s44
      %p55 = scmp.eq.s32.totalorder %s14, 0
      %p56 = por %p54, %p55
      %p57 = scmp.ne.s32.totalorder %s43, %s44
      %p58 = scmp.eq.s32.totalorder %s15, 1
      %p59 = por %p57, %p58
      %p61 = scmp.ne.s32.totalorder %s44, %s60
      %p62 = scmp.eq.s32.totalorder %s15, 0
      %p63 = por %p61, %p62
      %s64 = ssub.s32 %s18, %s27
      %s65 = ssub.s32 %s17, %s31
      %s66 = sor.u32 %s64, %s65
      %p67 = scmp.eq.s32.totalorder %s66, 0
      %s69 = sadd.s32 %s68, 1
      %s70 = scalar_select %p67, %s68, %s69
      %p73 = pneg %p67
      %p74 = scmp.eq.s32.totalorder %s9, 1
      %p75 = por %p73, %p74
      %p76 = scmp.ne.s32.totalorder %s68, %s71
      %p77 = scmp.eq.s32.totalorder %s9, 0
      %p78 = por %p76, %p77
      %p79 = scmp.ne.s32.totalorder %s68, %s71
      %p80 = scmp.eq.s32.totalorder %s14, 1
      %p81 = por %p79, %p80
      %p82 = scmp.ne.s32.totalorder %s71, %s72
      %p83 = scmp.eq.s32.totalorder %s14, 0
      %p84 = por %p82, %p83
      %p85 = scmp.ne.s32.totalorder %s71, %s72
      %p86 = scmp.eq.s32.totalorder %s15, 1
      %p87 = por %p85, %p86
      %p89 = scmp.ne.s32.totalorder %s72, %s88
      %p90 = scmp.eq.s32.totalorder %s15, 0
      %p91 = por %p89, %p90
      %s92 = ssub.s32 %s17, %s31
      %p93 = scmp.eq.s32.totalorder %s92, 0
      %s95 = sadd.s32 %s94, 1
      %s96 = scalar_select %p93, %s94, %s95
      %p99 = pneg %p93
      %p100 = scmp.eq.s32.totalorder %s9, 1
      %p101 = por %p99, %p100
      %p102 = scmp.ne.s32.totalorder %s94, %s97
      %p103 = scmp.eq.s32.totalorder %s9, 0
      %p104 = por %p102, %p103
      %p105 = scmp.ne.s32.totalorder %s94, %s97
      %p106 = scmp.eq.s32.totalorder %s14, 1
      %p107 = por %p105, %p106
      %p108 = scmp.ne.s32.totalorder %s97, %s98
      %p109 = scmp.eq.s32.totalorder %s14, 0
      %p110 = por %p108, %p109
      %p111 = scmp.ne.s32.totalorder %s97, %s98
      %p112 = scmp.eq.s32.totalorder %s15, 1
      %p113 = por %p111, %p112
      %p115 = scmp.ne.s32.totalorder %s98, %s114
      %p116 = scmp.eq.s32.totalorder %s15, 0
      %p117 = por %p115, %p116
      %s118 = ssub.s32 %s16, %s35
      %s119 = ssub.s32 %s17, %s31
      %s120 = sor.u32 %s118, %s119
      %p121 = scmp.eq.s32.totalorder %s120, 0
      %s123 = sadd.s32 %s122, 1
      %s124 = scalar_select %p121, %s122, %s123
      %p127 = pneg %p121
      %p128 = scmp.eq.s32.totalorder %s9, 1
      %p129 = por %p127, %p128
      %p130 = scmp.ne.s32.totalorder %s122, %s125
      %p131 = scmp.eq.s32.totalorder %s9, 0
      %p132 = por %p130, %p131
      %p133 = scmp.ne.s32.totalorder %s122, %s125
      %p134 = scmp.eq.s32.totalorder %s14, 1
      %p135 = por %p133, %p134
      %p136 = scmp.ne.s32.totalorder %s125, %s126
      %p137 = scmp.eq.s32.totalorder %s14, 0
      %p138 = por %p136, %p137
      %p139 = scmp.ne.s32.totalorder %s125, %s126
      %p140 = scmp.eq.s32.totalorder %s15, 1
      %p141 = por %p139, %p140
      %p143 = scmp.ne.s32.totalorder %s126, %s142
      %p144 = scmp.eq.s32.totalorder %s15, 0
      %p145 = por %p143, %p144
      %p146 = scmp.le.s32.totalorder 1, %s9
      %p147 = scmp.lt.s32.totalorder %s9, 3
      %p148 = pnand %p146, %p147
      %p149 = pneg %p148
      // Predicated region
      $region9: #{vit_forward.45} parent=5 // pred_check
        _
      $region10: #{vit_forward.45} parent=5 // pred_check_branch
        %151 = sbr.rel (%p148) target = $region12
      $region11: #{vit_forward.45} parent=5 // pred_region
        %s152 = ssub.s32 %s9, 1
        // Predicated region
        $region13: #{vit_forward.45} parent=11 // pred_check
          %p153 = pneg %p56
        $region14: #{vit_forward.45} parent=11 // pred_check_branch
          %155 = sbr.rel (%p153) target = $region16
        $region15: #{vit_forward.45} parent=11 // pred_region
          %s156 = smul.u32 4, %s19
          %p157 = scmp.lt.s32.totalorder %s156, 3
          %s158 = scalar_select %p157, %s156, 3
          %p159 = scmp.lt.s32.totalorder %s21, 0
          %s160 = scalar_select %p159, %s21, 0
          %s161 = sadd.s32 %s160, %s158
          %s162 = smul.addr %s161, 8
          %s163 = scalar_lea.vmem %s0, %s162
          %s164 = smul.u32 4, %s19
        $region16: #{vit_forward.45} parent=11 // pred_fallthru
          _
      $region12: #{vit_forward.45} parent=5 // pred_fallthru
        _
      %p165 = scmp.lt.s32.totalorder %s9, 2
      // Predicated region
      $region17: #{vit_forward.45} parent=5 // pred_check
        %p166 = pneg %p165
      $region18: #{vit_forward.45} parent=5 // pred_check_branch
        %168 = sbr.rel (%p166) target = $region20
      $region19: #{vit_forward.45} parent=5 // pred_region
        // Predicated region
        $region21: #{vit_forward.45} parent=19 // pred_check
          %p169 = pneg %p78
        $region22: #{vit_forward.45} parent=19 // pred_check_branch
          %171 = sbr.rel (%p169) target = $region24
        $region23: #{vit_forward.45} parent=19 // pred_region
          %s172 = sand.u32 %s68, 1
          %s173 = sand.u32 %s68, 1
          %s174 = smul.addr %s173, 256
          %s175 = scalar_lea.vmem [#allocation3], %s174
          %s176 = smul.u32 16, %s18
          %s177 = smul.u32 4, %s17
          %s178 = smul.addr %s176, 8
          %s179 = sadd.s32 %s177, %s178
          %s180 = smul.addr %s179, 4
          %s181 = scalar_lea.vmem %s1, %s180
          // Predicated region
          $region25: #{vit_forward.45} parent=23 // pred_check
            _
          $region26: #{vit_forward.45} parent=23 // pred_check_branch
            %183 = sbr.rel (0) target = $region28
          $region27: #{vit_forward.45} parent=23 // pred_region
            // Predicated region
            $region29: #{vit_forward.45} parent=27 // pred_check
              _
            $region30: #{vit_forward.45} parent=27 // pred_check_branch
              %185 = sbr.rel (0) target = $region32
            $region31: #{vit_forward.45} parent=27 // pred_region
              loop: start=0, step=1, limit=1
              $region33: #{vit_forward.45} parent=31 // loop_pre_header
                _
              $region34: #{vit_forward.45} parent=31 // loop_header
                %s187 = sphi 0, %s191
                %p188 = scmp.ge.s32.totalorder %s187, 1
                %s192 = sphi %s181, %s181
                %s193 = sphi %s175, %s175
              $region35: #{vit_forward.45} parent=31 // loop_header_branch
                %190 = sbr.rel (%p188) target = $region39
              $region36: #{vit_forward.45} parent=31 // loop_body
                %v194 = vld [vmem:[%s192] sm:$0xff]
                %195 = vst [vmem:[%s193] sm:$0xff] %v194
                %v196 = vld [vmem:[%s192 + $0x8] sm:$0xff]
                %197 = vst [vmem:[%s193 + $0x8] sm:$0xff] %v196
                %v198 = vld [vmem:[%s192 + $0x20] sm:$0xff]
                %199 = vst [vmem:[%s193 + $0x10] sm:$0xff] %v198
                %v200 = vld [vmem:[%s192 + $0x28] sm:$0xff]
                %201 = vst [vmem:[%s193 + $0x18] sm:$0xff] %v200
                %v202 = vld [vmem:[%s192 + $0x40] sm:$0xff]
                %203 = vst [vmem:[%s193 + $0x20] sm:$0xff] %v202
                %v204 = vld [vmem:[%s192 + $0x48] sm:$0xff]
                %205 = vst [vmem:[%s193 + $0x28] sm:$0xff] %v204
                %v206 = vld [vmem:[%s192 + $0x60] sm:$0xff]
                %207 = vst [vmem:[%s193 + $0x30] sm:$0xff] %v206
                %v208 = vld [vmem:[%s192 + $0x68] sm:$0xff]
                %209 = vst [vmem:[%s193 + $0x38] sm:$0xff] %v208
                %v210 = vld [vmem:[%s192 + $0x80] sm:$0xff]
                %211 = vst [vmem:[%s193 + $0x40] sm:$0xff] %v210
                %v212 = vld [vmem:[%s192 + $0x88] sm:$0xff]
                %213 = vst [vmem:[%s193 + $0x48] sm:$0xff] %v212
                %v214 = vld [vmem:[%s192 + $0xa0] sm:$0xff]
                %215 = vst [vmem:[%s193 + $0x50] sm:$0xff] %v214
                %v216 = vld [vmem:[%s192 + $0xa8] sm:$0xff]
                %217 = vst [vmem:[%s193 + $0x58] sm:$0xff] %v216
                %v218 = vld [vmem:[%s192 + $0xc0] sm:$0xff]
                %219 = vst [vmem:[%s193 + $0x60] sm:$0xff] %v218
                %v220 = vld [vmem:[%s192 + $0xc8] sm:$0xff]
                %221 = vst [vmem:[%s193 + $0x68] sm:$0xff] %v220
                %v222 = vld [vmem:[%s192 + $0xe0] sm:$0xff]
                %223 = vst [vmem:[%s193 + $0x70] sm:$0xff] %v222
                %v224 = vld [vmem:[%s192 + $0xe8] sm:$0xff]
                %225 = vst [vmem:[%s193 + $0x78] sm:$0xff] %v224
                %v226 = vld [vmem:[%s192 + $0x100] sm:$0xff]
                %227 = vst [vmem:[%s193 + $0x80] sm:$0xff] %v226
                %v228 = vld [vmem:[%s192 + $0x108] sm:$0xff]
                %229 = vst [vmem:[%s193 + $0x88] sm:$0xff] %v228
                %v230 = vld [vmem:[%s192 + $0x120] sm:$0xff]
                %231 = vst [vmem:[%s193 + $0x90] sm:$0xff] %v230
                %v232 = vld [vmem:[%s192 + $0x128] sm:$0xff]
                %233 = vst [vmem:[%s193 + $0x98] sm:$0xff] %v232
                %v234 = vld [vmem:[%s192 + $0x140] sm:$0xff]
                %235 = vst [vmem:[%s193 + $0xa0] sm:$0xff] %v234
                %v236 = vld [vmem:[%s192 + $0x148] sm:$0xff]
                %237 = vst [vmem:[%s193 + $0xa8] sm:$0xff] %v236
                %v238 = vld [vmem:[%s192 + $0x160] sm:$0xff]
                %239 = vst [vmem:[%s193 + $0xb0] sm:$0xff] %v238
                %v240 = vld [vmem:[%s192 + $0x168] sm:$0xff]
                %241 = vst [vmem:[%s193 + $0xb8] sm:$0xff] %v240
                %v242 = vld [vmem:[%s192 + $0x180] sm:$0xff]
                %243 = vst [vmem:[%s193 + $0xc0] sm:$0xff] %v242
                %v244 = vld [vmem:[%s192 + $0x188] sm:$0xff]
                %245 = vst [vmem:[%s193 + $0xc8] sm:$0xff] %v244
                %v246 = vld [vmem:[%s192 + $0x1a0] sm:$0xff]
                %247 = vst [vmem:[%s193 + $0xd0] sm:$0xff] %v246
                %v248 = vld [vmem:[%s192 + $0x1a8] sm:$0xff]
                %249 = vst [vmem:[%s193 + $0xd8] sm:$0xff] %v248
                %v250 = vld [vmem:[%s192 + $0x1c0] sm:$0xff]
                %251 = vst [vmem:[%s193 + $0xe0] sm:$0xff] %v250
                %v252 = vld [vmem:[%s192 + $0x1c8] sm:$0xff]
                %253 = vst [vmem:[%s193 + $0xe8] sm:$0xff] %v252
                %v254 = vld [vmem:[%s192 + $0x1e0] sm:$0xff]
                %255 = vst [vmem:[%s193 + $0xf0] sm:$0xff] %v254
                %v256 = vld [vmem:[%s192 + $0x1e8] sm:$0xff]
                %257 = vst [vmem:[%s193 + $0xf8] sm:$0xff] %v256
              $region37: #{vit_forward.45} parent=31 // loop_footer
                %s191 = sadd.s32 1, %s187
              $region38: #{vit_forward.45} parent=31 // loop_footer_branch
                %186 = sbr.rel target = $region34
              $region39: #{vit_forward.45} parent=31 // loop_exit
                _
            $region32: #{vit_forward.45} parent=27 // pred_fallthru
              _
            // Predicated region
            $region40: #{vit_forward.45} parent=27 // pred_check
              _
            $region41: #{vit_forward.45} parent=27 // pred_check_branch
              %259 = sbr.rel target = $region43
            $region42: #{vit_forward.45} parent=27 // pred_region
              _
            $region43: #{vit_forward.45} parent=27 // pred_fallthru
              _
          $region28: #{vit_forward.45} parent=23 // pred_fallthru
            _
          %260 = vnop
        $region24: #{vit_forward.45} parent=19 // pred_fallthru
          _
        // Predicated region
        $region44: #{vit_forward.45} parent=19 // pred_check
          %p261 = pneg %p104
        $region45: #{vit_forward.45} parent=19 // pred_check_branch
          %263 = sbr.rel (%p261) target = $region47
        $region46: #{vit_forward.45} parent=19 // pred_region
          %s264 = smul.u32 4, %s17
          %p265 = scmp.lt.s32.totalorder %s264, 7
          %s266 = scalar_select %p265, %s264, 7
          %s267 = scalar_lea.vmem %s2, %s266
          %s268 = smul.u32 4, %s17
        $region47: #{vit_forward.45} parent=19 // pred_fallthru
          _
      $region20: #{vit_forward.45} parent=5 // pred_fallthru
        _
      %p269 = scmp.le.s32.totalorder 1, %s9
      %p270 = scmp.lt.s32.totalorder %s9, 3
      %p271 = pnand %p269, %p270
      %p272 = pneg %p271
      // Predicated region
      $region48: #{vit_forward.45} parent=5 // pred_check
        _
      $region49: #{vit_forward.45} parent=5 // pred_check_branch
        %274 = sbr.rel (%p271) target = $region51
      $region50: #{vit_forward.45} parent=5 // pred_region
        %s275 = ssub.s32 %s9, 1
        %s276 = sand.u32 %s71, 1
        %s277 = sand.u32 %s71, 1
        %s278 = smul.addr %s277, 256
        %s279 = scalar_lea.vmem [#allocation3], %s278
        // Predicated region
        $region52: #{vit_forward.45} parent=50 // pred_check
          %p280 = pneg %p84
        $region53: #{vit_forward.45} parent=50 // pred_check_branch
          %282 = sbr.rel (%p280) target = $region55
        $region54: #{vit_forward.45} parent=50 // pred_region
          _
        $region55: #{vit_forward.45} parent=50 // pred_fallthru
          _
        %s283 = smul.u32 4, %s19
        %p284 = scmp.lt.s32.totalorder %s283, 3
        %s285 = scalar_select %p284, %s283, 3
        %p286 = scmp.lt.s32.totalorder %s21, 0
        %s287 = scalar_select %p286, %s21, 0
        %s288 = sadd.s32 %s287, %s285
        %s289 = smul.addr %s288, 8
        %s290 = scalar_lea.vmem %s0, %s289
        %p291 = pneg %p56
        %p292 = pneg %p53
        %s293 = sand.u32 %s71, 1
        %s294 = sand.u32 %s71, 1
        %s295 = smul.addr %s294, 256
        %s296 = scalar_lea.vmem [#allocation3], %s295
        %p297 = pneg %p84
        %p298 = pneg %p81
        %s299 = smul.u32 4, %s20
        %p300 = scmp.lt.s32.totalorder %s299, 7
        %s301 = scalar_select %p300, %s299, 7
        %s302 = scalar_lea.vmem %s2, %s301
        %p303 = pneg %p110
        %p304 = pneg %p107
        %p305 = pneg %p138
        %p306 = pneg %p135
        %s307 = sand.u32 %s125, 1
        %s308 = sand.u32 %s125, 1
        %s309 = smul.addr %s308, 64
        %s310 = scalar_lea.vmem [#allocation4], %s309
        %s311 = smul.u32 4, %s19
        %p312 = scmp.lt.s32.totalorder %s311, 3
        %s313 = scalar_select %p312, %s311, 3
        %p314 = scmp.lt.s32.totalorder %s21, 0
        %s315 = scalar_select %p314, %s21, 0
        %s316 = sadd.s32 %s315, %s313
        %s317 = smul.addr %s316, 8
        %s318 = scalar_lea.vmem %s0, %s317
        %s319 = smul.u32 4, %s19
        %s320 = smul.u32 16, %s21
        %s321 = smul.u32 4, %s20
        %s322 = smul.u32 4, %s20
        %p323 = scmp.lt.s32.totalorder %s322, 7
        %s324 = scalar_select %p323, %s322, 7
        %s325 = scalar_lea.vmem %s2, %s324
        %s326 = smul.u32 4, %s20
        %s327 = smul.u32 4, %s19
        %s328 = smul.u32 4, %s20
        %p330 = scmp.eq.s32.totalorder %s21, 0
        // Predicated region
        $region56: #{vit_forward.45} parent=50 // pred_check
          %p331 = pneg %p330
        $region57: #{vit_forward.45} parent=50 // pred_check_branch
          %333 = sbr.rel (%p331) target = $region59
        $region58: #{vit_forward.45} parent=50 // pred_region
          %334 = vst [vmem:[#allocation2] sm:$0xff] 0.0
          %335 = vst [vmem:[#allocation2 + $0x8] sm:$0xff] 0.0
          %336 = vst [vmem:[#allocation2 + $0x10] sm:$0xff] 0.0
          %337 = vst [vmem:[#allocation2 + $0x18] sm:$0xff] 0.0
          %338 = vst [vmem:[#allocation2 + $0x20] sm:$0xff] 0.0
          %339 = vst [vmem:[#allocation2 + $0x28] sm:$0xff] 0.0
          %340 = vst [vmem:[#allocation2 + $0x30] sm:$0xff] 0.0
          %341 = vst [vmem:[#allocation2 + $0x38] sm:$0xff] 0.0
          %342 = vst [vmem:[#allocation2 + $0x40] sm:$0xff] 0.0
          %343 = vst [vmem:[#allocation2 + $0x48] sm:$0xff] 0.0
          %344 = vst [vmem:[#allocation2 + $0x50] sm:$0xff] 0.0
          %345 = vst [vmem:[#allocation2 + $0x58] sm:$0xff] 0.0
          %346 = vst [vmem:[#allocation2 + $0x60] sm:$0xff] 0.0
          %347 = vst [vmem:[#allocation2 + $0x68] sm:$0xff] 0.0
          %348 = vst [vmem:[#allocation2 + $0x70] sm:$0xff] 0.0
          %349 = vst [vmem:[#allocation2 + $0x78] sm:$0xff] 0.0
        $region59: #{vit_forward.45} parent=50 // pred_fallthru
          _
        %v350 = vld [vmem:[#allocation2] sm:$0xff]
        %v351 = vld [vmem:[#allocation2 + $0x8] sm:$0xff]
        %v352 = vld [vmem:[#allocation2 + $0x10] sm:$0xff]
        %v353 = vld [vmem:[#allocation2 + $0x18] sm:$0xff]
        %v354 = vld [vmem:[#allocation2 + $0x20] sm:$0xff]
        %v355 = vld [vmem:[#allocation2 + $0x28] sm:$0xff]
        %v356 = vld [vmem:[#allocation2 + $0x30] sm:$0xff]
        %v357 = vld [vmem:[#allocation2 + $0x38] sm:$0xff]
        %v358 = vld [vmem:[#allocation2 + $0x40] sm:$0xff]
        %v359 = vld [vmem:[#allocation2 + $0x48] sm:$0xff]
        %v360 = vld [vmem:[#allocation2 + $0x50] sm:$0xff]
        %v361 = vld [vmem:[#allocation2 + $0x58] sm:$0xff]
        %v362 = vld [vmem:[#allocation2 + $0x60] sm:$0xff]
        %v363 = vld [vmem:[#allocation2 + $0x68] sm:$0xff]
        %v364 = vld [vmem:[#allocation2 + $0x70] sm:$0xff]
        %v365 = vld [vmem:[#allocation2 + $0x78] sm:$0xff]
        %v366 = vld [vmem:[%s318] sm:$0xff]
        %v367 = vld [vmem:[%s318 + $0x8] sm:$0xff]
        %v368 = vld [vmem:[%s318 + $0x10] sm:$0xff]
        %v369 = vld [vmem:[%s318 + $0x18] sm:$0xff]
        %v370 = vpack.c.bf16 %v367, %v366
        %v371 = vpack.c.bf16 %v369, %v368
        %v372 = vld [vmem:[%s279] sm:$0xff]
        %v373 = vld [vmem:[%s279 + $0x8] sm:$0xff]
        %v374 = vld [vmem:[%s279 + $0x10] sm:$0xff]
        %v375 = vld [vmem:[%s279 + $0x18] sm:$0xff]
        %v376 = vld [vmem:[%s279 + $0x20] sm:$0xff]
        %v377 = vld [vmem:[%s279 + $0x28] sm:$0xff]
        %v378 = vld [vmem:[%s279 + $0x30] sm:$0xff]
        %v379 = vld [vmem:[%s279 + $0x38] sm:$0xff]
        %v380 = vld [vmem:[%s279 + $0x40] sm:$0xff]
        %v381 = vld [vmem:[%s279 + $0x48] sm:$0xff]
        %v382 = vld [vmem:[%s279 + $0x50] sm:$0xff]
        %v383 = vld [vmem:[%s279 + $0x58] sm:$0xff]
        %v384 = vld [vmem:[%s279 + $0x60] sm:$0xff]
        %v385 = vld [vmem:[%s279 + $0x68] sm:$0xff]
        %v386 = vld [vmem:[%s279 + $0x70] sm:$0xff]
        %v387 = vld [vmem:[%s279 + $0x78] sm:$0xff]
        %v388 = vld [vmem:[%s279 + $0x80] sm:$0xff]
        %v389 = vld [vmem:[%s279 + $0x88] sm:$0xff]
        %v390 = vld [vmem:[%s279 + $0x90] sm:$0xff]
        %v391 = vld [vmem:[%s279 + $0x98] sm:$0xff]
        %v392 = vld [vmem:[%s279 + $0xa0] sm:$0xff]
        %v393 = vld [vmem:[%s279 + $0xa8] sm:$0xff]
        %v394 = vld [vmem:[%s279 + $0xb0] sm:$0xff]
        %v395 = vld [vmem:[%s279 + $0xb8] sm:$0xff]
        %v396 = vld [vmem:[%s279 + $0xc0] sm:$0xff]
        %v397 = vld [vmem:[%s279 + $0xc8] sm:$0xff]
        %v398 = vld [vmem:[%s279 + $0xd0] sm:$0xff]
        %v399 = vld [vmem:[%s279 + $0xd8] sm:$0xff]
        %v400 = vld [vmem:[%s279 + $0xe0] sm:$0xff]
        %v401 = vld [vmem:[%s279 + $0xe8] sm:$0xff]
        %v402 = vld [vmem:[%s279 + $0xf0] sm:$0xff]
        %v403 = vld [vmem:[%s279 + $0xf8] sm:$0xff]
        %v436 = vunpack.c.l.b16 %v372
        %v437 = vunpack.c.h.b16 %v372
        %v438 = vunpack.c.l.b16 %v373
        %v439 = vunpack.c.h.b16 %v373
        %v440 = vunpack.c.l.b16 %v374
        %v441 = vunpack.c.h.b16 %v374
        %v442 = vunpack.c.l.b16 %v375
        %v443 = vunpack.c.h.b16 %v375
        %v444 = vunpack.c.l.b16 %v376
        %v445 = vunpack.c.h.b16 %v376
        %v446 = vunpack.c.l.b16 %v377
        %v447 = vunpack.c.h.b16 %v377
        %v448 = vunpack.c.l.b16 %v378
        %v449 = vunpack.c.h.b16 %v378
        %v450 = vunpack.c.l.b16 %v379
        %v451 = vunpack.c.h.b16 %v379
        %v452 = vunpack.c.l.b16 %v380
        %v453 = vunpack.c.h.b16 %v380
        %v454 = vunpack.c.l.b16 %v381
        %v455 = vunpack.c.h.b16 %v381
        %v456 = vunpack.c.l.b16 %v382
        %v457 = vunpack.c.h.b16 %v382
        %v458 = vunpack.c.l.b16 %v383
        %v459 = vunpack.c.h.b16 %v383
        %v460 = vunpack.c.l.b16 %v384
        %v461 = vunpack.c.h.b16 %v384
        %v462 = vunpack.c.l.b16 %v385
        %v463 = vunpack.c.h.b16 %v385
        %v464 = vunpack.c.l.b16 %v386
        %v465 = vunpack.c.h.b16 %v386
        %v466 = vunpack.c.l.b16 %v387
        %v467 = vunpack.c.h.b16 %v387
        %v468 = vunpack.c.l.b16 %v388
        %v469 = vunpack.c.h.b16 %v388
        %v470 = vunpack.c.l.b16 %v389
        %v471 = vunpack.c.h.b16 %v389
        %v472 = vunpack.c.l.b16 %v390
        %v473 = vunpack.c.h.b16 %v390
        %v474 = vunpack.c.l.b16 %v391
        %v475 = vunpack.c.h.b16 %v391
        %v476 = vunpack.c.l.b16 %v392
        %v477 = vunpack.c.h.b16 %v392
        %v478 = vunpack.c.l.b16 %v393
        %v479 = vunpack.c.h.b16 %v393
        %v480 = vunpack.c.l.b16 %v394
        %v481 = vunpack.c.h.b16 %v394
        %v482 = vunpack.c.l.b16 %v395
        %v483 = vunpack.c.h.b16 %v395
        %v484 = vunpack.c.l.b16 %v396
        %v485 = vunpack.c.h.b16 %v396
        %v486 = vunpack.c.l.b16 %v397
        %v487 = vunpack.c.h.b16 %v397
        %v488 = vunpack.c.l.b16 %v398
        %v489 = vunpack.c.h.b16 %v398
        %v490 = vunpack.c.l.b16 %v399
        %v491 = vunpack.c.h.b16 %v399
        %v492 = vunpack.c.l.b16 %v400
        %v493 = vunpack.c.h.b16 %v400
        %v494 = vunpack.c.l.b16 %v401
        %v495 = vunpack.c.h.b16 %v401
        %v496 = vunpack.c.l.b16 %v402
        %v497 = vunpack.c.h.b16 %v402
        %v498 = vunpack.c.l.b16 %v403
        %v499 = vunpack.c.h.b16 %v403
        %v500 = vpack.c.b16 %v440, %v436
        %v501 = vpack.c.b16 %v441, %v437
        %v502 = vpack.c.b16 %v442, %v438
        %v503 = vpack.c.b16 %v443, %v439
        %v504 = vpack.c.b16 %v448, %v444
        %v505 = vpack.c.b16 %v449, %v445
        %v506 = vpack.c.b16 %v450, %v446
        %v507 = vpack.c.b16 %v451, %v447
        %v508 = vpack.c.b16 %v456, %v452
        %v509 = vpack.c.b16 %v457, %v453
        %v510 = vpack.c.b16 %v458, %v454
        %v511 = vpack.c.b16 %v459, %v455
        %v512 = vpack.c.b16 %v464, %v460
        %v513 = vpack.c.b16 %v465, %v461
        %v514 = vpack.c.b16 %v466, %v462
        %v515 = vpack.c.b16 %v467, %v463
        %v516 = vpack.c.b16 %v472, %v468
        %v517 = vpack.c.b16 %v473, %v469
        %v518 = vpack.c.b16 %v474, %v470
        %v519 = vpack.c.b16 %v475, %v471
        %v520 = vpack.c.b16 %v480, %v476
        %v521 = vpack.c.b16 %v481, %v477
        %v522 = vpack.c.b16 %v482, %v478
        %v523 = vpack.c.b16 %v483, %v479
        %v524 = vpack.c.b16 %v488, %v484
        %v525 = vpack.c.b16 %v489, %v485
        %v526 = vpack.c.b16 %v490, %v486
        %v527 = vpack.c.b16 %v491, %v487
        %v528 = vpack.c.b16 %v496, %v492
        %v529 = vpack.c.b16 %v497, %v493
        %v530 = vpack.c.b16 %v498, %v494
        %v531 = vpack.c.b16 %v499, %v495
        %564 = vmatprep.subr.bf16.mxu0 %v501
        %565 = vmatpush1.bf16.msra.mxu0 %v500
        %566 = vmatprep.subr.bf16.mxu0 %v505
        %567 = vmatpush1.bf16.msra.mxu0 %v504
        %568 = vmatprep.subr.bf16.mxu0 %v509
        %569 = vmatpush1.bf16.msra.mxu0 %v508
        %570 = vmatprep.subr.bf16.mxu0 %v513
        %571 = vmatpush1.bf16.msra.mxu0 %v512
        %572 = vmatprep.subr.bf16.mxu0 %v517
        %573 = vmatpush1.bf16.msra.mxu0 %v516
        %574 = vmatprep.subr.bf16.mxu0 %v521
        %575 = vmatpush1.bf16.msra.mxu0 %v520
        %576 = vmatprep.subr.bf16.mxu0 %v525
        %577 = vmatpush1.bf16.msra.mxu0 %v524
        %578 = vmatprep.subr.bf16.mxu0 %v529
        %579 = vmatpush1.bf16.msra.mxu0 %v528
        %580 = vmatprep.subr.bf16.mxu0 0
        %581 = vmatpush1.bf16.msra.mxu0 0
        %582 = vmatprep.subr.bf16.mxu0 0
        %583 = vmatpush1.bf16.msra.mxu0 0
        %584 = vmatprep.subr.bf16.mxu0 0
        %585 = vmatpush1.bf16.msra.mxu0 0
        %586 = vmatprep.subr.bf16.mxu0 0
        %587 = vmatpush1.bf16.msra.mxu0 0
        %588 = vmatprep.subr.bf16.mxu0 0
        %589 = vmatpush1.bf16.msra.mxu0 0
        %590 = vmatprep.subr.bf16.mxu0 0
        %591 = vmatpush1.bf16.msra.mxu0 0
        %592 = vmatprep.subr.bf16.mxu0 0
        %593 = vmatpush1.bf16.msra.mxu0 0
        %594 = vmatprep.subr.bf16.mxu0 0
        %595 = vmatpush1.bf16.msra.mxu0 0
        %596 = vmatprep.mubr.bf16.mxu0 0
        %597 = vmatmul.mubr.bf16.gmra.mrb[0].mxu0 %v370
        %v598 = vpop.f32.mrb[0].mxu0
        %v599 = vadd.f32 0.0, %v598
        %v600 = vpop.f32.mrb[0].mxu0
        %v601 = vadd.f32 0.0, %v600
        %v602 = vpop.f32.mrb[0].mxu0
        %v603 = vadd.f32 0.0, %v602
        %v604 = vpop.f32.mrb[0].mxu0
        %v605 = vadd.f32 0.0, %v604
        %606 = vmatprep.mubr.bf16.mxu0 0
        %607 = vmatmul.mubr.bf16.gmra.mrb[0].mxu0 %v371
        %v608 = vpop.f32.mrb[0].mxu0
        %v609 = vadd.f32 0.0, %v608
        %v610 = vpop.f32.mrb[0].mxu0
        %v611 = vadd.f32 0.0, %v610
        %v612 = vpop.f32.mrb[0].mxu0
        %v613 = vadd.f32 0.0, %v612
        %v614 = vpop.f32.mrb[0].mxu0
        %v615 = vadd.f32 0.0, %v614
        %616 = vdwg.mxu0
        %617 = vmatprep.subr.bf16.mxu0 %v503
        %618 = vmatpush1.bf16.msra.mxu0 %v502
        %619 = vmatprep.subr.bf16.mxu0 %v507
        %620 = vmatpush1.bf16.msra.mxu0 %v506
        %621 = vmatprep.subr.bf16.mxu0 %v511
        %622 = vmatpush1.bf16.msra.mxu0 %v510
        %623 = vmatprep.subr.bf16.mxu0 %v515
        %624 = vmatpush1.bf16.msra.mxu0 %v514
        %625 = vmatprep.subr.bf16.mxu0 %v519
        %626 = vmatpush1.bf16.msra.mxu0 %v518
        %627 = vmatprep.subr.bf16.mxu0 %v523
        %628 = vmatpush1.bf16.msra.mxu0 %v522
        %629 = vmatprep.subr.bf16.mxu0 %v527
        %630 = vmatpush1.bf16.msra.mxu0 %v526
        %631 = vmatprep.subr.bf16.mxu0 %v531
        %632 = vmatpush1.bf16.msra.mxu0 %v530
        %633 = vmatprep.subr.bf16.mxu0 0
        %634 = vmatpush1.bf16.msra.mxu0 0
        %635 = vmatprep.subr.bf16.mxu0 0
        %636 = vmatpush1.bf16.msra.mxu0 0
        %637 = vmatprep.subr.bf16.mxu0 0
        %638 = vmatpush1.bf16.msra.mxu0 0
        %639 = vmatprep.subr.bf16.mxu0 0
        %640 = vmatpush1.bf16.msra.mxu0 0
        %641 = vmatprep.subr.bf16.mxu0 0
        %642 = vmatpush1.bf16.msra.mxu0 0
        %643 = vmatprep.subr.bf16.mxu0 0
        %644 = vmatpush1.bf16.msra.mxu0 0
        %645 = vmatprep.subr.bf16.mxu0 0
        %646 = vmatpush1.bf16.msra.mxu0 0
        %647 = vmatprep.subr.bf16.mxu0 0
        %648 = vmatpush1.bf16.msra.mxu0 0
        %649 = vmatprep.mubr.bf16.mxu0 0
        %650 = vmatmul.mubr.bf16.gmra.mrb[0].mxu0 %v370
        %v651 = vpop.f32.mrb[0].mxu0
        %v652 = vadd.f32 0.0, %v651
        %v653 = vpop.f32.mrb[0].mxu0
        %v654 = vadd.f32 0.0, %v653
        %v655 = vpop.f32.mrb[0].mxu0
        %v656 = vadd.f32 0.0, %v655
        %v657 = vpop.f32.mrb[0].mxu0
        %v658 = vadd.f32 0.0, %v657
        %659 = vmatprep.mubr.bf16.mxu0 0
        %660 = vmatmul.mubr.bf16.gmra.mrb[0].mxu0 %v371
        %v661 = vpop.f32.mrb[0].mxu0
        %v662 = vadd.f32 0.0, %v661
        %v663 = vpop.f32.mrb[0].mxu0
        %v664 = vadd.f32 0.0, %v663
        %v665 = vpop.f32.mrb[0].mxu0
        %v666 = vadd.f32 0.0, %v665
        %v667 = vpop.f32.mrb[0].mxu0
        %v668 = vadd.f32 0.0, %v667
        %669 = vdwg.mxu0
        %v670 = vadd.f32 %v350, %v599
        %v671 = vadd.f32 %v351, %v601
        %v672 = vadd.f32 %v352, %v652
        %v673 = vadd.f32 %v353, %v654
        %v674 = vadd.f32 %v354, %v603
        %v675 = vadd.f32 %v355, %v605
        %v676 = vadd.f32 %v356, %v656
        %v677 = vadd.f32 %v357, %v658
        %v678 = vadd.f32 %v358, %v609
        %v679 = vadd.f32 %v359, %v611
        %v680 = vadd.f32 %v360, %v662
        %v681 = vadd.f32 %v361, %v664
        %v682 = vadd.f32 %v362, %v613
        %v683 = vadd.f32 %v363, %v615
        %v684 = vadd.f32 %v364, %v666
        %v685 = vadd.f32 %v365, %v668
        %686 = vst [vmem:[#allocation2] sm:$0xff] %v670
        %687 = vst [vmem:[#allocation2 + $0x8] sm:$0xff] %v671
        %688 = vst [vmem:[#allocation2 + $0x10] sm:$0xff] %v672
        %689 = vst [vmem:[#allocation2 + $0x18] sm:$0xff] %v673
        %690 = vst [vmem:[#allocation2 + $0x20] sm:$0xff] %v674
        %691 = vst [vmem:[#allocation2 + $0x28] sm:$0xff] %v675
        %692 = vst [vmem:[#allocation2 + $0x30] sm:$0xff] %v676
        %693 = vst [vmem:[#allocation2 + $0x38] sm:$0xff] %v677
        %694 = vst [vmem:[#allocation2 + $0x40] sm:$0xff] %v678
        %695 = vst [vmem:[#allocation2 + $0x48] sm:$0xff] %v679
        %696 = vst [vmem:[#allocation2 + $0x50] sm:$0xff] %v680
        %697 = vst [vmem:[#allocation2 + $0x58] sm:$0xff] %v681
        %698 = vst [vmem:[#allocation2 + $0x60] sm:$0xff] %v682
        %699 = vst [vmem:[#allocation2 + $0x68] sm:$0xff] %v683
        %700 = vst [vmem:[#allocation2 + $0x70] sm:$0xff] %v684
        %701 = vst [vmem:[#allocation2 + $0x78] sm:$0xff] %v685
        // Predicated region
        $region60: #{vit_forward.45} parent=50 // pred_check
          %p702 = pneg %p330
        $region61: #{vit_forward.45} parent=50 // pred_check_branch
          %704 = sbr.rel (%p702) target = $region63
        $region62: #{vit_forward.45} parent=50 // pred_region
          %v705 = vld [vmem:[#allocation2] sm:$0xff]
          %v706 = vld [vmem:[#allocation2 + $0x8] sm:$0xff]
          %v707 = vld [vmem:[#allocation2 + $0x10] sm:$0xff]
          %v708 = vld [vmem:[#allocation2 + $0x18] sm:$0xff]
          %v709 = vld [vmem:[#allocation2 + $0x20] sm:$0xff]
          %v710 = vld [vmem:[#allocation2 + $0x28] sm:$0xff]
          %v711 = vld [vmem:[#allocation2 + $0x30] sm:$0xff]
          %v712 = vld [vmem:[#allocation2 + $0x38] sm:$0xff]
          %v713 = vld [vmem:[#allocation2 + $0x40] sm:$0xff]
          %v714 = vld [vmem:[#allocation2 + $0x48] sm:$0xff]
          %v715 = vld [vmem:[#allocation2 + $0x50] sm:$0xff]
          %v716 = vld [vmem:[#allocation2 + $0x58] sm:$0xff]
          %v717 = vld [vmem:[#allocation2 + $0x60] sm:$0xff]
          %v718 = vld [vmem:[#allocation2 + $0x68] sm:$0xff]
          %v719 = vld [vmem:[#allocation2 + $0x70] sm:$0xff]
          %v720 = vld [vmem:[#allocation2 + $0x78] sm:$0xff]
          %v721 = vld [vmem:[%s325] sm:$0xf]
          %v723 = vlaneseq
          %v724 = vshrl.u32 %v723, 7
          %v725 = vsub.s32 0, %v724
          %v726 = vrot.slane %v721, %v725
          %v727 = vlaneseq
          %v728 = vshrl.u32 %v727, 7
          %v729 = vsub.s32 1, %v728
          %v730 = vrot.slane %v721, %v729
          %v731 = vlaneseq
          %v732 = vshrl.u32 %v731, 7
          %v733 = vsub.s32 2, %v732
          %v734 = vrot.slane %v721, %v733
          %v735 = vlaneseq
          %v736 = vshrl.u32 %v735, 7
          %v737 = vsub.s32 3, %v736
          %v738 = vrot.slane %v721, %v737
          %v743 = vadd.f32 %v705, %v726
          %v744 = vadd.f32 %v706, %v730
          %v745 = vadd.f32 %v707, %v734
          %v746 = vadd.f32 %v708, %v738
          %v747 = vadd.f32 %v709, %v726
          %v748 = vadd.f32 %v710, %v730
          %v749 = vadd.f32 %v711, %v734
          %v750 = vadd.f32 %v712, %v738
          %v751 = vadd.f32 %v713, %v726
          %v752 = vadd.f32 %v714, %v730
          %v753 = vadd.f32 %v715, %v734
          %v754 = vadd.f32 %v716, %v738
          %v755 = vadd.f32 %v717, %v726
          %v756 = vadd.f32 %v718, %v730
          %v757 = vadd.f32 %v719, %v734
          %v758 = vadd.f32 %v720, %v738
          %v759 = vpack.c.bf16 %v747, %v743
          %v760 = vpack.c.bf16 %v748, %v744
          %v761 = vpack.c.bf16 %v749, %v745
          %v762 = vpack.c.bf16 %v750, %v746
          %v763 = vpack.c.bf16 %v755, %v751
          %v764 = vpack.c.bf16 %v756, %v752
          %v765 = vpack.c.bf16 %v757, %v753
          %v766 = vpack.c.bf16 %v758, %v754
          %v775 = vunpack.c.l.b16 %v759
          %v776 = vunpack.c.l.b16 %v760
          %v777 = vunpack.c.l.b16 %v761
          %v778 = vunpack.c.l.b16 %v762
          %v779 = vunpack.c.h.b16 %v759
          %v780 = vunpack.c.h.b16 %v760
          %v781 = vunpack.c.h.b16 %v761
          %v782 = vunpack.c.h.b16 %v762
          %v783 = vunpack.c.l.b16 %v763
          %v784 = vunpack.c.l.b16 %v764
          %v785 = vunpack.c.l.b16 %v765
          %v786 = vunpack.c.l.b16 %v766
          %v787 = vunpack.c.h.b16 %v763
          %v788 = vunpack.c.h.b16 %v764
          %v789 = vunpack.c.h.b16 %v765
          %v790 = vunpack.c.h.b16 %v766
          %v791 = vpack.c.b16 %v776, %v775
          %v792 = vpack.c.b16 %v778, %v777
          %v793 = vpack.c.b16 %v780, %v779
          %v794 = vpack.c.b16 %v782, %v781
          %v795 = vpack.c.b16 %v784, %v783
          %v796 = vpack.c.b16 %v786, %v785
          %v797 = vpack.c.b16 %v788, %v787
          %v798 = vpack.c.b16 %v790, %v789
          %807 = vst [vmem:[%s310] sm:$0xff] %v791
          %808 = vst [vmem:[%s310 + $0x8] sm:$0xff] %v792
          %809 = vst [vmem:[%s310 + $0x10] sm:$0xff] %v793
          %810 = vst [vmem:[%s310 + $0x18] sm:$0xff] %v794
          %811 = vst [vmem:[%s310 + $0x20] sm:$0xff] %v795
          %812 = vst [vmem:[%s310 + $0x28] sm:$0xff] %v796
          %813 = vst [vmem:[%s310 + $0x30] sm:$0xff] %v797
          %814 = vst [vmem:[%s310 + $0x38] sm:$0xff] %v798
        $region63: #{vit_forward.45} parent=50 // pred_fallthru
          _
        %s815 = sand.u32 %s125, 1
        %s816 = sand.u32 %s125, 1
        %s817 = smul.addr %s816, 64
        %s818 = scalar_lea.vmem [#allocation4], %s817
        // Predicated region
        $region64: #{vit_forward.45} parent=50 // pred_check
          %p819 = pneg %p135
        $region65: #{vit_forward.45} parent=50 // pred_check_branch
          %821 = sbr.rel (%p819) target = $region67
        $region66: #{vit_forward.45} parent=50 // pred_region
          %s822 = smul.u32 4, %s19
          %s823 = smul.u32 4, %s20
          %s824 = smul.addr %s822, 8
          %s825 = sadd.s32 %s823, %s824
          %s826 = smul.addr %s825, 4
          %s827 = scalar_lea.vmem %s3, %s826
          // Predicated region
          $region68: #{vit_forward.45} parent=66 // pred_check
            _
          $region69: #{vit_forward.45} parent=66 // pred_check_branch
            %829 = sbr.rel (0) target = $region71
          $region70: #{vit_forward.45} parent=66 // pred_region
            // Predicated region
            $region72: #{vit_forward.45} parent=70 // pred_check
              _
            $region73: #{vit_forward.45} parent=70 // pred_check_branch
              %831 = sbr.rel (0) target = $region75
            $region74: #{vit_forward.45} parent=70 // pred_region
              loop: start=0, step=1, limit=1
              $region76: #{vit_forward.45} parent=74 // loop_pre_header
                _
              $region77: #{vit_forward.45} parent=74 // loop_header
                %s833 = sphi 0, %s837
                %p834 = scmp.ge.s32.totalorder %s833, 1
                %s838 = sphi %s818, %s818
                %s839 = sphi %s827, %s827
              $region78: #{vit_forward.45} parent=74 // loop_header_branch
                %836 = sbr.rel (%p834) target = $region82
              $region79: #{vit_forward.45} parent=74 // loop_body
                %v840 = vld [vmem:[%s838] sm:$0xff]
                %841 = vst [vmem:[%s839] sm:$0xff] %v840
                %v842 = vld [vmem:[%s838 + $0x8] sm:$0xff]
                %843 = vst [vmem:[%s839 + $0x8] sm:$0xff] %v842
                %v844 = vld [vmem:[%s838 + $0x10] sm:$0xff]
                %845 = vst [vmem:[%s839 + $0x20] sm:$0xff] %v844
                %v846 = vld [vmem:[%s838 + $0x18] sm:$0xff]
                %847 = vst [vmem:[%s839 + $0x28] sm:$0xff] %v846
                %v848 = vld [vmem:[%s838 + $0x20] sm:$0xff]
                %849 = vst [vmem:[%s839 + $0x40] sm:$0xff] %v848
                %v850 = vld [vmem:[%s838 + $0x28] sm:$0xff]
                %851 = vst [vmem:[%s839 + $0x48] sm:$0xff] %v850
                %v852 = vld [vmem:[%s838 + $0x30] sm:$0xff]
                %853 = vst [vmem:[%s839 + $0x60] sm:$0xff] %v852
                %v854 = vld [vmem:[%s838 + $0x38] sm:$0xff]
                %855 = vst [vmem:[%s839 + $0x68] sm:$0xff] %v854
              $region80: #{vit_forward.45} parent=74 // loop_footer
                %s837 = sadd.s32 1, %s833
              $region81: #{vit_forward.45} parent=74 // loop_footer_branch
                %832 = sbr.rel target = $region77
              $region82: #{vit_forward.45} parent=74 // loop_exit
                _
            $region75: #{vit_forward.45} parent=70 // pred_fallthru
              _
            // Predicated region
            $region83: #{vit_forward.45} parent=70 // pred_check
              _
            $region84: #{vit_forward.45} parent=70 // pred_check_branch
              %857 = sbr.rel target = $region86
            $region85: #{vit_forward.45} parent=70 // pred_region
              _
            $region86: #{vit_forward.45} parent=70 // pred_fallthru
              _
          $region71: #{vit_forward.45} parent=66 // pred_fallthru
            _
          %858 = vnop
        $region67: #{vit_forward.45} parent=50 // pred_fallthru
          _
      $region51: #{vit_forward.45} parent=5 // pred_fallthru
        _
      %p859 = scmp.le.s32.totalorder 2, %s9
      // Predicated region
      $region87: #{vit_forward.45} parent=5 // pred_check
        %p860 = pneg %p859
      $region88: #{vit_forward.45} parent=5 // pred_check_branch
        %862 = sbr.rel (%p860) target = $region90
      $region89: #{vit_forward.45} parent=5 // pred_region
        %s863 = ssub.s32 %s9, 2
        // Predicated region
        $region91: #{vit_forward.45} parent=89 // pred_check
          %p864 = pneg %p141
        $region92: #{vit_forward.45} parent=89 // pred_check_branch
          %866 = sbr.rel (%p864) target = $region94
        $region93: #{vit_forward.45} parent=89 // pred_region
          %s867 = sand.u32 %s126, 1
          %s868 = sand.u32 %s126, 1
          %s869 = smul.addr %s868, 64
          %s870 = scalar_lea.vmem [#allocation4], %s869
        $region94: #{vit_forward.45} parent=89 // pred_fallthru
          _
      $region90: #{vit_forward.45} parent=5 // pred_fallthru
        _
    $region6: #{vit_forward.45} parent=1 // loop_footer
      %s13 = sadd.s32 1, %s9
    $region7: #{vit_forward.45} parent=1 // loop_footer_branch
      %8 = sbr.rel target = $region3
    $region8: #{vit_forward.45} parent=1 // loop_exit
      _

// kernel: vit_forward.46
$region0: #{vit_forward.46}
  #allocation0 [shape = 'u32[]', space=smem, size = 0x4, offset = 0x4, fixed_abs, tag = 'smem constant byte address 0x4 - core index']
  #allocation1 [shape = 'u32[144,128]{1,0:T(1,128)}', space=vmem, size = 0x12000, scoped, tag = 'internal scratch']
  #allocation2 [shape = 'f32[16,1]{1,0:T(8,128)}', space=vmem, size = 0x2000, scoped, tag = 'scratch operand']
  #allocation3 [shape = 'f32[16,1]{1,0:T(8,128)}', space=vmem, size = 0x2000, scoped, tag = 'scratch operand']
  #allocation4 [shape = 'f32[16,128]{1,0:T(8,128)}', space=vmem, size = 0x2000, scoped, tag = 'scratch operand']
  %s0 = inlined_call_operand.vmem [shape: bf16[2,16,512], index: 0, kind: input, shape index: {}]
  %s1 = inlined_call_operand.vmem [shape: bf16[2,16,1024], index: 1, kind: input, shape index: {}, may-alias: {1,2}]
  %s2 = inlined_call_operand.vmem [shape: bf16[2,16,1024], index: 2, kind: input, shape index: {}, may-alias: {1,2}]
  %s3 = inlined_call_operand.vmem [shape: bf16[2,16,512], index: 3, kind: output, shape index: {}]
  %s4 = sld [smem:[#allocation0]]
  $region213: #{vit_forward.46} parent=0
    _
  %s6 = ssub.s32 1, %s4
  %s7 = scalar_select 0, %s6, %s4
  $region1: #{vit_forward.46} parent=0
    #allocation5 [shape = 'u8[8192]{0}', space=vmem, size = 0x2000, scoped, tag = 'input window, operand 0']
    #allocation6 [shape = 'u8[8192]{0}', space=vmem, size = 0x2000, scoped, tag = 'input window, operand 1']
    #allocation7 [shape = 'u8[8192]{0}', space=vmem, size = 0x2000, scoped, tag = 'input window, operand 2']
    #allocation8 [shape = 'u8[8192]{0}', space=vmem, size = 0x2000, scoped, tag = 'output window, operand 0']
    loop: start=0, step=1, limit=10
    $region2: #{vit_forward.46} parent=1 // loop_pre_header
      _
    $region3: #{vit_forward.46} parent=1 // loop_header
      %s9 = sphi 0, %s13
      %p10 = scmp.ge.s32.totalorder %s9, 10
      %s16 = sphi 0, %s42
      %s17 = sphi 0, %s38
      %s18 = sphi 0, %s34
      %s19 = sphi 0, %s30
      %s20 = sphi 0, %s16
      %s21 = sphi 0, %s17
      %s22 = sphi 0, %s18
      %s23 = sphi 0, %s19
      %s24 = sphi 0, %s20
      %s25 = sphi 0, %s21
      %s26 = sphi 0, %s22
      %s27 = sphi 0, %s23
      %s49 = sphi 0, %s51
      %s52 = sphi 0, %s49
      %s53 = sphi 0, %s52
      %s69 = sphi 0, %s53
      %s79 = sphi 0, %s81
      %s82 = sphi 0, %s79
      %s83 = sphi 0, %s82
      %s99 = sphi 0, %s83
      %s111 = sphi 0, %s113
      %s114 = sphi 0, %s111
      %s115 = sphi 0, %s114
      %s131 = sphi 0, %s115
      %s141 = sphi 0, %s143
      %s144 = sphi 0, %s141
      %s145 = sphi 0, %s144
      %s161 = sphi 0, %s145
    $region4: #{vit_forward.46} parent=1 // loop_header_branch
      %12 = sbr.rel (%p10) target = $region8
    $region5: #{vit_forward.46} parent=1 // loop_body
      %s14 = ssub.s32 %s9, 1
      %s15 = ssub.s32 %s9, 2
      %s28 = sadd.s32 1, %s19
      %p29 = scmp.ge.s32.totalorder %s28, 1
      %s30 = scalar_select %p29, 0, %s28
      %s31 = sadd.s32 1, %s18
      %s32 = scalar_select %p29, %s31, %s18
      %p33 = scmp.ge.s32.totalorder %s32, 1
      %s34 = scalar_select %p33, 0, %s32
      %s35 = sadd.s32 1, %s17
      %s36 = scalar_select %p33, %s35, %s17
      %p37 = scmp.ge.s32.totalorder %s36, 4
      %s38 = scalar_select %p37, 0, %s36
      %s39 = sadd.s32 1, %s16
      %s40 = scalar_select %p37, %s39, %s16
      %p41 = scmp.ge.s32.totalorder %s40, 2
      %s42 = scalar_select %p41, 0, %s40
      %s43 = ssub.s32 %s16, %s42
      %s44 = ssub.s32 %s18, %s34
      %s45 = sor.u32 %s43, %s44
      %s46 = ssub.s32 %s17, %s38
      %s47 = sor.u32 %s45, %s46
      %p48 = scmp.eq.s32.totalorder %s47, 0
      %s50 = sadd.s32 %s49, 1
      %s51 = scalar_select %p48, %s49, %s50
      %p54 = pneg %p48
      %p55 = scmp.eq.s32.totalorder %s9, 7
      %p56 = por %p54, %p55
      %p57 = scmp.ne.s32.totalorder %s49, %s52
      %p58 = scmp.eq.s32.totalorder %s9, 0
      %p59 = por %p57, %p58
      %p60 = scmp.ne.s32.totalorder %s49, %s52
      %p61 = scmp.eq.s32.totalorder %s14, 7
      %p62 = por %p60, %p61
      %p63 = scmp.ne.s32.totalorder %s52, %s53
      %p64 = scmp.eq.s32.totalorder %s14, 0
      %p65 = por %p63, %p64
      %p66 = scmp.ne.s32.totalorder %s52, %s53
      %p67 = scmp.eq.s32.totalorder %s15, 7
      %p68 = por %p66, %p67
      %p70 = scmp.ne.s32.totalorder %s53, %s69
      %p71 = scmp.eq.s32.totalorder %s15, 0
      %p72 = por %p70, %p71
      %s73 = ssub.s32 %s16, %s42
      %s74 = ssub.s32 %s19, %s30
      %s75 = sor.u32 %s73, %s74
      %s76 = ssub.s32 %s17, %s38
      %s77 = sor.u32 %s75, %s76
      %p78 = scmp.eq.s32.totalorder %s77, 0
      %s80 = sadd.s32 %s79, 1
      %s81 = scalar_select %p78, %s79, %s80
      %p84 = pneg %p78
      %p85 = scmp.eq.s32.totalorder %s9, 7
      %p86 = por %p84, %p85
      %p87 = scmp.ne.s32.totalorder %s79, %s82
      %p88 = scmp.eq.s32.totalorder %s9, 0
      %p89 = por %p87, %p88
      %p90 = scmp.ne.s32.totalorder %s79, %s82
      %p91 = scmp.eq.s32.totalorder %s14, 7
      %p92 = por %p90, %p91
      %p93 = scmp.ne.s32.totalorder %s82, %s83
      %p94 = scmp.eq.s32.totalorder %s14, 0
      %p95 = por %p93, %p94
      %p96 = scmp.ne.s32.totalorder %s82, %s83
      %p97 = scmp.eq.s32.totalorder %s15, 7
      %p98 = por %p96, %p97
      %p100 = scmp.ne.s32.totalorder %s83, %s99
      %p101 = scmp.eq.s32.totalorder %s15, 0
      %p102 = por %p100, %p101
      %s103 = sadd.s32 %s17, 4
      %s104 = sadd.s32 %s38, 4
      %s105 = ssub.s32 %s16, %s42
      %s106 = ssub.s32 %s19, %s30
      %s107 = sor.u32 %s105, %s106
      %s108 = ssub.s32 %s103, %s104
      %s109 = sor.u32 %s107, %s108
      %p110 = scmp.eq.s32.totalorder %s109, 0
      %s112 = sadd.s32 %s111, 1
      %s113 = scalar_select %p110, %s111, %s112
      %p116 = pneg %p110
      %p117 = scmp.eq.s32.totalorder %s9, 7
      %p118 = por %p116, %p117
      %p119 = scmp.ne.s32.totalorder %s111, %s114
      %p120 = scmp.eq.s32.totalorder %s9, 0
      %p121 = por %p119, %p120
      %p122 = scmp.ne.s32.totalorder %s111, %s114
      %p123 = scmp.eq.s32.totalorder %s14, 7
      %p124 = por %p122, %p123
      %p125 = scmp.ne.s32.totalorder %s114, %s115
      %p126 = scmp.eq.s32.totalorder %s14, 0
      %p127 = por %p125, %p126
      %p128 = scmp.ne.s32.totalorder %s114, %s115
      %p129 = scmp.eq.s32.totalorder %s15, 7
      %p130 = por %p128, %p129
      %p132 = scmp.ne.s32.totalorder %s115, %s131
      %p133 = scmp.eq.s32.totalorder %s15, 0
      %p134 = por %p132, %p133
      %s135 = ssub.s32 %s16, %s42
      %s136 = ssub.s32 %s18, %s34
      %s137 = sor.u32 %s135, %s136
      %s138 = ssub.s32 %s17, %s38
      %s139 = sor.u32 %s137, %s138
      %p140 = scmp.eq.s32.totalorder %s139, 0
      %s142 = sadd.s32 %s141, 1
      %s143 = scalar_select %p140, %s141, %s142
      %p146 = pneg %p140
      %p147 = scmp.eq.s32.totalorder %s9, 7
      %p148 = por %p146, %p147
      %p149 = scmp.ne.s32.totalorder %s141, %s144
      %p150 = scmp.eq.s32.totalorder %s9, 0
      %p151 = por %p149, %p150
      %p152 = scmp.ne.s32.totalorder %s141, %s144
      %p153 = scmp.eq.s32.totalorder %s14, 7
      %p154 = por %p152, %p153
      %p155 = scmp.ne.s32.totalorder %s144, %s145
      %p156 = scmp.eq.s32.totalorder %s14, 0
      %p157 = por %p155, %p156
      %p158 = scmp.ne.s32.totalorder %s144, %s145
      %p159 = scmp.eq.s32.totalorder %s15, 7
      %p160 = por %p158, %p159
      %p162 = scmp.ne.s32.totalorder %s145, %s161
      %p163 = scmp.eq.s32.totalorder %s15, 0
      %p164 = por %p162, %p163
      %p165 = scmp.le.s32.totalorder 1, %s9
      %p166 = scmp.lt.s32.totalorder %s9, 9
      %p167 = pnand %p165, %p166
      %p168 = pneg %p167
      // Predicated region
      $region9: #{vit_forward.46} parent=5 // pred_check
        _
      $region10: #{vit_forward.46} parent=5 // pred_check_branch
        %170 = sbr.rel (%p167) target = $region12
      $region11: #{vit_forward.46} parent=5 // pred_region
        %s171 = ssub.s32 %s9, 1
      $region12: #{vit_forward.46} parent=5 // pred_fallthru
        _
      %p172 = scmp.lt.s32.totalorder %s9, 8
      // Predicated region
      $region13: #{vit_forward.46} parent=5 // pred_check
        %p173 = pneg %p172
      $region14: #{vit_forward.46} parent=5 // pred_check_branch
        %175 = sbr.rel (%p173) target = $region16
      $region15: #{vit_forward.46} parent=5 // pred_region
        // Predicated region
        $region17: #{vit_forward.46} parent=15 // pred_check
          %p176 = pneg %p59
        $region18: #{vit_forward.46} parent=15 // pred_check_branch
          %178 = sbr.rel (%p176) target = $region20
        $region19: #{vit_forward.46} parent=15 // pred_region
          %s179 = sand.u32 %s49, 1
          %s180 = sand.u32 %s49, 1
          %s181 = smul.addr %s180, 8
          %s182 = scalar_lea.vmem [#allocation5], %s181
          %s183 = smul.u32 2, %s18
          %s184 = smul.addr %s183, 4
          %s185 = sadd.s32 %s17, %s184
          %s186 = smul.addr %s16, 8
          %s187 = sadd.s32 %s185, %s186
          %s188 = smul.addr %s187, 4
          %s189 = scalar_lea.vmem %s0, %s188
          // Predicated region
          $region21: #{vit_forward.46} parent=19 // pred_check
            _
          $region22: #{vit_forward.46} parent=19 // pred_check_branch
            %191 = sbr.rel (0) target = $region24
          $region23: #{vit_forward.46} parent=19 // pred_region
            // Predicated region
            $region25: #{vit_forward.46} parent=23 // pred_check
              _
            $region26: #{vit_forward.46} parent=23 // pred_check_branch
              %193 = sbr.rel target = $region28
            $region27: #{vit_forward.46} parent=23 // pred_region
              // Predicated region
              $region40: #{vit_forward.46} parent=27 // pred_check
                _
              $region41: #{vit_forward.46} parent=27 // pred_check_branch
                %210 = sbr.rel (0) target = $region43
              $region42: #{vit_forward.46} parent=27 // pred_region
                loop: start=0, step=1, limit=1
                $region44: #{vit_forward.46} parent=42 // loop_pre_header
                  _
                $region45: #{vit_forward.46} parent=42 // loop_header
                  %s212 = sphi 0, %s216
                  %p213 = scmp.ge.s32.totalorder %s212, 1
                  %s217 = sphi %s189, %s189
                  %s218 = sphi %s182, %s182
                $region46: #{vit_forward.46} parent=42 // loop_header_branch
                  %215 = sbr.rel (%p213) target = $region50
                $region47: #{vit_forward.46} parent=42 // loop_body
                  _
                $region48: #{vit_forward.46} parent=42 // loop_footer
                  %s216 = sadd.s32 1, %s212
                $region49: #{vit_forward.46} parent=42 // loop_footer_branch
                  %211 = sbr.rel target = $region45
                $region50: #{vit_forward.46} parent=42 // loop_exit
                  _
                loop: start=0, step=1, limit=1
                $region51: #{vit_forward.46} parent=42 // loop_pre_header
                  _
                $region52: #{vit_forward.46} parent=42 // loop_header
                  %s221 = sphi 0, %s225
                  %p222 = scmp.ge.s32.totalorder %s221, 1
                  %s226 = sphi %s189, %s189
                  %s227 = sphi %s182, %s182
                $region53: #{vit_forward.46} parent=42 // loop_header_branch
                  %224 = sbr.rel (%p222) target = $region57
                $region54: #{vit_forward.46} parent=42 // loop_body
                  %v228 = vld [vmem:[%s226] sm:$0xf]
                  %229 = vst [vmem:[%s227] sm:$0xf] %v228
                  %v230 = vld [vmem:[%s226 + $0x10] sm:$0xf]
                  %231 = vst [vmem:[%s227 + $0x4] sm:$0xf] %v230
                $region55: #{vit_forward.46} parent=42 // loop_footer
                  %s225 = sadd.s32 1, %s221
                $region56: #{vit_forward.46} parent=42 // loop_footer_branch
                  %220 = sbr.rel target = $region52
                $region57: #{vit_forward.46} parent=42 // loop_exit
                  _
              $region43: #{vit_forward.46} parent=27 // pred_fallthru
                _
            $region28: #{vit_forward.46} parent=23 // pred_fallthru
              _
            // Predicated region
            $region29: #{vit_forward.46} parent=23 // pred_check
              _
            $region30: #{vit_forward.46} parent=23 // pred_check_branch
              %195 = sbr.rel (0) target = $region32
            $region31: #{vit_forward.46} parent=23 // pred_region
              loop: start=0, step=1, limit=1
              $region33: #{vit_forward.46} parent=31 // loop_pre_header
                _
              $region34: #{vit_forward.46} parent=31 // loop_header
                %s198 = sphi 0, %s202
                %p199 = scmp.ge.s32.totalorder %s198, 1
                %s203 = sphi %s189, %s189
                %s204 = sphi %s182, %s182
              $region35: #{vit_forward.46} parent=31 // loop_header_branch
                %201 = sbr.rel (%p199) target = $region39
              $region36: #{vit_forward.46} parent=31 // loop_body
                %v205 = vld [vmem:[%s203] sm:$0xf]
                %206 = vst [vmem:[%s204] sm:$0xf] %v205
                %v207 = vld [vmem:[%s203 + $0x10] sm:$0xf]
                %208 = vst [vmem:[%s204 + $0x4] sm:$0xf] %v207
              $region37: #{vit_forward.46} parent=31 // loop_footer
                %s202 = sadd.s32 1, %s198
              $region38: #{vit_forward.46} parent=31 // loop_footer_branch
                %197 = sbr.rel target = $region34
              $region39: #{vit_forward.46} parent=31 // loop_exit
                _
            $region32: #{vit_forward.46} parent=23 // pred_fallthru
              _
          $region24: #{vit_forward.46} parent=19 // pred_fallthru
            _
          %232 = vnop
        $region20: #{vit_forward.46} parent=15 // pred_fallthru
          _
        // Predicated region
        $region58: #{vit_forward.46} parent=15 // pred_check
          %p233 = pneg %p89
        $region59: #{vit_forward.46} parent=15 // pred_check_branch
          %235 = sbr.rel (%p233) target = $region61
        $region60: #{vit_forward.46} parent=15 // pred_region
          %s236 = sand.u32 %s79, 1
          %s237 = sand.u32 %s79, 1
          %s238 = smul.addr %s237, 8
          %s239 = scalar_lea.vmem [#allocation6], %s238
          %s240 = smul.u32 2, %s19
          %s241 = smul.addr %s240, 8
          %s242 = sadd.s32 %s17, %s241
          %s243 = smul.addr %s16, 16
          %s244 = sadd.s32 %s242, %s243
          %s245 = smul.addr %s244, 4
          %s246 = scalar_lea.vmem %s1, %s245
          // Predicated region
          $region62: #{vit_forward.46} parent=60 // pred_check
            _
          $region63: #{vit_forward.46} parent=60 // pred_check_branch
            %248 = sbr.rel (0) target = $region65
          $region64: #{vit_forward.46} parent=60 // pred_region
            // Predicated region
            $region66: #{vit_forward.46} parent=64 // pred_check
              _
            $region67: #{vit_forward.46} parent=64 // pred_check_branch
              %250 = sbr.rel target = $region69
            $region68: #{vit_forward.46} parent=64 // pred_region
              // Predicated region
              $region81: #{vit_forward.46} parent=68 // pred_check
                _
              $region82: #{vit_forward.46} parent=68 // pred_check_branch
                %267 = sbr.rel (0) target = $region84
              $region83: #{vit_forward.46} parent=68 // pred_region
                loop: start=0, step=1, limit=1
                $region85: #{vit_forward.46} parent=83 // loop_pre_header
                  _
                $region86: #{vit_forward.46} parent=83 // loop_header
                  %s269 = sphi 0, %s273
                  %p270 = scmp.ge.s32.totalorder %s269, 1
                  %s274 = sphi %s246, %s246
                  %s275 = sphi %s239, %s239
                $region87: #{vit_forward.46} parent=83 // loop_header_branch
                  %272 = sbr.rel (%p270) target = $region91
                $region88: #{vit_forward.46} parent=83 // loop_body
                  _
                $region89: #{vit_forward.46} parent=83 // loop_footer
                  %s273 = sadd.s32 1, %s269
                $region90: #{vit_forward.46} parent=83 // loop_footer_branch
                  %268 = sbr.rel target = $region86
                $region91: #{vit_forward.46} parent=83 // loop_exit
                  _
                loop: start=0, step=1, limit=1
                $region92: #{vit_forward.46} parent=83 // loop_pre_header
                  _
                $region93: #{vit_forward.46} parent=83 // loop_header
                  %s278 = sphi 0, %s282
                  %p279 = scmp.ge.s32.totalorder %s278, 1
                  %s283 = sphi %s246, %s246
                  %s284 = sphi %s239, %s239
                $region94: #{vit_forward.46} parent=83 // loop_header_branch
                  %281 = sbr.rel (%p279) target = $region98
                $region95: #{vit_forward.46} parent=83 // loop_body
                  %v285 = vld [vmem:[%s283] sm:$0xf]
                  %286 = vst [vmem:[%s284] sm:$0xf] %v285
                  %v287 = vld [vmem:[%s283 + $0x20] sm:$0xf]
                  %288 = vst [vmem:[%s284 + $0x4] sm:$0xf] %v287
                $region96: #{vit_forward.46} parent=83 // loop_footer
                  %s282 = sadd.s32 1, %s278
                $region97: #{vit_forward.46} parent=83 // loop_footer_branch
                  %277 = sbr.rel target = $region93
                $region98: #{vit_forward.46} parent=83 // loop_exit
                  _
              $region84: #{vit_forward.46} parent=68 // pred_fallthru
                _
            $region69: #{vit_forward.46} parent=64 // pred_fallthru
              _
            // Predicated region
            $region70: #{vit_forward.46} parent=64 // pred_check
              _
            $region71: #{vit_forward.46} parent=64 // pred_check_branch
              %252 = sbr.rel (0) target = $region73
            $region72: #{vit_forward.46} parent=64 // pred_region
              loop: start=0, step=1, limit=1
              $region74: #{vit_forward.46} parent=72 // loop_pre_header
                _
              $region75: #{vit_forward.46} parent=72 // loop_header
                %s255 = sphi 0, %s259
                %p256 = scmp.ge.s32.totalorder %s255, 1
                %s260 = sphi %s246, %s246
                %s261 = sphi %s239, %s239
              $region76: #{vit_forward.46} parent=72 // loop_header_branch
                %258 = sbr.rel (%p256) target = $region80
              $region77: #{vit_forward.46} parent=72 // loop_body
                %v262 = vld [vmem:[%s260] sm:$0xf]
                %263 = vst [vmem:[%s261] sm:$0xf] %v262
                %v264 = vld [vmem:[%s260 + $0x20] sm:$0xf]
                %265 = vst [vmem:[%s261 + $0x4] sm:$0xf] %v264
              $region78: #{vit_forward.46} parent=72 // loop_footer
                %s259 = sadd.s32 1, %s255
              $region79: #{vit_forward.46} parent=72 // loop_footer_branch
                %254 = sbr.rel target = $region75
              $region80: #{vit_forward.46} parent=72 // loop_exit
                _
            $region73: #{vit_forward.46} parent=64 // pred_fallthru
              _
          $region65: #{vit_forward.46} parent=60 // pred_fallthru
            _
          %289 = vnop
        $region61: #{vit_forward.46} parent=15 // pred_fallthru
          _
        // Predicated region
        $region99: #{vit_forward.46} parent=15 // pred_check
          %p290 = pneg %p121
        $region100: #{vit_forward.46} parent=15 // pred_check_branch
          %292 = sbr.rel (%p290) target = $region102
        $region101: #{vit_forward.46} parent=15 // pred_region
          %s293 = sand.u32 %s111, 1
          %s294 = sand.u32 %s111, 1
          %s295 = smul.addr %s294, 8
          %s296 = scalar_lea.vmem [#allocation7], %s295
          %s297 = sadd.s32 %s17, 4
          %s298 = smul.u32 2, %s19
          %s299 = smul.addr %s298, 8
          %s300 = sadd.s32 %s297, %s299
          %s301 = smul.addr %s16, 16
          %s302 = sadd.s32 %s300, %s301
          %s303 = smul.addr %s302, 4
          %s304 = scalar_lea.vmem %s2, %s303
          // Predicated region
          $region103: #{vit_forward.46} parent=101 // pred_check
            _
          $region104: #{vit_forward.46} parent=101 // pred_check_branch
            %306 = sbr.rel (0) target = $region106
          $region105: #{vit_forward.46} parent=101 // pred_region
            // Predicated region
            $region107: #{vit_forward.46} parent=105 // pred_check
              _
            $region108: #{vit_forward.46} parent=105 // pred_check_branch
              %308 = sbr.rel target = $region110
            $region109: #{vit_forward.46} parent=105 // pred_region
              // Predicated region
              $region122: #{vit_forward.46} parent=109 // pred_check
                _
              $region123: #{vit_forward.46} parent=109 // pred_check_branch
                %325 = sbr.rel (0) target = $region125
              $region124: #{vit_forward.46} parent=109 // pred_region
                loop: start=0, step=1, limit=1
                $region126: #{vit_forward.46} parent=124 // loop_pre_header
                  _
                $region127: #{vit_forward.46} parent=124 // loop_header
                  %s327 = sphi 0, %s331
                  %p328 = scmp.ge.s32.totalorder %s327, 1
                  %s332 = sphi %s304, %s304
                  %s333 = sphi %s296, %s296
                $region128: #{vit_forward.46} parent=124 // loop_header_branch
                  %330 = sbr.rel (%p328) target = $region132
                $region129: #{vit_forward.46} parent=124 // loop_body
                  _
                $region130: #{vit_forward.46} parent=124 // loop_footer
                  %s331 = sadd.s32 1, %s327
                $region131: #{vit_forward.46} parent=124 // loop_footer_branch
                  %326 = sbr.rel target = $region127
                $region132: #{vit_forward.46} parent=124 // loop_exit
                  _
                loop: start=0, step=1, limit=1
                $region133: #{vit_forward.46} parent=124 // loop_pre_header
                  _
                $region134: #{vit_forward.46} parent=124 // loop_header
                  %s336 = sphi 0, %s340
                  %p337 = scmp.ge.s32.totalorder %s336, 1
                  %s341 = sphi %s304, %s304
                  %s342 = sphi %s296, %s296
                $region135: #{vit_forward.46} parent=124 // loop_header_branch
                  %339 = sbr.rel (%p337) target = $region139
                $region136: #{vit_forward.46} parent=124 // loop_body
                  %v343 = vld [vmem:[%s341] sm:$0xf]
                  %344 = vst [vmem:[%s342] sm:$0xf] %v343
                  %v345 = vld [vmem:[%s341 + $0x20] sm:$0xf]
                  %346 = vst [vmem:[%s342 + $0x4] sm:$0xf] %v345
                $region137: #{vit_forward.46} parent=124 // loop_footer
                  %s340 = sadd.s32 1, %s336
                $region138: #{vit_forward.46} parent=124 // loop_footer_branch
                  %335 = sbr.rel target = $region134
                $region139: #{vit_forward.46} parent=124 // loop_exit
                  _
              $region125: #{vit_forward.46} parent=109 // pred_fallthru
                _
            $region110: #{vit_forward.46} parent=105 // pred_fallthru
              _
            // Predicated region
            $region111: #{vit_forward.46} parent=105 // pred_check
              _
            $region112: #{vit_forward.46} parent=105 // pred_check_branch
              %310 = sbr.rel (0) target = $region114
            $region113: #{vit_forward.46} parent=105 // pred_region
              loop: start=0, step=1, limit=1
              $region115: #{vit_forward.46} parent=113 // loop_pre_header
                _
              $region116: #{vit_forward.46} parent=113 // loop_header
                %s313 = sphi 0, %s317
                %p314 = scmp.ge.s32.totalorder %s313, 1
                %s318 = sphi %s304, %s304
                %s319 = sphi %s296, %s296
              $region117: #{vit_forward.46} parent=113 // loop_header_branch
                %316 = sbr.rel (%p314) target = $region121
              $region118: #{vit_forward.46} parent=113 // loop_body
                %v320 = vld [vmem:[%s318] sm:$0xf]
                %321 = vst [vmem:[%s319] sm:$0xf] %v320
                %v322 = vld [vmem:[%s318 + $0x20] sm:$0xf]
                %323 = vst [vmem:[%s319 + $0x4] sm:$0xf] %v322
              $region119: #{vit_forward.46} parent=113 // loop_footer
                %s317 = sadd.s32 1, %s313
              $region120: #{vit_forward.46} parent=113 // loop_footer_branch
                %312 = sbr.rel target = $region116
              $region121: #{vit_forward.46} parent=113 // loop_exit
                _
            $region114: #{vit_forward.46} parent=105 // pred_fallthru
              _
          $region106: #{vit_forward.46} parent=101 // pred_fallthru
            _
          %347 = vnop
        $region102: #{vit_forward.46} parent=15 // pred_fallthru
          _
      $region16: #{vit_forward.46} parent=5 // pred_fallthru
        _
      %p348 = scmp.le.s32.totalorder 1, %s9
      %p349 = scmp.lt.s32.totalorder %s9, 9
      %p350 = pnand %p348, %p349
      %p351 = pneg %p350
      // Predicated region
      $region140: #{vit_forward.46} parent=5 // pred_check
        _
      $region141: #{vit_forward.46} parent=5 // pred_check_branch
        %353 = sbr.rel (%p350) target = $region143
      $region142: #{vit_forward.46} parent=5 // pred_region
        %s354 = ssub.s32 %s9, 1
        %s355 = sand.u32 %s52, 1
        %s356 = sand.u32 %s52, 1
        %s357 = smul.addr %s356, 8
        %s358 = scalar_lea.vmem [#allocation5], %s357
        // Predicated region
        $region144: #{vit_forward.46} parent=142 // pred_check
          %p359 = pneg %p65
        $region145: #{vit_forward.46} parent=142 // pred_check_branch
          %361 = sbr.rel (%p359) target = $region147
        $region146: #{vit_forward.46} parent=142 // pred_region
          _
        $region147: #{vit_forward.46} parent=142 // pred_fallthru
          _
        %s362 = sand.u32 %s82, 1
        %s363 = sand.u32 %s82, 1
        %s364 = smul.addr %s363, 8
        %s365 = scalar_lea.vmem [#allocation6], %s364
        // Predicated region
        $region148: #{vit_forward.46} parent=142 // pred_check
          %p366 = pneg %p95
        $region149: #{vit_forward.46} parent=142 // pred_check_branch
          %368 = sbr.rel (%p366) target = $region151
        $region150: #{vit_forward.46} parent=142 // pred_region
          _
        $region151: #{vit_forward.46} parent=142 // pred_fallthru
          _
        %s369 = sand.u32 %s114, 1
        %s370 = sand.u32 %s114, 1
        %s371 = smul.addr %s370, 8
        %s372 = scalar_lea.vmem [#allocation7], %s371
        // Predicated region
        $region152: #{vit_forward.46} parent=142 // pred_check
          %p373 = pneg %p127
        $region153: #{vit_forward.46} parent=142 // pred_check_branch
          %375 = sbr.rel (%p373) target = $region155
        $region154: #{vit_forward.46} parent=142 // pred_region
          _
        $region155: #{vit_forward.46} parent=142 // pred_fallthru
          _
        %s376 = sand.u32 %s52, 1
        %s377 = sand.u32 %s52, 1
        %s378 = smul.addr %s377, 8
        %s379 = scalar_lea.vmem [#allocation5], %s378
        %p380 = pneg %p65
        %p381 = pneg %p62
        %s382 = sand.u32 %s82, 1
        %s383 = sand.u32 %s82, 1
        %s384 = smul.addr %s383, 8
        %s385 = scalar_lea.vmem [#allocation6], %s384
        %p386 = pneg %p95
        %p387 = pneg %p92
        %s388 = sand.u32 %s114, 1
        %s389 = sand.u32 %s114, 1
        %s390 = smul.addr %s389, 8
        %s391 = scalar_lea.vmem [#allocation7], %s390
        %p392 = pneg %p127
        %p393 = pneg %p124
        %p394 = pneg %p157
        %p395 = pneg %p154
        %s396 = sand.u32 %s144, 1
        %s397 = sand.u32 %s144, 1
        %s398 = smul.addr %s397, 8
        %s399 = scalar_lea.vmem [#allocation8], %s398
        %s400 = smul.u32 2, %s22
        %s401 = smul.u32 2, %s23
        %s402 = sadd.s32 %s21, 4
        %s403 = smul.u32 2, %s23
        %s404 = smul.u32 2, %s22
        %p406 = scmp.eq.s32.totalorder %s23, 0
        // Predicated region
        $region156: #{vit_forward.46} parent=142 // pred_check
          %p407 = pneg %p406
        $region157: #{vit_forward.46} parent=142 // pred_check_branch
          %409 = sbr.rel (%p407) target = $region159
        $region158: #{vit_forward.46} parent=142 // pred_region
          %vm410 = vcmask 7168
          %411 = vst.msk [vmem:[#allocation2] sm:$0xff] %vm410, -1e+30
          %412 = vst.msk [vmem:[#allocation2 + $0x8] sm:$0xff] %vm410, -1e+30
          %413 = vst.msk [vmem:[#allocation3] sm:$0xff] %vm410, 0.0
          %414 = vst.msk [vmem:[#allocation3 + $0x8] sm:$0xff] %vm410, 0.0
          %415 = vst [vmem:[#allocation4] sm:$0xff] 0.0
          %416 = vst [vmem:[#allocation4 + $0x8] sm:$0xff] 0.0
        $region159: #{vit_forward.46} parent=142 // pred_fallthru
          _
        %v417 = vld [vmem:[%s358] sm:$0xf]
        %v418 = vld [vmem:[%s358 + $0x4] sm:$0xf]
        %v419 = vld [vmem:[%s365] sm:$0xf]
        %v420 = vld [vmem:[%s365 + $0x4] sm:$0xf]
        %v421 = vld [vmem:[%s372] sm:$0xf]
        %v422 = vld [vmem:[%s372 + $0x4] sm:$0xf]
        %v425 = vunpack.c.l.b16 %v417
        %v426 = vunpack.c.l.b16 %v418
        %v427 = vpack.c.b16 %v426, %v425
        %v431 = vunpack.c.l.b16 %v419
        %v432 = vunpack.c.l.b16 %v420
        %v433 = vpack.c.b16 %v432, %v431
        %435 = vmatprep.subr.bf16.mxu0 0
        %436 = vmatpush1.bf16.xpose.msra.mxu0 %v433
        %437 = vmatprep.subr.bf16.mxu0 0
        %438 = vmatpush1.bf16.xpose.msra.mxu0 0
        %439 = vmatprep.subr.bf16.mxu0 0
        %440 = vmatpush1.bf16.xpose.msra.mxu0 0
        %441 = vmatprep.subr.bf16.mxu0 0
        %442 = vmatpush1.bf16.xpose.msra.mxu0 0
        %443 = vmatprep.subr.bf16.mxu0 0
        %444 = vmatpush1.bf16.xpose.msra.mxu0 0
        %445 = vmatprep.subr.bf16.mxu0 0
        %446 = vmatpush1.bf16.xpose.msra.mxu0 0
        %447 = vmatprep.subr.bf16.mxu0 0
        %448 = vmatpush1.bf16.xpose.msra.mxu0 0
        %449 = vmatprep.subr.bf16.mxu0 0
        %450 = vmatpush1.bf16.xpose.msra.mxu0 0
        %451 = vmatprep.subr.bf16.mxu0 0
        %452 = vmatpush1.bf16.xpose.msra.mxu0 0
        %453 = vmatprep.subr.bf16.mxu0 0
        %454 = vmatpush1.bf16.xpose.msra.mxu0 0
        %455 = vmatprep.subr.bf16.mxu0 0
        %456 = vmatpush1.bf16.xpose.msra.mxu0 0
        %457 = vmatprep.subr.bf16.mxu0 0
        %458 = vmatpush1.bf16.xpose.msra.mxu0 0
        %459 = vmatprep.subr.bf16.mxu0 0
        %460 = vmatpush1.bf16.xpose.msra.mxu0 0
        %461 = vmatprep.subr.bf16.mxu0 0
        %462 = vmatpush1.bf16.xpose.msra.mxu0 0
        %463 = vmatprep.subr.bf16.mxu0 0
        %464 = vmatpush1.bf16.xpose.msra.mxu0 0
        %465 = vmatprep.subr.bf16.mxu0 0
        %466 = vmatpush1.bf16.xpose.msra.mxu0 0
        %467 = vmatprep.mubr.bf16.mxu0 0
        %468 = vmatmul.mubr.bf16.gmra.mrb[0].mxu0 %v427
        %v469 = vpop.f32.mrb[0].mxu0
        %v470 = vadd.f32 0.0, %v469
        %v471 = vpop.f32.mrb[0].mxu0
        %v472 = vpop.f32.mrb[0].mxu0
        %v473 = vadd.f32 0.0, %v472
        %v474 = vpop.f32.mrb[0].mxu0
        %475 = vdwg.mxu0
        %v476 = vmul.f32 %v470, 0.35355338
        %v477 = vmul.f32 %v473, 0.35355338
        %s478 = smul.u32 %s23, 16
        %v479 = vlaneseq
        %v480 = vand.u32 %v479, 127
        %v481 = vstv %s478
        %v482 = vadd.s32 %v481, %v480
        %vm483 = vcmp.lt.s32.totalorder %v482, 5
        %v484 = vsel %vm483, %v476, -1e+30
        %v485 = vsel %vm483, %v477, -1e+30
        %v486 = vld [vmem:[#allocation2] sm:$0xff]
        %v487 = vld [vmem:[#allocation2 + $0x8] sm:$0xff]
        %vm488 = vcmask 130048
        %v489 = vsel %vm488, %v484, -inf
        %490 = vmax.xlane.f32.xlu0 %v489
        %v491 = vpop.xlane.xlu0 %490
        %v492 = vsel %vm488, %v485, -inf
        %493 = vmax.xlane.f32.xlu0 %v492
        %v494 = vpop.xlane.xlu0 %493
        %v495 = vmax.f32 %v486, %v491
        %v496 = vmax.f32 %v487, %v494
        %v497 = vsub.f32 %v486, %v495
        %v498 = vsub.f32 %v487, %v496
        %v499 = vmul.f32 %v497, 1.442695
        %v500 = vpow.pop %v499
        %v501 = vmul.f32 %v498, 1.442695
        %v502 = vpow.pop %v501
        %504 = vset.pattern.permute.xlu0 0
        %505 = vperm.xlu0 %504, %v495
        %v506 = vpop.permute.xlu0 %505
        %509 = vset.pattern.permute.xlu0 0
        %510 = vperm.xlu0 %509, %v496
        %v511 = vpop.permute.xlu0 %510
        %v513 = vsub.f32 %v484, %v506
        %v514 = vsub.f32 %v485, %v511
        %v515 = vmul.f32 %v513, 1.442695
        %v516 = vpow.pop %v515
        %v517 = vmul.f32 %v514, 1.442695
        %v518 = vpow.pop %v517
        %v519 = vld [vmem:[#allocation3] sm:$0xff]
        %v520 = vld [vmem:[#allocation3 + $0x8] sm:$0xff]
        %v521 = vmul.f32 %v500, %v519
        %v522 = vmul.f32 %v502, %v520
        %v523 = vsel %vm488, %v516, 0.0
        %524 = vadd.xlane.f32.xlu0 %v523
        %v525 = vpop.xlane.xlu0 %524
        %v526 = vsel %vm488, %v518, 0.0
        %527 = vadd.xlane.f32.xlu0 %v526
        %v528 = vpop.xlane.xlu0 %527
        %v529 = vadd.f32 %v521, %v525
        %v530 = vadd.f32 %v522, %v528
        %vm531 = vcmask 7168
        %532 = vst.msk [vmem:[#allocation3] sm:$0xff] %vm531, %v529
        %533 = vst.msk [vmem:[#allocation3 + $0x8] sm:$0xff] %vm531, %v530
        %v534 = vld [vmem:[#allocation4] sm:$0xff]
        %v535 = vld [vmem:[#allocation4 + $0x8] sm:$0xff]
        %537 = vset.pattern.permute.xlu0 0
        %538 = vperm.xlu0 %537, %v500
        %v539 = vpop.permute.xlu0 %538
        %542 = vset.pattern.permute.xlu0 0
        %543 = vperm.xlu0 %542, %v502
        %v544 = vpop.permute.xlu0 %543
        %v546 = vmul.f32 %v539, %v534
        %v547 = vmul.f32 %v544, %v535
        %v548 = vpack.c.bf16 %v518, %v516
        %v551 = vunpack.c.l.b16 %v421
        %v552 = vunpack.c.l.b16 %v422
        %v553 = vpack.c.b16 %v552, %v551
        %v556 = vsel %vm488, %v548, 0
        %558 = vmatprep.subr.bf16.mxu0 0
        %559 = vmatpush1.bf16.msra.mxu0 %v553
        %560 = vmatprep.subr.bf16.mxu0 0
        %561 = vmatpush1.bf16.msra.mxu0 0
        %562 = vmatprep.subr.bf16.mxu0 0
        %563 = vmatpush1.bf16.msra.mxu0 0
        %564 = vmatprep.subr.bf16.mxu0 0
        %565 = vmatpush1.bf16.msra.mxu0 0
        %566 = vmatprep.subr.bf16.mxu0 0
        %567 = vmatpush1.bf16.msra.mxu0 0
        %568 = vmatprep.subr.bf16.mxu0 0
        %569 = vmatpush1.bf16.msra.mxu0 0
        %570 = vmatprep.subr.bf16.mxu0 0
        %571 = vmatpush1.bf16.msra.mxu0 0
        %572 = vmatprep.subr.bf16.mxu0 0
        %573 = vmatpush1.bf16.msra.mxu0 0
        %574 = vmatprep.subr.bf16.mxu0 0
        %575 = vmatpush1.bf16.msra.mxu0 0
        %576 = vmatprep.subr.bf16.mxu0 0
        %577 = vmatpush1.bf16.msra.mxu0 0
        %578 = vmatprep.subr.bf16.mxu0 0
        %579 = vmatpush1.bf16.msra.mxu0 0
        %580 = vmatprep.subr.bf16.mxu0 0
        %581 = vmatpush1.bf16.msra.mxu0 0
        %582 = vmatprep.subr.bf16.mxu0 0
        %583 = vmatpush1.bf16.msra.mxu0 0
        %584 = vmatprep.subr.bf16.mxu0 0
        %585 = vmatpush1.bf16.msra.mxu0 0
        %586 = vmatprep.subr.bf16.mxu0 0
        %587 = vmatpush1.bf16.msra.mxu0 0
        %588 = vmatprep.subr.bf16.mxu0 0
        %589 = vmatpush1.bf16.msra.mxu0 0
        %590 = vmatprep.mubr.bf16.mxu0 0
        %591 = vmatmul.mubr.bf16.gmra.mrb[0].mxu0 %v556
        %v592 = vpop.f32.mrb[0].mxu0
        %v593 = vadd.f32 0.0, %v592
        %v594 = vpop.f32.mrb[0].mxu0
        %v595 = vpop.f32.mrb[0].mxu0
        %v596 = vadd.f32 0.0, %v595
        %v597 = vpop.f32.mrb[0].mxu0
        %598 = vdwg.mxu0
        %v599 = vadd.f32 %v546, %v593
        %v600 = vadd.f32 %v547, %v596
        %601 = vst [vmem:[#allocation4] sm:$0xff] %v599
        %602 = vst [vmem:[#allocation4 + $0x8] sm:$0xff] %v600
        %603 = vst.msk [vmem:[#allocation2] sm:$0xff] %vm531, %v495
        %604 = vst.msk [vmem:[#allocation2 + $0x8] sm:$0xff] %vm531, %v496
        // Predicated region
        $region160: #{vit_forward.46} parent=142 // pred_check
          %p605 = pneg %p406
        $region161: #{vit_forward.46} parent=142 // pred_check_branch
          %607 = sbr.rel (%p605) target = $region163
        $region162: #{vit_forward.46} parent=142 // pred_region
          %v608 = vld [vmem:[#allocation4] sm:$0xff]
          %v609 = vld [vmem:[#allocation4 + $0x8] sm:$0xff]
          %v610 = vld [vmem:[#allocation3] sm:$0xff]
          %v611 = vld [vmem:[#allocation3 + $0x8] sm:$0xff]
          %v612 = vrcp.pop %v610
          %v613 = vrcp.pop %v611
          %615 = vset.pattern.permute.xlu0 0
          %616 = vperm.xlu0 %615, %v612
          %v617 = vpop.permute.xlu0 %616
          %620 = vset.pattern.permute.xlu0 0
          %621 = vperm.xlu0 %620, %v613
          %v622 = vpop.permute.xlu0 %621
          %v624 = vmul.f32 %v608, %v617
          %v625 = vmul.f32 %v609, %v622
          %v626 = vpack.c.bf16 %v625, %v624
          %v628 = vunpack.c.l.b16 %v626
          %v629 = vunpack.c.h.b16 %v626
          %v630 = vpack.c.b16 %v628, %v628
          %v631 = vpack.c.b16 %v629, %v629
          %634 = vst [vmem:[%s399] sm:$0xf] %v630
          %635 = vst [vmem:[%s399 + $0x4] sm:$0xf] %v631
        $region163: #{vit_forward.46} parent=142 // pred_fallthru
          _
        %s636 = sand.u32 %s144, 1
        %s637 = sand.u32 %s144, 1
        %s638 = smul.addr %s637, 8
        %s639 = scalar_lea.vmem [#allocation8], %s638
        // Predicated region
        $region164: #{vit_forward.46} parent=142 // pred_check
          %p640 = pneg %p154
        $region165: #{vit_forward.46} parent=142 // pred_check_branch
          %642 = sbr.rel (%p640) target = $region167
        $region166: #{vit_forward.46} parent=142 // pred_region
          %s643 = smul.u32 2, %s22
          %s644 = smul.addr %s643, 4
          %s645 = sadd.s32 %s21, %s644
          %s646 = smul.addr %s20, 8
          %s647 = sadd.s32 %s645, %s646
          %s648 = smul.addr %s647, 4
          %s649 = scalar_lea.vmem %s3, %s648
          // Predicated region
          $region168: #{vit_forward.46} parent=166 // pred_check
            _
          $region169: #{vit_forward.46} parent=166 // pred_check_branch
            %651 = sbr.rel (0) target = $region171
          $region170: #{vit_forward.46} parent=166 // pred_region
            // Predicated region
            $region172: #{vit_forward.46} parent=170 // pred_check
              _
            $region173: #{vit_forward.46} parent=170 // pred_check_branch
              %653 = sbr.rel target = $region175
            $region174: #{vit_forward.46} parent=170 // pred_region
              // Predicated region
              $region187: #{vit_forward.46} parent=174 // pred_check
                _
              $region188: #{vit_forward.46} parent=174 // pred_check_branch
                %670 = sbr.rel (0) target = $region190
              $region189: #{vit_forward.46} parent=174 // pred_region
                loop: start=0, step=1, limit=1
                $region191: #{vit_forward.46} parent=189 // loop_pre_header
                  _
                $region192: #{vit_forward.46} parent=189 // loop_header
                  %s672 = sphi 0, %s676
                  %p673 = scmp.ge.s32.totalorder %s672, 1
                  %s677 = sphi %s639, %s639
                  %s678 = sphi %s649, %s649
                $region193: #{vit_forward.46} parent=189 // loop_header_branch
                  %675 = sbr.rel (%p673) target = $region197
                $region194: #{vit_forward.46} parent=189 // loop_body
                  _
                $region195: #{vit_forward.46} parent=189 // loop_footer
                  %s676 = sadd.s32 1, %s672
                $region196: #{vit_forward.46} parent=189 // loop_footer_branch
                  %671 = sbr.rel target = $region192
                $region197: #{vit_forward.46} parent=189 // loop_exit
                  _
                loop: start=0, step=1, limit=1
                $region198: #{vit_forward.46} parent=189 // loop_pre_header
                  _
                $region199: #{vit_forward.46} parent=189 // loop_header
                  %s681 = sphi 0, %s685
                  %p682 = scmp.ge.s32.totalorder %s681, 1
                  %s686 = sphi %s639, %s639
                  %s687 = sphi %s649, %s649
                $region200: #{vit_forward.46} parent=189 // loop_header_branch
                  %684 = sbr.rel (%p682) target = $region204
                $region201: #{vit_forward.46} parent=189 // loop_body
                  %v688 = vld [vmem:[%s686] sm:$0xf]
                  %689 = vst [vmem:[%s687] sm:$0xf] %v688
                  %v690 = vld [vmem:[%s686 + $0x4] sm:$0xf]
                  %691 = vst [vmem:[%s687 + $0x10] sm:$0xf] %v690
                $region202: #{vit_forward.46} parent=189 // loop_footer
                  %s685 = sadd.s32 1, %s681
                $region203: #{vit_forward.46} parent=189 // loop_footer_branch
                  %680 = sbr.rel target = $region199
                $region204: #{vit_forward.46} parent=189 // loop_exit
                  _
              $region190: #{vit_forward.46} parent=174 // pred_fallthru
                _
            $region175: #{vit_forward.46} parent=170 // pred_fallthru
              _
            // Predicated region
            $region176: #{vit_forward.46} parent=170 // pred_check
              _
            $region177: #{vit_forward.46} parent=170 // pred_check_branch
              %655 = sbr.rel (0) target = $region179
            $region178: #{vit_forward.46} parent=170 // pred_region
              loop: start=0, step=1, limit=1
              $region180: #{vit_forward.46} parent=178 // loop_pre_header
                _
              $region181: #{vit_forward.46} parent=178 // loop_header
                %s658 = sphi 0, %s662
                %p659 = scmp.ge.s32.totalorder %s658, 1
                %s663 = sphi %s639, %s639
                %s664 = sphi %s649, %s649
              $region182: #{vit_forward.46} parent=178 // loop_header_branch
                %661 = sbr.rel (%p659) target = $region186
              $region183: #{vit_forward.46} parent=178 // loop_body
                %v665 = vld [vmem:[%s663] sm:$0xf]
                %666 = vst [vmem:[%s664] sm:$0xf] %v665
                %v667 = vld [vmem:[%s663 + $0x4] sm:$0xf]
                %668 = vst [vmem:[%s664 + $0x10] sm:$0xf] %v667
              $region184: #{vit_forward.46} parent=178 // loop_footer
                %s662 = sadd.s32 1, %s658
              $region185: #{vit_forward.46} parent=178 // loop_footer_branch
                %657 = sbr.rel target = $region181
              $region186: #{vit_forward.46} parent=178 // loop_exit
                _
            $region179: #{vit_forward.46} parent=170 // pred_fallthru
              _
          $region171: #{vit_forward.46} parent=166 // pred_fallthru
            _
          %692 = vnop
        $region167: #{vit_forward.46} parent=142 // pred_fallthru
          _
      $region143: #{vit_forward.46} parent=5 // pred_fallthru
        _
      %p693 = scmp.le.s32.totalorder 2, %s9
      // Predicated region
      $region205: #{vit_forward.46} parent=5 // pred_check
        %p694 = pneg %p693
      $region206: #{vit_forward.46} parent=5 // pred_check_branch
        %696 = sbr.rel (%p694) target = $region208
      $region207: #{vit_forward.46} parent=5 // pred_region
        %s697 = ssub.s32 %s9, 2
        // Predicated region
        $region209: #{vit_forward.46} parent=207 // pred_check
          %p698 = pneg %p160
        $region210: #{vit_forward.46} parent=207 // pred_check_branch
          %700 = sbr.rel (%p698) target = $region212
        $region211: #{vit_forward.46} parent=207 // pred_region
          %s701 = sand.u32 %s145, 1
          %s702 = sand.u32 %s145, 1
          %s703 = smul.addr %s702, 8
          %s704 = scalar_lea.vmem [#allocation8], %s703
        $region212: #{vit_forward.46} parent=207 // pred_fallthru
          _
      $region208: #{vit_forward.46} parent=5 // pred_fallthru
        _
    $region6: #{vit_forward.46} parent=1 // loop_footer
      %s13 = sadd.s32 1, %s9
    $region7: #{vit_forward.46} parent=1 // loop_footer_branch
      %8 = sbr.rel target = $region3
    $region8: #{vit_forward.46} parent=1 // loop_exit
      _

</llo_original>
